<compile_context>
chip_gen: v5e
topology: v5e:2x2
jax: 0.10.0
libtpu: 0.0.40
codegen_flags: <defaults>
</compile_context>

<pallas_src>
import numpy as np
import jax
import jax.numpy as jnp
from jax.experimental import pallas as pl
from jax.experimental.pallas import tpu as pltpu

NEG_SLOPE = 0.01   # nn.LeakyReLU default negative_slope
BN_EPS = 1e-5

# width-grouped weight slabs: small/early slabs go straight to VMEM, big/late
# slabs are staged manually so their DMA overlaps early compute.
_VMEM_WIDTHS = (128, 512, 768)
_ANY_WIDTHS = (1280, 256, 384, 896)          # in order of first use in the kernel
_LAYER_ORDER = ('rot', 'deep', 'rb1m1', 'rb1m1x2', 'rb1m2', 'rb1m2x2', 'shrink1',
                'rb2m1', 'rb2m1x2', 'rb2m2', 'rb2m2x2', 'shrink2', 'head')


def _rup(n, m):
    return ((n + m - 1) // m) * m


def _conv_dense(wb, H, W, stride, pad):
    """PyTorch conv [Cout,Cin,kh,kw] -> dense matmul on the flattened NHWC map."""
    w, b = (np.asarray(t, np.float32) for t in wb)
    Cout, Cin, kh, kw = w.shape
    Ho = (H + 2 * pad - kh) // stride + 1
    Wo = (W + 2 * pad - kw) // stride + 1
    M = np.zeros((H * W * Cin, Ho * Wo * Cout), np.float32)
    for ho in range(Ho):
        for wo in range(Wo):
            col0 = (ho * Wo + wo) * Cout
            for ki in range(kh):
                hi = ho * stride - pad + ki
                if hi < 0 or hi >= H:
                    continue
                for kj in range(kw):
                    wi = wo * stride - pad + kj
                    if wi < 0 or wi >= W:
                        continue
                    row0 = (hi * W + wi) * Cin
                    M[row0:row0 + Cin, col0:col0 + Cout] += w[:, :, ki, kj].T
    return M, np.tile(b, Ho * Wo), Ho, Wo


# ---------------------------------------------------------------------------
# One-time parameter preprocessing: fold / merge / pad / pack.
# ---------------------------------------------------------------------------
def preprocess_params(raw):
    """Returns (params, meta).
    params = (f32 bias panel, bf16 VMEM slabs..., bf16 staged slabs...)."""
    dense = {}   # name -> (M [Kpad, Npad] f32, b [Npad] f32, split or None)

    def pad_cols(M, b, Np):
        Mo = np.zeros((M.shape[0], Np), np.float32); Mo[:, :M.shape[1]] = M
        bo = np.zeros((Np,), np.float32); bo[:b.shape[0]] = b
        return Mo, bo

    def add(name, M, b, Kp, split=None):
        Np = _rup(M.shape[1], 128)
        M, b = pad_cols(M, b, Np)
        Mo = np.zeros((Kp, Np), np.float32)
        Mo[:M.shape[0], :] = M
        dense[name] = (Mo, b, split)

    def merge(Ma, ba, Mb, bb):           # shared-LHS concat, per-piece lane pad
        Na, Nb = _rup(Ma.shape[1], 128), _rup(Mb.shape[1], 128)
        Ma, ba = pad_cols(Ma, ba, Na)
        Mb, bb = pad_cols(Mb, bb, Nb)
        return np.concatenate([Ma, Mb], 1), np.concatenate([ba, bb]), Na

    def bn_affine(bnp, HW):
        # TODO(synk): BatchNorm2d folded with eval-mode running stats; PyTorch
        # train-mode batch statistics are not reproduced.
        gamma, beta, rmean, rvar = (np.asarray(t, np.float32) for t in bnp)
        scale = gamma / np.sqrt(rvar + BN_EPS)
        shift = beta - rmean * scale
        return np.tile(scale, HW), np.tile(shift, HW)

    def fold_bn(M, b, scale, shift):     # (h*s + t) @ M + b == h @ (s*M) + (t@M + b)
        return scale[:, None] * M, b + shift @ M

    def add_res_module(name, p, H, W, kp_in, s=None, t=None):
        M1, b1, _, _ = _conv_dense(p['conv1'], H, W, 1, 0)       # 1x1 branch
        Mx1, bx1, _, _ = _conv_dense(p['convx1'], H, W, 1, 1)    # 3x3 branch, conv 1
        if s is not None:                 # preceding BatchNorm folded into both
            M1, b1 = fold_bn(M1, b1, s, t)
            Mx1, bx1 = fold_bn(Mx1, bx1, s, t)
        Mm, bm, n1 = merge(M1, b1, Mx1, bx1)                     # shared-LHS merge
        add(name, Mm, bm, Kp=kp_in, split=n1)
        Mx2, bx2, _, _ = _conv_dense(p['convx2'], H, W, 1, 1)    # 3x3 branch, conv 2
        add(name + 'x2', Mx2, bx2, Kp=_rup(Mx2.shape[0], 128))
        return n1

    # --- avg_rotate: 4 rotations folded into one matrix; (x-2048)/4096 folded ---
    Wr, br, _, _ = _conv_dense(raw['rotate'], 4, 4, 1, 2)        # [16, 64]
    idx = np.arange(16).reshape(4, 4)
    Wc = Wr.copy()
    for k in (1, 2, 3):
        src = np.rot90(idx, k).reshape(-1)       # rot_flat[j] = x_flat[src[j]]
        Wc += Wr[np.argsort(src), :]             # rot(x) @ Wr == x @ Wr[argsort(src)]
    Wc *= 0.25
    add('rot', Wc / 4096.0, br - (2048.0 / 4096.0) * Wc.sum(0), Kp=128)

    # --- deep_sample ---
    Md, bd, _, _ = _conv_dense(raw['deep'], 4, 4, 1, 1)          # [64, 128]
    add('deep', Md, bd, Kp=_rup(Wc.shape[1], 128))

    # --- res_block1 (4x4) ---
    n1 = add_res_module('rb1m1', raw['rb1']['rm1'], 4, 4,
                        kp_in=_rup(Md.shape[1], 128))
    s1, t1 = bn_affine(raw['rb1']['bn1'], 16)
    n1 = add_res_module('rb1m2', raw['rb1']['rm2'], 4, 4, kp_in=n1, s=s1, t=t1)
    s2, t2 = bn_affine(raw['rb1']['bn2'], 16)

    # --- shrink_conv1 (BN2 folded in), 4x4 -> 3x3 ---
    Ms1, bs1, Ho, Wo = _conv_dense(raw['shrink1'], 4, 4, 2, 2)
    Ms1, bs1 = fold_bn(Ms1, bs1, s2, t2)
    add('shrink1', Ms1, bs1, Kp=n1)

    # --- res_block2 (3x3) ---
    n1 = add_res_module('rb2m1', raw['rb2']['rm1'], Ho, Wo,
                        kp_in=_rup(Ms1.shape[1], 128))
    s3, t3 = bn_affine(raw['rb2']['bn1'], Ho * Wo)
    n1 = add_res_module('rb2m2', raw['rb2']['rm2'], Ho, Wo, kp_in=n1, s=s3, t=t3)
    s4, t4 = bn_affine(raw['rb2']['bn2'], Ho * Wo)

    # --- shrink_conv2 (BN4 folded in), 3x3 -> 3x3 ---
    Ms2, bs2, Ho2, Wo2 = _conv_dense(raw['shrink2'], Ho, Wo, 2, 2)
    Ms2, bs2 = fold_bn(Ms2, bs2, s4, t4)
    add('shrink2', Ms2, bs2, Kp=n1)

    # --- AdaptiveAvgPool2d(1) + Linear(8,4), with the x4096 output scale folded ---
    lw, lb = (np.asarray(t, np.float32) for t in raw['lin'])     # [4,8], [4]
    hw = Ho2 * Wo2
    add('head', np.tile(lw.T / hw, (hw, 1)) * 4096.0, lb * 4096.0,
        Kp=_rup(Ms2.shape[1], 128))

    # --- pack by padded lane width: bf16 weight slabs + one f32 bias panel ---
    widths = tuple(sorted({dense[n][0].shape[1] for n in _LAYER_ORDER}))
    assert set(widths) == set(_VMEM_WIDTHS) | set(_ANY_WIDTHS), widths
    layers, packs, bias_chunks = {}, {}, []
    b_off = 0
    for w in widths:
        mats, r = [], 0
        for n in _LAYER_ORDER:
            M, b, split = dense[n]
            if M.shape[1] != w:
                continue
            layers[n] = dict(width=int(w), r0=int(r), rows=int(M.shape[0]),
                             b0=int(b_off),
                             split=None if split is None else int(split))
            mats.append(M)
            bias_chunks.append(b)
            r += M.shape[0]
            b_off += w
        packs[w] = np.concatenate(mats, 0)
    bias_panel = np.concatenate(bias_chunks)[None, :]            # [1, 5888] f32

    # Biases stay f32 (~24 KB, negligible DMA) so all VPU epilogue math is f32;
    # only the MXU operands are bf16.
    # TODO(synk): int8 (v5e/v6e) / fp8 (v7x) weight quantization would halve
    # the slabs again; not applied here to keep numerics simple.
    params = ((jnp.asarray(bias_panel, jnp.float32),)
              + tuple(jnp.asarray(packs[w], jnp.bfloat16) for w in _VMEM_WIDTHS)
              + tuple(jnp.asarray(packs[w], jnp.bfloat16) for w in _ANY_WIDTHS))
    meta = dict(layers=layers, vmem_widths=_VMEM_WIDTHS, any_widths=_ANY_WIDTHS)
    return params, meta


# ---------------------------------------------------------------------------
# Fused forward kernel builder (meta is static, baked into the closure).
# ---------------------------------------------------------------------------
def build_forward(meta):
    layers = meta['layers']
    vmem_w, any_w = meta['vmem_widths'], meta['any_widths']
    n_v, n_a = len(vmem_w), len(any_w)

    def kernel(*refs):
        x_ref, b_ref = refs[0], refs[1]
        vref = {w: refs[2 + i] for i, w in enumerate(vmem_w)}
        href = {w: refs[2 + n_v + i] for i, w in enumerate(any_w)}
        o_ref = refs[2 + n_v + n_a]
        sref = {w: refs[3 + n_v + n_a + i] for i, w in enumerate(any_w)}
        sem = refs[3 + n_v + n_a + n_a]

        # Kick off HBM->VMEM staging of the big/late weight slabs now, so their
        # transfer overlaps with the early-layer matmuls below.
        copies = {w: pltpu.make_async_copy(href[w], sref[w], sem.at[i])
                  for i, w in enumerate(any_w)}
        for w in any_w:
            copies[w].start()
        waited = set()

        def wref(w):
            if w in sref:
                if w not in waited:
                    copies[w].wait()          # block only right before first use
                    waited.add(w)
                return sref[w]
            return vref[w]

        def mm(h, name, act=True):
            L = layers[name]
            W = wref(L['width'])[pl.ds(L['r0'], L['rows']), :]        # bf16 slab slice
            y = jnp.dot(h.astype(jnp.bfloat16), W,
                        preferred_element_type=jnp.float32)           # MXU bf16 -> f32
            y = y + b_ref[:, pl.ds(L['b0'], L['width'])]              # f32 epilogue
            return jnp.where(y >= 0, y, NEG_SLOPE * y) if act else y  # LeakyReLU

        def res(h, name):                 # ResModule with merged shared-LHS matmuls
            n1 = layers[name]['split']
            y = mm(h, name)                                           # [x1 | mid]
            return y[:, :n1] + mm(y[:, n1:], name + 'x2')             # x1 + x2

        h = mm(x_ref[...], 'rot', act=False)   # avg_rotate (+ input norm folded)
        h = mm(h, 'deep')                      # deep_sample
        h = res(h, 'rb1m1')                    # ResModule(8,32)  (BN folded downstream)
        h = res(h, 'rb1m2')                    # ResModule(32,16)
        h = mm(h, 'shrink1')                   # shrink_conv1 (BN folded in)
        h = res(h, 'rb2m1')                    # ResModule(16,32)
        h = res(h, 'rb2m2')                    # ResModule(32,16)
        h = mm(h, 'shrink2')                   # shrink_conv2 (BN folded in)
        h = mm(h, 'head')                      # avg-pool + Linear + LeakyReLU (*4096 folded)
        o_ref[...] = h + 2048.0                # padded lanes also get +2048; sliced off

    @jax.jit
    def forward(x, params):
        """x: [B, 1, 4, 4] NCHW board.  params: tuple from preprocess_params."""
        B = x.shape[0]
        rows = _rup(max(B, 1), 8)
        xf = x.astype(jnp.float32).reshape(B, 16)   # C=1: NCHW flatten == NHWC flatten
        xp = jnp.zeros((rows, 128), jnp.float32).at[:B, :16].set(xf)
        bias = params[0]
        vparams = params[1:1 + n_v]
        aparams = params[1 + n_v:]
        # TODO(synk): at B=2 a single TensorCore is used; add a row grid with
        # dimension_semantics=("parallel",) only if the batch grows (v7x 2 TCs).
        out = pl.pallas_call(
            kernel,
            out_shape=jax.ShapeDtypeStruct((rows, 128), jnp.float32),
            in_specs=([pl.BlockSpec(memory_space=pltpu.MemorySpace.VMEM)] * (2 + n_v)
                      + [pl.BlockSpec(memory_space=pl.ANY)] * n_a),
            out_specs=pl.BlockSpec(memory_space=pltpu.MemorySpace.VMEM),
            scratch_shapes=([pltpu.VMEM(p.shape, p.dtype) for p in aparams]
                            + [pltpu.SemaphoreType.DMA((n_a,))]),
            compiler_params=pltpu.CompilerParams(vmem_limit_bytes=32 * 1024 * 1024),
        )(xp, bias, *vparams, *aparams)
        return out[:B, :4]

    return forward


# ---------------------------------------------------------------------------
# Deterministic synthetic parameters (PyTorch layouts/shapes).
# ---------------------------------------------------------------------------
def init_params(key):
    keys = iter(jax.random.split(key, 64))

    def conv_p(cout, cin, kh, kw):
        k1, k2 = jax.random.split(next(keys))
        fan_in = cin * kh * kw
        w = jax.random.normal(k1, (cout, cin, kh, kw), jnp.float32) / jnp.sqrt(fan_in)
        b = 0.01 * jax.random.normal(k2, (cout,), jnp.float32)
        return w, b

    def bn_p(c):   # (gamma, beta, running_mean, running_var), fresh init
        return (jnp.ones((c,), jnp.float32), jnp.zeros((c,), jnp.float32),
                jnp.zeros((c,), jnp.float32), jnp.ones((c,), jnp.float32))

    def res_p(cin, cout):
        return {'conv1': conv_p(cout, cin, 1, 1),
                'convx1': conv_p(cin * 2, cin, 3, 3),
                'convx2': conv_p(cout, cin * 2, 3, 3)}

    return {
        'rotate': conv_p(4, 1, 5, 5),
        'deep': conv_p(8, 4, 3, 3),
        'rb1': {'rm1': res_p(8, 32), 'bn1': bn_p(32),
                'rm2': res_p(32, 16), 'bn2': bn_p(16)},
        'shrink1': conv_p(16, 16, 3, 3),
        'rb2': {'rm1': res_p(16, 32), 'bn1': bn_p(32),
                'rm2': res_p(32, 16), 'bn2': bn_p(16)},
        'shrink2': conv_p(8, 16, 3, 3),
        'lin': (jax.random.normal(next(keys), (4, 8), jnp.float32) / jnp.sqrt(8.0),
                0.01 * jax.random.normal(next(keys), (4,), jnp.float32)),
    }


# ---------------------------------------------------------------------------
# Pure-JAX reference (mirrors the PyTorch module) used only for validation.
# ---------------------------------------------------------------------------
def _ref_forward(x, raw):
    hp = jax.lax.Precision.HIGHEST

    def conv(h, wb, stride=1, pad=0):
        w, b = wb
        y = jax.lax.conv_general_dilated(
            h, w, window_strides=(stride, stride),
            padding=[(pad, pad), (pad, pad)],
            dimension_numbers=('NCHW', 'OIHW', 'NCHW'), precision=hp)
        return y + b[None, :, None, None]

    def lrelu(t):
        return jnp.where(t >= 0, t, NEG_SLOPE * t)

    def res_module(h, p):
        x1 = lrelu(conv(h, p['conv1']))
        x2 = lrelu(conv(h, p['convx1'], pad=1))
        x2 = lrelu(conv(x2, p['convx2'], pad=1))
        return x1 + x2

    def batchnorm(h, p):
        gamma, beta, rmean, rvar = p
        scale = gamma / jnp.sqrt(rvar + BN_EPS)
        shift = beta - rmean * scale
        return h * scale[None, :, None, None] + shift[None, :, None, None]

    s = (x.astype(jnp.float32) - 2048.0) / 4096.0
    s = 0.25 * (conv(jnp.rot90(s, 1, axes=(2, 3)), raw['rotate'], pad=2)
                + conv(jnp.rot90(s, 2, axes=(2, 3)), raw['rotate'], pad=2)
                + conv(jnp.rot90(s, 3, axes=(2, 3)), raw['rotate'], pad=2)
                + conv(s, raw['rotate'], pad=2))
    s = lrelu(conv(s, raw['deep'], pad=1))
    s = batchnorm(res_module(s, raw['rb1']['rm1']), raw['rb1']['bn1'])
    s = batchnorm(res_module(s, raw['rb1']['rm2']), raw['rb1']['bn2'])
    s = lrelu(conv(s, raw['shrink1'], stride=2, pad=2))
    s = batchnorm(res_module(s, raw['rb2']['rm1']), raw['rb2']['bn1'])
    s = batchnorm(res_module(s, raw['rb2']['rm2']), raw['rb2']['bn2'])
    s = lrelu(conv(s, raw['shrink2'], stride=2, pad=2))
    pooled = jnp.mean(s, axis=(2, 3))
    lw, lb = raw['lin']
    out = lrelu(jnp.dot(pooled, lw.T, precision=hp) + lb)
    return out * 4096.0 + 2048.0


if __name__ == "__main__":
    key = jax.random.PRNGKey(0)
    raw = init_params(key)
    params, meta = preprocess_params(raw)     # hoisted: built once, not per call
    qnet_forward = build_forward(meta)

    # QNet consumes a single-channel 4x4 board, NCHW: [B, 1, 4, 4]
    x = jax.random.uniform(jax.random.fold_in(key, 123), (2, 1, 4, 4),
                           jnp.float32, minval=0.0, maxval=4096.0)

    out = jax.block_until_ready(qnet_forward(x, params))
    assert out.shape == (2, 4) and out.dtype == jnp.float32
    assert bool(jnp.all(jnp.isfinite(out)))

    # validate the fused kernel against the plain-JAX reference of the module
    ref = jax.block_until_ready(_ref_forward(x, raw))
    err = float(jnp.max(jnp.abs(out - ref))) / 4096.0    # normalized units
    assert err < 5e-2, f"fused kernel mismatch vs reference (normalized err {err})"
    print("KERNEL_OK")
</pallas_src>

<mosaic_0001>
module attributes {stable_mosaic.version = 11 : i64} {
  func.func @kernel(%arg0: memref<8x128xf32, #tpu.memory_space<vmem>>, %arg1: memref<1x5888xf32, #tpu.memory_space<vmem>>, %arg2: memref<640x128xbf16, #tpu.memory_space<vmem>>, %arg3: memref<256x512xbf16, #tpu.memory_space<vmem>>, %arg4: memref<384x768xbf16, #tpu.memory_space<vmem>>, %arg5: memref<512x1280xbf16, #tpu.memory_space<any>>, %arg6: memref<1920x256xbf16, #tpu.memory_space<any>>, %arg7: memref<384x384xbf16, #tpu.memory_space<any>>, %arg8: memref<384x896xbf16, #tpu.memory_space<any>>, %arg9: memref<8x128xf32, #tpu.memory_space<vmem>>, %arg10: memref<512x1280xbf16, #tpu.memory_space<vmem>>, %arg11: memref<1920x256xbf16, #tpu.memory_space<vmem>>, %arg12: memref<384x384xbf16, #tpu.memory_space<vmem>>, %arg13: memref<384x896xbf16, #tpu.memory_space<vmem>>, %arg14: memref<4x!tpu.dma_semaphore, #tpu.memory_space<semaphore_mem>>) attributes {dimension_semantics = [], scalar_prefetch = 0 : i64, scratch_operands = 5 : i64, tpu.core_type = #tpu.core_type<tc>} {
    %c0_i32 = arith.constant 0 : i32
    %0 = tpu.memref_slice %arg14[%c0_i32] : memref<4x!tpu.dma_semaphore, #tpu.memory_space<semaphore_mem>> -> memref<1x!tpu.dma_semaphore, #tpu.memory_space<semaphore_mem>>
    %1 = tpu.memref_squeeze %0 : memref<1x!tpu.dma_semaphore, #tpu.memory_space<semaphore_mem>> -> memref<!tpu.dma_semaphore, #tpu.memory_space<semaphore_mem>>
    tpu.enqueue_dma source(%arg5 : memref<512x1280xbf16, #tpu.memory_space<any>>) target(%arg10 : memref<512x1280xbf16, #tpu.memory_space<vmem>>) target_semaphore(%1 : memref<!tpu.dma_semaphore, #tpu.memory_space<semaphore_mem>>)
    %c1_i32 = arith.constant 1 : i32
    %2 = tpu.memref_slice %arg14[%c1_i32] : memref<4x!tpu.dma_semaphore, #tpu.memory_space<semaphore_mem>> -> memref<1x!tpu.dma_semaphore, #tpu.memory_space<semaphore_mem>>
    %3 = tpu.memref_squeeze %2 : memref<1x!tpu.dma_semaphore, #tpu.memory_space<semaphore_mem>> -> memref<!tpu.dma_semaphore, #tpu.memory_space<semaphore_mem>>
    tpu.enqueue_dma source(%arg6 : memref<1920x256xbf16, #tpu.memory_space<any>>) target(%arg11 : memref<1920x256xbf16, #tpu.memory_space<vmem>>) target_semaphore(%3 : memref<!tpu.dma_semaphore, #tpu.memory_space<semaphore_mem>>)
    %c2_i32 = arith.constant 2 : i32
    %4 = tpu.memref_slice %arg14[%c2_i32] : memref<4x!tpu.dma_semaphore, #tpu.memory_space<semaphore_mem>> -> memref<1x!tpu.dma_semaphore, #tpu.memory_space<semaphore_mem>>
    %5 = tpu.memref_squeeze %4 : memref<1x!tpu.dma_semaphore, #tpu.memory_space<semaphore_mem>> -> memref<!tpu.dma_semaphore, #tpu.memory_space<semaphore_mem>>
    tpu.enqueue_dma source(%arg7 : memref<384x384xbf16, #tpu.memory_space<any>>) target(%arg12 : memref<384x384xbf16, #tpu.memory_space<vmem>>) target_semaphore(%5 : memref<!tpu.dma_semaphore, #tpu.memory_space<semaphore_mem>>)
    %c3_i32 = arith.constant 3 : i32
    %6 = tpu.memref_slice %arg14[%c3_i32] : memref<4x!tpu.dma_semaphore, #tpu.memory_space<semaphore_mem>> -> memref<1x!tpu.dma_semaphore, #tpu.memory_space<semaphore_mem>>
    %7 = tpu.memref_squeeze %6 : memref<1x!tpu.dma_semaphore, #tpu.memory_space<semaphore_mem>> -> memref<!tpu.dma_semaphore, #tpu.memory_space<semaphore_mem>>
    tpu.enqueue_dma source(%arg8 : memref<384x896xbf16, #tpu.memory_space<any>>) target(%arg13 : memref<384x896xbf16, #tpu.memory_space<vmem>>) target_semaphore(%7 : memref<!tpu.dma_semaphore, #tpu.memory_space<semaphore_mem>>)
    %c0 = arith.constant 0 : index
    %c0_0 = arith.constant 0 : index
    %8 = vector.load %arg0[%c0, %c0_0] : memref<8x128xf32, #tpu.memory_space<vmem>>, vector<8x128xf32>
    %c0_1 = arith.constant 0 : index
    %c0_2 = arith.constant 0 : index
    %9 = vector.load %arg2[%c0_1, %c0_2] : memref<640x128xbf16, #tpu.memory_space<vmem>>, vector<128x128xbf16>
    %10 = arith.truncf %8 : vector<8x128xf32> to vector<8x128xbf16>
    %cst = arith.constant dense<0.000000e+00> : vector<8x128xf32>
    %11 = tpu.matmul %10, %9, %cst {dimension_numbers = #tpu.dot_dimension_numbers<[1], [0], [0], [1], [0, 0, 1, 1], [], []>} : vector<8x128xbf16>, vector<128x128xbf16>, vector<8x128xf32> -> vector<8x128xf32>
    %c0_3 = arith.constant 0 : index
    %c0_4 = arith.constant 0 : index
    %12 = vector.load %arg1[%c0_3, %c0_4] : memref<1x5888xf32, #tpu.memory_space<vmem>>, vector<1x128xf32>
    %13 = vector.broadcast %12 : vector<1x128xf32> to vector<8x128xf32>
    %14 = arith.addf %11, %13 : vector<8x128xf32>
    %c128 = arith.constant 128 : index
    %c0_5 = arith.constant 0 : index
    %15 = vector.load %arg2[%c128, %c0_5] : memref<640x128xbf16, #tpu.memory_space<vmem>>, vector<128x128xbf16>
    %16 = arith.truncf %14 : vector<8x128xf32> to vector<8x128xbf16>
    %cst_6 = arith.constant dense<0.000000e+00> : vector<8x128xf32>
    %17 = tpu.matmul %16, %15, %cst_6 {dimension_numbers = #tpu.dot_dimension_numbers<[1], [0], [0], [1], [0, 0, 1, 1], [], []>} : vector<8x128xbf16>, vector<128x128xbf16>, vector<8x128xf32> -> vector<8x128xf32>
    %c0_7 = arith.constant 0 : index
    %c128_8 = arith.constant 128 : index
    %18 = vector.load %arg1[%c0_7, %c128_8] : memref<1x5888xf32, #tpu.memory_space<vmem>>, vector<1x128xf32>
    %19 = vector.broadcast %18 : vector<1x128xf32> to vector<8x128xf32>
    %20 = arith.addf %17, %19 : vector<8x128xf32>
    %cst_9 = arith.constant 0.000000e+00 : f32
    %21 = vector.broadcast %cst_9 : f32 to vector<8x128xf32>
    %22 = arith.cmpf oge, %20, %21 : vector<8x128xf32>
    %cst_10 = arith.constant 0.00999999977 : f32
    %23 = vector.broadcast %cst_10 : f32 to vector<8x128xf32>
    %24 = arith.mulf %23, %20 : vector<8x128xf32>
    %25 = arith.select %22, %20, %24 : vector<8x128xi1>, vector<8x128xf32>
    %c0_11 = arith.constant 0 : index
    %c0_12 = arith.constant 0 : index
    %26 = vector.load %arg4[%c0_11, %c0_12] : memref<384x768xbf16, #tpu.memory_space<vmem>>, vector<128x768xbf16>
    %27 = arith.truncf %25 : vector<8x128xf32> to vector<8x128xbf16>
    %cst_13 = arith.constant dense<0.000000e+00> : vector<8x768xf32>
    %28 = tpu.matmul %27, %26, %cst_13 {dimension_numbers = #tpu.dot_dimension_numbers<[1], [0], [0], [1], [0, 0, 1, 1], [], []>} : vector<8x128xbf16>, vector<128x768xbf16>, vector<8x768xf32> -> vector<8x768xf32>
    %c0_14 = arith.constant 0 : index
    %c2176 = arith.constant 2176 : index
    %29 = vector.load %arg1[%c0_14, %c2176] : memref<1x5888xf32, #tpu.memory_space<vmem>>, vector<1x768xf32>
    %30 = vector.broadcast %29 : vector<1x768xf32> to vector<8x768xf32>
    %31 = arith.addf %28, %30 : vector<8x768xf32>
    %cst_15 = arith.constant 0.000000e+00 : f32
    %32 = vector.broadcast %cst_15 : f32 to vector<8x768xf32>
    %33 = arith.cmpf oge, %31, %32 : vector<8x768xf32>
    %cst_16 = arith.constant 0.00999999977 : f32
    %34 = vector.broadcast %cst_16 : f32 to vector<8x768xf32>
    %35 = arith.mulf %34, %31 : vector<8x768xf32>
    %36 = arith.select %33, %31, %35 : vector<8x768xi1>, vector<8x768xf32>
    %37 = vector.extract_strided_slice %36 {offsets = [0, 0], sizes = [8, 512], strides = [1, 1]} : vector<8x768xf32> to vector<8x512xf32>
    %38 = vector.extract_strided_slice %36 {offsets = [0, 512], sizes = [8, 256], strides = [1, 1]} : vector<8x768xf32> to vector<8x256xf32>
    %c0_17 = arith.constant 0 : index
    %c0_18 = arith.constant 0 : index
    %39 = vector.load %arg3[%c0_17, %c0_18] : memref<256x512xbf16, #tpu.memory_space<vmem>>, vector<256x512xbf16>
    %40 = arith.truncf %38 : vector<8x256xf32> to vector<8x256xbf16>
    %cst_19 = arith.constant dense<0.000000e+00> : vector<8x512xf32>
    %41 = tpu.matmul %40, %39, %cst_19 {dimension_numbers = #tpu.dot_dimension_numbers<[1], [0], [0], [1], [0, 0, 1, 1], [], []>} : vector<8x256xbf16>, vector<256x512xbf16>, vector<8x512xf32> -> vector<8x512xf32>
    %c0_20 = arith.constant 0 : index
    %c1664 = arith.constant 1664 : index
    %42 = vector.load %arg1[%c0_20, %c1664] : memref<1x5888xf32, #tpu.memory_space<vmem>>, vector<1x512xf32>
    %43 = vector.broadcast %42 : vector<1x512xf32> to vector<8x512xf32>
    %44 = arith.addf %41, %43 : vector<8x512xf32>
    %cst_21 = arith.constant 0.000000e+00 : f32
    %45 = vector.broadcast %cst_21 : f32 to vector<8x512xf32>
    %46 = arith.cmpf oge, %44, %45 : vector<8x512xf32>
    %cst_22 = arith.constant 0.00999999977 : f32
    %47 = vector.broadcast %cst_22 : f32 to vector<8x512xf32>
    %48 = arith.mulf %47, %44 : vector<8x512xf32>
    %49 = arith.select %46, %44, %48 : vector<8x512xi1>, vector<8x512xf32>
    %50 = arith.addf %37, %49 : vector<8x512xf32>
    %c0_i32_23 = arith.constant 0 : i32
    %51 = tpu.memref_slice %arg14[%c0_i32_23] : memref<4x!tpu.dma_semaphore, #tpu.memory_space<semaphore_mem>> -> memref<1x!tpu.dma_semaphore, #tpu.memory_space<semaphore_mem>>
    %52 = tpu.memref_squeeze %51 : memref<1x!tpu.dma_semaphore, #tpu.memory_space<semaphore_mem>> -> memref<!tpu.dma_semaphore, #tpu.memory_space<semaphore_mem>>
    tpu.wait_dma2 semaphore(%52 : memref<!tpu.dma_semaphore, #tpu.memory_space<semaphore_mem>>) src(%arg5 : memref<512x1280xbf16, #tpu.memory_space<any>>) dst(%arg10 : memref<512x1280xbf16, #tpu.memory_space<vmem>>)
    %c0_24 = arith.constant 0 : index
    %c0_25 = arith.constant 0 : index
    %53 = vector.load %arg10[%c0_24, %c0_25] : memref<512x1280xbf16, #tpu.memory_space<vmem>>, vector<512x1280xbf16>
    %54 = arith.truncf %50 : vector<8x512xf32> to vector<8x512xbf16>
    %cst_26 = arith.constant dense<0.000000e+00> : vector<8x1280xf32>
    %55 = tpu.matmul %54, %53, %cst_26 {dimension_numbers = #tpu.dot_dimension_numbers<[1], [0], [0], [1], [0, 0, 1, 1], [], []>} : vector<8x512xbf16>, vector<512x1280xbf16>, vector<8x1280xf32> -> vector<8x1280xf32>
    %c0_27 = arith.constant 0 : index
    %c4608 = arith.constant 4608 : index
    %56 = vector.load %arg1[%c0_27, %c4608] : memref<1x5888xf32, #tpu.memory_space<vmem>>, vector<1x1280xf32>
    %57 = vector.broadcast %56 : vector<1x1280xf32> to vector<8x1280xf32>
    %58 = arith.addf %55, %57 : vector<8x1280xf32>
    %cst_28 = arith.constant 0.000000e+00 : f32
    %59 = vector.broadcast %cst_28 : f32 to vector<8x1280xf32>
    %60 = arith.cmpf oge, %58, %59 : vector<8x1280xf32>
    %cst_29 = arith.constant 0.00999999977 : f32
    %61 = vector.broadcast %cst_29 : f32 to vector<8x1280xf32>
    %62 = arith.mulf %61, %58 : vector<8x1280xf32>
    %63 = arith.select %60, %58, %62 : vector<8x1280xi1>, vector<8x1280xf32>
    %64 = vector.extract_strided_slice %63 {offsets = [0, 0], sizes = [8, 256], strides = [1, 1]} : vector<8x1280xf32> to vector<8x256xf32>
    %65 = vector.extract_strided_slice %63 {offsets = [0, 256], sizes = [8, 1024], strides = [1, 1]} : vector<8x1280xf32> to vector<8x1024xf32>
    %c1_i32_30 = arith.constant 1 : i32
    %66 = tpu.memref_slice %arg14[%c1_i32_30] : memref<4x!tpu.dma_semaphore, #tpu.memory_space<semaphore_mem>> -> memref<1x!tpu.dma_semaphore, #tpu.memory_space<semaphore_mem>>
    %67 = tpu.memref_squeeze %66 : memref<1x!tpu.dma_semaphore, #tpu.memory_space<semaphore_mem>> -> memref<!tpu.dma_semaphore, #tpu.memory_space<semaphore_mem>>
    tpu.wait_dma2 semaphore(%67 : memref<!tpu.dma_semaphore, #tpu.memory_space<semaphore_mem>>) src(%arg6 : memref<1920x256xbf16, #tpu.memory_space<any>>) dst(%arg11 : memref<1920x256xbf16, #tpu.memory_space<vmem>>)
    %c0_31 = arith.constant 0 : index
    %c0_32 = arith.constant 0 : index
    %68 = vector.load %arg11[%c0_31, %c0_32] : memref<1920x256xbf16, #tpu.memory_space<vmem>>, vector<1024x256xbf16>
    %69 = arith.truncf %65 : vector<8x1024xf32> to vector<8x1024xbf16>
    %cst_33 = arith.constant dense<0.000000e+00> : vector<8x256xf32>
    %70 = tpu.matmul %69, %68, %cst_33 {dimension_numbers = #tpu.dot_dimension_numbers<[1], [0], [0], [1], [0, 0, 1, 1], [], []>} : vector<8x1024xbf16>, vector<1024x256xbf16>, vector<8x256xf32> -> vector<8x256xf32>
    %c0_34 = arith.constant 0 : index
    %c512 = arith.constant 512 : index
    %71 = vector.load %arg1[%c0_34, %c512] : memref<1x5888xf32, #tpu.memory_space<vmem>>, vector<1x256xf32>
    %72 = vector.broadcast %71 : vector<1x256xf32> to vector<8x256xf32>
    %73 = arith.addf %70, %72 : vector<8x256xf32>
    %cst_35 = arith.constant 0.000000e+00 : f32
    %74 = vector.broadcast %cst_35 : f32 to vector<8x256xf32>
    %75 = arith.cmpf oge, %73, %74 : vector<8x256xf32>
    %cst_36 = arith.constant 0.00999999977 : f32
    %76 = vector.broadcast %cst_36 : f32 to vector<8x256xf32>
    %77 = arith.mulf %76, %73 : vector<8x256xf32>
    %78 = arith.select %75, %73, %77 : vector<8x256xi1>, vector<8x256xf32>
    %79 = arith.addf %64, %78 : vector<8x256xf32>
    %c1024 = arith.constant 1024 : index
    %c0_37 = arith.constant 0 : index
    %80 = vector.load %arg11[%c1024, %c0_37] : memref<1920x256xbf16, #tpu.memory_space<vmem>>, vector<256x256xbf16>
    %81 = arith.truncf %79 : vector<8x256xf32> to vector<8x256xbf16>
    %cst_38 = arith.constant dense<0.000000e+00> : vector<8x256xf32>
    %82 = tpu.matmul %81, %80, %cst_38 {dimension_numbers = #tpu.dot_dimension_numbers<[1], [0], [0], [1], [0, 0, 1, 1], [], []>} : vector<8x256xbf16>, vector<256x256xbf16>, vector<8x256xf32> -> vector<8x256xf32>
    %c0_39 = arith.constant 0 : index
    %c768 = arith.constant 768 : index
    %83 = vector.load %arg1[%c0_39, %c768] : memref<1x5888xf32, #tpu.memory_space<vmem>>, vector<1x256xf32>
    %84 = vector.broadcast %83 : vector<1x256xf32> to vector<8x256xf32>
    %85 = arith.addf %82, %84 : vector<8x256xf32>
    %cst_40 = arith.constant 0.000000e+00 : f32
    %86 = vector.broadcast %cst_40 : f32 to vector<8x256xf32>
    %87 = arith.cmpf oge, %85, %86 : vector<8x256xf32>
    %cst_41 = arith.constant 0.00999999977 : f32
    %88 = vector.broadcast %cst_41 : f32 to vector<8x256xf32>
    %89 = arith.mulf %88, %85 : vector<8x256xf32>
    %90 = arith.select %87, %85, %89 : vector<8x256xi1>, vector<8x256xf32>
    %c128_42 = arith.constant 128 : index
    %c0_43 = arith.constant 0 : index
    %91 = vector.load %arg4[%c128_42, %c0_43] : memref<384x768xbf16, #tpu.memory_space<vmem>>, vector<256x768xbf16>
    %92 = arith.truncf %90 : vector<8x256xf32> to vector<8x256xbf16>
    %cst_44 = arith.constant dense<0.000000e+00> : vector<8x768xf32>
    %93 = tpu.matmul %92, %91, %cst_44 {dimension_numbers = #tpu.dot_dimension_numbers<[1], [0], [0], [1], [0, 0, 1, 1], [], []>} : vector<8x256xbf16>, vector<256x768xbf16>, vector<8x768xf32> -> vector<8x768xf32>
    %c0_45 = arith.constant 0 : index
    %c2944 = arith.constant 2944 : index
    %94 = vector.load %arg1[%c0_45, %c2944] : memref<1x5888xf32, #tpu.memory_space<vmem>>, vector<1x768xf32>
    %95 = vector.broadcast %94 : vector<1x768xf32> to vector<8x768xf32>
    %96 = arith.addf %93, %95 : vector<8x768xf32>
    %cst_46 = arith.constant 0.000000e+00 : f32
    %97 = vector.broadcast %cst_46 : f32 to vector<8x768xf32>
    %98 = arith.cmpf oge, %96, %97 : vector<8x768xf32>
    %cst_47 = arith.constant 0.00999999977 : f32
    %99 = vector.broadcast %cst_47 : f32 to vector<8x768xf32>
    %100 = arith.mulf %99, %96 : vector<8x768xf32>
    %101 = arith.select %98, %96, %100 : vector<8x768xi1>, vector<8x768xf32>
    %102 = vector.extract_strided_slice %101 {offsets = [0, 0], sizes = [8, 384], strides = [1, 1]} : vector<8x768xf32> to vector<8x384xf32>
    %103 = vector.extract_strided_slice %101 {offsets = [0, 384], sizes = [8, 384], strides = [1, 1]} : vector<8x768xf32> to vector<8x384xf32>
    %c2_i32_48 = arith.constant 2 : i32
    %104 = tpu.memref_slice %arg14[%c2_i32_48] : memref<4x!tpu.dma_semaphore, #tpu.memory_space<semaphore_mem>> -> memref<1x!tpu.dma_semaphore, #tpu.memory_space<semaphore_mem>>
    %105 = tpu.memref_squeeze %104 : memref<1x!tpu.dma_semaphore, #tpu.memory_space<semaphore_mem>> -> memref<!tpu.dma_semaphore, #tpu.memory_space<semaphore_mem>>
    tpu.wait_dma2 semaphore(%105 : memref<!tpu.dma_semaphore, #tpu.memory_space<semaphore_mem>>) src(%arg7 : memref<384x384xbf16, #tpu.memory_space<any>>) dst(%arg12 : memref<384x384xbf16, #tpu.memory_space<vmem>>)
    %c0_49 = arith.constant 0 : index
    %c0_50 = arith.constant 0 : index
    %106 = vector.load %arg12[%c0_49, %c0_50] : memref<384x384xbf16, #tpu.memory_space<vmem>>, vector<384x384xbf16>
    %107 = arith.truncf %103 : vector<8x384xf32> to vector<8x384xbf16>
    %cst_51 = arith.constant dense<0.000000e+00> : vector<8x384xf32>
    %108 = tpu.matmul %107, %106, %cst_51 {dimension_numbers = #tpu.dot_dimension_numbers<[1], [0], [0], [1], [0, 0, 1, 1], [], []>} : vector<8x384xbf16>, vector<384x384xbf16>, vector<8x384xf32> -> vector<8x384xf32>
    %c0_52 = arith.constant 0 : index
    %c1280 = arith.constant 1280 : index
    %109 = vector.load %arg1[%c0_52, %c1280] : memref<1x5888xf32, #tpu.memory_space<vmem>>, vector<1x384xf32>
    %110 = vector.broadcast %109 : vector<1x384xf32> to vector<8x384xf32>
    %111 = arith.addf %108, %110 : vector<8x384xf32>
    %cst_53 = arith.constant 0.000000e+00 : f32
    %112 = vector.broadcast %cst_53 : f32 to vector<8x384xf32>
    %113 = arith.cmpf oge, %111, %112 : vector<8x384xf32>
    %cst_54 = arith.constant 0.00999999977 : f32
    %114 = vector.broadcast %cst_54 : f32 to vector<8x384xf32>
    %115 = arith.mulf %114, %111 : vector<8x384xf32>
    %116 = arith.select %113, %111, %115 : vector<8x384xi1>, vector<8x384xf32>
    %117 = arith.addf %102, %116 : vector<8x384xf32>
    %c3_i32_55 = arith.constant 3 : i32
    %118 = tpu.memref_slice %arg14[%c3_i32_55] : memref<4x!tpu.dma_semaphore, #tpu.memory_space<semaphore_mem>> -> memref<1x!tpu.dma_semaphore, #tpu.memory_space<semaphore_mem>>
    %119 = tpu.memref_squeeze %118 : memref<1x!tpu.dma_semaphore, #tpu.memory_space<semaphore_mem>> -> memref<!tpu.dma_semaphore, #tpu.memory_space<semaphore_mem>>
    tpu.wait_dma2 semaphore(%119 : memref<!tpu.dma_semaphore, #tpu.memory_space<semaphore_mem>>) src(%arg8 : memref<384x896xbf16, #tpu.memory_space<any>>) dst(%arg13 : memref<384x896xbf16, #tpu.memory_space<vmem>>)
    %c0_56 = arith.constant 0 : index
    %c0_57 = arith.constant 0 : index
    %120 = vector.load %arg13[%c0_56, %c0_57] : memref<384x896xbf16, #tpu.memory_space<vmem>>, vector<384x896xbf16>
    %121 = arith.truncf %117 : vector<8x384xf32> to vector<8x384xbf16>
    %cst_58 = arith.constant dense<0.000000e+00> : vector<8x896xf32>
    %122 = tpu.matmul %121, %120, %cst_58 {dimension_numbers = #tpu.dot_dimension_numbers<[1], [0], [0], [1], [0, 0, 1, 1], [], []>} : vector<8x384xbf16>, vector<384x896xbf16>, vector<8x896xf32> -> vector<8x896xf32>
    %c0_59 = arith.constant 0 : index
    %c3712 = arith.constant 3712 : index
    %123 = vector.load %arg1[%c0_59, %c3712] : memref<1x5888xf32, #tpu.memory_space<vmem>>, vector<1x896xf32>
    %124 = vector.broadcast %123 : vector<1x896xf32> to vector<8x896xf32>
    %125 = arith.addf %122, %124 : vector<8x896xf32>
    %cst_60 = arith.constant 0.000000e+00 : f32
    %126 = vector.broadcast %cst_60 : f32 to vector<8x896xf32>
    %127 = arith.cmpf oge, %125, %126 : vector<8x896xf32>
    %cst_61 = arith.constant 0.00999999977 : f32
    %128 = vector.broadcast %cst_61 : f32 to vector<8x896xf32>
    %129 = arith.mulf %128, %125 : vector<8x896xf32>
    %130 = arith.select %127, %125, %129 : vector<8x896xi1>, vector<8x896xf32>
    %131 = vector.extract_strided_slice %130 {offsets = [0, 0], sizes = [8, 256], strides = [1, 1]} : vector<8x896xf32> to vector<8x256xf32>
    %132 = vector.extract_strided_slice %130 {offsets = [0, 256], sizes = [8, 640], strides = [1, 1]} : vector<8x896xf32> to vector<8x640xf32>
    %c1280_62 = arith.constant 1280 : index
    %c0_63 = arith.constant 0 : index
    %133 = vector.load %arg11[%c1280_62, %c0_63] : memref<1920x256xbf16, #tpu.memory_space<vmem>>, vector<640x256xbf16>
    %134 = arith.truncf %132 : vector<8x640xf32> to vector<8x640xbf16>
    %cst_64 = arith.constant dense<0.000000e+00> : vector<8x256xf32>
    %135 = tpu.matmul %134, %133, %cst_64 {dimension_numbers = #tpu.dot_dimension_numbers<[1], [0], [0], [1], [0, 0, 1, 1], [], []>} : vector<8x640xbf16>, vector<640x256xbf16>, vector<8x256xf32> -> vector<8x256xf32>
    %c0_65 = arith.constant 0 : index
    %c1024_66 = arith.constant 1024 : index
    %136 = vector.load %arg1[%c0_65, %c1024_66] : memref<1x5888xf32, #tpu.memory_space<vmem>>, vector<1x256xf32>
    %137 = vector.broadcast %136 : vector<1x256xf32> to vector<8x256xf32>
    %138 = arith.addf %135, %137 : vector<8x256xf32>
    %cst_67 = arith.constant 0.000000e+00 : f32
    %139 = vector.broadcast %cst_67 : f32 to vector<8x256xf32>
    %140 = arith.cmpf oge, %138, %139 : vector<8x256xf32>
    %cst_68 = arith.constant 0.00999999977 : f32
    %141 = vector.broadcast %cst_68 : f32 to vector<8x256xf32>
    %142 = arith.mulf %141, %138 : vector<8x256xf32>
    %143 = arith.select %140, %138, %142 : vector<8x256xi1>, vector<8x256xf32>
    %144 = arith.addf %131, %143 : vector<8x256xf32>
    %c256 = arith.constant 256 : index
    %c0_69 = arith.constant 0 : index
    %145 = vector.load %arg2[%c256, %c0_69] : memref<640x128xbf16, #tpu.memory_space<vmem>>, vector<256x128xbf16>
    %146 = arith.truncf %144 : vector<8x256xf32> to vector<8x256xbf16>
    %cst_70 = arith.constant dense<0.000000e+00> : vector<8x128xf32>
    %147 = tpu.matmul %146, %145, %cst_70 {dimension_numbers = #tpu.dot_dimension_numbers<[1], [0], [0], [1], [0, 0, 1, 1], [], []>} : vector<8x256xbf16>, vector<256x128xbf16>, vector<8x128xf32> -> vector<8x128xf32>
    %c0_71 = arith.constant 0 : index
    %c256_72 = arith.constant 256 : index
    %148 = vector.load %arg1[%c0_71, %c256_72] : memref<1x5888xf32, #tpu.memory_space<vmem>>, vector<1x128xf32>
    %149 = vector.broadcast %148 : vector<1x128xf32> to vector<8x128xf32>
    %150 = arith.addf %147, %149 : vector<8x128xf32>
    %cst_73 = arith.constant 0.000000e+00 : f32
    %151 = vector.broadcast %cst_73 : f32 to vector<8x128xf32>
    %152 = arith.cmpf oge, %150, %151 : vector<8x128xf32>
    %cst_74 = arith.constant 0.00999999977 : f32
    %153 = vector.broadcast %cst_74 : f32 to vector<8x128xf32>
    %154 = arith.mulf %153, %150 : vector<8x128xf32>
    %155 = arith.select %152, %150, %154 : vector<8x128xi1>, vector<8x128xf32>
    %c512_75 = arith.constant 512 : index
    %c0_76 = arith.constant 0 : index
    %156 = vector.load %arg2[%c512_75, %c0_76] : memref<640x128xbf16, #tpu.memory_space<vmem>>, vector<128x128xbf16>
    %157 = arith.truncf %155 : vector<8x128xf32> to vector<8x128xbf16>
    %cst_77 = arith.constant dense<0.000000e+00> : vector<8x128xf32>
    %158 = tpu.matmul %157, %156, %cst_77 {dimension_numbers = #tpu.dot_dimension_numbers<[1], [0], [0], [1], [0, 0, 1, 1], [], []>} : vector<8x128xbf16>, vector<128x128xbf16>, vector<8x128xf32> -> vector<8x128xf32>
    %c0_78 = arith.constant 0 : index
    %c384 = arith.constant 384 : index
    %159 = vector.load %arg1[%c0_78, %c384] : memref<1x5888xf32, #tpu.memory_space<vmem>>, vector<1x128xf32>
    %160 = vector.broadcast %159 : vector<1x128xf32> to vector<8x128xf32>
    %161 = arith.addf %158, %160 : vector<8x128xf32>
    %cst_79 = arith.constant 0.000000e+00 : f32
    %162 = vector.broadcast %cst_79 : f32 to vector<8x128xf32>
    %163 = arith.cmpf oge, %161, %162 : vector<8x128xf32>
    %cst_80 = arith.constant 0.00999999977 : f32
    %164 = vector.broadcast %cst_80 : f32 to vector<8x128xf32>
    %165 = arith.mulf %164, %161 : vector<8x128xf32>
    %166 = arith.select %163, %161, %165 : vector<8x128xi1>, vector<8x128xf32>
    %cst_81 = arith.constant 2.048000e+03 : f32
    %167 = vector.broadcast %cst_81 : f32 to vector<8x128xf32>
    %168 = arith.addf %166, %167 : vector<8x128xf32>
    %c0_82 = arith.constant 0 : index
    %c0_83 = arith.constant 0 : index
    %169 = vector.load %arg9[%c0_82, %c0_83] : memref<8x128xf32, #tpu.memory_space<vmem>>, vector<8x128xf32>
    tpu.vector_store %arg9[%c0_82, %c0_83], %168 {strides = array<i32>} : memref<8x128xf32, #tpu.memory_space<vmem>>, vector<8x128xf32>,
    return
  }
}

</mosaic_0001>

<llo_original>
// kernel: forward.1
$region0: #{forward.1}
  #allocation0 [shape = 'u32[]', space=smem, size = 0x4, offset = 0x4, fixed_abs, tag = 'smem constant byte address 0x4 - core index']
  #allocation1 [shape = 'u32[72,128]{1,0:T(1,128)}', space=vmem, size = 0x9000, scoped, tag = 'internal scratch']
  #allocation2 [shape = 'bf16[512,1280]{1,0:T(8,128)(2,1)}', space=vmem, size = 0x140000, scoped, tag = 'scratch operand']
  #allocation3 [shape = 'bf16[1920,256]{1,0:T(8,128)(2,1)}', space=vmem, size = 0xf0000, scoped, tag = 'scratch operand']
  #allocation4 [shape = 'bf16[384,384]{1,0:T(8,128)(2,1)}', space=vmem, size = 0x48000, scoped, tag = 'scratch operand']
  #allocation5 [shape = 'bf16[384,896]{1,0:T(8,128)(2,1)}', space=vmem, size = 0xa8000, scoped, tag = 'scratch operand']
  #allocation6 [shape = 's32[4]{0}', space=sflag, size = 0x10, scoped, tag = 'scratch operand']
  #allocation14 [shape = 's32[]', space=sflag, size = 0x4, offset = 0, fixed_abs, tag = 'sflag constant byte address 0x0 - dummy sync flag']
  #allocation15 [shape = 's32[]', space=sflag, size = 0x4, offset = 0, fixed_abs, tag = 'sflag constant byte address 0x0 - dummy sync flag']
  #allocation16 [shape = 'u32[]', space=smem, size = 0x4, offset = 0x44, fixed_abs, tag = 'smem constant byte address 0x44 - assertion arg 0']
  #allocation17 [shape = 'u32[]', space=smem, size = 0x4, offset = 0x48, fixed_abs, tag = 'smem constant byte address 0x48 - assertion arg 1']
  #allocation18 [shape = 's32[]', space=sflag, size = 0x4, offset = 0, fixed_abs, tag = 'sflag constant byte address 0x0 - dummy sync flag']
  #allocation19 [shape = 's32[]', space=sflag, size = 0x4, offset = 0, fixed_abs, tag = 'sflag constant byte address 0x0 - dummy sync flag']
  #allocation20 [shape = 's32[]', space=sflag, size = 0x4, offset = 0, fixed_abs, tag = 'sflag constant byte address 0x0 - dummy sync flag']
  #allocation21 [shape = 's32[]', space=sflag, size = 0x4, offset = 0, fixed_abs, tag = 'sflag constant byte address 0x0 - dummy sync flag']
  #allocation22 [shape = 's32[]', space=sflag, size = 0x4, offset = 0, fixed_abs, tag = 'sflag constant byte address 0x0 - dummy sync flag']
  #allocation23 [shape = 's32[]', space=sflag, size = 0x4, offset = 0, fixed_abs, tag = 'sflag constant byte address 0x0 - dummy sync flag']
  %s0 = inlined_call_operand.vmem [shape: f32[8,128], index: 0, kind: input, shape index: {}]
  %s1 = inlined_call_operand.hbm [shape: f32[1,5888], index: 1, kind: input, shape index: {}]
  %s2 = inlined_call_operand.hbm [shape: bf16[640,128], index: 2, kind: input, shape index: {}]
  %s3 = inlined_call_operand.hbm [shape: bf16[256,512], index: 3, kind: input, shape index: {}]
  %s4 = inlined_call_operand.hbm [shape: bf16[384,768], index: 4, kind: input, shape index: {}]
  %s5 = inlined_call_operand.hbm [shape: bf16[512,1280], index: 5, kind: input, shape index: {}]
  %s6 = inlined_call_operand.hbm [shape: bf16[1920,256], index: 6, kind: input, shape index: {}]
  %s7 = inlined_call_operand.hbm [shape: bf16[384,384], index: 7, kind: input, shape index: {}]
  %s8 = inlined_call_operand.hbm [shape: bf16[384,896], index: 8, kind: input, shape index: {}]
  %s9 = inlined_call_operand.vmem [shape: f32[8,128], index: 9, kind: output, shape index: {}]
  %s10 = sld [smem:[#allocation0]]
  $region62: #{forward.1} parent=0
    _
  %s12 = ssub.s32 1, %s10
  %s13 = scalar_select 0, %s12, %s10
  $region1: #{forward.1} parent=0
    #allocation7 [shape = 'u8[23552]{0}', space=vmem, size = 0x5c00, scoped, tag = 'input window, operand 1, single buffered']
    #allocation8 [shape = 's32[1]{0}', space=sflag, size = 0x4, scoped, tag = 'scoped memory for forward.1']
    #allocation9 [shape = 'u8[163840]{0}', space=vmem, size = 0x28000, scoped, tag = 'input window, operand 2, single buffered']
    #allocation10 [shape = 's32[1]{0}', space=sflag, size = 0x4, scoped, tag = 'scoped memory for forward.1']
    #allocation11 [shape = 'u8[262144]{0}', space=vmem, size = 0x40000, scoped, tag = 'input window, operand 3, single buffered']
    #allocation12 [shape = 'u8[589824]{0}', space=vmem, size = 0x90000, scoped, tag = 'input window, operand 4, single buffered']
    #allocation13 [shape = 's32[1]{0}', space=sflag, size = 0x4, scoped, tag = 'scoped memory for forward.1']
    %14 = vsyncpa [#allocation8], 0
    %15 = vsyncpa [#allocation10], 0
    %16 = vsyncpa [#allocation13], 0
    // Predicated region
    $region2: #{forward.1} parent=1 // pred_check
      _
    $region3: #{forward.1} parent=1 // pred_check_branch
      %18 = sbr.rel (0) target = $region5
    $region4: #{forward.1} parent=1 // pred_region
      _
    $region5: #{forward.1} parent=1 // pred_fallthru
      _
    // Predicated region
    $region6: #{forward.1} parent=1 // pred_check
      _
    $region7: #{forward.1} parent=1 // pred_check_branch
      %20 = sbr.rel (0) target = $region9
    $region8: #{forward.1} parent=1 // pred_region
      %22 = vsyncadd [#allocation8], 0
      %s24 = sshll.u32 %s1, 4
      %s25 = int_to_ptr.hbm [resolvable:$true] %s24
      %s26 = sshll.u32 [#allocation7], 4
      %s27 = int_to_ptr.vmem [resolvable:$true] %s26
      %29 = dma.hbm_to_vmem [thread:$0]  %s25, 736, %s27, [#allocation8]
    $region9: #{forward.1} parent=1 // pred_fallthru
      _
    // Predicated region
    $region10: #{forward.1} parent=1 // pred_check
      _
    $region11: #{forward.1} parent=1 // pred_check_branch
      %31 = sbr.rel (0) target = $region13
    $region12: #{forward.1} parent=1 // pred_region
      %33 = vsyncadd [#allocation10], 0
      %s34 = sshll.u32 %s2, 4
      %s35 = int_to_ptr.hbm [resolvable:$true] %s34
      %s36 = sshll.u32 [#allocation9], 4
      %s37 = int_to_ptr.vmem [resolvable:$true] %s36
      %42 = dma.hbm_to_vmem [thread:$0]  %s35, 5120, %s37, [#allocation10], 64, 64, 4
    $region13: #{forward.1} parent=1 // pred_fallthru
      _
    // Predicated region
    $region14: #{forward.1} parent=1 // pred_check
      _
    $region15: #{forward.1} parent=1 // pred_check_branch
      %44 = sbr.rel (0) target = $region17
    $region16: #{forward.1} parent=1 // pred_region
      %46 = vsyncadd [#allocation10], 0
      %s47 = sshll.u32 %s3, 4
      %s48 = int_to_ptr.hbm [resolvable:$true] %s47
      %s49 = sshll.u32 [#allocation11], 4
      %s50 = int_to_ptr.vmem [resolvable:$true] %s49
      %55 = dma.hbm_to_vmem [thread:$0]  %s48, 8192, %s50, [#allocation10], 256, 256, 16
    $region17: #{forward.1} parent=1 // pred_fallthru
      _
    // Predicated region
    $region18: #{forward.1} parent=1 // pred_check
      _
    $region19: #{forward.1} parent=1 // pred_check_branch
      %57 = sbr.rel (0) target = $region21
    $region20: #{forward.1} parent=1 // pred_region
      %59 = vsyncadd [#allocation13], 0
      %s60 = sshll.u32 %s4, 4
      %s61 = int_to_ptr.hbm [resolvable:$true] %s60
      %s62 = sshll.u32 [#allocation12], 4
      %s63 = int_to_ptr.vmem [resolvable:$true] %s62
      %68 = dma.hbm_to_vmem [thread:$0]  %s61, 18432, %s63, [#allocation13], 384, 384, 24
    $region21: #{forward.1} parent=1 // pred_fallthru
      _
    // Predicated region
    $region22: #{forward.1} parent=1 // pred_check
      _
    $region23: #{forward.1} parent=1 // pred_check_branch
      %70 = sbr.rel (0) target = $region25
    $region24: #{forward.1} parent=1 // pred_region
      %72 = dma.done [#allocation8], 736
    $region25: #{forward.1} parent=1 // pred_fallthru
      _
    // Predicated region
    $region26: #{forward.1} parent=1 // pred_check
      _
    $region27: #{forward.1} parent=1 // pred_check_branch
      %74 = sbr.rel (0) target = $region29
    $region28: #{forward.1} parent=1 // pred_region
      %76 = dma.done [#allocation10], 5120
    $region29: #{forward.1} parent=1 // pred_fallthru
      _
    // Predicated region
    $region30: #{forward.1} parent=1 // pred_check
      _
    $region31: #{forward.1} parent=1 // pred_check_branch
      %78 = sbr.rel (0) target = $region33
    $region32: #{forward.1} parent=1 // pred_region
      %80 = dma.done [#allocation10], 8192
    $region33: #{forward.1} parent=1 // pred_fallthru
      _
    // Predicated region
    $region34: #{forward.1} parent=1 // pred_check
      _
    $region35: #{forward.1} parent=1 // pred_check_branch
      %82 = sbr.rel (0) target = $region37
    $region36: #{forward.1} parent=1 // pred_region
      %84 = dma.done [#allocation13], 18432
    $region37: #{forward.1} parent=1 // pred_fallthru
      _
    // Predicated region
    $region38: #{forward.1} parent=1 // pred_check
      _
    $region39: #{forward.1} parent=1 // pred_check_branch
      %86 = sbr.rel target = $region41
    $region40: #{forward.1} parent=1 // pred_region
      %87 = sst [smem:[#allocation16]] [#allocation15]
      %88 = sst [smem:[#allocation17]] [#allocation14]
    $region41: #{forward.1} parent=1 // pred_fallthru
      _
    %90 = shalt.err (0)
    %s92 = sshll.u32 %s5, 4
    %s93 = int_to_ptr.hbm [resolvable:$true] %s92
    %s94 = sshll.u32 [#allocation2], 4
    %s95 = int_to_ptr.vmem [resolvable:$true] %s94
    %97 = dma.hbm_to_vmem [thread:$0]  %s93, 40960, %s95, [#allocation6]
    %s98 = scalar_lea.sflag [#allocation6], 1
    // Predicated region
    $region42: #{forward.1} parent=1 // pred_check
      _
    $region43: #{forward.1} parent=1 // pred_check_branch
      %100 = sbr.rel target = $region45
    $region44: #{forward.1} parent=1 // pred_region
      %101 = sst [smem:[#allocation16]] [#allocation19]
      %102 = sst [smem:[#allocation17]] [#allocation18]
    $region45: #{forward.1} parent=1 // pred_fallthru
      _
    %104 = shalt.err (0)
    %s106 = sshll.u32 %s6, 4
    %s107 = int_to_ptr.hbm [resolvable:$true] %s106
    %s108 = sshll.u32 [#allocation3], 4
    %s109 = int_to_ptr.vmem [resolvable:$true] %s108
    %111 = dma.hbm_to_vmem [thread:$0]  %s107, 30720, %s109, %s98
    %s112 = scalar_lea.sflag [#allocation6], 2
    // Predicated region
    $region46: #{forward.1} parent=1 // pred_check
      _
    $region47: #{forward.1} parent=1 // pred_check_branch
      %114 = sbr.rel target = $region49
    $region48: #{forward.1} parent=1 // pred_region
      %115 = sst [smem:[#allocation16]] [#allocation21]
      %116 = sst [smem:[#allocation17]] [#allocation20]
    $region49: #{forward.1} parent=1 // pred_fallthru
      _
    %118 = shalt.err (0)
    %s120 = sshll.u32 %s7, 4
    %s121 = int_to_ptr.hbm [resolvable:$true] %s120
    %s122 = sshll.u32 [#allocation4], 4
    %s123 = int_to_ptr.vmem [resolvable:$true] %s122
    %125 = dma.hbm_to_vmem [thread:$0]  %s121, 9216, %s123, %s112
    %s126 = scalar_lea.sflag [#allocation6], 3
    // Predicated region
    $region50: #{forward.1} parent=1 // pred_check
      _
    $region51: #{forward.1} parent=1 // pred_check_branch
      %128 = sbr.rel target = $region53
    $region52: #{forward.1} parent=1 // pred_region
      %129 = sst [smem:[#allocation16]] [#allocation23]
      %130 = sst [smem:[#allocation17]] [#allocation22]
    $region53: #{forward.1} parent=1 // pred_fallthru
      _
    %132 = shalt.err (0)
    %s134 = sshll.u32 %s8, 4
    %s135 = int_to_ptr.hbm [resolvable:$true] %s134
    %s136 = sshll.u32 [#allocation5], 4
    %s137 = int_to_ptr.vmem [resolvable:$true] %s136
    %139 = dma.hbm_to_vmem [thread:$0]  %s135, 21504, %s137, %s126
    %v140 = vld [vmem:[%s0] sm:$0xff]
    %v141 = vld [vmem:[#allocation9] sm:$0xf]
    %v142 = vld [vmem:[#allocation9 + $0x4] sm:$0xf]
    %v143 = vld [vmem:[#allocation9 + $0x8] sm:$0xf]
    %v144 = vld [vmem:[#allocation9 + $0xc] sm:$0xf]
    %v145 = vld [vmem:[#allocation9 + $0x10] sm:$0xf]
    %v146 = vld [vmem:[#allocation9 + $0x14] sm:$0xf]
    %v147 = vld [vmem:[#allocation9 + $0x18] sm:$0xf]
    %v148 = vld [vmem:[#allocation9 + $0x1c] sm:$0xf]
    %v149 = vld [vmem:[#allocation9 + $0x20] sm:$0xf]
    %v150 = vld [vmem:[#allocation9 + $0x24] sm:$0xf]
    %v151 = vld [vmem:[#allocation9 + $0x28] sm:$0xf]
    %v152 = vld [vmem:[#allocation9 + $0x2c] sm:$0xf]
    %v153 = vld [vmem:[#allocation9 + $0x30] sm:$0xf]
    %v154 = vld [vmem:[#allocation9 + $0x34] sm:$0xf]
    %v155 = vld [vmem:[#allocation9 + $0x38] sm:$0xf]
    %v156 = vld [vmem:[#allocation9 + $0x3c] sm:$0xf]
    %v157 = vpack.c.bf16 %v140, %v140
    %v158 = vld [vmem:[#allocation7] sm:$0x1]
    %v160 = vperm.slane %v158, 0
    %v178 = vunpack.c.l.b16 %v141
    %v179 = vunpack.c.l.b16 %v142
    %v180 = vunpack.c.l.b16 %v143
    %v181 = vunpack.c.l.b16 %v144
    %v182 = vunpack.c.l.b16 %v145
    %v183 = vunpack.c.l.b16 %v146
    %v184 = vunpack.c.l.b16 %v147
    %v185 = vunpack.c.l.b16 %v148
    %v186 = vunpack.c.l.b16 %v149
    %v187 = vunpack.c.l.b16 %v150
    %v188 = vunpack.c.l.b16 %v151
    %v189 = vunpack.c.l.b16 %v152
    %v190 = vunpack.c.l.b16 %v153
    %v191 = vunpack.c.l.b16 %v154
    %v192 = vunpack.c.l.b16 %v155
    %v193 = vunpack.c.l.b16 %v156
    %v194 = vpack.c.b16 %v179, %v178
    %v195 = vpack.c.b16 %v181, %v180
    %v196 = vpack.c.b16 %v183, %v182
    %v197 = vpack.c.b16 %v185, %v184
    %v198 = vpack.c.b16 %v187, %v186
    %v199 = vpack.c.b16 %v189, %v188
    %v200 = vpack.c.b16 %v191, %v190
    %v201 = vpack.c.b16 %v193, %v192
    %210 = vmatpush.bf16.msra.mxu0 %v201
    %211 = vmatpush.bf16.msra.mxu0 %v200
    %212 = vmatpush.bf16.msra.mxu0 %v199
    %213 = vmatpush.bf16.msra.mxu0 %v198
    %214 = vmatpush.bf16.msra.mxu0 %v197
    %215 = vmatpush.bf16.msra.mxu0 %v196
    %216 = vmatpush.bf16.msra.mxu0 %v195
    %217 = vmatpush.bf16.msra.mxu0 %v194
    %218 = vmatmul.bf16.gmra.mxu0 %v157
    %v219 = vpop.f32.mrf.mxu0
    %v220 = vadd.f32 %v160, %v219
    %v221 = vpop.f32.mrf.mxu0
    %222 = vdwg.mxu0
    %v223 = vld [vmem:[#allocation9 + $0x40] sm:$0xf]
    %v224 = vld [vmem:[#allocation9 + $0x44] sm:$0xf]
    %v225 = vld [vmem:[#allocation9 + $0x48] sm:$0xf]
    %v226 = vld [vmem:[#allocation9 + $0x4c] sm:$0xf]
    %v227 = vld [vmem:[#allocation9 + $0x50] sm:$0xf]
    %v228 = vld [vmem:[#allocation9 + $0x54] sm:$0xf]
    %v229 = vld [vmem:[#allocation9 + $0x58] sm:$0xf]
    %v230 = vld [vmem:[#allocation9 + $0x5c] sm:$0xf]
    %v231 = vld [vmem:[#allocation9 + $0x60] sm:$0xf]
    %v232 = vld [vmem:[#allocation9 + $0x64] sm:$0xf]
    %v233 = vld [vmem:[#allocation9 + $0x68] sm:$0xf]
    %v234 = vld [vmem:[#allocation9 + $0x6c] sm:$0xf]
    %v235 = vld [vmem:[#allocation9 + $0x70] sm:$0xf]
    %v236 = vld [vmem:[#allocation9 + $0x74] sm:$0xf]
    %v237 = vld [vmem:[#allocation9 + $0x78] sm:$0xf]
    %v238 = vld [vmem:[#allocation9 + $0x7c] sm:$0xf]
    %v239 = vpack.c.bf16 %v220, %v220
    %v240 = vld [vmem:[#allocation7 + $0x1] sm:$0x1]
    %v242 = vperm.slane %v240, 0
    %v260 = vunpack.c.l.b16 %v223
    %v261 = vunpack.c.l.b16 %v224
    %v262 = vunpack.c.l.b16 %v225
    %v263 = vunpack.c.l.b16 %v226
    %v264 = vunpack.c.l.b16 %v227
    %v265 = vunpack.c.l.b16 %v228
    %v266 = vunpack.c.l.b16 %v229
    %v267 = vunpack.c.l.b16 %v230
    %v268 = vunpack.c.l.b16 %v231
    %v269 = vunpack.c.l.b16 %v232
    %v270 = vunpack.c.l.b16 %v233
    %v271 = vunpack.c.l.b16 %v234
    %v272 = vunpack.c.l.b16 %v235
    %v273 = vunpack.c.l.b16 %v236
    %v274 = vunpack.c.l.b16 %v237
    %v275 = vunpack.c.l.b16 %v238
    %v276 = vpack.c.b16 %v261, %v260
    %v277 = vpack.c.b16 %v263, %v262
    %v278 = vpack.c.b16 %v265, %v264
    %v279 = vpack.c.b16 %v267, %v266
    %v280 = vpack.c.b16 %v269, %v268
    %v281 = vpack.c.b16 %v271, %v270
    %v282 = vpack.c.b16 %v273, %v272
    %v283 = vpack.c.b16 %v275, %v274
    %292 = vmatpush.bf16.msra.mxu0 %v283
    %293 = vmatpush.bf16.msra.mxu0 %v282
    %294 = vmatpush.bf16.msra.mxu0 %v281
    %295 = vmatpush.bf16.msra.mxu0 %v280
    %296 = vmatpush.bf16.msra.mxu0 %v279
    %297 = vmatpush.bf16.msra.mxu0 %v278
    %298 = vmatpush.bf16.msra.mxu0 %v277
    %299 = vmatpush.bf16.msra.mxu0 %v276
    %300 = vmatmul.bf16.gmra.mxu0 %v239
    %v301 = vpop.f32.mrf.mxu0
    %v302 = vadd.f32 %v242, %v301
    %v303 = vpop.f32.mrf.mxu0
    %304 = vdwg.mxu0
    %vm305 = vcmp.ge.f32.partialorder %v302, 0.0
    %v306 = vmul.f32 %v302, 0.01
    %v307 = vsel %vm305, %v302, %v306
    %v308 = vld [vmem:[#allocation12] sm:$0xff]
    %v309 = vld [vmem:[#allocation12 + $0x8] sm:$0xff]
    %v310 = vld [vmem:[#allocation12 + $0x10] sm:$0xff]
    %v311 = vld [vmem:[#allocation12 + $0x18] sm:$0xff]
    %v312 = vld [vmem:[#allocation12 + $0x20] sm:$0xff]
    %v313 = vld [vmem:[#allocation12 + $0x28] sm:$0xff]
    %v314 = vld [vmem:[#allocation12 + $0x30] sm:$0xff]
    %v315 = vld [vmem:[#allocation12 + $0x38] sm:$0xff]
    %v316 = vld [vmem:[#allocation12 + $0x40] sm:$0xff]
    %v317 = vld [vmem:[#allocation12 + $0x48] sm:$0xff]
    %v318 = vld [vmem:[#allocation12 + $0x50] sm:$0xff]
    %v319 = vld [vmem:[#allocation12 + $0x58] sm:$0xff]
    %v320 = vld [vmem:[#allocation12 + $0x60] sm:$0xff]
    %v321 = vld [vmem:[#allocation12 + $0x68] sm:$0xff]
    %v322 = vld [vmem:[#allocation12 + $0x70] sm:$0xff]
    %v323 = vld [vmem:[#allocation12 + $0x78] sm:$0xff]
    %v324 = vld [vmem:[#allocation12 + $0x80] sm:$0xff]
    %v325 = vld [vmem:[#allocation12 + $0x88] sm:$0xff]
    %v326 = vld [vmem:[#allocation12 + $0x90] sm:$0xff]
    %v327 = vld [vmem:[#allocation12 + $0x98] sm:$0xff]
    %v328 = vld [vmem:[#allocation12 + $0xa0] sm:$0xff]
    %v329 = vld [vmem:[#allocation12 + $0xa8] sm:$0xff]
    %v330 = vld [vmem:[#allocation12 + $0xb0] sm:$0xff]
    %v331 = vld [vmem:[#allocation12 + $0xb8] sm:$0xff]
    %v332 = vld [vmem:[#allocation12 + $0xc0] sm:$0xff]
    %v333 = vld [vmem:[#allocation12 + $0xc8] sm:$0xff]
    %v334 = vld [vmem:[#allocation12 + $0xd0] sm:$0xff]
    %v335 = vld [vmem:[#allocation12 + $0xd8] sm:$0xff]
    %v336 = vld [vmem:[#allocation12 + $0xe0] sm:$0xff]
    %v337 = vld [vmem:[#allocation12 + $0xe8] sm:$0xff]
    %v338 = vld [vmem:[#allocation12 + $0xf0] sm:$0xff]
    %v339 = vld [vmem:[#allocation12 + $0xf8] sm:$0xff]
    %v340 = vld [vmem:[#allocation12 + $0x100] sm:$0xff]
    %v341 = vld [vmem:[#allocation12 + $0x108] sm:$0xff]
    %v342 = vld [vmem:[#allocation12 + $0x110] sm:$0xff]
    %v343 = vld [vmem:[#allocation12 + $0x118] sm:$0xff]
    %v344 = vld [vmem:[#allocation12 + $0x120] sm:$0xff]
    %v345 = vld [vmem:[#allocation12 + $0x128] sm:$0xff]
    %v346 = vld [vmem:[#allocation12 + $0x130] sm:$0xff]
    %v347 = vld [vmem:[#allocation12 + $0x138] sm:$0xff]
    %v348 = vld [vmem:[#allocation12 + $0x140] sm:$0xff]
    %v349 = vld [vmem:[#allocation12 + $0x148] sm:$0xff]
    %v350 = vld [vmem:[#allocation12 + $0x150] sm:$0xff]
    %v351 = vld [vmem:[#allocation12 + $0x158] sm:$0xff]
    %v352 = vld [vmem:[#allocation12 + $0x160] sm:$0xff]
    %v353 = vld [vmem:[#allocation12 + $0x168] sm:$0xff]
    %v354 = vld [vmem:[#allocation12 + $0x170] sm:$0xff]
    %v355 = vld [vmem:[#allocation12 + $0x178] sm:$0xff]
    %v356 = vpack.c.bf16 %v307, %v307
    %v357 = vld [vmem:[#allocation7 + $0x11] sm:$0x3f]
    %v359 = vperm.slane %v357, 0
    %v360 = vperm.slane %v357, 1
    %v361 = vperm.slane %v357, 2
    %v362 = vperm.slane %v357, 3
    %v363 = vperm.slane %v357, 4
    %v364 = vperm.slane %v357, 5
    %v419 = vunpack.c.l.b16 %v308
    %v420 = vunpack.c.h.b16 %v308
    %v421 = vunpack.c.l.b16 %v309
    %v422 = vunpack.c.h.b16 %v309
    %v423 = vunpack.c.l.b16 %v310
    %v424 = vunpack.c.h.b16 %v310
    %v425 = vunpack.c.l.b16 %v311
    %v426 = vunpack.c.h.b16 %v311
    %v427 = vunpack.c.l.b16 %v312
    %v428 = vunpack.c.h.b16 %v312
    %v429 = vunpack.c.l.b16 %v313
    %v430 = vunpack.c.h.b16 %v313
    %v431 = vunpack.c.l.b16 %v314
    %v432 = vunpack.c.h.b16 %v314
    %v433 = vunpack.c.l.b16 %v315
    %v434 = vunpack.c.h.b16 %v315
    %v435 = vunpack.c.l.b16 %v316
    %v436 = vunpack.c.h.b16 %v316
    %v437 = vunpack.c.l.b16 %v317
    %v438 = vunpack.c.h.b16 %v317
    %v439 = vunpack.c.l.b16 %v318
    %v440 = vunpack.c.h.b16 %v318
    %v441 = vunpack.c.l.b16 %v319
    %v442 = vunpack.c.h.b16 %v319
    %v443 = vunpack.c.l.b16 %v320
    %v444 = vunpack.c.h.b16 %v320
    %v445 = vunpack.c.l.b16 %v321
    %v446 = vunpack.c.h.b16 %v321
    %v447 = vunpack.c.l.b16 %v322
    %v448 = vunpack.c.h.b16 %v322
    %v449 = vunpack.c.l.b16 %v323
    %v450 = vunpack.c.h.b16 %v323
    %v451 = vunpack.c.l.b16 %v324
    %v452 = vunpack.c.h.b16 %v324
    %v453 = vunpack.c.l.b16 %v325
    %v454 = vunpack.c.h.b16 %v325
    %v455 = vunpack.c.l.b16 %v326
    %v456 = vunpack.c.h.b16 %v326
    %v457 = vunpack.c.l.b16 %v327
    %v458 = vunpack.c.h.b16 %v327
    %v459 = vunpack.c.l.b16 %v328
    %v460 = vunpack.c.h.b16 %v328
    %v461 = vunpack.c.l.b16 %v329
    %v462 = vunpack.c.h.b16 %v329
    %v463 = vunpack.c.l.b16 %v330
    %v464 = vunpack.c.h.b16 %v330
    %v465 = vunpack.c.l.b16 %v331
    %v466 = vunpack.c.h.b16 %v331
    %v467 = vunpack.c.l.b16 %v332
    %v468 = vunpack.c.h.b16 %v332
    %v469 = vunpack.c.l.b16 %v333
    %v470 = vunpack.c.h.b16 %v333
    %v471 = vunpack.c.l.b16 %v334
    %v472 = vunpack.c.h.b16 %v334
    %v473 = vunpack.c.l.b16 %v335
    %v474 = vunpack.c.h.b16 %v335
    %v475 = vunpack.c.l.b16 %v336
    %v476 = vunpack.c.h.b16 %v336
    %v477 = vunpack.c.l.b16 %v337
    %v478 = vunpack.c.h.b16 %v337
    %v479 = vunpack.c.l.b16 %v338
    %v480 = vunpack.c.h.b16 %v338
    %v481 = vunpack.c.l.b16 %v339
    %v482 = vunpack.c.h.b16 %v339
    %v483 = vunpack.c.l.b16 %v340
    %v484 = vunpack.c.h.b16 %v340
    %v485 = vunpack.c.l.b16 %v341
    %v486 = vunpack.c.h.b16 %v341
    %v487 = vunpack.c.l.b16 %v342
    %v488 = vunpack.c.h.b16 %v342
    %v489 = vunpack.c.l.b16 %v343
    %v490 = vunpack.c.h.b16 %v343
    %v491 = vunpack.c.l.b16 %v344
    %v492 = vunpack.c.h.b16 %v344
    %v493 = vunpack.c.l.b16 %v345
    %v494 = vunpack.c.h.b16 %v345
    %v495 = vunpack.c.l.b16 %v346
    %v496 = vunpack.c.h.b16 %v346
    %v497 = vunpack.c.l.b16 %v347
    %v498 = vunpack.c.h.b16 %v347
    %v499 = vunpack.c.l.b16 %v348
    %v500 = vunpack.c.h.b16 %v348
    %v501 = vunpack.c.l.b16 %v349
    %v502 = vunpack.c.h.b16 %v349
    %v503 = vunpack.c.l.b16 %v350
    %v504 = vunpack.c.h.b16 %v350
    %v505 = vunpack.c.l.b16 %v351
    %v506 = vunpack.c.h.b16 %v351
    %v507 = vunpack.c.l.b16 %v352
    %v508 = vunpack.c.h.b16 %v352
    %v509 = vunpack.c.l.b16 %v353
    %v510 = vunpack.c.h.b16 %v353
    %v511 = vunpack.c.l.b16 %v354
    %v512 = vunpack.c.h.b16 %v354
    %v513 = vunpack.c.l.b16 %v355
    %v514 = vunpack.c.h.b16 %v355
    %v515 = vpack.c.b16 %v425, %v419
    %v516 = vpack.c.b16 %v426, %v420
    %v517 = vpack.c.b16 %v427, %v421
    %v518 = vpack.c.b16 %v428, %v422
    %v519 = vpack.c.b16 %v429, %v423
    %v520 = vpack.c.b16 %v430, %v424
    %v521 = vpack.c.b16 %v437, %v431
    %v522 = vpack.c.b16 %v438, %v432
    %v523 = vpack.c.b16 %v439, %v433
    %v524 = vpack.c.b16 %v440, %v434
    %v525 = vpack.c.b16 %v441, %v435
    %v526 = vpack.c.b16 %v442, %v436
    %v527 = vpack.c.b16 %v449, %v443
    %v528 = vpack.c.b16 %v450, %v444
    %v529 = vpack.c.b16 %v451, %v445
    %v530 = vpack.c.b16 %v452, %v446
    %v531 = vpack.c.b16 %v453, %v447
    %v532 = vpack.c.b16 %v454, %v448
    %v533 = vpack.c.b16 %v461, %v455
    %v534 = vpack.c.b16 %v462, %v456
    %v535 = vpack.c.b16 %v463, %v457
    %v536 = vpack.c.b16 %v464, %v458
    %v537 = vpack.c.b16 %v465, %v459
    %v538 = vpack.c.b16 %v466, %v460
    %v539 = vpack.c.b16 %v473, %v467
    %v540 = vpack.c.b16 %v474, %v468
    %v541 = vpack.c.b16 %v475, %v469
    %v542 = vpack.c.b16 %v476, %v470
    %v543 = vpack.c.b16 %v477, %v471
    %v544 = vpack.c.b16 %v478, %v472
    %v545 = vpack.c.b16 %v485, %v479
    %v546 = vpack.c.b16 %v486, %v480
    %v547 = vpack.c.b16 %v487, %v481
    %v548 = vpack.c.b16 %v488, %v482
    %v549 = vpack.c.b16 %v489, %v483
    %v550 = vpack.c.b16 %v490, %v484
    %v551 = vpack.c.b16 %v497, %v491
    %v552 = vpack.c.b16 %v498, %v492
    %v553 = vpack.c.b16 %v499, %v493
    %v554 = vpack.c.b16 %v500, %v494
    %v555 = vpack.c.b16 %v501, %v495
    %v556 = vpack.c.b16 %v502, %v496
    %v557 = vpack.c.b16 %v509, %v503
    %v558 = vpack.c.b16 %v510, %v504
    %v559 = vpack.c.b16 %v511, %v505
    %v560 = vpack.c.b16 %v512, %v506
    %v561 = vpack.c.b16 %v513, %v507
    %v562 = vpack.c.b16 %v514, %v508
    %611 = vmatpush.bf16.msra.mxu0 %v557
    %612 = vmatpush.bf16.msra.mxu0 %v551
    %613 = vmatpush.bf16.msra.mxu0 %v545
    %614 = vmatpush.bf16.msra.mxu0 %v539
    %615 = vmatpush.bf16.msra.mxu0 %v533
    %616 = vmatpush.bf16.msra.mxu0 %v527
    %617 = vmatpush.bf16.msra.mxu0 %v521
    %618 = vmatpush.bf16.msra.mxu0 %v515
    %619 = vmatmul.bf16.gmra.mxu0 %v356
    %v620 = vpop.f32.mrf.mxu0
    %v621 = vadd.f32 %v359, %v620
    %v622 = vpop.f32.mrf.mxu0
    %623 = vdwg.mxu0
    %624 = vmatpush.bf16.msra.mxu0 %v558
    %625 = vmatpush.bf16.msra.mxu0 %v552
    %626 = vmatpush.bf16.msra.mxu0 %v546
    %627 = vmatpush.bf16.msra.mxu0 %v540
    %628 = vmatpush.bf16.msra.mxu0 %v534
    %629 = vmatpush.bf16.msra.mxu0 %v528
    %630 = vmatpush.bf16.msra.mxu0 %v522
    %631 = vmatpush.bf16.msra.mxu0 %v516
    %632 = vmatmul.bf16.gmra.mxu0 %v356
    %v633 = vpop.f32.mrf.mxu0
    %v634 = vadd.f32 %v360, %v633
    %v635 = vpop.f32.mrf.mxu0
    %636 = vdwg.mxu0
    %637 = vmatpush.bf16.msra.mxu0 %v559
    %638 = vmatpush.bf16.msra.mxu0 %v553
    %639 = vmatpush.bf16.msra.mxu0 %v547
    %640 = vmatpush.bf16.msra.mxu0 %v541
    %641 = vmatpush.bf16.msra.mxu0 %v535
    %642 = vmatpush.bf16.msra.mxu0 %v529
    %643 = vmatpush.bf16.msra.mxu0 %v523
    %644 = vmatpush.bf16.msra.mxu0 %v517
    %645 = vmatmul.bf16.gmra.mxu0 %v356
    %v646 = vpop.f32.mrf.mxu0
    %v647 = vadd.f32 %v361, %v646
    %v648 = vpop.f32.mrf.mxu0
    %649 = vdwg.mxu0
    %650 = vmatpush.bf16.msra.mxu0 %v560
    %651 = vmatpush.bf16.msra.mxu0 %v554
    %652 = vmatpush.bf16.msra.mxu0 %v548
    %653 = vmatpush.bf16.msra.mxu0 %v542
    %654 = vmatpush.bf16.msra.mxu0 %v536
    %655 = vmatpush.bf16.msra.mxu0 %v530
    %656 = vmatpush.bf16.msra.mxu0 %v524
    %657 = vmatpush.bf16.msra.mxu0 %v518
    %658 = vmatmul.bf16.gmra.mxu0 %v356
    %v659 = vpop.f32.mrf.mxu0
    %v660 = vadd.f32 %v362, %v659
    %v661 = vpop.f32.mrf.mxu0
    %662 = vdwg.mxu0
    %663 = vmatpush.bf16.msra.mxu0 %v561
    %664 = vmatpush.bf16.msra.mxu0 %v555
    %665 = vmatpush.bf16.msra.mxu0 %v549
    %666 = vmatpush.bf16.msra.mxu0 %v543
    %667 = vmatpush.bf16.msra.mxu0 %v537
    %668 = vmatpush.bf16.msra.mxu0 %v531
    %669 = vmatpush.bf16.msra.mxu0 %v525
    %670 = vmatpush.bf16.msra.mxu0 %v519
    %671 = vmatmul.bf16.gmra.mxu0 %v356
    %v672 = vpop.f32.mrf.mxu0
    %v673 = vadd.f32 %v363, %v672
    %v674 = vpop.f32.mrf.mxu0
    %675 = vdwg.mxu0
    %676 = vmatpush.bf16.msra.mxu0 %v562
    %677 = vmatpush.bf16.msra.mxu0 %v556
    %678 = vmatpush.bf16.msra.mxu0 %v550
    %679 = vmatpush.bf16.msra.mxu0 %v544
    %680 = vmatpush.bf16.msra.mxu0 %v538
    %681 = vmatpush.bf16.msra.mxu0 %v532
    %682 = vmatpush.bf16.msra.mxu0 %v526
    %683 = vmatpush.bf16.msra.mxu0 %v520
    %684 = vmatmul.bf16.gmra.mxu0 %v356
    %v685 = vpop.f32.mrf.mxu0
    %v686 = vadd.f32 %v364, %v685
    %v687 = vpop.f32.mrf.mxu0
    %688 = vdwg.mxu0
    %vm689 = vcmp.ge.f32.partialorder %v621, 0.0
    %vm690 = vcmp.ge.f32.partialorder %v634, 0.0
    %vm691 = vcmp.ge.f32.partialorder %v647, 0.0
    %vm692 = vcmp.ge.f32.partialorder %v660, 0.0
    %vm693 = vcmp.ge.f32.partialorder %v673, 0.0
    %vm694 = vcmp.ge.f32.partialorder %v686, 0.0
    %v695 = vmul.f32 %v621, 0.01
    %v696 = vmul.f32 %v634, 0.01
    %v697 = vmul.f32 %v647, 0.01
    %v698 = vmul.f32 %v660, 0.01
    %v699 = vmul.f32 %v673, 0.01
    %v700 = vmul.f32 %v686, 0.01
    %v701 = vsel %vm689, %v621, %v695
    %v702 = vsel %vm690, %v634, %v696
    %v703 = vsel %vm691, %v647, %v697
    %v704 = vsel %vm692, %v660, %v698
    %v705 = vsel %vm693, %v673, %v699
    %v706 = vsel %vm694, %v686, %v700
    %v707 = vld [vmem:[#allocation11] sm:$0xff]
    %v708 = vld [vmem:[#allocation11 + $0x8] sm:$0xff]
    %v709 = vld [vmem:[#allocation11 + $0x10] sm:$0xff]
    %v710 = vld [vmem:[#allocation11 + $0x18] sm:$0xff]
    %v711 = vld [vmem:[#allocation11 + $0x20] sm:$0xff]
    %v712 = vld [vmem:[#allocation11 + $0x28] sm:$0xff]
    %v713 = vld [vmem:[#allocation11 + $0x30] sm:$0xff]
    %v714 = vld [vmem:[#allocation11 + $0x38] sm:$0xff]
    %v715 = vld [vmem:[#allocation11 + $0x40] sm:$0xff]
    %v716 = vld [vmem:[#allocation11 + $0x48] sm:$0xff]
    %v717 = vld [vmem:[#allocation11 + $0x50] sm:$0xff]
    %v718 = vld [vmem:[#allocation11 + $0x58] sm:$0xff]
    %v719 = vld [vmem:[#allocation11 + $0x60] sm:$0xff]
    %v720 = vld [vmem:[#allocation11 + $0x68] sm:$0xff]
    %v721 = vld [vmem:[#allocation11 + $0x70] sm:$0xff]
    %v722 = vld [vmem:[#allocation11 + $0x78] sm:$0xff]
    %v723 = vld [vmem:[#allocation11 + $0x80] sm:$0xff]
    %v724 = vld [vmem:[#allocation11 + $0x88] sm:$0xff]
    %v725 = vld [vmem:[#allocation11 + $0x90] sm:$0xff]
    %v726 = vld [vmem:[#allocation11 + $0x98] sm:$0xff]
    %v727 = vld [vmem:[#allocation11 + $0xa0] sm:$0xff]
    %v728 = vld [vmem:[#allocation11 + $0xa8] sm:$0xff]
    %v729 = vld [vmem:[#allocation11 + $0xb0] sm:$0xff]
    %v730 = vld [vmem:[#allocation11 + $0xb8] sm:$0xff]
    %v731 = vld [vmem:[#allocation11 + $0xc0] sm:$0xff]
    %v732 = vld [vmem:[#allocation11 + $0xc8] sm:$0xff]
    %v733 = vld [vmem:[#allocation11 + $0xd0] sm:$0xff]
    %v734 = vld [vmem:[#allocation11 + $0xd8] sm:$0xff]
    %v735 = vld [vmem:[#allocation11 + $0xe0] sm:$0xff]
    %v736 = vld [vmem:[#allocation11 + $0xe8] sm:$0xff]
    %v737 = vld [vmem:[#allocation11 + $0xf0] sm:$0xff]
    %v738 = vld [vmem:[#allocation11 + $0xf8] sm:$0xff]
    %v739 = vld [vmem:[#allocation11 + $0x100] sm:$0xff]
    %v740 = vld [vmem:[#allocation11 + $0x108] sm:$0xff]
    %v741 = vld [vmem:[#allocation11 + $0x110] sm:$0xff]
    %v742 = vld [vmem:[#allocation11 + $0x118] sm:$0xff]
    %v743 = vld [vmem:[#allocation11 + $0x120] sm:$0xff]
    %v744 = vld [vmem:[#allocation11 + $0x128] sm:$0xff]
    %v745 = vld [vmem:[#allocation11 + $0x130] sm:$0xff]
    %v746 = vld [vmem:[#allocation11 + $0x138] sm:$0xff]
    %v747 = vld [vmem:[#allocation11 + $0x140] sm:$0xff]
    %v748 = vld [vmem:[#allocation11 + $0x148] sm:$0xff]
    %v749 = vld [vmem:[#allocation11 + $0x150] sm:$0xff]
    %v750 = vld [vmem:[#allocation11 + $0x158] sm:$0xff]
    %v751 = vld [vmem:[#allocation11 + $0x160] sm:$0xff]
    %v752 = vld [vmem:[#allocation11 + $0x168] sm:$0xff]
    %v753 = vld [vmem:[#allocation11 + $0x170] sm:$0xff]
    %v754 = vld [vmem:[#allocation11 + $0x178] sm:$0xff]
    %v755 = vld [vmem:[#allocation11 + $0x180] sm:$0xff]
    %v756 = vld [vmem:[#allocation11 + $0x188] sm:$0xff]
    %v757 = vld [vmem:[#allocation11 + $0x190] sm:$0xff]
    %v758 = vld [vmem:[#allocation11 + $0x198] sm:$0xff]
    %v759 = vld [vmem:[#allocation11 + $0x1a0] sm:$0xff]
    %v760 = vld [vmem:[#allocation11 + $0x1a8] sm:$0xff]
    %v761 = vld [vmem:[#allocation11 + $0x1b0] sm:$0xff]
    %v762 = vld [vmem:[#allocation11 + $0x1b8] sm:$0xff]
    %v763 = vld [vmem:[#allocation11 + $0x1c0] sm:$0xff]
    %v764 = vld [vmem:[#allocation11 + $0x1c8] sm:$0xff]
    %v765 = vld [vmem:[#allocation11 + $0x1d0] sm:$0xff]
    %v766 = vld [vmem:[#allocation11 + $0x1d8] sm:$0xff]
    %v767 = vld [vmem:[#allocation11 + $0x1e0] sm:$0xff]
    %v768 = vld [vmem:[#allocation11 + $0x1e8] sm:$0xff]
    %v769 = vld [vmem:[#allocation11 + $0x1f0] sm:$0xff]
    %v770 = vld [vmem:[#allocation11 + $0x1f8] sm:$0xff]
    %v771 = vpack.c.bf16 %v705, %v705
    %v772 = vpack.c.bf16 %v706, %v706
    %v773 = vld [vmem:[#allocation7 + $0xd] sm:$0xf]
    %v775 = vperm.slane %v773, 0
    %v776 = vperm.slane %v773, 1
    %v777 = vperm.slane %v773, 2
    %v778 = vperm.slane %v773, 3
    %v847 = vunpack.c.l.b16 %v707
    %v848 = vunpack.c.h.b16 %v707
    %v849 = vunpack.c.l.b16 %v708
    %v850 = vunpack.c.h.b16 %v708
    %v851 = vunpack.c.l.b16 %v709
    %v852 = vunpack.c.h.b16 %v709
    %v853 = vunpack.c.l.b16 %v710
    %v854 = vunpack.c.h.b16 %v710
    %v855 = vunpack.c.l.b16 %v711
    %v856 = vunpack.c.h.b16 %v711
    %v857 = vunpack.c.l.b16 %v712
    %v858 = vunpack.c.h.b16 %v712
    %v859 = vunpack.c.l.b16 %v713
    %v860 = vunpack.c.h.b16 %v713
    %v861 = vunpack.c.l.b16 %v714
    %v862 = vunpack.c.h.b16 %v714
    %v863 = vunpack.c.l.b16 %v715
    %v864 = vunpack.c.h.b16 %v715
    %v865 = vunpack.c.l.b16 %v716
    %v866 = vunpack.c.h.b16 %v716
    %v867 = vunpack.c.l.b16 %v717
    %v868 = vunpack.c.h.b16 %v717
    %v869 = vunpack.c.l.b16 %v718
    %v870 = vunpack.c.h.b16 %v718
    %v871 = vunpack.c.l.b16 %v719
    %v872 = vunpack.c.h.b16 %v719
    %v873 = vunpack.c.l.b16 %v720
    %v874 = vunpack.c.h.b16 %v720
    %v875 = vunpack.c.l.b16 %v721
    %v876 = vunpack.c.h.b16 %v721
    %v877 = vunpack.c.l.b16 %v722
    %v878 = vunpack.c.h.b16 %v722
    %v879 = vunpack.c.l.b16 %v723
    %v880 = vunpack.c.h.b16 %v723
    %v881 = vunpack.c.l.b16 %v724
    %v882 = vunpack.c.h.b16 %v724
    %v883 = vunpack.c.l.b16 %v725
    %v884 = vunpack.c.h.b16 %v725
    %v885 = vunpack.c.l.b16 %v726
    %v886 = vunpack.c.h.b16 %v726
    %v887 = vunpack.c.l.b16 %v727
    %v888 = vunpack.c.h.b16 %v727
    %v889 = vunpack.c.l.b16 %v728
    %v890 = vunpack.c.h.b16 %v728
    %v891 = vunpack.c.l.b16 %v729
    %v892 = vunpack.c.h.b16 %v729
    %v893 = vunpack.c.l.b16 %v730
    %v894 = vunpack.c.h.b16 %v730
    %v895 = vunpack.c.l.b16 %v731
    %v896 = vunpack.c.h.b16 %v731
    %v897 = vunpack.c.l.b16 %v732
    %v898 = vunpack.c.h.b16 %v732
    %v899 = vunpack.c.l.b16 %v733
    %v900 = vunpack.c.h.b16 %v733
    %v901 = vunpack.c.l.b16 %v734
    %v902 = vunpack.c.h.b16 %v734
    %v903 = vunpack.c.l.b16 %v735
    %v904 = vunpack.c.h.b16 %v735
    %v905 = vunpack.c.l.b16 %v736
    %v906 = vunpack.c.h.b16 %v736
    %v907 = vunpack.c.l.b16 %v737
    %v908 = vunpack.c.h.b16 %v737
    %v909 = vunpack.c.l.b16 %v738
    %v910 = vunpack.c.h.b16 %v738
    %v911 = vunpack.c.l.b16 %v739
    %v912 = vunpack.c.h.b16 %v739
    %v913 = vunpack.c.l.b16 %v740
    %v914 = vunpack.c.h.b16 %v740
    %v915 = vunpack.c.l.b16 %v741
    %v916 = vunpack.c.h.b16 %v741
    %v917 = vunpack.c.l.b16 %v742
    %v918 = vunpack.c.h.b16 %v742
    %v919 = vunpack.c.l.b16 %v743
    %v920 = vunpack.c.h.b16 %v743
    %v921 = vunpack.c.l.b16 %v744
    %v922 = vunpack.c.h.b16 %v744
    %v923 = vunpack.c.l.b16 %v745
    %v924 = vunpack.c.h.b16 %v745
    %v925 = vunpack.c.l.b16 %v746
    %v926 = vunpack.c.h.b16 %v746
    %v927 = vunpack.c.l.b16 %v747
    %v928 = vunpack.c.h.b16 %v747
    %v929 = vunpack.c.l.b16 %v748
    %v930 = vunpack.c.h.b16 %v748
    %v931 = vunpack.c.l.b16 %v749
    %v932 = vunpack.c.h.b16 %v749
    %v933 = vunpack.c.l.b16 %v750
    %v934 = vunpack.c.h.b16 %v750
    %v935 = vunpack.c.l.b16 %v751
    %v936 = vunpack.c.h.b16 %v751
    %v937 = vunpack.c.l.b16 %v752
    %v938 = vunpack.c.h.b16 %v752
    %v939 = vunpack.c.l.b16 %v753
    %v940 = vunpack.c.h.b16 %v753
    %v941 = vunpack.c.l.b16 %v754
    %v942 = vunpack.c.h.b16 %v754
    %v943 = vunpack.c.l.b16 %v755
    %v944 = vunpack.c.h.b16 %v755
    %v945 = vunpack.c.l.b16 %v756
    %v946 = vunpack.c.h.b16 %v756
    %v947 = vunpack.c.l.b16 %v757
    %v948 = vunpack.c.h.b16 %v757
    %v949 = vunpack.c.l.b16 %v758
    %v950 = vunpack.c.h.b16 %v758
    %v951 = vunpack.c.l.b16 %v759
    %v952 = vunpack.c.h.b16 %v759
    %v953 = vunpack.c.l.b16 %v760
    %v954 = vunpack.c.h.b16 %v760
    %v955 = vunpack.c.l.b16 %v761
    %v956 = vunpack.c.h.b16 %v761
    %v957 = vunpack.c.l.b16 %v762
    %v958 = vunpack.c.h.b16 %v762
    %v959 = vunpack.c.l.b16 %v763
    %v960 = vunpack.c.h.b16 %v763
    %v961 = vunpack.c.l.b16 %v764
    %v962 = vunpack.c.h.b16 %v764
    %v963 = vunpack.c.l.b16 %v765
    %v964 = vunpack.c.h.b16 %v765
    %v965 = vunpack.c.l.b16 %v766
    %v966 = vunpack.c.h.b16 %v766
    %v967 = vunpack.c.l.b16 %v767
    %v968 = vunpack.c.h.b16 %v767
    %v969 = vunpack.c.l.b16 %v768
    %v970 = vunpack.c.h.b16 %v768
    %v971 = vunpack.c.l.b16 %v769
    %v972 = vunpack.c.h.b16 %v769
    %v973 = vunpack.c.l.b16 %v770
    %v974 = vunpack.c.h.b16 %v770
    %v975 = vpack.c.b16 %v851, %v847
    %v976 = vpack.c.b16 %v852, %v848
    %v977 = vpack.c.b16 %v853, %v849
    %v978 = vpack.c.b16 %v854, %v850
    %v979 = vpack.c.b16 %v859, %v855
    %v980 = vpack.c.b16 %v860, %v856
    %v981 = vpack.c.b16 %v861, %v857
    %v982 = vpack.c.b16 %v862, %v858
    %v983 = vpack.c.b16 %v867, %v863
    %v984 = vpack.c.b16 %v868, %v864
    %v985 = vpack.c.b16 %v869, %v865
    %v986 = vpack.c.b16 %v870, %v866
    %v987 = vpack.c.b16 %v875, %v871
    %v988 = vpack.c.b16 %v876, %v872
    %v989 = vpack.c.b16 %v877, %v873
    %v990 = vpack.c.b16 %v878, %v874
    %v991 = vpack.c.b16 %v883, %v879
    %v992 = vpack.c.b16 %v884, %v880
    %v993 = vpack.c.b16 %v885, %v881
    %v994 = vpack.c.b16 %v886, %v882
    %v995 = vpack.c.b16 %v891, %v887
    %v996 = vpack.c.b16 %v892, %v888
    %v997 = vpack.c.b16 %v893, %v889
    %v998 = vpack.c.b16 %v894, %v890
    %v999 = vpack.c.b16 %v899, %v895
    %v1000 = vpack.c.b16 %v900, %v896
    %v1001 = vpack.c.b16 %v901, %v897
    %v1002 = vpack.c.b16 %v902, %v898
    %v1003 = vpack.c.b16 %v907, %v903
    %v1004 = vpack.c.b16 %v908, %v904
    %v1005 = vpack.c.b16 %v909, %v905
    %v1006 = vpack.c.b16 %v910, %v906
    %v1007 = vpack.c.b16 %v915, %v911
    %v1008 = vpack.c.b16 %v916, %v912
    %v1009 = vpack.c.b16 %v917, %v913
    %v1010 = vpack.c.b16 %v918, %v914
    %v1011 = vpack.c.b16 %v923, %v919
    %v1012 = vpack.c.b16 %v924, %v920
    %v1013 = vpack.c.b16 %v925, %v921
    %v1014 = vpack.c.b16 %v926, %v922
    %v1015 = vpack.c.b16 %v931, %v927
    %v1016 = vpack.c.b16 %v932, %v928
    %v1017 = vpack.c.b16 %v933, %v929
    %v1018 = vpack.c.b16 %v934, %v930
    %v1019 = vpack.c.b16 %v939, %v935
    %v1020 = vpack.c.b16 %v940, %v936
    %v1021 = vpack.c.b16 %v941, %v937
    %v1022 = vpack.c.b16 %v942, %v938
    %v1023 = vpack.c.b16 %v947, %v943
    %v1024 = vpack.c.b16 %v948, %v944
    %v1025 = vpack.c.b16 %v949, %v945
    %v1026 = vpack.c.b16 %v950, %v946
    %v1027 = vpack.c.b16 %v955, %v951
    %v1028 = vpack.c.b16 %v956, %v952
    %v1029 = vpack.c.b16 %v957, %v953
    %v1030 = vpack.c.b16 %v958, %v954
    %v1031 = vpack.c.b16 %v963, %v959
    %v1032 = vpack.c.b16 %v964, %v960
    %v1033 = vpack.c.b16 %v965, %v961
    %v1034 = vpack.c.b16 %v966, %v962
    %v1035 = vpack.c.b16 %v971, %v967
    %v1036 = vpack.c.b16 %v972, %v968
    %v1037 = vpack.c.b16 %v973, %v969
    %v1038 = vpack.c.b16 %v974, %v970
    %1103 = vmatpush.bf16.msra.mxu0 %v1003
    %1104 = vmatpush.bf16.msra.mxu0 %v999
    %1105 = vmatpush.bf16.msra.mxu0 %v995
    %1106 = vmatpush.bf16.msra.mxu0 %v991
    %1107 = vmatpush.bf16.msra.mxu0 %v987
    %1108 = vmatpush.bf16.msra.mxu0 %v983
    %1109 = vmatpush.bf16.msra.mxu0 %v979
    %1110 = vmatpush.bf16.msra.mxu0 %v975
    %1111 = vmatmul.bf16.gmra.mxu0 %v771
    %v1112 = vpop.f32.mrf.mxu0
    %v1113 = vadd.f32 %v775, %v1112
    %v1114 = vpop.f32.mrf.mxu0
    %1115 = vdwg.mxu0
    %1116 = vmatpush.bf16.msra.mxu0 %v1035
    %1117 = vmatpush.bf16.msra.mxu0 %v1031
    %1118 = vmatpush.bf16.msra.mxu0 %v1027
    %1119 = vmatpush.bf16.msra.mxu0 %v1023
    %1120 = vmatpush.bf16.msra.mxu0 %v1019
    %1121 = vmatpush.bf16.msra.mxu0 %v1015
    %1122 = vmatpush.bf16.msra.mxu0 %v1011
    %1123 = vmatpush.bf16.msra.mxu0 %v1007
    %1124 = vmatmul.bf16.gmra.mxu0 %v772
    %v1125 = vpop.f32.mrf.mxu0
    %v1126 = vadd.f32 %v1113, %v1125
    %v1127 = vpop.f32.mrf.mxu0
    %1128 = vdwg.mxu0
    %1129 = vmatpush.bf16.msra.mxu0 %v1004
    %1130 = vmatpush.bf16.msra.mxu0 %v1000
    %1131 = vmatpush.bf16.msra.mxu0 %v996
    %1132 = vmatpush.bf16.msra.mxu0 %v992
    %1133 = vmatpush.bf16.msra.mxu0 %v988
    %1134 = vmatpush.bf16.msra.mxu0 %v984
    %1135 = vmatpush.bf16.msra.mxu0 %v980
    %1136 = vmatpush.bf16.msra.mxu0 %v976
    %1137 = vmatmul.bf16.gmra.mxu0 %v771
    %v1138 = vpop.f32.mrf.mxu0
    %v1139 = vadd.f32 %v776, %v1138
    %v1140 = vpop.f32.mrf.mxu0
    %1141 = vdwg.mxu0
    %1142 = vmatpush.bf16.msra.mxu0 %v1036
    %1143 = vmatpush.bf16.msra.mxu0 %v1032
    %1144 = vmatpush.bf16.msra.mxu0 %v1028
    %1145 = vmatpush.bf16.msra.mxu0 %v1024
    %1146 = vmatpush.bf16.msra.mxu0 %v1020
    %1147 = vmatpush.bf16.msra.mxu0 %v1016
    %1148 = vmatpush.bf16.msra.mxu0 %v1012
    %1149 = vmatpush.bf16.msra.mxu0 %v1008
    %1150 = vmatmul.bf16.gmra.mxu0 %v772
    %v1151 = vpop.f32.mrf.mxu0
    %v1152 = vadd.f32 %v1139, %v1151
    %v1153 = vpop.f32.mrf.mxu0
    %1154 = vdwg.mxu0
    %1155 = vmatpush.bf16.msra.mxu0 %v1005
    %1156 = vmatpush.bf16.msra.mxu0 %v1001
    %1157 = vmatpush.bf16.msra.mxu0 %v997
    %1158 = vmatpush.bf16.msra.mxu0 %v993
    %1159 = vmatpush.bf16.msra.mxu0 %v989
    %1160 = vmatpush.bf16.msra.mxu0 %v985
    %1161 = vmatpush.bf16.msra.mxu0 %v981
    %1162 = vmatpush.bf16.msra.mxu0 %v977
    %1163 = vmatmul.bf16.gmra.mxu0 %v771
    %v1164 = vpop.f32.mrf.mxu0
    %v1165 = vadd.f32 %v777, %v1164
    %v1166 = vpop.f32.mrf.mxu0
    %1167 = vdwg.mxu0
    %1168 = vmatpush.bf16.msra.mxu0 %v1037
    %1169 = vmatpush.bf16.msra.mxu0 %v1033
    %1170 = vmatpush.bf16.msra.mxu0 %v1029
    %1171 = vmatpush.bf16.msra.mxu0 %v1025
    %1172 = vmatpush.bf16.msra.mxu0 %v1021
    %1173 = vmatpush.bf16.msra.mxu0 %v1017
    %1174 = vmatpush.bf16.msra.mxu0 %v1013
    %1175 = vmatpush.bf16.msra.mxu0 %v1009
    %1176 = vmatmul.bf16.gmra.mxu0 %v772
    %v1177 = vpop.f32.mrf.mxu0
    %v1178 = vadd.f32 %v1165, %v1177
    %v1179 = vpop.f32.mrf.mxu0
    %1180 = vdwg.mxu0
    %1181 = vmatpush.bf16.msra.mxu0 %v1006
    %1182 = vmatpush.bf16.msra.mxu0 %v1002
    %1183 = vmatpush.bf16.msra.mxu0 %v998
    %1184 = vmatpush.bf16.msra.mxu0 %v994
    %1185 = vmatpush.bf16.msra.mxu0 %v990
    %1186 = vmatpush.bf16.msra.mxu0 %v986
    %1187 = vmatpush.bf16.msra.mxu0 %v982
    %1188 = vmatpush.bf16.msra.mxu0 %v978
    %1189 = vmatmul.bf16.gmra.mxu0 %v771
    %v1190 = vpop.f32.mrf.mxu0
    %v1191 = vadd.f32 %v778, %v1190
    %v1192 = vpop.f32.mrf.mxu0
    %1193 = vdwg.mxu0
    %1194 = vmatpush.bf16.msra.mxu0 %v1038
    %1195 = vmatpush.bf16.msra.mxu0 %v1034
    %1196 = vmatpush.bf16.msra.mxu0 %v1030
    %1197 = vmatpush.bf16.msra.mxu0 %v1026
    %1198 = vmatpush.bf16.msra.mxu0 %v1022
    %1199 = vmatpush.bf16.msra.mxu0 %v1018
    %1200 = vmatpush.bf16.msra.mxu0 %v1014
    %1201 = vmatpush.bf16.msra.mxu0 %v1010
    %1202 = vmatmul.bf16.gmra.mxu0 %v772
    %v1203 = vpop.f32.mrf.mxu0
    %v1204 = vadd.f32 %v1191, %v1203
    %v1205 = vpop.f32.mrf.mxu0
    %1206 = vdwg.mxu0
    %vm1207 = vcmp.ge.f32.partialorder %v1126, 0.0
    %vm1208 = vcmp.ge.f32.partialorder %v1152, 0.0
    %vm1209 = vcmp.ge.f32.partialorder %v1178, 0.0
    %vm1210 = vcmp.ge.f32.partialorder %v1204, 0.0
    %v1211 = vmul.f32 %v1126, 0.01
    %v1212 = vmul.f32 %v1152, 0.01
    %v1213 = vmul.f32 %v1178, 0.01
    %v1214 = vmul.f32 %v1204, 0.01
    %v1215 = vsel %vm1207, %v1126, %v1211
    %v1216 = vsel %vm1208, %v1152, %v1212
    %v1217 = vsel %vm1209, %v1178, %v1213
    %v1218 = vsel %vm1210, %v1204, %v1214
    %v1219 = vadd.f32 %v701, %v1215
    %v1220 = vadd.f32 %v702, %v1216
    %v1221 = vadd.f32 %v703, %v1217
    %v1222 = vadd.f32 %v704, %v1218
    %s1223 = smul.u32 4, 64
    %s1224 = smul.u32 %s1223, 10
    %s1225 = sshll.u32 %s1224, 4
    %1226 = dma.done [#allocation6], %s1225
    %v1227 = vld [vmem:[#allocation2] sm:$0xff]
    %v1228 = vld [vmem:[#allocation2 + $0x8] sm:$0xff]
    %v1229 = vld [vmem:[#allocation2 + $0x10] sm:$0xff]
    %v1230 = vld [vmem:[#allocation2 + $0x18] sm:$0xff]
    %v1231 = vld [vmem:[#allocation2 + $0x20] sm:$0xff]
    %v1232 = vld [vmem:[#allocation2 + $0x28] sm:$0xff]
    %v1233 = vld [vmem:[#allocation2 + $0x30] sm:$0xff]
    %v1234 = vld [vmem:[#allocation2 + $0x38] sm:$0xff]
    %v1235 = vld [vmem:[#allocation2 + $0x40] sm:$0xff]
    %v1236 = vld [vmem:[#allocation2 + $0x48] sm:$0xff]
    %v1237 = vld [vmem:[#allocation2 + $0x50] sm:$0xff]
    %v1238 = vld [vmem:[#allocation2 + $0x58] sm:$0xff]
    %v1239 = vld [vmem:[#allocation2 + $0x60] sm:$0xff]
    %v1240 = vld [vmem:[#allocation2 + $0x68] sm:$0xff]
    %v1241 = vld [vmem:[#allocation2 + $0x70] sm:$0xff]
    %v1242 = vld [vmem:[#allocation2 + $0x78] sm:$0xff]
    %v1243 = vld [vmem:[#allocation2 + $0x80] sm:$0xff]
    %v1244 = vld [vmem:[#allocation2 + $0x88] sm:$0xff]
    %v1245 = vld [vmem:[#allocation2 + $0x90] sm:$0xff]
    %v1246 = vld [vmem:[#allocation2 + $0x98] sm:$0xff]
    %v1247 = vld [vmem:[#allocation2 + $0xa0] sm:$0xff]
    %v1248 = vld [vmem:[#allocation2 + $0xa8] sm:$0xff]
    %v1249 = vld [vmem:[#allocation2 + $0xb0] sm:$0xff]
    %v1250 = vld [vmem:[#allocation2 + $0xb8] sm:$0xff]
    %v1251 = vld [vmem:[#allocation2 + $0xc0] sm:$0xff]
    %v1252 = vld [vmem:[#allocation2 + $0xc8] sm:$0xff]
    %v1253 = vld [vmem:[#allocation2 + $0xd0] sm:$0xff]
    %v1254 = vld [vmem:[#allocation2 + $0xd8] sm:$0xff]
    %v1255 = vld [vmem:[#allocation2 + $0xe0] sm:$0xff]
    %v1256 = vld [vmem:[#allocation2 + $0xe8] sm:$0xff]
    %v1257 = vld [vmem:[#allocation2 + $0xf0] sm:$0xff]
    %v1258 = vld [vmem:[#allocation2 + $0xf8] sm:$0xff]
    %v1259 = vld [vmem:[#allocation2 + $0x100] sm:$0xff]
    %v1260 = vld [vmem:[#allocation2 + $0x108] sm:$0xff]
    %v1261 = vld [vmem:[#allocation2 + $0x110] sm:$0xff]
    %v1262 = vld [vmem:[#allocation2 + $0x118] sm:$0xff]
    %v1263 = vld [vmem:[#allocation2 + $0x120] sm:$0xff]
    %v1264 = vld [vmem:[#allocation2 + $0x128] sm:$0xff]
    %v1265 = vld [vmem:[#allocation2 + $0x130] sm:$0xff]
    %v1266 = vld [vmem:[#allocation2 + $0x138] sm:$0xff]
    %v1267 = vld [vmem:[#allocation2 + $0x140] sm:$0xff]
    %v1268 = vld [vmem:[#allocation2 + $0x148] sm:$0xff]
    %v1269 = vld [vmem:[#allocation2 + $0x150] sm:$0xff]
    %v1270 = vld [vmem:[#allocation2 + $0x158] sm:$0xff]
    %v1271 = vld [vmem:[#allocation2 + $0x160] sm:$0xff]
    %v1272 = vld [vmem:[#allocation2 + $0x168] sm:$0xff]
    %v1273 = vld [vmem:[#allocation2 + $0x170] sm:$0xff]
    %v1274 = vld [vmem:[#allocation2 + $0x178] sm:$0xff]
    %v1275 = vld [vmem:[#allocation2 + $0x180] sm:$0xff]
    %v1276 = vld [vmem:[#allocation2 + $0x188] sm:$0xff]
    %v1277 = vld [vmem:[#allocation2 + $0x190] sm:$0xff]
    %v1278 = vld [vmem:[#allocation2 + $0x198] sm:$0xff]
    %v1279 = vld [vmem:[#allocation2 + $0x1a0] sm:$0xff]
    %v1280 = vld [vmem:[#allocation2 + $0x1a8] sm:$0xff]
    %v1281 = vld [vmem:[#allocation2 + $0x1b0] sm:$0xff]
    %v1282 = vld [vmem:[#allocation2 + $0x1b8] sm:$0xff]
    %v1283 = vld [vmem:[#allocation2 + $0x1c0] sm:$0xff]
    %v1284 = vld [vmem:[#allocation2 + $0x1c8] sm:$0xff]
    %v1285 = vld [vmem:[#allocation2 + $0x1d0] sm:$0xff]
    %v1286 = vld [vmem:[#allocation2 + $0x1d8] sm:$0xff]
    %v1287 = vld [vmem:[#allocation2 + $0x1e0] sm:$0xff]
    %v1288 = vld [vmem:[#allocation2 + $0x1e8] sm:$0xff]
    %v1289 = vld [vmem:[#allocation2 + $0x1f0] sm:$0xff]
    %v1290 = vld [vmem:[#allocation2 + $0x1f8] sm:$0xff]
    %v1291 = vld [vmem:[#allocation2 + $0x200] sm:$0xff]
    %v1292 = vld [vmem:[#allocation2 + $0x208] sm:$0xff]
    %v1293 = vld [vmem:[#allocation2 + $0x210] sm:$0xff]
    %v1294 = vld [vmem:[#allocation2 + $0x218] sm:$0xff]
    %v1295 = vld [vmem:[#allocation2 + $0x220] sm:$0xff]
    %v1296 = vld [vmem:[#allocation2 + $0x228] sm:$0xff]
    %v1297 = vld [vmem:[#allocation2 + $0x230] sm:$0xff]
    %v1298 = vld [vmem:[#allocation2 + $0x238] sm:$0xff]
    %v1299 = vld [vmem:[#allocation2 + $0x240] sm:$0xff]
    %v1300 = vld [vmem:[#allocation2 + $0x248] sm:$0xff]
    %v1301 = vld [vmem:[#allocation2 + $0x250] sm:$0xff]
    %v1302 = vld [vmem:[#allocation2 + $0x258] sm:$0xff]
    %v1303 = vld [vmem:[#allocation2 + $0x260] sm:$0xff]
    %v1304 = vld [vmem:[#allocation2 + $0x268] sm:$0xff]
    %v1305 = vld [vmem:[#allocation2 + $0x270] sm:$0xff]
    %v1306 = vld [vmem:[#allocation2 + $0x278] sm:$0xff]
    %v1307 = vld [vmem:[#allocation2 + $0x280] sm:$0xff]
    %v1308 = vld [vmem:[#allocation2 + $0x288] sm:$0xff]
    %v1309 = vld [vmem:[#allocation2 + $0x290] sm:$0xff]
    %v1310 = vld [vmem:[#allocation2 + $0x298] sm:$0xff]
    %v1311 = vld [vmem:[#allocation2 + $0x2a0] sm:$0xff]
    %v1312 = vld [vmem:[#allocation2 + $0x2a8] sm:$0xff]
    %v1313 = vld [vmem:[#allocation2 + $0x2b0] sm:$0xff]
    %v1314 = vld [vmem:[#allocation2 + $0x2b8] sm:$0xff]
    %v1315 = vld [vmem:[#allocation2 + $0x2c0] sm:$0xff]
    %v1316 = vld [vmem:[#allocation2 + $0x2c8] sm:$0xff]
    %v1317 = vld [vmem:[#allocation2 + $0x2d0] sm:$0xff]
    %v1318 = vld [vmem:[#allocation2 + $0x2d8] sm:$0xff]
    %v1319 = vld [vmem:[#allocation2 + $0x2e0] sm:$0xff]
    %v1320 = vld [vmem:[#allocation2 + $0x2e8] sm:$0xff]
    %v1321 = vld [vmem:[#allocation2 + $0x2f0] sm:$0xff]
    %v1322 = vld [vmem:[#allocation2 + $0x2f8] sm:$0xff]
    %v1323 = vld [vmem:[#allocation2 + $0x300] sm:$0xff]
    %v1324 = vld [vmem:[#allocation2 + $0x308] sm:$0xff]
    %v1325 = vld [vmem:[#allocation2 + $0x310] sm:$0xff]
    %v1326 = vld [vmem:[#allocation2 + $0x318] sm:$0xff]
    %v1327 = vld [vmem:[#allocation2 + $0x320] sm:$0xff]
    %v1328 = vld [vmem:[#allocation2 + $0x328] sm:$0xff]
    %v1329 = vld [vmem:[#allocation2 + $0x330] sm:$0xff]
    %v1330 = vld [vmem:[#allocation2 + $0x338] sm:$0xff]
    %v1331 = vld [vmem:[#allocation2 + $0x340] sm:$0xff]
    %v1332 = vld [vmem:[#allocation2 + $0x348] sm:$0xff]
    %v1333 = vld [vmem:[#allocation2 + $0x350] sm:$0xff]
    %v1334 = vld [vmem:[#allocation2 + $0x358] sm:$0xff]
    %v1335 = vld [vmem:[#allocation2 + $0x360] sm:$0xff]
    %v1336 = vld [vmem:[#allocation2 + $0x368] sm:$0xff]
    %v1337 = vld [vmem:[#allocation2 + $0x370] sm:$0xff]
    %v1338 = vld [vmem:[#allocation2 + $0x378] sm:$0xff]
    %v1339 = vld [vmem:[#allocation2 + $0x380] sm:$0xff]
    %v1340 = vld [vmem:[#allocation2 + $0x388] sm:$0xff]
    %v1341 = vld [vmem:[#allocation2 + $0x390] sm:$0xff]
    %v1342 = vld [vmem:[#allocation2 + $0x398] sm:$0xff]
    %v1343 = vld [vmem:[#allocation2 + $0x3a0] sm:$0xff]
    %v1344 = vld [vmem:[#allocation2 + $0x3a8] sm:$0xff]
    %v1345 = vld [vmem:[#allocation2 + $0x3b0] sm:$0xff]
    %v1346 = vld [vmem:[#allocation2 + $0x3b8] sm:$0xff]
    %v1347 = vld [vmem:[#allocation2 + $0x3c0] sm:$0xff]
    %v1348 = vld [vmem:[#allocation2 + $0x3c8] sm:$0xff]
    %v1349 = vld [vmem:[#allocation2 + $0x3d0] sm:$0xff]
    %v1350 = vld [vmem:[#allocation2 + $0x3d8] sm:$0xff]
    %v1351 = vld [vmem:[#allocation2 + $0x3e0] sm:$0xff]
    %v1352 = vld [vmem:[#allocation2 + $0x3e8] sm:$0xff]
    %v1353 = vld [vmem:[#allocation2 + $0x3f0] sm:$0xff]
    %v1354 = vld [vmem:[#allocation2 + $0x3f8] sm:$0xff]
    %v1355 = vld [vmem:[#allocation2 + $0x400] sm:$0xff]
    %v1356 = vld [vmem:[#allocation2 + $0x408] sm:$0xff]
    %v1357 = vld [vmem:[#allocation2 + $0x410] sm:$0xff]
    %v1358 = vld [vmem:[#allocation2 + $0x418] sm:$0xff]
    %v1359 = vld [vmem:[#allocation2 + $0x420] sm:$0xff]
    %v1360 = vld [vmem:[#allocation2 + $0x428] sm:$0xff]
    %v1361 = vld [vmem:[#allocation2 + $0x430] sm:$0xff]
    %v1362 = vld [vmem:[#allocation2 + $0x438] sm:$0xff]
    %v1363 = vld [vmem:[#allocation2 + $0x440] sm:$0xff]
    %v1364 = vld [vmem:[#allocation2 + $0x448] sm:$0xff]
    %v1365 = vld [vmem:[#allocation2 + $0x450] sm:$0xff]
    %v1366 = vld [vmem:[#allocation2 + $0x458] sm:$0xff]
    %v1367 = vld [vmem:[#allocation2 + $0x460] sm:$0xff]
    %v1368 = vld [vmem:[#allocation2 + $0x468] sm:$0xff]
    %v1369 = vld [vmem:[#allocation2 + $0x470] sm:$0xff]
    %v1370 = vld [vmem:[#allocation2 + $0x478] sm:$0xff]
    %v1371 = vld [vmem:[#allocation2 + $0x480] sm:$0xff]
    %v1372 = vld [vmem:[#allocation2 + $0x488] sm:$0xff]
    %v1373 = vld [vmem:[#allocation2 + $0x490] sm:$0xff]
    %v1374 = vld [vmem:[#allocation2 + $0x498] sm:$0xff]
    %v1375 = vld [vmem:[#allocation2 + $0x4a0] sm:$0xff]
    %v1376 = vld [vmem:[#allocation2 + $0x4a8] sm:$0xff]
    %v1377 = vld [vmem:[#allocation2 + $0x4b0] sm:$0xff]
    %v1378 = vld [vmem:[#allocation2 + $0x4b8] sm:$0xff]
    %v1379 = vld [vmem:[#allocation2 + $0x4c0] sm:$0xff]
    %v1380 = vld [vmem:[#allocation2 + $0x4c8] sm:$0xff]
    %v1381 = vld [vmem:[#allocation2 + $0x4d0] sm:$0xff]
    %v1382 = vld [vmem:[#allocation2 + $0x4d8] sm:$0xff]
    %v1383 = vld [vmem:[#allocation2 + $0x4e0] sm:$0xff]
    %v1384 = vld [vmem:[#allocation2 + $0x4e8] sm:$0xff]
    %v1385 = vld [vmem:[#allocation2 + $0x4f0] sm:$0xff]
    %v1386 = vld [vmem:[#allocation2 + $0x4f8] sm:$0xff]
    %v1387 = vld [vmem:[#allocation2 + $0x500] sm:$0xff]
    %v1388 = vld [vmem:[#allocation2 + $0x508] sm:$0xff]
    %v1389 = vld [vmem:[#allocation2 + $0x510] sm:$0xff]
    %v1390 = vld [vmem:[#allocation2 + $0x518] sm:$0xff]
    %v1391 = vld [vmem:[#allocation2 + $0x520] sm:$0xff]
    %v1392 = vld [vmem:[#allocation2 + $0x528] sm:$0xff]
    %v1393 = vld [vmem:[#allocation2 + $0x530] sm:$0xff]
    %v1394 = vld [vmem:[#allocation2 + $0x538] sm:$0xff]
    %v1395 = vld [vmem:[#allocation2 + $0x540] sm:$0xff]
    %v1396 = vld [vmem:[#allocation2 + $0x548] sm:$0xff]
    %v1397 = vld [vmem:[#allocation2 + $0x550] sm:$0xff]
    %v1398 = vld [vmem:[#allocation2 + $0x558] sm:$0xff]
    %v1399 = vld [vmem:[#allocation2 + $0x560] sm:$0xff]
    %v1400 = vld [vmem:[#allocation2 + $0x568] sm:$0xff]
    %v1401 = vld [vmem:[#allocation2 + $0x570] sm:$0xff]
    %v1402 = vld [vmem:[#allocation2 + $0x578] sm:$0xff]
    %v1403 = vld [vmem:[#allocation2 + $0x580] sm:$0xff]
    %v1404 = vld [vmem:[#allocation2 + $0x588] sm:$0xff]
    %v1405 = vld [vmem:[#allocation2 + $0x590] sm:$0xff]
    %v1406 = vld [vmem:[#allocation2 + $0x598] sm:$0xff]
    %v1407 = vld [vmem:[#allocation2 + $0x5a0] sm:$0xff]
    %v1408 = vld [vmem:[#allocation2 + $0x5a8] sm:$0xff]
    %v1409 = vld [vmem:[#allocation2 + $0x5b0] sm:$0xff]
    %v1410 = vld [vmem:[#allocation2 + $0x5b8] sm:$0xff]
    %v1411 = vld [vmem:[#allocation2 + $0x5c0] sm:$0xff]
    %v1412 = vld [vmem:[#allocation2 + $0x5c8] sm:$0xff]
    %v1413 = vld [vmem:[#allocation2 + $0x5d0] sm:$0xff]
    %v1414 = vld [vmem:[#allocation2 + $0x5d8] sm:$0xff]
    %v1415 = vld [vmem:[#allocation2 + $0x5e0] sm:$0xff]
    %v1416 = vld [vmem:[#allocation2 + $0x5e8] sm:$0xff]
    %v1417 = vld [vmem:[#allocation2 + $0x5f0] sm:$0xff]
    %v1418 = vld [vmem:[#allocation2 + $0x5f8] sm:$0xff]
    %v1419 = vld [vmem:[#allocation2 + $0x600] sm:$0xff]
    %v1420 = vld [vmem:[#allocation2 + $0x608] sm:$0xff]
    %v1421 = vld [vmem:[#allocation2 + $0x610] sm:$0xff]
    %v1422 = vld [vmem:[#allocation2 + $0x618] sm:$0xff]
    %v1423 = vld [vmem:[#allocation2 + $0x620] sm:$0xff]
    %v1424 = vld [vmem:[#allocation2 + $0x628] sm:$0xff]
    %v1425 = vld [vmem:[#allocation2 + $0x630] sm:$0xff]
    %v1426 = vld [vmem:[#allocation2 + $0x638] sm:$0xff]
    %v1427 = vld [vmem:[#allocation2 + $0x640] sm:$0xff]
    %v1428 = vld [vmem:[#allocation2 + $0x648] sm:$0xff]
    %v1429 = vld [vmem:[#allocation2 + $0x650] sm:$0xff]
    %v1430 = vld [vmem:[#allocation2 + $0x658] sm:$0xff]
    %v1431 = vld [vmem:[#allocation2 + $0x660] sm:$0xff]
    %v1432 = vld [vmem:[#allocation2 + $0x668] sm:$0xff]
    %v1433 = vld [vmem:[#allocation2 + $0x670] sm:$0xff]
    %v1434 = vld [vmem:[#allocation2 + $0x678] sm:$0xff]
    %v1435 = vld [vmem:[#allocation2 + $0x680] sm:$0xff]
    %v1436 = vld [vmem:[#allocation2 + $0x688] sm:$0xff]
    %v1437 = vld [vmem:[#allocation2 + $0x690] sm:$0xff]
    %v1438 = vld [vmem:[#allocation2 + $0x698] sm:$0xff]
    %v1439 = vld [vmem:[#allocation2 + $0x6a0] sm:$0xff]
    %v1440 = vld [vmem:[#allocation2 + $0x6a8] sm:$0xff]
    %v1441 = vld [vmem:[#allocation2 + $0x6b0] sm:$0xff]
    %v1442 = vld [vmem:[#allocation2 + $0x6b8] sm:$0xff]
    %v1443 = vld [vmem:[#allocation2 + $0x6c0] sm:$0xff]
    %v1444 = vld [vmem:[#allocation2 + $0x6c8] sm:$0xff]
    %v1445 = vld [vmem:[#allocation2 + $0x6d0] sm:$0xff]
    %v1446 = vld [vmem:[#allocation2 + $0x6d8] sm:$0xff]
    %v1447 = vld [vmem:[#allocation2 + $0x6e0] sm:$0xff]
    %v1448 = vld [vmem:[#allocation2 + $0x6e8] sm:$0xff]
    %v1449 = vld [vmem:[#allocation2 + $0x6f0] sm:$0xff]
    %v1450 = vld [vmem:[#allocation2 + $0x6f8] sm:$0xff]
    %v1451 = vld [vmem:[#allocation2 + $0x700] sm:$0xff]
    %v1452 = vld [vmem:[#allocation2 + $0x708] sm:$0xff]
    %v1453 = vld [vmem:[#allocation2 + $0x710] sm:$0xff]
    %v1454 = vld [vmem:[#allocation2 + $0x718] sm:$0xff]
    %v1455 = vld [vmem:[#allocation2 + $0x720] sm:$0xff]
    %v1456 = vld [vmem:[#allocation2 + $0x728] sm:$0xff]
    %v1457 = vld [vmem:[#allocation2 + $0x730] sm:$0xff]
    %v1458 = vld [vmem:[#allocation2 + $0x738] sm:$0xff]
    %v1459 = vld [vmem:[#allocation2 + $0x740] sm:$0xff]
    %v1460 = vld [vmem:[#allocation2 + $0x748] sm:$0xff]
    %v1461 = vld [vmem:[#allocation2 + $0x750] sm:$0xff]
    %v1462 = vld [vmem:[#allocation2 + $0x758] sm:$0xff]
    %v1463 = vld [vmem:[#allocation2 + $0x760] sm:$0xff]
    %v1464 = vld [vmem:[#allocation2 + $0x768] sm:$0xff]
    %v1465 = vld [vmem:[#allocation2 + $0x770] sm:$0xff]
    %v1466 = vld [vmem:[#allocation2 + $0x778] sm:$0xff]
    %v1467 = vld [vmem:[#allocation2 + $0x780] sm:$0xff]
    %v1468 = vld [vmem:[#allocation2 + $0x788] sm:$0xff]
    %v1469 = vld [vmem:[#allocation2 + $0x790] sm:$0xff]
    %v1470 = vld [vmem:[#allocation2 + $0x798] sm:$0xff]
    %v1471 = vld [vmem:[#allocation2 + $0x7a0] sm:$0xff]
    %v1472 = vld [vmem:[#allocation2 + $0x7a8] sm:$0xff]
    %v1473 = vld [vmem:[#allocation2 + $0x7b0] sm:$0xff]
    %v1474 = vld [vmem:[#allocation2 + $0x7b8] sm:$0xff]
    %v1475 = vld [vmem:[#allocation2 + $0x7c0] sm:$0xff]
    %v1476 = vld [vmem:[#allocation2 + $0x7c8] sm:$0xff]
    %v1477 = vld [vmem:[#allocation2 + $0x7d0] sm:$0xff]
    %v1478 = vld [vmem:[#allocation2 + $0x7d8] sm:$0xff]
    %v1479 = vld [vmem:[#allocation2 + $0x7e0] sm:$0xff]
    %v1480 = vld [vmem:[#allocation2 + $0x7e8] sm:$0xff]
    %v1481 = vld [vmem:[#allocation2 + $0x7f0] sm:$0xff]
    %v1482 = vld [vmem:[#allocation2 + $0x7f8] sm:$0xff]
    %v1483 = vld [vmem:[#allocation2 + $0x800] sm:$0xff]
    %v1484 = vld [vmem:[#allocation2 + $0x808] sm:$0xff]
    %v1485 = vld [vmem:[#allocation2 + $0x810] sm:$0xff]
    %v1486 = vld [vmem:[#allocation2 + $0x818] sm:$0xff]
    %v1487 = vld [vmem:[#allocation2 + $0x820] sm:$0xff]
    %v1488 = vld [vmem:[#allocation2 + $0x828] sm:$0xff]
    %v1489 = vld [vmem:[#allocation2 + $0x830] sm:$0xff]
    %v1490 = vld [vmem:[#allocation2 + $0x838] sm:$0xff]
    %v1491 = vld [vmem:[#allocation2 + $0x840] sm:$0xff]
    %v1492 = vld [vmem:[#allocation2 + $0x848] sm:$0xff]
    %v1493 = vld [vmem:[#allocation2 + $0x850] sm:$0xff]
    %v1494 = vld [vmem:[#allocation2 + $0x858] sm:$0xff]
    %v1495 = vld [vmem:[#allocation2 + $0x860] sm:$0xff]
    %v1496 = vld [vmem:[#allocation2 + $0x868] sm:$0xff]
    %v1497 = vld [vmem:[#allocation2 + $0x870] sm:$0xff]
    %v1498 = vld [vmem:[#allocation2 + $0x878] sm:$0xff]
    %v1499 = vld [vmem:[#allocation2 + $0x880] sm:$0xff]
    %v1500 = vld [vmem:[#allocation2 + $0x888] sm:$0xff]
    %v1501 = vld [vmem:[#allocation2 + $0x890] sm:$0xff]
    %v1502 = vld [vmem:[#allocation2 + $0x898] sm:$0xff]
    %v1503 = vld [vmem:[#allocation2 + $0x8a0] sm:$0xff]
    %v1504 = vld [vmem:[#allocation2 + $0x8a8] sm:$0xff]
    %v1505 = vld [vmem:[#allocation2 + $0x8b0] sm:$0xff]
    %v1506 = vld [vmem:[#allocation2 + $0x8b8] sm:$0xff]
    %v1507 = vld [vmem:[#allocation2 + $0x8c0] sm:$0xff]
    %v1508 = vld [vmem:[#allocation2 + $0x8c8] sm:$0xff]
    %v1509 = vld [vmem:[#allocation2 + $0x8d0] sm:$0xff]
    %v1510 = vld [vmem:[#allocation2 + $0x8d8] sm:$0xff]
    %v1511 = vld [vmem:[#allocation2 + $0x8e0] sm:$0xff]
    %v1512 = vld [vmem:[#allocation2 + $0x8e8] sm:$0xff]
    %v1513 = vld [vmem:[#allocation2 + $0x8f0] sm:$0xff]
    %v1514 = vld [vmem:[#allocation2 + $0x8f8] sm:$0xff]
    %v1515 = vld [vmem:[#allocation2 + $0x900] sm:$0xff]
    %v1516 = vld [vmem:[#allocation2 + $0x908] sm:$0xff]
    %v1517 = vld [vmem:[#allocation2 + $0x910] sm:$0xff]
    %v1518 = vld [vmem:[#allocation2 + $0x918] sm:$0xff]
    %v1519 = vld [vmem:[#allocation2 + $0x920] sm:$0xff]
    %v1520 = vld [vmem:[#allocation2 + $0x928] sm:$0xff]
    %v1521 = vld [vmem:[#allocation2 + $0x930] sm:$0xff]
    %v1522 = vld [vmem:[#allocation2 + $0x938] sm:$0xff]
    %v1523 = vld [vmem:[#allocation2 + $0x940] sm:$0xff]
    %v1524 = vld [vmem:[#allocation2 + $0x948] sm:$0xff]
    %v1525 = vld [vmem:[#allocation2 + $0x950] sm:$0xff]
    %v1526 = vld [vmem:[#allocation2 + $0x958] sm:$0xff]
    %v1527 = vld [vmem:[#allocation2 + $0x960] sm:$0xff]
    %v1528 = vld [vmem:[#allocation2 + $0x968] sm:$0xff]
    %v1529 = vld [vmem:[#allocation2 + $0x970] sm:$0xff]
    %v1530 = vld [vmem:[#allocation2 + $0x978] sm:$0xff]
    %v1531 = vld [vmem:[#allocation2 + $0x980] sm:$0xff]
    %v1532 = vld [vmem:[#allocation2 + $0x988] sm:$0xff]
    %v1533 = vld [vmem:[#allocation2 + $0x990] sm:$0xff]
    %v1534 = vld [vmem:[#allocation2 + $0x998] sm:$0xff]
    %v1535 = vld [vmem:[#allocation2 + $0x9a0] sm:$0xff]
    %v1536 = vld [vmem:[#allocation2 + $0x9a8] sm:$0xff]
    %v1537 = vld [vmem:[#allocation2 + $0x9b0] sm:$0xff]
    %v1538 = vld [vmem:[#allocation2 + $0x9b8] sm:$0xff]
    %v1539 = vld [vmem:[#allocation2 + $0x9c0] sm:$0xff]
    %v1540 = vld [vmem:[#allocation2 + $0x9c8] sm:$0xff]
    %v1541 = vld [vmem:[#allocation2 + $0x9d0] sm:$0xff]
    %v1542 = vld [vmem:[#allocation2 + $0x9d8] sm:$0xff]
    %v1543 = vld [vmem:[#allocation2 + $0x9e0] sm:$0xff]
    %v1544 = vld [vmem:[#allocation2 + $0x9e8] sm:$0xff]
    %v1545 = vld [vmem:[#allocation2 + $0x9f0] sm:$0xff]
    %v1546 = vld [vmem:[#allocation2 + $0x9f8] sm:$0xff]
    %v1547 = vpack.c.bf16 %v1219, %v1219
    %v1548 = vpack.c.bf16 %v1220, %v1220
    %v1549 = vpack.c.bf16 %v1221, %v1221
    %v1550 = vpack.c.bf16 %v1222, %v1222
    %v1551 = vld [vmem:[#allocation7 + $0x24] sm:$0xff]
    %v1552 = vld [vmem:[#allocation7 + $0x2c] sm:$0x3]
    %v1555 = vperm.slane %v1551, 0
    %v1556 = vperm.slane %v1551, 1
    %v1557 = vperm.slane %v1551, 2
    %v1558 = vperm.slane %v1551, 3
    %v1559 = vperm.slane %v1551, 4
    %v1560 = vperm.slane %v1551, 5
    %v1561 = vperm.slane %v1551, 6
    %v1562 = vperm.slane %v1551, 7
    %v1563 = vperm.slane %v1552, 0
    %v1564 = vperm.slane %v1552, 1
    %v1895 = vunpack.c.l.b16 %v1227
    %v1896 = vunpack.c.h.b16 %v1227
    %v1897 = vunpack.c.l.b16 %v1228
    %v1898 = vunpack.c.h.b16 %v1228
    %v1899 = vunpack.c.l.b16 %v1229
    %v1900 = vunpack.c.h.b16 %v1229
    %v1901 = vunpack.c.l.b16 %v1230
    %v1902 = vunpack.c.h.b16 %v1230
    %v1903 = vunpack.c.l.b16 %v1231
    %v1904 = vunpack.c.h.b16 %v1231
    %v1905 = vunpack.c.l.b16 %v1232
    %v1906 = vunpack.c.h.b16 %v1232
    %v1907 = vunpack.c.l.b16 %v1233
    %v1908 = vunpack.c.h.b16 %v1233
    %v1909 = vunpack.c.l.b16 %v1234
    %v1910 = vunpack.c.h.b16 %v1234
    %v1911 = vunpack.c.l.b16 %v1235
    %v1912 = vunpack.c.h.b16 %v1235
    %v1913 = vunpack.c.l.b16 %v1236
    %v1914 = vunpack.c.h.b16 %v1236
    %v1915 = vunpack.c.l.b16 %v1237
    %v1916 = vunpack.c.h.b16 %v1237
    %v1917 = vunpack.c.l.b16 %v1238
    %v1918 = vunpack.c.h.b16 %v1238
    %v1919 = vunpack.c.l.b16 %v1239
    %v1920 = vunpack.c.h.b16 %v1239
    %v1921 = vunpack.c.l.b16 %v1240
    %v1922 = vunpack.c.h.b16 %v1240
    %v1923 = vunpack.c.l.b16 %v1241
    %v1924 = vunpack.c.h.b16 %v1241
    %v1925 = vunpack.c.l.b16 %v1242
    %v1926 = vunpack.c.h.b16 %v1242
    %v1927 = vunpack.c.l.b16 %v1243
    %v1928 = vunpack.c.h.b16 %v1243
    %v1929 = vunpack.c.l.b16 %v1244
    %v1930 = vunpack.c.h.b16 %v1244
    %v1931 = vunpack.c.l.b16 %v1245
    %v1932 = vunpack.c.h.b16 %v1245
    %v1933 = vunpack.c.l.b16 %v1246
    %v1934 = vunpack.c.h.b16 %v1246
    %v1935 = vunpack.c.l.b16 %v1247
    %v1936 = vunpack.c.h.b16 %v1247
    %v1937 = vunpack.c.l.b16 %v1248
    %v1938 = vunpack.c.h.b16 %v1248
    %v1939 = vunpack.c.l.b16 %v1249
    %v1940 = vunpack.c.h.b16 %v1249
    %v1941 = vunpack.c.l.b16 %v1250
    %v1942 = vunpack.c.h.b16 %v1250
    %v1943 = vunpack.c.l.b16 %v1251
    %v1944 = vunpack.c.h.b16 %v1251
    %v1945 = vunpack.c.l.b16 %v1252
    %v1946 = vunpack.c.h.b16 %v1252
    %v1947 = vunpack.c.l.b16 %v1253
    %v1948 = vunpack.c.h.b16 %v1253
    %v1949 = vunpack.c.l.b16 %v1254
    %v1950 = vunpack.c.h.b16 %v1254
    %v1951 = vunpack.c.l.b16 %v1255
    %v1952 = vunpack.c.h.b16 %v1255
    %v1953 = vunpack.c.l.b16 %v1256
    %v1954 = vunpack.c.h.b16 %v1256
    %v1955 = vunpack.c.l.b16 %v1257
    %v1956 = vunpack.c.h.b16 %v1257
    %v1957 = vunpack.c.l.b16 %v1258
    %v1958 = vunpack.c.h.b16 %v1258
    %v1959 = vunpack.c.l.b16 %v1259
    %v1960 = vunpack.c.h.b16 %v1259
    %v1961 = vunpack.c.l.b16 %v1260
    %v1962 = vunpack.c.h.b16 %v1260
    %v1963 = vunpack.c.l.b16 %v1261
    %v1964 = vunpack.c.h.b16 %v1261
    %v1965 = vunpack.c.l.b16 %v1262
    %v1966 = vunpack.c.h.b16 %v1262
    %v1967 = vunpack.c.l.b16 %v1263
    %v1968 = vunpack.c.h.b16 %v1263
    %v1969 = vunpack.c.l.b16 %v1264
    %v1970 = vunpack.c.h.b16 %v1264
    %v1971 = vunpack.c.l.b16 %v1265
    %v1972 = vunpack.c.h.b16 %v1265
    %v1973 = vunpack.c.l.b16 %v1266
    %v1974 = vunpack.c.h.b16 %v1266
    %v1975 = vunpack.c.l.b16 %v1267
    %v1976 = vunpack.c.h.b16 %v1267
    %v1977 = vunpack.c.l.b16 %v1268
    %v1978 = vunpack.c.h.b16 %v1268
    %v1979 = vunpack.c.l.b16 %v1269
    %v1980 = vunpack.c.h.b16 %v1269
    %v1981 = vunpack.c.l.b16 %v1270
    %v1982 = vunpack.c.h.b16 %v1270
    %v1983 = vunpack.c.l.b16 %v1271
    %v1984 = vunpack.c.h.b16 %v1271
    %v1985 = vunpack.c.l.b16 %v1272
    %v1986 = vunpack.c.h.b16 %v1272
    %v1987 = vunpack.c.l.b16 %v1273
    %v1988 = vunpack.c.h.b16 %v1273
    %v1989 = vunpack.c.l.b16 %v1274
    %v1990 = vunpack.c.h.b16 %v1274
    %v1991 = vunpack.c.l.b16 %v1275
    %v1992 = vunpack.c.h.b16 %v1275
    %v1993 = vunpack.c.l.b16 %v1276
    %v1994 = vunpack.c.h.b16 %v1276
    %v1995 = vunpack.c.l.b16 %v1277
    %v1996 = vunpack.c.h.b16 %v1277
    %v1997 = vunpack.c.l.b16 %v1278
    %v1998 = vunpack.c.h.b16 %v1278
    %v1999 = vunpack.c.l.b16 %v1279
    %v2000 = vunpack.c.h.b16 %v1279
    %v2001 = vunpack.c.l.b16 %v1280
    %v2002 = vunpack.c.h.b16 %v1280
    %v2003 = vunpack.c.l.b16 %v1281
    %v2004 = vunpack.c.h.b16 %v1281
    %v2005 = vunpack.c.l.b16 %v1282
    %v2006 = vunpack.c.h.b16 %v1282
    %v2007 = vunpack.c.l.b16 %v1283
    %v2008 = vunpack.c.h.b16 %v1283
    %v2009 = vunpack.c.l.b16 %v1284
    %v2010 = vunpack.c.h.b16 %v1284
    %v2011 = vunpack.c.l.b16 %v1285
    %v2012 = vunpack.c.h.b16 %v1285
    %v2013 = vunpack.c.l.b16 %v1286
    %v2014 = vunpack.c.h.b16 %v1286
    %v2015 = vunpack.c.l.b16 %v1287
    %v2016 = vunpack.c.h.b16 %v1287
    %v2017 = vunpack.c.l.b16 %v1288
    %v2018 = vunpack.c.h.b16 %v1288
    %v2019 = vunpack.c.l.b16 %v1289
    %v2020 = vunpack.c.h.b16 %v1289
    %v2021 = vunpack.c.l.b16 %v1290
    %v2022 = vunpack.c.h.b16 %v1290
    %v2023 = vunpack.c.l.b16 %v1291
    %v2024 = vunpack.c.h.b16 %v1291
    %v2025 = vunpack.c.l.b16 %v1292
    %v2026 = vunpack.c.h.b16 %v1292
    %v2027 = vunpack.c.l.b16 %v1293
    %v2028 = vunpack.c.h.b16 %v1293
    %v2029 = vunpack.c.l.b16 %v1294
    %v2030 = vunpack.c.h.b16 %v1294
    %v2031 = vunpack.c.l.b16 %v1295
    %v2032 = vunpack.c.h.b16 %v1295
    %v2033 = vunpack.c.l.b16 %v1296
    %v2034 = vunpack.c.h.b16 %v1296
    %v2035 = vunpack.c.l.b16 %v1297
    %v2036 = vunpack.c.h.b16 %v1297
    %v2037 = vunpack.c.l.b16 %v1298
    %v2038 = vunpack.c.h.b16 %v1298
    %v2039 = vunpack.c.l.b16 %v1299
    %v2040 = vunpack.c.h.b16 %v1299
    %v2041 = vunpack.c.l.b16 %v1300
    %v2042 = vunpack.c.h.b16 %v1300
    %v2043 = vunpack.c.l.b16 %v1301
    %v2044 = vunpack.c.h.b16 %v1301
    %v2045 = vunpack.c.l.b16 %v1302
    %v2046 = vunpack.c.h.b16 %v1302
    %v2047 = vunpack.c.l.b16 %v1303
    %v2048 = vunpack.c.h.b16 %v1303
    %v2049 = vunpack.c.l.b16 %v1304
    %v2050 = vunpack.c.h.b16 %v1304
    %v2051 = vunpack.c.l.b16 %v1305
    %v2052 = vunpack.c.h.b16 %v1305
    %v2053 = vunpack.c.l.b16 %v1306
    %v2054 = vunpack.c.h.b16 %v1306
    %v2055 = vunpack.c.l.b16 %v1307
    %v2056 = vunpack.c.h.b16 %v1307
    %v2057 = vunpack.c.l.b16 %v1308
    %v2058 = vunpack.c.h.b16 %v1308
    %v2059 = vunpack.c.l.b16 %v1309
    %v2060 = vunpack.c.h.b16 %v1309
    %v2061 = vunpack.c.l.b16 %v1310
    %v2062 = vunpack.c.h.b16 %v1310
    %v2063 = vunpack.c.l.b16 %v1311
    %v2064 = vunpack.c.h.b16 %v1311
    %v2065 = vunpack.c.l.b16 %v1312
    %v2066 = vunpack.c.h.b16 %v1312
    %v2067 = vunpack.c.l.b16 %v1313
    %v2068 = vunpack.c.h.b16 %v1313
    %v2069 = vunpack.c.l.b16 %v1314
    %v2070 = vunpack.c.h.b16 %v1314
    %v2071 = vunpack.c.l.b16 %v1315
    %v2072 = vunpack.c.h.b16 %v1315
    %v2073 = vunpack.c.l.b16 %v1316
    %v2074 = vunpack.c.h.b16 %v1316
    %v2075 = vunpack.c.l.b16 %v1317
    %v2076 = vunpack.c.h.b16 %v1317
    %v2077 = vunpack.c.l.b16 %v1318
    %v2078 = vunpack.c.h.b16 %v1318
    %v2079 = vunpack.c.l.b16 %v1319
    %v2080 = vunpack.c.h.b16 %v1319
    %v2081 = vunpack.c.l.b16 %v1320
    %v2082 = vunpack.c.h.b16 %v1320
    %v2083 = vunpack.c.l.b16 %v1321
    %v2084 = vunpack.c.h.b16 %v1321
    %v2085 = vunpack.c.l.b16 %v1322
    %v2086 = vunpack.c.h.b16 %v1322
    %v2087 = vunpack.c.l.b16 %v1323
    %v2088 = vunpack.c.h.b16 %v1323
    %v2089 = vunpack.c.l.b16 %v1324
    %v2090 = vunpack.c.h.b16 %v1324
    %v2091 = vunpack.c.l.b16 %v1325
    %v2092 = vunpack.c.h.b16 %v1325
    %v2093 = vunpack.c.l.b16 %v1326
    %v2094 = vunpack.c.h.b16 %v1326
    %v2095 = vunpack.c.l.b16 %v1327
    %v2096 = vunpack.c.h.b16 %v1327
    %v2097 = vunpack.c.l.b16 %v1328
    %v2098 = vunpack.c.h.b16 %v1328
    %v2099 = vunpack.c.l.b16 %v1329
    %v2100 = vunpack.c.h.b16 %v1329
    %v2101 = vunpack.c.l.b16 %v1330
    %v2102 = vunpack.c.h.b16 %v1330
    %v2103 = vunpack.c.l.b16 %v1331
    %v2104 = vunpack.c.h.b16 %v1331
    %v2105 = vunpack.c.l.b16 %v1332
    %v2106 = vunpack.c.h.b16 %v1332
    %v2107 = vunpack.c.l.b16 %v1333
    %v2108 = vunpack.c.h.b16 %v1333
    %v2109 = vunpack.c.l.b16 %v1334
    %v2110 = vunpack.c.h.b16 %v1334
    %v2111 = vunpack.c.l.b16 %v1335
    %v2112 = vunpack.c.h.b16 %v1335
    %v2113 = vunpack.c.l.b16 %v1336
    %v2114 = vunpack.c.h.b16 %v1336
    %v2115 = vunpack.c.l.b16 %v1337
    %v2116 = vunpack.c.h.b16 %v1337
    %v2117 = vunpack.c.l.b16 %v1338
    %v2118 = vunpack.c.h.b16 %v1338
    %v2119 = vunpack.c.l.b16 %v1339
    %v2120 = vunpack.c.h.b16 %v1339
    %v2121 = vunpack.c.l.b16 %v1340
    %v2122 = vunpack.c.h.b16 %v1340
    %v2123 = vunpack.c.l.b16 %v1341
    %v2124 = vunpack.c.h.b16 %v1341
    %v2125 = vunpack.c.l.b16 %v1342
    %v2126 = vunpack.c.h.b16 %v1342
    %v2127 = vunpack.c.l.b16 %v1343
    %v2128 = vunpack.c.h.b16 %v1343
    %v2129 = vunpack.c.l.b16 %v1344
    %v2130 = vunpack.c.h.b16 %v1344
    %v2131 = vunpack.c.l.b16 %v1345
    %v2132 = vunpack.c.h.b16 %v1345
    %v2133 = vunpack.c.l.b16 %v1346
    %v2134 = vunpack.c.h.b16 %v1346
    %v2135 = vunpack.c.l.b16 %v1347
    %v2136 = vunpack.c.h.b16 %v1347
    %v2137 = vunpack.c.l.b16 %v1348
    %v2138 = vunpack.c.h.b16 %v1348
    %v2139 = vunpack.c.l.b16 %v1349
    %v2140 = vunpack.c.h.b16 %v1349
    %v2141 = vunpack.c.l.b16 %v1350
    %v2142 = vunpack.c.h.b16 %v1350
    %v2143 = vunpack.c.l.b16 %v1351
    %v2144 = vunpack.c.h.b16 %v1351
    %v2145 = vunpack.c.l.b16 %v1352
    %v2146 = vunpack.c.h.b16 %v1352
    %v2147 = vunpack.c.l.b16 %v1353
    %v2148 = vunpack.c.h.b16 %v1353
    %v2149 = vunpack.c.l.b16 %v1354
    %v2150 = vunpack.c.h.b16 %v1354
    %v2151 = vunpack.c.l.b16 %v1355
    %v2152 = vunpack.c.h.b16 %v1355
    %v2153 = vunpack.c.l.b16 %v1356
    %v2154 = vunpack.c.h.b16 %v1356
    %v2155 = vunpack.c.l.b16 %v1357
    %v2156 = vunpack.c.h.b16 %v1357
    %v2157 = vunpack.c.l.b16 %v1358
    %v2158 = vunpack.c.h.b16 %v1358
    %v2159 = vunpack.c.l.b16 %v1359
    %v2160 = vunpack.c.h.b16 %v1359
    %v2161 = vunpack.c.l.b16 %v1360
    %v2162 = vunpack.c.h.b16 %v1360
    %v2163 = vunpack.c.l.b16 %v1361
    %v2164 = vunpack.c.h.b16 %v1361
    %v2165 = vunpack.c.l.b16 %v1362
    %v2166 = vunpack.c.h.b16 %v1362
    %v2167 = vunpack.c.l.b16 %v1363
    %v2168 = vunpack.c.h.b16 %v1363
    %v2169 = vunpack.c.l.b16 %v1364
    %v2170 = vunpack.c.h.b16 %v1364
    %v2171 = vunpack.c.l.b16 %v1365
    %v2172 = vunpack.c.h.b16 %v1365
    %v2173 = vunpack.c.l.b16 %v1366
    %v2174 = vunpack.c.h.b16 %v1366
    %v2175 = vunpack.c.l.b16 %v1367
    %v2176 = vunpack.c.h.b16 %v1367
    %v2177 = vunpack.c.l.b16 %v1368
    %v2178 = vunpack.c.h.b16 %v1368
    %v2179 = vunpack.c.l.b16 %v1369
    %v2180 = vunpack.c.h.b16 %v1369
    %v2181 = vunpack.c.l.b16 %v1370
    %v2182 = vunpack.c.h.b16 %v1370
    %v2183 = vunpack.c.l.b16 %v1371
    %v2184 = vunpack.c.h.b16 %v1371
    %v2185 = vunpack.c.l.b16 %v1372
    %v2186 = vunpack.c.h.b16 %v1372
    %v2187 = vunpack.c.l.b16 %v1373
    %v2188 = vunpack.c.h.b16 %v1373
    %v2189 = vunpack.c.l.b16 %v1374
    %v2190 = vunpack.c.h.b16 %v1374
    %v2191 = vunpack.c.l.b16 %v1375
    %v2192 = vunpack.c.h.b16 %v1375
    %v2193 = vunpack.c.l.b16 %v1376
    %v2194 = vunpack.c.h.b16 %v1376
    %v2195 = vunpack.c.l.b16 %v1377
    %v2196 = vunpack.c.h.b16 %v1377
    %v2197 = vunpack.c.l.b16 %v1378
    %v2198 = vunpack.c.h.b16 %v1378
    %v2199 = vunpack.c.l.b16 %v1379
    %v2200 = vunpack.c.h.b16 %v1379
    %v2201 = vunpack.c.l.b16 %v1380
    %v2202 = vunpack.c.h.b16 %v1380
    %v2203 = vunpack.c.l.b16 %v1381
    %v2204 = vunpack.c.h.b16 %v1381
    %v2205 = vunpack.c.l.b16 %v1382
    %v2206 = vunpack.c.h.b16 %v1382
    %v2207 = vunpack.c.l.b16 %v1383
    %v2208 = vunpack.c.h.b16 %v1383
    %v2209 = vunpack.c.l.b16 %v1384
    %v2210 = vunpack.c.h.b16 %v1384
    %v2211 = vunpack.c.l.b16 %v1385
    %v2212 = vunpack.c.h.b16 %v1385
    %v2213 = vunpack.c.l.b16 %v1386
    %v2214 = vunpack.c.h.b16 %v1386
    %v2215 = vunpack.c.l.b16 %v1387
    %v2216 = vunpack.c.h.b16 %v1387
    %v2217 = vunpack.c.l.b16 %v1388
    %v2218 = vunpack.c.h.b16 %v1388
    %v2219 = vunpack.c.l.b16 %v1389
    %v2220 = vunpack.c.h.b16 %v1389
    %v2221 = vunpack.c.l.b16 %v1390
    %v2222 = vunpack.c.h.b16 %v1390
    %v2223 = vunpack.c.l.b16 %v1391
    %v2224 = vunpack.c.h.b16 %v1391
    %v2225 = vunpack.c.l.b16 %v1392
    %v2226 = vunpack.c.h.b16 %v1392
    %v2227 = vunpack.c.l.b16 %v1393
    %v2228 = vunpack.c.h.b16 %v1393
    %v2229 = vunpack.c.l.b16 %v1394
    %v2230 = vunpack.c.h.b16 %v1394
    %v2231 = vunpack.c.l.b16 %v1395
    %v2232 = vunpack.c.h.b16 %v1395
    %v2233 = vunpack.c.l.b16 %v1396
    %v2234 = vunpack.c.h.b16 %v1396
    %v2235 = vunpack.c.l.b16 %v1397
    %v2236 = vunpack.c.h.b16 %v1397
    %v2237 = vunpack.c.l.b16 %v1398
    %v2238 = vunpack.c.h.b16 %v1398
    %v2239 = vunpack.c.l.b16 %v1399
    %v2240 = vunpack.c.h.b16 %v1399
    %v2241 = vunpack.c.l.b16 %v1400
    %v2242 = vunpack.c.h.b16 %v1400
    %v2243 = vunpack.c.l.b16 %v1401
    %v2244 = vunpack.c.h.b16 %v1401
    %v2245 = vunpack.c.l.b16 %v1402
    %v2246 = vunpack.c.h.b16 %v1402
    %v2247 = vunpack.c.l.b16 %v1403
    %v2248 = vunpack.c.h.b16 %v1403
    %v2249 = vunpack.c.l.b16 %v1404
    %v2250 = vunpack.c.h.b16 %v1404
    %v2251 = vunpack.c.l.b16 %v1405
    %v2252 = vunpack.c.h.b16 %v1405
    %v2253 = vunpack.c.l.b16 %v1406
    %v2254 = vunpack.c.h.b16 %v1406
    %v2255 = vunpack.c.l.b16 %v1407
    %v2256 = vunpack.c.h.b16 %v1407
    %v2257 = vunpack.c.l.b16 %v1408
    %v2258 = vunpack.c.h.b16 %v1408
    %v2259 = vunpack.c.l.b16 %v1409
    %v2260 = vunpack.c.h.b16 %v1409
    %v2261 = vunpack.c.l.b16 %v1410
    %v2262 = vunpack.c.h.b16 %v1410
    %v2263 = vunpack.c.l.b16 %v1411
    %v2264 = vunpack.c.h.b16 %v1411
    %v2265 = vunpack.c.l.b16 %v1412
    %v2266 = vunpack.c.h.b16 %v1412
    %v2267 = vunpack.c.l.b16 %v1413
    %v2268 = vunpack.c.h.b16 %v1413
    %v2269 = vunpack.c.l.b16 %v1414
    %v2270 = vunpack.c.h.b16 %v1414
    %v2271 = vunpack.c.l.b16 %v1415
    %v2272 = vunpack.c.h.b16 %v1415
    %v2273 = vunpack.c.l.b16 %v1416
    %v2274 = vunpack.c.h.b16 %v1416
    %v2275 = vunpack.c.l.b16 %v1417
    %v2276 = vunpack.c.h.b16 %v1417
    %v2277 = vunpack.c.l.b16 %v1418
    %v2278 = vunpack.c.h.b16 %v1418
    %v2279 = vunpack.c.l.b16 %v1419
    %v2280 = vunpack.c.h.b16 %v1419
    %v2281 = vunpack.c.l.b16 %v1420
    %v2282 = vunpack.c.h.b16 %v1420
    %v2283 = vunpack.c.l.b16 %v1421
    %v2284 = vunpack.c.h.b16 %v1421
    %v2285 = vunpack.c.l.b16 %v1422
    %v2286 = vunpack.c.h.b16 %v1422
    %v2287 = vunpack.c.l.b16 %v1423
    %v2288 = vunpack.c.h.b16 %v1423
    %v2289 = vunpack.c.l.b16 %v1424
    %v2290 = vunpack.c.h.b16 %v1424
    %v2291 = vunpack.c.l.b16 %v1425
    %v2292 = vunpack.c.h.b16 %v1425
    %v2293 = vunpack.c.l.b16 %v1426
    %v2294 = vunpack.c.h.b16 %v1426
    %v2295 = vunpack.c.l.b16 %v1427
    %v2296 = vunpack.c.h.b16 %v1427
    %v2297 = vunpack.c.l.b16 %v1428
    %v2298 = vunpack.c.h.b16 %v1428
    %v2299 = vunpack.c.l.b16 %v1429
    %v2300 = vunpack.c.h.b16 %v1429
    %v2301 = vunpack.c.l.b16 %v1430
    %v2302 = vunpack.c.h.b16 %v1430
    %v2303 = vunpack.c.l.b16 %v1431
    %v2304 = vunpack.c.h.b16 %v1431
    %v2305 = vunpack.c.l.b16 %v1432
    %v2306 = vunpack.c.h.b16 %v1432
    %v2307 = vunpack.c.l.b16 %v1433
    %v2308 = vunpack.c.h.b16 %v1433
    %v2309 = vunpack.c.l.b16 %v1434
    %v2310 = vunpack.c.h.b16 %v1434
    %v2311 = vunpack.c.l.b16 %v1435
    %v2312 = vunpack.c.h.b16 %v1435
    %v2313 = vunpack.c.l.b16 %v1436
    %v2314 = vunpack.c.h.b16 %v1436
    %v2315 = vunpack.c.l.b16 %v1437
    %v2316 = vunpack.c.h.b16 %v1437
    %v2317 = vunpack.c.l.b16 %v1438
    %v2318 = vunpack.c.h.b16 %v1438
    %v2319 = vunpack.c.l.b16 %v1439
    %v2320 = vunpack.c.h.b16 %v1439
    %v2321 = vunpack.c.l.b16 %v1440
    %v2322 = vunpack.c.h.b16 %v1440
    %v2323 = vunpack.c.l.b16 %v1441
    %v2324 = vunpack.c.h.b16 %v1441
    %v2325 = vunpack.c.l.b16 %v1442
    %v2326 = vunpack.c.h.b16 %v1442
    %v2327 = vunpack.c.l.b16 %v1443
    %v2328 = vunpack.c.h.b16 %v1443
    %v2329 = vunpack.c.l.b16 %v1444
    %v2330 = vunpack.c.h.b16 %v1444
    %v2331 = vunpack.c.l.b16 %v1445
    %v2332 = vunpack.c.h.b16 %v1445
    %v2333 = vunpack.c.l.b16 %v1446
    %v2334 = vunpack.c.h.b16 %v1446
    %v2335 = vunpack.c.l.b16 %v1447
    %v2336 = vunpack.c.h.b16 %v1447
    %v2337 = vunpack.c.l.b16 %v1448
    %v2338 = vunpack.c.h.b16 %v1448
    %v2339 = vunpack.c.l.b16 %v1449
    %v2340 = vunpack.c.h.b16 %v1449
    %v2341 = vunpack.c.l.b16 %v1450
    %v2342 = vunpack.c.h.b16 %v1450
    %v2343 = vunpack.c.l.b16 %v1451
    %v2344 = vunpack.c.h.b16 %v1451
    %v2345 = vunpack.c.l.b16 %v1452
    %v2346 = vunpack.c.h.b16 %v1452
    %v2347 = vunpack.c.l.b16 %v1453
    %v2348 = vunpack.c.h.b16 %v1453
    %v2349 = vunpack.c.l.b16 %v1454
    %v2350 = vunpack.c.h.b16 %v1454
    %v2351 = vunpack.c.l.b16 %v1455
    %v2352 = vunpack.c.h.b16 %v1455
    %v2353 = vunpack.c.l.b16 %v1456
    %v2354 = vunpack.c.h.b16 %v1456
    %v2355 = vunpack.c.l.b16 %v1457
    %v2356 = vunpack.c.h.b16 %v1457
    %v2357 = vunpack.c.l.b16 %v1458
    %v2358 = vunpack.c.h.b16 %v1458
    %v2359 = vunpack.c.l.b16 %v1459
    %v2360 = vunpack.c.h.b16 %v1459
    %v2361 = vunpack.c.l.b16 %v1460
    %v2362 = vunpack.c.h.b16 %v1460
    %v2363 = vunpack.c.l.b16 %v1461
    %v2364 = vunpack.c.h.b16 %v1461
    %v2365 = vunpack.c.l.b16 %v1462
    %v2366 = vunpack.c.h.b16 %v1462
    %v2367 = vunpack.c.l.b16 %v1463
    %v2368 = vunpack.c.h.b16 %v1463
    %v2369 = vunpack.c.l.b16 %v1464
    %v2370 = vunpack.c.h.b16 %v1464
    %v2371 = vunpack.c.l.b16 %v1465
    %v2372 = vunpack.c.h.b16 %v1465
    %v2373 = vunpack.c.l.b16 %v1466
    %v2374 = vunpack.c.h.b16 %v1466
    %v2375 = vunpack.c.l.b16 %v1467
    %v2376 = vunpack.c.h.b16 %v1467
    %v2377 = vunpack.c.l.b16 %v1468
    %v2378 = vunpack.c.h.b16 %v1468
    %v2379 = vunpack.c.l.b16 %v1469
    %v2380 = vunpack.c.h.b16 %v1469
    %v2381 = vunpack.c.l.b16 %v1470
    %v2382 = vunpack.c.h.b16 %v1470
    %v2383 = vunpack.c.l.b16 %v1471
    %v2384 = vunpack.c.h.b16 %v1471
    %v2385 = vunpack.c.l.b16 %v1472
    %v2386 = vunpack.c.h.b16 %v1472
    %v2387 = vunpack.c.l.b16 %v1473
    %v2388 = vunpack.c.h.b16 %v1473
    %v2389 = vunpack.c.l.b16 %v1474
    %v2390 = vunpack.c.h.b16 %v1474
    %v2391 = vunpack.c.l.b16 %v1475
    %v2392 = vunpack.c.h.b16 %v1475
    %v2393 = vunpack.c.l.b16 %v1476
    %v2394 = vunpack.c.h.b16 %v1476
    %v2395 = vunpack.c.l.b16 %v1477
    %v2396 = vunpack.c.h.b16 %v1477
    %v2397 = vunpack.c.l.b16 %v1478
    %v2398 = vunpack.c.h.b16 %v1478
    %v2399 = vunpack.c.l.b16 %v1479
    %v2400 = vunpack.c.h.b16 %v1479
    %v2401 = vunpack.c.l.b16 %v1480
    %v2402 = vunpack.c.h.b16 %v1480
    %v2403 = vunpack.c.l.b16 %v1481
    %v2404 = vunpack.c.h.b16 %v1481
    %v2405 = vunpack.c.l.b16 %v1482
    %v2406 = vunpack.c.h.b16 %v1482
    %v2407 = vunpack.c.l.b16 %v1483
    %v2408 = vunpack.c.h.b16 %v1483
    %v2409 = vunpack.c.l.b16 %v1484
    %v2410 = vunpack.c.h.b16 %v1484
    %v2411 = vunpack.c.l.b16 %v1485
    %v2412 = vunpack.c.h.b16 %v1485
    %v2413 = vunpack.c.l.b16 %v1486
    %v2414 = vunpack.c.h.b16 %v1486
    %v2415 = vunpack.c.l.b16 %v1487
    %v2416 = vunpack.c.h.b16 %v1487
    %v2417 = vunpack.c.l.b16 %v1488
    %v2418 = vunpack.c.h.b16 %v1488
    %v2419 = vunpack.c.l.b16 %v1489
    %v2420 = vunpack.c.h.b16 %v1489
    %v2421 = vunpack.c.l.b16 %v1490
    %v2422 = vunpack.c.h.b16 %v1490
    %v2423 = vunpack.c.l.b16 %v1491
    %v2424 = vunpack.c.h.b16 %v1491
    %v2425 = vunpack.c.l.b16 %v1492
    %v2426 = vunpack.c.h.b16 %v1492
    %v2427 = vunpack.c.l.b16 %v1493
    %v2428 = vunpack.c.h.b16 %v1493
    %v2429 = vunpack.c.l.b16 %v1494
    %v2430 = vunpack.c.h.b16 %v1494
    %v2431 = vunpack.c.l.b16 %v1495
    %v2432 = vunpack.c.h.b16 %v1495
    %v2433 = vunpack.c.l.b16 %v1496
    %v2434 = vunpack.c.h.b16 %v1496
    %v2435 = vunpack.c.l.b16 %v1497
    %v2436 = vunpack.c.h.b16 %v1497
    %v2437 = vunpack.c.l.b16 %v1498
    %v2438 = vunpack.c.h.b16 %v1498
    %v2439 = vunpack.c.l.b16 %v1499
    %v2440 = vunpack.c.h.b16 %v1499
    %v2441 = vunpack.c.l.b16 %v1500
    %v2442 = vunpack.c.h.b16 %v1500
    %v2443 = vunpack.c.l.b16 %v1501
    %v2444 = vunpack.c.h.b16 %v1501
    %v2445 = vunpack.c.l.b16 %v1502
    %v2446 = vunpack.c.h.b16 %v1502
    %v2447 = vunpack.c.l.b16 %v1503
    %v2448 = vunpack.c.h.b16 %v1503
    %v2449 = vunpack.c.l.b16 %v1504
    %v2450 = vunpack.c.h.b16 %v1504
    %v2451 = vunpack.c.l.b16 %v1505
    %v2452 = vunpack.c.h.b16 %v1505
    %v2453 = vunpack.c.l.b16 %v1506
    %v2454 = vunpack.c.h.b16 %v1506
    %v2455 = vunpack.c.l.b16 %v1507
    %v2456 = vunpack.c.h.b16 %v1507
    %v2457 = vunpack.c.l.b16 %v1508
    %v2458 = vunpack.c.h.b16 %v1508
    %v2459 = vunpack.c.l.b16 %v1509
    %v2460 = vunpack.c.h.b16 %v1509
    %v2461 = vunpack.c.l.b16 %v1510
    %v2462 = vunpack.c.h.b16 %v1510
    %v2463 = vunpack.c.l.b16 %v1511
    %v2464 = vunpack.c.h.b16 %v1511
    %v2465 = vunpack.c.l.b16 %v1512
    %v2466 = vunpack.c.h.b16 %v1512
    %v2467 = vunpack.c.l.b16 %v1513
    %v2468 = vunpack.c.h.b16 %v1513
    %v2469 = vunpack.c.l.b16 %v1514
    %v2470 = vunpack.c.h.b16 %v1514
    %v2471 = vunpack.c.l.b16 %v1515
    %v2472 = vunpack.c.h.b16 %v1515
    %v2473 = vunpack.c.l.b16 %v1516
    %v2474 = vunpack.c.h.b16 %v1516
    %v2475 = vunpack.c.l.b16 %v1517
    %v2476 = vunpack.c.h.b16 %v1517
    %v2477 = vunpack.c.l.b16 %v1518
    %v2478 = vunpack.c.h.b16 %v1518
    %v2479 = vunpack.c.l.b16 %v1519
    %v2480 = vunpack.c.h.b16 %v1519
    %v2481 = vunpack.c.l.b16 %v1520
    %v2482 = vunpack.c.h.b16 %v1520
    %v2483 = vunpack.c.l.b16 %v1521
    %v2484 = vunpack.c.h.b16 %v1521
    %v2485 = vunpack.c.l.b16 %v1522
    %v2486 = vunpack.c.h.b16 %v1522
    %v2487 = vunpack.c.l.b16 %v1523
    %v2488 = vunpack.c.h.b16 %v1523
    %v2489 = vunpack.c.l.b16 %v1524
    %v2490 = vunpack.c.h.b16 %v1524
    %v2491 = vunpack.c.l.b16 %v1525
    %v2492 = vunpack.c.h.b16 %v1525
    %v2493 = vunpack.c.l.b16 %v1526
    %v2494 = vunpack.c.h.b16 %v1526
    %v2495 = vunpack.c.l.b16 %v1527
    %v2496 = vunpack.c.h.b16 %v1527
    %v2497 = vunpack.c.l.b16 %v1528
    %v2498 = vunpack.c.h.b16 %v1528
    %v2499 = vunpack.c.l.b16 %v1529
    %v2500 = vunpack.c.h.b16 %v1529
    %v2501 = vunpack.c.l.b16 %v1530
    %v2502 = vunpack.c.h.b16 %v1530
    %v2503 = vunpack.c.l.b16 %v1531
    %v2504 = vunpack.c.h.b16 %v1531
    %v2505 = vunpack.c.l.b16 %v1532
    %v2506 = vunpack.c.h.b16 %v1532
    %v2507 = vunpack.c.l.b16 %v1533
    %v2508 = vunpack.c.h.b16 %v1533
    %v2509 = vunpack.c.l.b16 %v1534
    %v2510 = vunpack.c.h.b16 %v1534
    %v2511 = vunpack.c.l.b16 %v1535
    %v2512 = vunpack.c.h.b16 %v1535
    %v2513 = vunpack.c.l.b16 %v1536
    %v2514 = vunpack.c.h.b16 %v1536
    %v2515 = vunpack.c.l.b16 %v1537
    %v2516 = vunpack.c.h.b16 %v1537
    %v2517 = vunpack.c.l.b16 %v1538
    %v2518 = vunpack.c.h.b16 %v1538
    %v2519 = vunpack.c.l.b16 %v1539
    %v2520 = vunpack.c.h.b16 %v1539
    %v2521 = vunpack.c.l.b16 %v1540
    %v2522 = vunpack.c.h.b16 %v1540
    %v2523 = vunpack.c.l.b16 %v1541
    %v2524 = vunpack.c.h.b16 %v1541
    %v2525 = vunpack.c.l.b16 %v1542
    %v2526 = vunpack.c.h.b16 %v1542
    %v2527 = vunpack.c.l.b16 %v1543
    %v2528 = vunpack.c.h.b16 %v1543
    %v2529 = vunpack.c.l.b16 %v1544
    %v2530 = vunpack.c.h.b16 %v1544
    %v2531 = vunpack.c.l.b16 %v1545
    %v2532 = vunpack.c.h.b16 %v1545
    %v2533 = vunpack.c.l.b16 %v1546
    %v2534 = vunpack.c.h.b16 %v1546
    %v2535 = vpack.c.b16 %v1905, %v1895
    %v2536 = vpack.c.b16 %v1906, %v1896
    %v2537 = vpack.c.b16 %v1907, %v1897
    %v2538 = vpack.c.b16 %v1908, %v1898
    %v2539 = vpack.c.b16 %v1909, %v1899
    %v2540 = vpack.c.b16 %v1910, %v1900
    %v2541 = vpack.c.b16 %v1911, %v1901
    %v2542 = vpack.c.b16 %v1912, %v1902
    %v2543 = vpack.c.b16 %v1913, %v1903
    %v2544 = vpack.c.b16 %v1914, %v1904
    %v2545 = vpack.c.b16 %v1925, %v1915
    %v2546 = vpack.c.b16 %v1926, %v1916
    %v2547 = vpack.c.b16 %v1927, %v1917
    %v2548 = vpack.c.b16 %v1928, %v1918
    %v2549 = vpack.c.b16 %v1929, %v1919
    %v2550 = vpack.c.b16 %v1930, %v1920
    %v2551 = vpack.c.b16 %v1931, %v1921
    %v2552 = vpack.c.b16 %v1932, %v1922
    %v2553 = vpack.c.b16 %v1933, %v1923
    %v2554 = vpack.c.b16 %v1934, %v1924
    %v2555 = vpack.c.b16 %v1945, %v1935
    %v2556 = vpack.c.b16 %v1946, %v1936
    %v2557 = vpack.c.b16 %v1947, %v1937
    %v2558 = vpack.c.b16 %v1948, %v1938
    %v2559 = vpack.c.b16 %v1949, %v1939
    %v2560 = vpack.c.b16 %v1950, %v1940
    %v2561 = vpack.c.b16 %v1951, %v1941
    %v2562 = vpack.c.b16 %v1952, %v1942
    %v2563 = vpack.c.b16 %v1953, %v1943
    %v2564 = vpack.c.b16 %v1954, %v1944
    %v2565 = vpack.c.b16 %v1965, %v1955
    %v2566 = vpack.c.b16 %v1966, %v1956
    %v2567 = vpack.c.b16 %v1967, %v1957
    %v2568 = vpack.c.b16 %v1968, %v1958
    %v2569 = vpack.c.b16 %v1969, %v1959
    %v2570 = vpack.c.b16 %v1970, %v1960
    %v2571 = vpack.c.b16 %v1971, %v1961
    %v2572 = vpack.c.b16 %v1972, %v1962
    %v2573 = vpack.c.b16 %v1973, %v1963
    %v2574 = vpack.c.b16 %v1974, %v1964
    %v2575 = vpack.c.b16 %v1985, %v1975
    %v2576 = vpack.c.b16 %v1986, %v1976
    %v2577 = vpack.c.b16 %v1987, %v1977
    %v2578 = vpack.c.b16 %v1988, %v1978
    %v2579 = vpack.c.b16 %v1989, %v1979
    %v2580 = vpack.c.b16 %v1990, %v1980
    %v2581 = vpack.c.b16 %v1991, %v1981
    %v2582 = vpack.c.b16 %v1992, %v1982
    %v2583 = vpack.c.b16 %v1993, %v1983
    %v2584 = vpack.c.b16 %v1994, %v1984
    %v2585 = vpack.c.b16 %v2005, %v1995
    %v2586 = vpack.c.b16 %v2006, %v1996
    %v2587 = vpack.c.b16 %v2007, %v1997
    %v2588 = vpack.c.b16 %v2008, %v1998
    %v2589 = vpack.c.b16 %v2009, %v1999
    %v2590 = vpack.c.b16 %v2010, %v2000
    %v2591 = vpack.c.b16 %v2011, %v2001
    %v2592 = vpack.c.b16 %v2012, %v2002
    %v2593 = vpack.c.b16 %v2013, %v2003
    %v2594 = vpack.c.b16 %v2014, %v2004
    %v2595 = vpack.c.b16 %v2025, %v2015
    %v2596 = vpack.c.b16 %v2026, %v2016
    %v2597 = vpack.c.b16 %v2027, %v2017
    %v2598 = vpack.c.b16 %v2028, %v2018
    %v2599 = vpack.c.b16 %v2029, %v2019
    %v2600 = vpack.c.b16 %v2030, %v2020
    %v2601 = vpack.c.b16 %v2031, %v2021
    %v2602 = vpack.c.b16 %v2032, %v2022
    %v2603 = vpack.c.b16 %v2033, %v2023
    %v2604 = vpack.c.b16 %v2034, %v2024
    %v2605 = vpack.c.b16 %v2045, %v2035
    %v2606 = vpack.c.b16 %v2046, %v2036
    %v2607 = vpack.c.b16 %v2047, %v2037
    %v2608 = vpack.c.b16 %v2048, %v2038
    %v2609 = vpack.c.b16 %v2049, %v2039
    %v2610 = vpack.c.b16 %v2050, %v2040
    %v2611 = vpack.c.b16 %v2051, %v2041
    %v2612 = vpack.c.b16 %v2052, %v2042
    %v2613 = vpack.c.b16 %v2053, %v2043
    %v2614 = vpack.c.b16 %v2054, %v2044
    %v2615 = vpack.c.b16 %v2065, %v2055
    %v2616 = vpack.c.b16 %v2066, %v2056
    %v2617 = vpack.c.b16 %v2067, %v2057
    %v2618 = vpack.c.b16 %v2068, %v2058
    %v2619 = vpack.c.b16 %v2069, %v2059
    %v2620 = vpack.c.b16 %v2070, %v2060
    %v2621 = vpack.c.b16 %v2071, %v2061
    %v2622 = vpack.c.b16 %v2072, %v2062
    %v2623 = vpack.c.b16 %v2073, %v2063
    %v2624 = vpack.c.b16 %v2074, %v2064
    %v2625 = vpack.c.b16 %v2085, %v2075
    %v2626 = vpack.c.b16 %v2086, %v2076
    %v2627 = vpack.c.b16 %v2087, %v2077
    %v2628 = vpack.c.b16 %v2088, %v2078
    %v2629 = vpack.c.b16 %v2089, %v2079
    %v2630 = vpack.c.b16 %v2090, %v2080
    %v2631 = vpack.c.b16 %v2091, %v2081
    %v2632 = vpack.c.b16 %v2092, %v2082
    %v2633 = vpack.c.b16 %v2093, %v2083
    %v2634 = vpack.c.b16 %v2094, %v2084
    %v2635 = vpack.c.b16 %v2105, %v2095
    %v2636 = vpack.c.b16 %v2106, %v2096
    %v2637 = vpack.c.b16 %v2107, %v2097
    %v2638 = vpack.c.b16 %v2108, %v2098
    %v2639 = vpack.c.b16 %v2109, %v2099
    %v2640 = vpack.c.b16 %v2110, %v2100
    %v2641 = vpack.c.b16 %v2111, %v2101
    %v2642 = vpack.c.b16 %v2112, %v2102
    %v2643 = vpack.c.b16 %v2113, %v2103
    %v2644 = vpack.c.b16 %v2114, %v2104
    %v2645 = vpack.c.b16 %v2125, %v2115
    %v2646 = vpack.c.b16 %v2126, %v2116
    %v2647 = vpack.c.b16 %v2127, %v2117
    %v2648 = vpack.c.b16 %v2128, %v2118
    %v2649 = vpack.c.b16 %v2129, %v2119
    %v2650 = vpack.c.b16 %v2130, %v2120
    %v2651 = vpack.c.b16 %v2131, %v2121
    %v2652 = vpack.c.b16 %v2132, %v2122
    %v2653 = vpack.c.b16 %v2133, %v2123
    %v2654 = vpack.c.b16 %v2134, %v2124
    %v2655 = vpack.c.b16 %v2145, %v2135
    %v2656 = vpack.c.b16 %v2146, %v2136
    %v2657 = vpack.c.b16 %v2147, %v2137
    %v2658 = vpack.c.b16 %v2148, %v2138
    %v2659 = vpack.c.b16 %v2149, %v2139
    %v2660 = vpack.c.b16 %v2150, %v2140
    %v2661 = vpack.c.b16 %v2151, %v2141
    %v2662 = vpack.c.b16 %v2152, %v2142
    %v2663 = vpack.c.b16 %v2153, %v2143
    %v2664 = vpack.c.b16 %v2154, %v2144
    %v2665 = vpack.c.b16 %v2165, %v2155
    %v2666 = vpack.c.b16 %v2166, %v2156
    %v2667 = vpack.c.b16 %v2167, %v2157
    %v2668 = vpack.c.b16 %v2168, %v2158
    %v2669 = vpack.c.b16 %v2169, %v2159
    %v2670 = vpack.c.b16 %v2170, %v2160
    %v2671 = vpack.c.b16 %v2171, %v2161
    %v2672 = vpack.c.b16 %v2172, %v2162
    %v2673 = vpack.c.b16 %v2173, %v2163
    %v2674 = vpack.c.b16 %v2174, %v2164
    %v2675 = vpack.c.b16 %v2185, %v2175
    %v2676 = vpack.c.b16 %v2186, %v2176
    %v2677 = vpack.c.b16 %v2187, %v2177
    %v2678 = vpack.c.b16 %v2188, %v2178
    %v2679 = vpack.c.b16 %v2189, %v2179
    %v2680 = vpack.c.b16 %v2190, %v2180
    %v2681 = vpack.c.b16 %v2191, %v2181
    %v2682 = vpack.c.b16 %v2192, %v2182
    %v2683 = vpack.c.b16 %v2193, %v2183
    %v2684 = vpack.c.b16 %v2194, %v2184
    %v2685 = vpack.c.b16 %v2205, %v2195
    %v2686 = vpack.c.b16 %v2206, %v2196
    %v2687 = vpack.c.b16 %v2207, %v2197
    %v2688 = vpack.c.b16 %v2208, %v2198
    %v2689 = vpack.c.b16 %v2209, %v2199
    %v2690 = vpack.c.b16 %v2210, %v2200
    %v2691 = vpack.c.b16 %v2211, %v2201
    %v2692 = vpack.c.b16 %v2212, %v2202
    %v2693 = vpack.c.b16 %v2213, %v2203
    %v2694 = vpack.c.b16 %v2214, %v2204
    %v2695 = vpack.c.b16 %v2225, %v2215
    %v2696 = vpack.c.b16 %v2226, %v2216
    %v2697 = vpack.c.b16 %v2227, %v2217
    %v2698 = vpack.c.b16 %v2228, %v2218
    %v2699 = vpack.c.b16 %v2229, %v2219
    %v2700 = vpack.c.b16 %v2230, %v2220
    %v2701 = vpack.c.b16 %v2231, %v2221
    %v2702 = vpack.c.b16 %v2232, %v2222
    %v2703 = vpack.c.b16 %v2233, %v2223
    %v2704 = vpack.c.b16 %v2234, %v2224
    %v2705 = vpack.c.b16 %v2245, %v2235
    %v2706 = vpack.c.b16 %v2246, %v2236
    %v2707 = vpack.c.b16 %v2247, %v2237
    %v2708 = vpack.c.b16 %v2248, %v2238
    %v2709 = vpack.c.b16 %v2249, %v2239
    %v2710 = vpack.c.b16 %v2250, %v2240
    %v2711 = vpack.c.b16 %v2251, %v2241
    %v2712 = vpack.c.b16 %v2252, %v2242
    %v2713 = vpack.c.b16 %v2253, %v2243
    %v2714 = vpack.c.b16 %v2254, %v2244
    %v2715 = vpack.c.b16 %v2265, %v2255
    %v2716 = vpack.c.b16 %v2266, %v2256
    %v2717 = vpack.c.b16 %v2267, %v2257
    %v2718 = vpack.c.b16 %v2268, %v2258
    %v2719 = vpack.c.b16 %v2269, %v2259
    %v2720 = vpack.c.b16 %v2270, %v2260
    %v2721 = vpack.c.b16 %v2271, %v2261
    %v2722 = vpack.c.b16 %v2272, %v2262
    %v2723 = vpack.c.b16 %v2273, %v2263
    %v2724 = vpack.c.b16 %v2274, %v2264
    %v2725 = vpack.c.b16 %v2285, %v2275
    %v2726 = vpack.c.b16 %v2286, %v2276
    %v2727 = vpack.c.b16 %v2287, %v2277
    %v2728 = vpack.c.b16 %v2288, %v2278
    %v2729 = vpack.c.b16 %v2289, %v2279
    %v2730 = vpack.c.b16 %v2290, %v2280
    %v2731 = vpack.c.b16 %v2291, %v2281
    %v2732 = vpack.c.b16 %v2292, %v2282
    %v2733 = vpack.c.b16 %v2293, %v2283
    %v2734 = vpack.c.b16 %v2294, %v2284
    %v2735 = vpack.c.b16 %v2305, %v2295
    %v2736 = vpack.c.b16 %v2306, %v2296
    %v2737 = vpack.c.b16 %v2307, %v2297
    %v2738 = vpack.c.b16 %v2308, %v2298
    %v2739 = vpack.c.b16 %v2309, %v2299
    %v2740 = vpack.c.b16 %v2310, %v2300
    %v2741 = vpack.c.b16 %v2311, %v2301
    %v2742 = vpack.c.b16 %v2312, %v2302
    %v2743 = vpack.c.b16 %v2313, %v2303
    %v2744 = vpack.c.b16 %v2314, %v2304
    %v2745 = vpack.c.b16 %v2325, %v2315
    %v2746 = vpack.c.b16 %v2326, %v2316
    %v2747 = vpack.c.b16 %v2327, %v2317
    %v2748 = vpack.c.b16 %v2328, %v2318
    %v2749 = vpack.c.b16 %v2329, %v2319
    %v2750 = vpack.c.b16 %v2330, %v2320
    %v2751 = vpack.c.b16 %v2331, %v2321
    %v2752 = vpack.c.b16 %v2332, %v2322
    %v2753 = vpack.c.b16 %v2333, %v2323
    %v2754 = vpack.c.b16 %v2334, %v2324
    %v2755 = vpack.c.b16 %v2345, %v2335
    %v2756 = vpack.c.b16 %v2346, %v2336
    %v2757 = vpack.c.b16 %v2347, %v2337
    %v2758 = vpack.c.b16 %v2348, %v2338
    %v2759 = vpack.c.b16 %v2349, %v2339
    %v2760 = vpack.c.b16 %v2350, %v2340
    %v2761 = vpack.c.b16 %v2351, %v2341
    %v2762 = vpack.c.b16 %v2352, %v2342
    %v2763 = vpack.c.b16 %v2353, %v2343
    %v2764 = vpack.c.b16 %v2354, %v2344
    %v2765 = vpack.c.b16 %v2365, %v2355
    %v2766 = vpack.c.b16 %v2366, %v2356
    %v2767 = vpack.c.b16 %v2367, %v2357
    %v2768 = vpack.c.b16 %v2368, %v2358
    %v2769 = vpack.c.b16 %v2369, %v2359
    %v2770 = vpack.c.b16 %v2370, %v2360
    %v2771 = vpack.c.b16 %v2371, %v2361
    %v2772 = vpack.c.b16 %v2372, %v2362
    %v2773 = vpack.c.b16 %v2373, %v2363
    %v2774 = vpack.c.b16 %v2374, %v2364
    %v2775 = vpack.c.b16 %v2385, %v2375
    %v2776 = vpack.c.b16 %v2386, %v2376
    %v2777 = vpack.c.b16 %v2387, %v2377
    %v2778 = vpack.c.b16 %v2388, %v2378
    %v2779 = vpack.c.b16 %v2389, %v2379
    %v2780 = vpack.c.b16 %v2390, %v2380
    %v2781 = vpack.c.b16 %v2391, %v2381
    %v2782 = vpack.c.b16 %v2392, %v2382
    %v2783 = vpack.c.b16 %v2393, %v2383
    %v2784 = vpack.c.b16 %v2394, %v2384
    %v2785 = vpack.c.b16 %v2405, %v2395
    %v2786 = vpack.c.b16 %v2406, %v2396
    %v2787 = vpack.c.b16 %v2407, %v2397
    %v2788 = vpack.c.b16 %v2408, %v2398
    %v2789 = vpack.c.b16 %v2409, %v2399
    %v2790 = vpack.c.b16 %v2410, %v2400
    %v2791 = vpack.c.b16 %v2411, %v2401
    %v2792 = vpack.c.b16 %v2412, %v2402
    %v2793 = vpack.c.b16 %v2413, %v2403
    %v2794 = vpack.c.b16 %v2414, %v2404
    %v2795 = vpack.c.b16 %v2425, %v2415
    %v2796 = vpack.c.b16 %v2426, %v2416
    %v2797 = vpack.c.b16 %v2427, %v2417
    %v2798 = vpack.c.b16 %v2428, %v2418
    %v2799 = vpack.c.b16 %v2429, %v2419
    %v2800 = vpack.c.b16 %v2430, %v2420
    %v2801 = vpack.c.b16 %v2431, %v2421
    %v2802 = vpack.c.b16 %v2432, %v2422
    %v2803 = vpack.c.b16 %v2433, %v2423
    %v2804 = vpack.c.b16 %v2434, %v2424
    %v2805 = vpack.c.b16 %v2445, %v2435
    %v2806 = vpack.c.b16 %v2446, %v2436
    %v2807 = vpack.c.b16 %v2447, %v2437
    %v2808 = vpack.c.b16 %v2448, %v2438
    %v2809 = vpack.c.b16 %v2449, %v2439
    %v2810 = vpack.c.b16 %v2450, %v2440
    %v2811 = vpack.c.b16 %v2451, %v2441
    %v2812 = vpack.c.b16 %v2452, %v2442
    %v2813 = vpack.c.b16 %v2453, %v2443
    %v2814 = vpack.c.b16 %v2454, %v2444
    %v2815 = vpack.c.b16 %v2465, %v2455
    %v2816 = vpack.c.b16 %v2466, %v2456
    %v2817 = vpack.c.b16 %v2467, %v2457
    %v2818 = vpack.c.b16 %v2468, %v2458
    %v2819 = vpack.c.b16 %v2469, %v2459
    %v2820 = vpack.c.b16 %v2470, %v2460
    %v2821 = vpack.c.b16 %v2471, %v2461
    %v2822 = vpack.c.b16 %v2472, %v2462
    %v2823 = vpack.c.b16 %v2473, %v2463
    %v2824 = vpack.c.b16 %v2474, %v2464
    %v2825 = vpack.c.b16 %v2485, %v2475
    %v2826 = vpack.c.b16 %v2486, %v2476
    %v2827 = vpack.c.b16 %v2487, %v2477
    %v2828 = vpack.c.b16 %v2488, %v2478
    %v2829 = vpack.c.b16 %v2489, %v2479
    %v2830 = vpack.c.b16 %v2490, %v2480
    %v2831 = vpack.c.b16 %v2491, %v2481
    %v2832 = vpack.c.b16 %v2492, %v2482
    %v2833 = vpack.c.b16 %v2493, %v2483
    %v2834 = vpack.c.b16 %v2494, %v2484
    %v2835 = vpack.c.b16 %v2505, %v2495
    %v2836 = vpack.c.b16 %v2506, %v2496
    %v2837 = vpack.c.b16 %v2507, %v2497
    %v2838 = vpack.c.b16 %v2508, %v2498
    %v2839 = vpack.c.b16 %v2509, %v2499
    %v2840 = vpack.c.b16 %v2510, %v2500
    %v2841 = vpack.c.b16 %v2511, %v2501
    %v2842 = vpack.c.b16 %v2512, %v2502
    %v2843 = vpack.c.b16 %v2513, %v2503
    %v2844 = vpack.c.b16 %v2514, %v2504
    %v2845 = vpack.c.b16 %v2525, %v2515
    %v2846 = vpack.c.b16 %v2526, %v2516
    %v2847 = vpack.c.b16 %v2527, %v2517
    %v2848 = vpack.c.b16 %v2528, %v2518
    %v2849 = vpack.c.b16 %v2529, %v2519
    %v2850 = vpack.c.b16 %v2530, %v2520
    %v2851 = vpack.c.b16 %v2531, %v2521
    %v2852 = vpack.c.b16 %v2532, %v2522
    %v2853 = vpack.c.b16 %v2533, %v2523
    %v2854 = vpack.c.b16 %v2534, %v2524
    %3175 = vmatpush.bf16.msra.mxu0 %v2605
    %3176 = vmatpush.bf16.msra.mxu0 %v2595
    %3177 = vmatpush.bf16.msra.mxu0 %v2585
    %3178 = vmatpush.bf16.msra.mxu0 %v2575
    %3179 = vmatpush.bf16.msra.mxu0 %v2565
    %3180 = vmatpush.bf16.msra.mxu0 %v2555
    %3181 = vmatpush.bf16.msra.mxu0 %v2545
    %3182 = vmatpush.bf16.msra.mxu0 %v2535
    %3183 = vmatmul.bf16.gmra.mxu0 %v1547
    %v3184 = vpop.f32.mrf.mxu0
    %v3185 = vadd.f32 %v1555, %v3184
    %v3186 = vpop.f32.mrf.mxu0
    %3187 = vdwg.mxu0
    %3188 = vmatpush.bf16.msra.mxu0 %v2685
    %3189 = vmatpush.bf16.msra.mxu0 %v2675
    %3190 = vmatpush.bf16.msra.mxu0 %v2665
    %3191 = vmatpush.bf16.msra.mxu0 %v2655
    %3192 = vmatpush.bf16.msra.mxu0 %v2645
    %3193 = vmatpush.bf16.msra.mxu0 %v2635
    %3194 = vmatpush.bf16.msra.mxu0 %v2625
    %3195 = vmatpush.bf16.msra.mxu0 %v2615
    %3196 = vmatmul.bf16.gmra.mxu0 %v1548
    %v3197 = vpop.f32.mrf.mxu0
    %v3198 = vadd.f32 %v3185, %v3197
    %v3199 = vpop.f32.mrf.mxu0
    %3200 = vdwg.mxu0
    %3201 = vmatpush.bf16.msra.mxu0 %v2765
    %3202 = vmatpush.bf16.msra.mxu0 %v2755
    %3203 = vmatpush.bf16.msra.mxu0 %v2745
    %3204 = vmatpush.bf16.msra.mxu0 %v2735
    %3205 = vmatpush.bf16.msra.mxu0 %v2725
    %3206 = vmatpush.bf16.msra.mxu0 %v2715
    %3207 = vmatpush.bf16.msra.mxu0 %v2705
    %3208 = vmatpush.bf16.msra.mxu0 %v2695
    %3209 = vmatmul.bf16.gmra.mxu0 %v1549
    %v3210 = vpop.f32.mrf.mxu0
    %v3211 = vadd.f32 %v3198, %v3210
    %v3212 = vpop.f32.mrf.mxu0
    %3213 = vdwg.mxu0
    %3214 = vmatpush.bf16.msra.mxu0 %v2845
    %3215 = vmatpush.bf16.msra.mxu0 %v2835
    %3216 = vmatpush.bf16.msra.mxu0 %v2825
    %3217 = vmatpush.bf16.msra.mxu0 %v2815
    %3218 = vmatpush.bf16.msra.mxu0 %v2805
    %3219 = vmatpush.bf16.msra.mxu0 %v2795
    %3220 = vmatpush.bf16.msra.mxu0 %v2785
    %3221 = vmatpush.bf16.msra.mxu0 %v2775
    %3222 = vmatmul.bf16.gmra.mxu0 %v1550
    %v3223 = vpop.f32.mrf.mxu0
    %v3224 = vadd.f32 %v3211, %v3223
    %v3225 = vpop.f32.mrf.mxu0
    %3226 = vdwg.mxu0
    %3227 = vmatpush.bf16.msra.mxu0 %v2606
    %3228 = vmatpush.bf16.msra.mxu0 %v2596
    %3229 = vmatpush.bf16.msra.mxu0 %v2586
    %3230 = vmatpush.bf16.msra.mxu0 %v2576
    %3231 = vmatpush.bf16.msra.mxu0 %v2566
    %3232 = vmatpush.bf16.msra.mxu0 %v2556
    %3233 = vmatpush.bf16.msra.mxu0 %v2546
    %3234 = vmatpush.bf16.msra.mxu0 %v2536
    %3235 = vmatmul.bf16.gmra.mxu0 %v1547
    %v3236 = vpop.f32.mrf.mxu0
    %v3237 = vadd.f32 %v1556, %v3236
    %v3238 = vpop.f32.mrf.mxu0
    %3239 = vdwg.mxu0
    %3240 = vmatpush.bf16.msra.mxu0 %v2686
    %3241 = vmatpush.bf16.msra.mxu0 %v2676
    %3242 = vmatpush.bf16.msra.mxu0 %v2666
    %3243 = vmatpush.bf16.msra.mxu0 %v2656
    %3244 = vmatpush.bf16.msra.mxu0 %v2646
    %3245 = vmatpush.bf16.msra.mxu0 %v2636
    %3246 = vmatpush.bf16.msra.mxu0 %v2626
    %3247 = vmatpush.bf16.msra.mxu0 %v2616
    %3248 = vmatmul.bf16.gmra.mxu0 %v1548
    %v3249 = vpop.f32.mrf.mxu0
    %v3250 = vadd.f32 %v3237, %v3249
    %v3251 = vpop.f32.mrf.mxu0
    %3252 = vdwg.mxu0
    %3253 = vmatpush.bf16.msra.mxu0 %v2766
    %3254 = vmatpush.bf16.msra.mxu0 %v2756
    %3255 = vmatpush.bf16.msra.mxu0 %v2746
    %3256 = vmatpush.bf16.msra.mxu0 %v2736
    %3257 = vmatpush.bf16.msra.mxu0 %v2726
    %3258 = vmatpush.bf16.msra.mxu0 %v2716
    %3259 = vmatpush.bf16.msra.mxu0 %v2706
    %3260 = vmatpush.bf16.msra.mxu0 %v2696
    %3261 = vmatmul.bf16.gmra.mxu0 %v1549
    %v3262 = vpop.f32.mrf.mxu0
    %v3263 = vadd.f32 %v3250, %v3262
    %v3264 = vpop.f32.mrf.mxu0
    %3265 = vdwg.mxu0
    %3266 = vmatpush.bf16.msra.mxu0 %v2846
    %3267 = vmatpush.bf16.msra.mxu0 %v2836
    %3268 = vmatpush.bf16.msra.mxu0 %v2826
    %3269 = vmatpush.bf16.msra.mxu0 %v2816
    %3270 = vmatpush.bf16.msra.mxu0 %v2806
    %3271 = vmatpush.bf16.msra.mxu0 %v2796
    %3272 = vmatpush.bf16.msra.mxu0 %v2786
    %3273 = vmatpush.bf16.msra.mxu0 %v2776
    %3274 = vmatmul.bf16.gmra.mxu0 %v1550
    %v3275 = vpop.f32.mrf.mxu0
    %v3276 = vadd.f32 %v3263, %v3275
    %v3277 = vpop.f32.mrf.mxu0
    %3278 = vdwg.mxu0
    %3279 = vmatpush.bf16.msra.mxu0 %v2607
    %3280 = vmatpush.bf16.msra.mxu0 %v2597
    %3281 = vmatpush.bf16.msra.mxu0 %v2587
    %3282 = vmatpush.bf16.msra.mxu0 %v2577
    %3283 = vmatpush.bf16.msra.mxu0 %v2567
    %3284 = vmatpush.bf16.msra.mxu0 %v2557
    %3285 = vmatpush.bf16.msra.mxu0 %v2547
    %3286 = vmatpush.bf16.msra.mxu0 %v2537
    %3287 = vmatmul.bf16.gmra.mxu0 %v1547
    %v3288 = vpop.f32.mrf.mxu0
    %v3289 = vadd.f32 %v1557, %v3288
    %v3290 = vpop.f32.mrf.mxu0
    %3291 = vdwg.mxu0
    %3292 = vmatpush.bf16.msra.mxu0 %v2687
    %3293 = vmatpush.bf16.msra.mxu0 %v2677
    %3294 = vmatpush.bf16.msra.mxu0 %v2667
    %3295 = vmatpush.bf16.msra.mxu0 %v2657
    %3296 = vmatpush.bf16.msra.mxu0 %v2647
    %3297 = vmatpush.bf16.msra.mxu0 %v2637
    %3298 = vmatpush.bf16.msra.mxu0 %v2627
    %3299 = vmatpush.bf16.msra.mxu0 %v2617
    %3300 = vmatmul.bf16.gmra.mxu0 %v1548
    %v3301 = vpop.f32.mrf.mxu0
    %v3302 = vadd.f32 %v3289, %v3301
    %v3303 = vpop.f32.mrf.mxu0
    %3304 = vdwg.mxu0
    %3305 = vmatpush.bf16.msra.mxu0 %v2767
    %3306 = vmatpush.bf16.msra.mxu0 %v2757
    %3307 = vmatpush.bf16.msra.mxu0 %v2747
    %3308 = vmatpush.bf16.msra.mxu0 %v2737
    %3309 = vmatpush.bf16.msra.mxu0 %v2727
    %3310 = vmatpush.bf16.msra.mxu0 %v2717
    %3311 = vmatpush.bf16.msra.mxu0 %v2707
    %3312 = vmatpush.bf16.msra.mxu0 %v2697
    %3313 = vmatmul.bf16.gmra.mxu0 %v1549
    %v3314 = vpop.f32.mrf.mxu0
    %v3315 = vadd.f32 %v3302, %v3314
    %v3316 = vpop.f32.mrf.mxu0
    %3317 = vdwg.mxu0
    %3318 = vmatpush.bf16.msra.mxu0 %v2847
    %3319 = vmatpush.bf16.msra.mxu0 %v2837
    %3320 = vmatpush.bf16.msra.mxu0 %v2827
    %3321 = vmatpush.bf16.msra.mxu0 %v2817
    %3322 = vmatpush.bf16.msra.mxu0 %v2807
    %3323 = vmatpush.bf16.msra.mxu0 %v2797
    %3324 = vmatpush.bf16.msra.mxu0 %v2787
    %3325 = vmatpush.bf16.msra.mxu0 %v2777
    %3326 = vmatmul.bf16.gmra.mxu0 %v1550
    %v3327 = vpop.f32.mrf.mxu0
    %v3328 = vadd.f32 %v3315, %v3327
    %v3329 = vpop.f32.mrf.mxu0
    %3330 = vdwg.mxu0
    %3331 = vmatpush.bf16.msra.mxu0 %v2608
    %3332 = vmatpush.bf16.msra.mxu0 %v2598
    %3333 = vmatpush.bf16.msra.mxu0 %v2588
    %3334 = vmatpush.bf16.msra.mxu0 %v2578
    %3335 = vmatpush.bf16.msra.mxu0 %v2568
    %3336 = vmatpush.bf16.msra.mxu0 %v2558
    %3337 = vmatpush.bf16.msra.mxu0 %v2548
    %3338 = vmatpush.bf16.msra.mxu0 %v2538
    %3339 = vmatmul.bf16.gmra.mxu0 %v1547
    %v3340 = vpop.f32.mrf.mxu0
    %v3341 = vadd.f32 %v1558, %v3340
    %v3342 = vpop.f32.mrf.mxu0
    %3343 = vdwg.mxu0
    %3344 = vmatpush.bf16.msra.mxu0 %v2688
    %3345 = vmatpush.bf16.msra.mxu0 %v2678
    %3346 = vmatpush.bf16.msra.mxu0 %v2668
    %3347 = vmatpush.bf16.msra.mxu0 %v2658
    %3348 = vmatpush.bf16.msra.mxu0 %v2648
    %3349 = vmatpush.bf16.msra.mxu0 %v2638
    %3350 = vmatpush.bf16.msra.mxu0 %v2628
    %3351 = vmatpush.bf16.msra.mxu0 %v2618
    %3352 = vmatmul.bf16.gmra.mxu0 %v1548
    %v3353 = vpop.f32.mrf.mxu0
    %v3354 = vadd.f32 %v3341, %v3353
    %v3355 = vpop.f32.mrf.mxu0
    %3356 = vdwg.mxu0
    %3357 = vmatpush.bf16.msra.mxu0 %v2768
    %3358 = vmatpush.bf16.msra.mxu0 %v2758
    %3359 = vmatpush.bf16.msra.mxu0 %v2748
    %3360 = vmatpush.bf16.msra.mxu0 %v2738
    %3361 = vmatpush.bf16.msra.mxu0 %v2728
    %3362 = vmatpush.bf16.msra.mxu0 %v2718
    %3363 = vmatpush.bf16.msra.mxu0 %v2708
    %3364 = vmatpush.bf16.msra.mxu0 %v2698
    %3365 = vmatmul.bf16.gmra.mxu0 %v1549
    %v3366 = vpop.f32.mrf.mxu0
    %v3367 = vadd.f32 %v3354, %v3366
    %v3368 = vpop.f32.mrf.mxu0
    %3369 = vdwg.mxu0
    %3370 = vmatpush.bf16.msra.mxu0 %v2848
    %3371 = vmatpush.bf16.msra.mxu0 %v2838
    %3372 = vmatpush.bf16.msra.mxu0 %v2828
    %3373 = vmatpush.bf16.msra.mxu0 %v2818
    %3374 = vmatpush.bf16.msra.mxu0 %v2808
    %3375 = vmatpush.bf16.msra.mxu0 %v2798
    %3376 = vmatpush.bf16.msra.mxu0 %v2788
    %3377 = vmatpush.bf16.msra.mxu0 %v2778
    %3378 = vmatmul.bf16.gmra.mxu0 %v1550
    %v3379 = vpop.f32.mrf.mxu0
    %v3380 = vadd.f32 %v3367, %v3379
    %v3381 = vpop.f32.mrf.mxu0
    %3382 = vdwg.mxu0
    %3383 = vmatpush.bf16.msra.mxu0 %v2609
    %3384 = vmatpush.bf16.msra.mxu0 %v2599
    %3385 = vmatpush.bf16.msra.mxu0 %v2589
    %3386 = vmatpush.bf16.msra.mxu0 %v2579
    %3387 = vmatpush.bf16.msra.mxu0 %v2569
    %3388 = vmatpush.bf16.msra.mxu0 %v2559
    %3389 = vmatpush.bf16.msra.mxu0 %v2549
    %3390 = vmatpush.bf16.msra.mxu0 %v2539
    %3391 = vmatmul.bf16.gmra.mxu0 %v1547
    %v3392 = vpop.f32.mrf.mxu0
    %v3393 = vadd.f32 %v1559, %v3392
    %v3394 = vpop.f32.mrf.mxu0
    %3395 = vdwg.mxu0
    %3396 = vmatpush.bf16.msra.mxu0 %v2689
    %3397 = vmatpush.bf16.msra.mxu0 %v2679
    %3398 = vmatpush.bf16.msra.mxu0 %v2669
    %3399 = vmatpush.bf16.msra.mxu0 %v2659
    %3400 = vmatpush.bf16.msra.mxu0 %v2649
    %3401 = vmatpush.bf16.msra.mxu0 %v2639
    %3402 = vmatpush.bf16.msra.mxu0 %v2629
    %3403 = vmatpush.bf16.msra.mxu0 %v2619
    %3404 = vmatmul.bf16.gmra.mxu0 %v1548
    %v3405 = vpop.f32.mrf.mxu0
    %v3406 = vadd.f32 %v3393, %v3405
    %v3407 = vpop.f32.mrf.mxu0
    %3408 = vdwg.mxu0
    %3409 = vmatpush.bf16.msra.mxu0 %v2769
    %3410 = vmatpush.bf16.msra.mxu0 %v2759
    %3411 = vmatpush.bf16.msra.mxu0 %v2749
    %3412 = vmatpush.bf16.msra.mxu0 %v2739
    %3413 = vmatpush.bf16.msra.mxu0 %v2729
    %3414 = vmatpush.bf16.msra.mxu0 %v2719
    %3415 = vmatpush.bf16.msra.mxu0 %v2709
    %3416 = vmatpush.bf16.msra.mxu0 %v2699
    %3417 = vmatmul.bf16.gmra.mxu0 %v1549
    %v3418 = vpop.f32.mrf.mxu0
    %v3419 = vadd.f32 %v3406, %v3418
    %v3420 = vpop.f32.mrf.mxu0
    %3421 = vdwg.mxu0
    %3422 = vmatpush.bf16.msra.mxu0 %v2849
    %3423 = vmatpush.bf16.msra.mxu0 %v2839
    %3424 = vmatpush.bf16.msra.mxu0 %v2829
    %3425 = vmatpush.bf16.msra.mxu0 %v2819
    %3426 = vmatpush.bf16.msra.mxu0 %v2809
    %3427 = vmatpush.bf16.msra.mxu0 %v2799
    %3428 = vmatpush.bf16.msra.mxu0 %v2789
    %3429 = vmatpush.bf16.msra.mxu0 %v2779
    %3430 = vmatmul.bf16.gmra.mxu0 %v1550
    %v3431 = vpop.f32.mrf.mxu0
    %v3432 = vadd.f32 %v3419, %v3431
    %v3433 = vpop.f32.mrf.mxu0
    %3434 = vdwg.mxu0
    %3435 = vmatpush.bf16.msra.mxu0 %v2610
    %3436 = vmatpush.bf16.msra.mxu0 %v2600
    %3437 = vmatpush.bf16.msra.mxu0 %v2590
    %3438 = vmatpush.bf16.msra.mxu0 %v2580
    %3439 = vmatpush.bf16.msra.mxu0 %v2570
    %3440 = vmatpush.bf16.msra.mxu0 %v2560
    %3441 = vmatpush.bf16.msra.mxu0 %v2550
    %3442 = vmatpush.bf16.msra.mxu0 %v2540
    %3443 = vmatmul.bf16.gmra.mxu0 %v1547
    %v3444 = vpop.f32.mrf.mxu0
    %v3445 = vadd.f32 %v1560, %v3444
    %v3446 = vpop.f32.mrf.mxu0
    %3447 = vdwg.mxu0
    %3448 = vmatpush.bf16.msra.mxu0 %v2690
    %3449 = vmatpush.bf16.msra.mxu0 %v2680
    %3450 = vmatpush.bf16.msra.mxu0 %v2670
    %3451 = vmatpush.bf16.msra.mxu0 %v2660
    %3452 = vmatpush.bf16.msra.mxu0 %v2650
    %3453 = vmatpush.bf16.msra.mxu0 %v2640
    %3454 = vmatpush.bf16.msra.mxu0 %v2630
    %3455 = vmatpush.bf16.msra.mxu0 %v2620
    %3456 = vmatmul.bf16.gmra.mxu0 %v1548
    %v3457 = vpop.f32.mrf.mxu0
    %v3458 = vadd.f32 %v3445, %v3457
    %v3459 = vpop.f32.mrf.mxu0
    %3460 = vdwg.mxu0
    %3461 = vmatpush.bf16.msra.mxu0 %v2770
    %3462 = vmatpush.bf16.msra.mxu0 %v2760
    %3463 = vmatpush.bf16.msra.mxu0 %v2750
    %3464 = vmatpush.bf16.msra.mxu0 %v2740
    %3465 = vmatpush.bf16.msra.mxu0 %v2730
    %3466 = vmatpush.bf16.msra.mxu0 %v2720
    %3467 = vmatpush.bf16.msra.mxu0 %v2710
    %3468 = vmatpush.bf16.msra.mxu0 %v2700
    %3469 = vmatmul.bf16.gmra.mxu0 %v1549
    %v3470 = vpop.f32.mrf.mxu0
    %v3471 = vadd.f32 %v3458, %v3470
    %v3472 = vpop.f32.mrf.mxu0
    %3473 = vdwg.mxu0
    %3474 = vmatpush.bf16.msra.mxu0 %v2850
    %3475 = vmatpush.bf16.msra.mxu0 %v2840
    %3476 = vmatpush.bf16.msra.mxu0 %v2830
    %3477 = vmatpush.bf16.msra.mxu0 %v2820
    %3478 = vmatpush.bf16.msra.mxu0 %v2810
    %3479 = vmatpush.bf16.msra.mxu0 %v2800
    %3480 = vmatpush.bf16.msra.mxu0 %v2790
    %3481 = vmatpush.bf16.msra.mxu0 %v2780
    %3482 = vmatmul.bf16.gmra.mxu0 %v1550
    %v3483 = vpop.f32.mrf.mxu0
    %v3484 = vadd.f32 %v3471, %v3483
    %v3485 = vpop.f32.mrf.mxu0
    %3486 = vdwg.mxu0
    %3487 = vmatpush.bf16.msra.mxu0 %v2611
    %3488 = vmatpush.bf16.msra.mxu0 %v2601
    %3489 = vmatpush.bf16.msra.mxu0 %v2591
    %3490 = vmatpush.bf16.msra.mxu0 %v2581
    %3491 = vmatpush.bf16.msra.mxu0 %v2571
    %3492 = vmatpush.bf16.msra.mxu0 %v2561
    %3493 = vmatpush.bf16.msra.mxu0 %v2551
    %3494 = vmatpush.bf16.msra.mxu0 %v2541
    %3495 = vmatmul.bf16.gmra.mxu0 %v1547
    %v3496 = vpop.f32.mrf.mxu0
    %v3497 = vadd.f32 %v1561, %v3496
    %v3498 = vpop.f32.mrf.mxu0
    %3499 = vdwg.mxu0
    %3500 = vmatpush.bf16.msra.mxu0 %v2691
    %3501 = vmatpush.bf16.msra.mxu0 %v2681
    %3502 = vmatpush.bf16.msra.mxu0 %v2671
    %3503 = vmatpush.bf16.msra.mxu0 %v2661
    %3504 = vmatpush.bf16.msra.mxu0 %v2651
    %3505 = vmatpush.bf16.msra.mxu0 %v2641
    %3506 = vmatpush.bf16.msra.mxu0 %v2631
    %3507 = vmatpush.bf16.msra.mxu0 %v2621
    %3508 = vmatmul.bf16.gmra.mxu0 %v1548
    %v3509 = vpop.f32.mrf.mxu0
    %v3510 = vadd.f32 %v3497, %v3509
    %v3511 = vpop.f32.mrf.mxu0
    %3512 = vdwg.mxu0
    %3513 = vmatpush.bf16.msra.mxu0 %v2771
    %3514 = vmatpush.bf16.msra.mxu0 %v2761
    %3515 = vmatpush.bf16.msra.mxu0 %v2751
    %3516 = vmatpush.bf16.msra.mxu0 %v2741
    %3517 = vmatpush.bf16.msra.mxu0 %v2731
    %3518 = vmatpush.bf16.msra.mxu0 %v2721
    %3519 = vmatpush.bf16.msra.mxu0 %v2711
    %3520 = vmatpush.bf16.msra.mxu0 %v2701
    %3521 = vmatmul.bf16.gmra.mxu0 %v1549
    %v3522 = vpop.f32.mrf.mxu0
    %v3523 = vadd.f32 %v3510, %v3522
    %v3524 = vpop.f32.mrf.mxu0
    %3525 = vdwg.mxu0
    %3526 = vmatpush.bf16.msra.mxu0 %v2851
    %3527 = vmatpush.bf16.msra.mxu0 %v2841
    %3528 = vmatpush.bf16.msra.mxu0 %v2831
    %3529 = vmatpush.bf16.msra.mxu0 %v2821
    %3530 = vmatpush.bf16.msra.mxu0 %v2811
    %3531 = vmatpush.bf16.msra.mxu0 %v2801
    %3532 = vmatpush.bf16.msra.mxu0 %v2791
    %3533 = vmatpush.bf16.msra.mxu0 %v2781
    %3534 = vmatmul.bf16.gmra.mxu0 %v1550
    %v3535 = vpop.f32.mrf.mxu0
    %v3536 = vadd.f32 %v3523, %v3535
    %v3537 = vpop.f32.mrf.mxu0
    %3538 = vdwg.mxu0
    %3539 = vmatpush.bf16.msra.mxu0 %v2612
    %3540 = vmatpush.bf16.msra.mxu0 %v2602
    %3541 = vmatpush.bf16.msra.mxu0 %v2592
    %3542 = vmatpush.bf16.msra.mxu0 %v2582
    %3543 = vmatpush.bf16.msra.mxu0 %v2572
    %3544 = vmatpush.bf16.msra.mxu0 %v2562
    %3545 = vmatpush.bf16.msra.mxu0 %v2552
    %3546 = vmatpush.bf16.msra.mxu0 %v2542
    %3547 = vmatmul.bf16.gmra.mxu0 %v1547
    %v3548 = vpop.f32.mrf.mxu0
    %v3549 = vadd.f32 %v1562, %v3548
    %v3550 = vpop.f32.mrf.mxu0
    %3551 = vdwg.mxu0
    %3552 = vmatpush.bf16.msra.mxu0 %v2692
    %3553 = vmatpush.bf16.msra.mxu0 %v2682
    %3554 = vmatpush.bf16.msra.mxu0 %v2672
    %3555 = vmatpush.bf16.msra.mxu0 %v2662
    %3556 = vmatpush.bf16.msra.mxu0 %v2652
    %3557 = vmatpush.bf16.msra.mxu0 %v2642
    %3558 = vmatpush.bf16.msra.mxu0 %v2632
    %3559 = vmatpush.bf16.msra.mxu0 %v2622
    %3560 = vmatmul.bf16.gmra.mxu0 %v1548
    %v3561 = vpop.f32.mrf.mxu0
    %v3562 = vadd.f32 %v3549, %v3561
    %v3563 = vpop.f32.mrf.mxu0
    %3564 = vdwg.mxu0
    %3565 = vmatpush.bf16.msra.mxu0 %v2772
    %3566 = vmatpush.bf16.msra.mxu0 %v2762
    %3567 = vmatpush.bf16.msra.mxu0 %v2752
    %3568 = vmatpush.bf16.msra.mxu0 %v2742
    %3569 = vmatpush.bf16.msra.mxu0 %v2732
    %3570 = vmatpush.bf16.msra.mxu0 %v2722
    %3571 = vmatpush.bf16.msra.mxu0 %v2712
    %3572 = vmatpush.bf16.msra.mxu0 %v2702
    %3573 = vmatmul.bf16.gmra.mxu0 %v1549
    %v3574 = vpop.f32.mrf.mxu0
    %v3575 = vadd.f32 %v3562, %v3574
    %v3576 = vpop.f32.mrf.mxu0
    %3577 = vdwg.mxu0
    %3578 = vmatpush.bf16.msra.mxu0 %v2852
    %3579 = vmatpush.bf16.msra.mxu0 %v2842
    %3580 = vmatpush.bf16.msra.mxu0 %v2832
    %3581 = vmatpush.bf16.msra.mxu0 %v2822
    %3582 = vmatpush.bf16.msra.mxu0 %v2812
    %3583 = vmatpush.bf16.msra.mxu0 %v2802
    %3584 = vmatpush.bf16.msra.mxu0 %v2792
    %3585 = vmatpush.bf16.msra.mxu0 %v2782
    %3586 = vmatmul.bf16.gmra.mxu0 %v1550
    %v3587 = vpop.f32.mrf.mxu0
    %v3588 = vadd.f32 %v3575, %v3587
    %v3589 = vpop.f32.mrf.mxu0
    %3590 = vdwg.mxu0
    %3591 = vmatpush.bf16.msra.mxu0 %v2613
    %3592 = vmatpush.bf16.msra.mxu0 %v2603
    %3593 = vmatpush.bf16.msra.mxu0 %v2593
    %3594 = vmatpush.bf16.msra.mxu0 %v2583
    %3595 = vmatpush.bf16.msra.mxu0 %v2573
    %3596 = vmatpush.bf16.msra.mxu0 %v2563
    %3597 = vmatpush.bf16.msra.mxu0 %v2553
    %3598 = vmatpush.bf16.msra.mxu0 %v2543
    %3599 = vmatmul.bf16.gmra.mxu0 %v1547
    %v3600 = vpop.f32.mrf.mxu0
    %v3601 = vadd.f32 %v1563, %v3600
    %v3602 = vpop.f32.mrf.mxu0
    %3603 = vdwg.mxu0
    %3604 = vmatpush.bf16.msra.mxu0 %v2693
    %3605 = vmatpush.bf16.msra.mxu0 %v2683
    %3606 = vmatpush.bf16.msra.mxu0 %v2673
    %3607 = vmatpush.bf16.msra.mxu0 %v2663
    %3608 = vmatpush.bf16.msra.mxu0 %v2653
    %3609 = vmatpush.bf16.msra.mxu0 %v2643
    %3610 = vmatpush.bf16.msra.mxu0 %v2633
    %3611 = vmatpush.bf16.msra.mxu0 %v2623
    %3612 = vmatmul.bf16.gmra.mxu0 %v1548
    %v3613 = vpop.f32.mrf.mxu0
    %v3614 = vadd.f32 %v3601, %v3613
    %v3615 = vpop.f32.mrf.mxu0
    %3616 = vdwg.mxu0
    %3617 = vmatpush.bf16.msra.mxu0 %v2773
    %3618 = vmatpush.bf16.msra.mxu0 %v2763
    %3619 = vmatpush.bf16.msra.mxu0 %v2753
    %3620 = vmatpush.bf16.msra.mxu0 %v2743
    %3621 = vmatpush.bf16.msra.mxu0 %v2733
    %3622 = vmatpush.bf16.msra.mxu0 %v2723
    %3623 = vmatpush.bf16.msra.mxu0 %v2713
    %3624 = vmatpush.bf16.msra.mxu0 %v2703
    %3625 = vmatmul.bf16.gmra.mxu0 %v1549
    %v3626 = vpop.f32.mrf.mxu0
    %v3627 = vadd.f32 %v3614, %v3626
    %v3628 = vpop.f32.mrf.mxu0
    %3629 = vdwg.mxu0
    %3630 = vmatpush.bf16.msra.mxu0 %v2853
    %3631 = vmatpush.bf16.msra.mxu0 %v2843
    %3632 = vmatpush.bf16.msra.mxu0 %v2833
    %3633 = vmatpush.bf16.msra.mxu0 %v2823
    %3634 = vmatpush.bf16.msra.mxu0 %v2813
    %3635 = vmatpush.bf16.msra.mxu0 %v2803
    %3636 = vmatpush.bf16.msra.mxu0 %v2793
    %3637 = vmatpush.bf16.msra.mxu0 %v2783
    %3638 = vmatmul.bf16.gmra.mxu0 %v1550
    %v3639 = vpop.f32.mrf.mxu0
    %v3640 = vadd.f32 %v3627, %v3639
    %v3641 = vpop.f32.mrf.mxu0
    %3642 = vdwg.mxu0
    %3643 = vmatpush.bf16.msra.mxu0 %v2614
    %3644 = vmatpush.bf16.msra.mxu0 %v2604
    %3645 = vmatpush.bf16.msra.mxu0 %v2594
    %3646 = vmatpush.bf16.msra.mxu0 %v2584
    %3647 = vmatpush.bf16.msra.mxu0 %v2574
    %3648 = vmatpush.bf16.msra.mxu0 %v2564
    %3649 = vmatpush.bf16.msra.mxu0 %v2554
    %3650 = vmatpush.bf16.msra.mxu0 %v2544
    %3651 = vmatmul.bf16.gmra.mxu0 %v1547
    %v3652 = vpop.f32.mrf.mxu0
    %v3653 = vadd.f32 %v1564, %v3652
    %v3654 = vpop.f32.mrf.mxu0
    %3655 = vdwg.mxu0
    %3656 = vmatpush.bf16.msra.mxu0 %v2694
    %3657 = vmatpush.bf16.msra.mxu0 %v2684
    %3658 = vmatpush.bf16.msra.mxu0 %v2674
    %3659 = vmatpush.bf16.msra.mxu0 %v2664
    %3660 = vmatpush.bf16.msra.mxu0 %v2654
    %3661 = vmatpush.bf16.msra.mxu0 %v2644
    %3662 = vmatpush.bf16.msra.mxu0 %v2634
    %3663 = vmatpush.bf16.msra.mxu0 %v2624
    %3664 = vmatmul.bf16.gmra.mxu0 %v1548
    %v3665 = vpop.f32.mrf.mxu0
    %v3666 = vadd.f32 %v3653, %v3665
    %v3667 = vpop.f32.mrf.mxu0
    %3668 = vdwg.mxu0
    %3669 = vmatpush.bf16.msra.mxu0 %v2774
    %3670 = vmatpush.bf16.msra.mxu0 %v2764
    %3671 = vmatpush.bf16.msra.mxu0 %v2754
    %3672 = vmatpush.bf16.msra.mxu0 %v2744
    %3673 = vmatpush.bf16.msra.mxu0 %v2734
    %3674 = vmatpush.bf16.msra.mxu0 %v2724
    %3675 = vmatpush.bf16.msra.mxu0 %v2714
    %3676 = vmatpush.bf16.msra.mxu0 %v2704
    %3677 = vmatmul.bf16.gmra.mxu0 %v1549
    %v3678 = vpop.f32.mrf.mxu0
    %v3679 = vadd.f32 %v3666, %v3678
    %v3680 = vpop.f32.mrf.mxu0
    %3681 = vdwg.mxu0
    %3682 = vmatpush.bf16.msra.mxu0 %v2854
    %3683 = vmatpush.bf16.msra.mxu0 %v2844
    %3684 = vmatpush.bf16.msra.mxu0 %v2834
    %3685 = vmatpush.bf16.msra.mxu0 %v2824
    %3686 = vmatpush.bf16.msra.mxu0 %v2814
    %3687 = vmatpush.bf16.msra.mxu0 %v2804
    %3688 = vmatpush.bf16.msra.mxu0 %v2794
    %3689 = vmatpush.bf16.msra.mxu0 %v2784
    %3690 = vmatmul.bf16.gmra.mxu0 %v1550
    %v3691 = vpop.f32.mrf.mxu0
    %v3692 = vadd.f32 %v3679, %v3691
    %v3693 = vpop.f32.mrf.mxu0
    %3694 = vdwg.mxu0
    %vm3695 = vcmp.ge.f32.partialorder %v3224, 0.0
    %vm3696 = vcmp.ge.f32.partialorder %v3276, 0.0
    %vm3697 = vcmp.ge.f32.partialorder %v3328, 0.0
    %vm3698 = vcmp.ge.f32.partialorder %v3380, 0.0
    %vm3699 = vcmp.ge.f32.partialorder %v3432, 0.0
    %vm3700 = vcmp.ge.f32.partialorder %v3484, 0.0
    %vm3701 = vcmp.ge.f32.partialorder %v3536, 0.0
    %vm3702 = vcmp.ge.f32.partialorder %v3588, 0.0
    %vm3703 = vcmp.ge.f32.partialorder %v3640, 0.0
    %vm3704 = vcmp.ge.f32.partialorder %v3692, 0.0
    %v3705 = vmul.f32 %v3224, 0.01
    %v3706 = vmul.f32 %v3276, 0.01
    %v3707 = vmul.f32 %v3328, 0.01
    %v3708 = vmul.f32 %v3380, 0.01
    %v3709 = vmul.f32 %v3432, 0.01
    %v3710 = vmul.f32 %v3484, 0.01
    %v3711 = vmul.f32 %v3536, 0.01
    %v3712 = vmul.f32 %v3588, 0.01
    %v3713 = vmul.f32 %v3640, 0.01
    %v3714 = vmul.f32 %v3692, 0.01
    %v3715 = vsel %vm3695, %v3224, %v3705
    %v3716 = vsel %vm3696, %v3276, %v3706
    %v3717 = vsel %vm3697, %v3328, %v3707
    %v3718 = vsel %vm3698, %v3380, %v3708
    %v3719 = vsel %vm3699, %v3432, %v3709
    %v3720 = vsel %vm3700, %v3484, %v3710
    %v3721 = vsel %vm3701, %v3536, %v3711
    %v3722 = vsel %vm3702, %v3588, %v3712
    %v3723 = vsel %vm3703, %v3640, %v3713
    %v3724 = vsel %vm3704, %v3692, %v3714
    %s3725 = smul.u32 4, 240
    %s3726 = smul.u32 %s3725, 2
    %s3727 = sshll.u32 %s3726, 4
    %3728 = dma.done %s98, %s3727
    %v3729 = vld [vmem:[#allocation3] sm:$0xff]
    %v3730 = vld [vmem:[#allocation3 + $0x8] sm:$0xff]
    %v3731 = vld [vmem:[#allocation3 + $0x10] sm:$0xff]
    %v3732 = vld [vmem:[#allocation3 + $0x18] sm:$0xff]
    %v3733 = vld [vmem:[#allocation3 + $0x20] sm:$0xff]
    %v3734 = vld [vmem:[#allocation3 + $0x28] sm:$0xff]
    %v3735 = vld [vmem:[#allocation3 + $0x30] sm:$0xff]
    %v3736 = vld [vmem:[#allocation3 + $0x38] sm:$0xff]
    %v3737 = vld [vmem:[#allocation3 + $0x40] sm:$0xff]
    %v3738 = vld [vmem:[#allocation3 + $0x48] sm:$0xff]
    %v3739 = vld [vmem:[#allocation3 + $0x50] sm:$0xff]
    %v3740 = vld [vmem:[#allocation3 + $0x58] sm:$0xff]
    %v3741 = vld [vmem:[#allocation3 + $0x60] sm:$0xff]
    %v3742 = vld [vmem:[#allocation3 + $0x68] sm:$0xff]
    %v3743 = vld [vmem:[#allocation3 + $0x70] sm:$0xff]
    %v3744 = vld [vmem:[#allocation3 + $0x78] sm:$0xff]
    %v3745 = vld [vmem:[#allocation3 + $0x80] sm:$0xff]
    %v3746 = vld [vmem:[#allocation3 + $0x88] sm:$0xff]
    %v3747 = vld [vmem:[#allocation3 + $0x90] sm:$0xff]
    %v3748 = vld [vmem:[#allocation3 + $0x98] sm:$0xff]
    %v3749 = vld [vmem:[#allocation3 + $0xa0] sm:$0xff]
    %v3750 = vld [vmem:[#allocation3 + $0xa8] sm:$0xff]
    %v3751 = vld [vmem:[#allocation3 + $0xb0] sm:$0xff]
    %v3752 = vld [vmem:[#allocation3 + $0xb8] sm:$0xff]
    %v3753 = vld [vmem:[#allocation3 + $0xc0] sm:$0xff]
    %v3754 = vld [vmem:[#allocation3 + $0xc8] sm:$0xff]
    %v3755 = vld [vmem:[#allocation3 + $0xd0] sm:$0xff]
    %v3756 = vld [vmem:[#allocation3 + $0xd8] sm:$0xff]
    %v3757 = vld [vmem:[#allocation3 + $0xe0] sm:$0xff]
    %v3758 = vld [vmem:[#allocation3 + $0xe8] sm:$0xff]
    %v3759 = vld [vmem:[#allocation3 + $0xf0] sm:$0xff]
    %v3760 = vld [vmem:[#allocation3 + $0xf8] sm:$0xff]
    %v3761 = vld [vmem:[#allocation3 + $0x100] sm:$0xff]
    %v3762 = vld [vmem:[#allocation3 + $0x108] sm:$0xff]
    %v3763 = vld [vmem:[#allocation3 + $0x110] sm:$0xff]
    %v3764 = vld [vmem:[#allocation3 + $0x118] sm:$0xff]
    %v3765 = vld [vmem:[#allocation3 + $0x120] sm:$0xff]
    %v3766 = vld [vmem:[#allocation3 + $0x128] sm:$0xff]
    %v3767 = vld [vmem:[#allocation3 + $0x130] sm:$0xff]
    %v3768 = vld [vmem:[#allocation3 + $0x138] sm:$0xff]
    %v3769 = vld [vmem:[#allocation3 + $0x140] sm:$0xff]
    %v3770 = vld [vmem:[#allocation3 + $0x148] sm:$0xff]
    %v3771 = vld [vmem:[#allocation3 + $0x150] sm:$0xff]
    %v3772 = vld [vmem:[#allocation3 + $0x158] sm:$0xff]
    %v3773 = vld [vmem:[#allocation3 + $0x160] sm:$0xff]
    %v3774 = vld [vmem:[#allocation3 + $0x168] sm:$0xff]
    %v3775 = vld [vmem:[#allocation3 + $0x170] sm:$0xff]
    %v3776 = vld [vmem:[#allocation3 + $0x178] sm:$0xff]
    %v3777 = vld [vmem:[#allocation3 + $0x180] sm:$0xff]
    %v3778 = vld [vmem:[#allocation3 + $0x188] sm:$0xff]
    %v3779 = vld [vmem:[#allocation3 + $0x190] sm:$0xff]
    %v3780 = vld [vmem:[#allocation3 + $0x198] sm:$0xff]
    %v3781 = vld [vmem:[#allocation3 + $0x1a0] sm:$0xff]
    %v3782 = vld [vmem:[#allocation3 + $0x1a8] sm:$0xff]
    %v3783 = vld [vmem:[#allocation3 + $0x1b0] sm:$0xff]
    %v3784 = vld [vmem:[#allocation3 + $0x1b8] sm:$0xff]
    %v3785 = vld [vmem:[#allocation3 + $0x1c0] sm:$0xff]
    %v3786 = vld [vmem:[#allocation3 + $0x1c8] sm:$0xff]
    %v3787 = vld [vmem:[#allocation3 + $0x1d0] sm:$0xff]
    %v3788 = vld [vmem:[#allocation3 + $0x1d8] sm:$0xff]
    %v3789 = vld [vmem:[#allocation3 + $0x1e0] sm:$0xff]
    %v3790 = vld [vmem:[#allocation3 + $0x1e8] sm:$0xff]
    %v3791 = vld [vmem:[#allocation3 + $0x1f0] sm:$0xff]
    %v3792 = vld [vmem:[#allocation3 + $0x1f8] sm:$0xff]
    %v3793 = vld [vmem:[#allocation3 + $0x200] sm:$0xff]
    %v3794 = vld [vmem:[#allocation3 + $0x208] sm:$0xff]
    %v3795 = vld [vmem:[#allocation3 + $0x210] sm:$0xff]
    %v3796 = vld [vmem:[#allocation3 + $0x218] sm:$0xff]
    %v3797 = vld [vmem:[#allocation3 + $0x220] sm:$0xff]
    %v3798 = vld [vmem:[#allocation3 + $0x228] sm:$0xff]
    %v3799 = vld [vmem:[#allocation3 + $0x230] sm:$0xff]
    %v3800 = vld [vmem:[#allocation3 + $0x238] sm:$0xff]
    %v3801 = vld [vmem:[#allocation3 + $0x240] sm:$0xff]
    %v3802 = vld [vmem:[#allocation3 + $0x248] sm:$0xff]
    %v3803 = vld [vmem:[#allocation3 + $0x250] sm:$0xff]
    %v3804 = vld [vmem:[#allocation3 + $0x258] sm:$0xff]
    %v3805 = vld [vmem:[#allocation3 + $0x260] sm:$0xff]
    %v3806 = vld [vmem:[#allocation3 + $0x268] sm:$0xff]
    %v3807 = vld [vmem:[#allocation3 + $0x270] sm:$0xff]
    %v3808 = vld [vmem:[#allocation3 + $0x278] sm:$0xff]
    %v3809 = vld [vmem:[#allocation3 + $0x280] sm:$0xff]
    %v3810 = vld [vmem:[#allocation3 + $0x288] sm:$0xff]
    %v3811 = vld [vmem:[#allocation3 + $0x290] sm:$0xff]
    %v3812 = vld [vmem:[#allocation3 + $0x298] sm:$0xff]
    %v3813 = vld [vmem:[#allocation3 + $0x2a0] sm:$0xff]
    %v3814 = vld [vmem:[#allocation3 + $0x2a8] sm:$0xff]
    %v3815 = vld [vmem:[#allocation3 + $0x2b0] sm:$0xff]
    %v3816 = vld [vmem:[#allocation3 + $0x2b8] sm:$0xff]
    %v3817 = vld [vmem:[#allocation3 + $0x2c0] sm:$0xff]
    %v3818 = vld [vmem:[#allocation3 + $0x2c8] sm:$0xff]
    %v3819 = vld [vmem:[#allocation3 + $0x2d0] sm:$0xff]
    %v3820 = vld [vmem:[#allocation3 + $0x2d8] sm:$0xff]
    %v3821 = vld [vmem:[#allocation3 + $0x2e0] sm:$0xff]
    %v3822 = vld [vmem:[#allocation3 + $0x2e8] sm:$0xff]
    %v3823 = vld [vmem:[#allocation3 + $0x2f0] sm:$0xff]
    %v3824 = vld [vmem:[#allocation3 + $0x2f8] sm:$0xff]
    %v3825 = vld [vmem:[#allocation3 + $0x300] sm:$0xff]
    %v3826 = vld [vmem:[#allocation3 + $0x308] sm:$0xff]
    %v3827 = vld [vmem:[#allocation3 + $0x310] sm:$0xff]
    %v3828 = vld [vmem:[#allocation3 + $0x318] sm:$0xff]
    %v3829 = vld [vmem:[#allocation3 + $0x320] sm:$0xff]
    %v3830 = vld [vmem:[#allocation3 + $0x328] sm:$0xff]
    %v3831 = vld [vmem:[#allocation3 + $0x330] sm:$0xff]
    %v3832 = vld [vmem:[#allocation3 + $0x338] sm:$0xff]
    %v3833 = vld [vmem:[#allocation3 + $0x340] sm:$0xff]
    %v3834 = vld [vmem:[#allocation3 + $0x348] sm:$0xff]
    %v3835 = vld [vmem:[#allocation3 + $0x350] sm:$0xff]
    %v3836 = vld [vmem:[#allocation3 + $0x358] sm:$0xff]
    %v3837 = vld [vmem:[#allocation3 + $0x360] sm:$0xff]
    %v3838 = vld [vmem:[#allocation3 + $0x368] sm:$0xff]
    %v3839 = vld [vmem:[#allocation3 + $0x370] sm:$0xff]
    %v3840 = vld [vmem:[#allocation3 + $0x378] sm:$0xff]
    %v3841 = vld [vmem:[#allocation3 + $0x380] sm:$0xff]
    %v3842 = vld [vmem:[#allocation3 + $0x388] sm:$0xff]
    %v3843 = vld [vmem:[#allocation3 + $0x390] sm:$0xff]
    %v3844 = vld [vmem:[#allocation3 + $0x398] sm:$0xff]
    %v3845 = vld [vmem:[#allocation3 + $0x3a0] sm:$0xff]
    %v3846 = vld [vmem:[#allocation3 + $0x3a8] sm:$0xff]
    %v3847 = vld [vmem:[#allocation3 + $0x3b0] sm:$0xff]
    %v3848 = vld [vmem:[#allocation3 + $0x3b8] sm:$0xff]
    %v3849 = vld [vmem:[#allocation3 + $0x3c0] sm:$0xff]
    %v3850 = vld [vmem:[#allocation3 + $0x3c8] sm:$0xff]
    %v3851 = vld [vmem:[#allocation3 + $0x3d0] sm:$0xff]
    %v3852 = vld [vmem:[#allocation3 + $0x3d8] sm:$0xff]
    %v3853 = vld [vmem:[#allocation3 + $0x3e0] sm:$0xff]
    %v3854 = vld [vmem:[#allocation3 + $0x3e8] sm:$0xff]
    %v3855 = vld [vmem:[#allocation3 + $0x3f0] sm:$0xff]
    %v3856 = vld [vmem:[#allocation3 + $0x3f8] sm:$0xff]
    %v3857 = vpack.c.bf16 %v3717, %v3717
    %v3858 = vpack.c.bf16 %v3718, %v3718
    %v3859 = vpack.c.bf16 %v3719, %v3719
    %v3860 = vpack.c.bf16 %v3720, %v3720
    %v3861 = vpack.c.bf16 %v3721, %v3721
    %v3862 = vpack.c.bf16 %v3722, %v3722
    %v3863 = vpack.c.bf16 %v3723, %v3723
    %v3864 = vpack.c.bf16 %v3724, %v3724
    %v3865 = vld [vmem:[#allocation7 + $0x4] sm:$0x3]
    %v3867 = vperm.slane %v3865, 0
    %v3868 = vperm.slane %v3865, 1
    %v3999 = vunpack.c.l.b16 %v3729
    %v4000 = vunpack.c.h.b16 %v3729
    %v4001 = vunpack.c.l.b16 %v3730
    %v4002 = vunpack.c.h.b16 %v3730
    %v4003 = vunpack.c.l.b16 %v3731
    %v4004 = vunpack.c.h.b16 %v3731
    %v4005 = vunpack.c.l.b16 %v3732
    %v4006 = vunpack.c.h.b16 %v3732
    %v4007 = vunpack.c.l.b16 %v3733
    %v4008 = vunpack.c.h.b16 %v3733
    %v4009 = vunpack.c.l.b16 %v3734
    %v4010 = vunpack.c.h.b16 %v3734
    %v4011 = vunpack.c.l.b16 %v3735
    %v4012 = vunpack.c.h.b16 %v3735
    %v4013 = vunpack.c.l.b16 %v3736
    %v4014 = vunpack.c.h.b16 %v3736
    %v4015 = vunpack.c.l.b16 %v3737
    %v4016 = vunpack.c.h.b16 %v3737
    %v4017 = vunpack.c.l.b16 %v3738
    %v4018 = vunpack.c.h.b16 %v3738
    %v4019 = vunpack.c.l.b16 %v3739
    %v4020 = vunpack.c.h.b16 %v3739
    %v4021 = vunpack.c.l.b16 %v3740
    %v4022 = vunpack.c.h.b16 %v3740
    %v4023 = vunpack.c.l.b16 %v3741
    %v4024 = vunpack.c.h.b16 %v3741
    %v4025 = vunpack.c.l.b16 %v3742
    %v4026 = vunpack.c.h.b16 %v3742
    %v4027 = vunpack.c.l.b16 %v3743
    %v4028 = vunpack.c.h.b16 %v3743
    %v4029 = vunpack.c.l.b16 %v3744
    %v4030 = vunpack.c.h.b16 %v3744
    %v4031 = vunpack.c.l.b16 %v3745
    %v4032 = vunpack.c.h.b16 %v3745
    %v4033 = vunpack.c.l.b16 %v3746
    %v4034 = vunpack.c.h.b16 %v3746
    %v4035 = vunpack.c.l.b16 %v3747
    %v4036 = vunpack.c.h.b16 %v3747
    %v4037 = vunpack.c.l.b16 %v3748
    %v4038 = vunpack.c.h.b16 %v3748
    %v4039 = vunpack.c.l.b16 %v3749
    %v4040 = vunpack.c.h.b16 %v3749
    %v4041 = vunpack.c.l.b16 %v3750
    %v4042 = vunpack.c.h.b16 %v3750
    %v4043 = vunpack.c.l.b16 %v3751
    %v4044 = vunpack.c.h.b16 %v3751
    %v4045 = vunpack.c.l.b16 %v3752
    %v4046 = vunpack.c.h.b16 %v3752
    %v4047 = vunpack.c.l.b16 %v3753
    %v4048 = vunpack.c.h.b16 %v3753
    %v4049 = vunpack.c.l.b16 %v3754
    %v4050 = vunpack.c.h.b16 %v3754
    %v4051 = vunpack.c.l.b16 %v3755
    %v4052 = vunpack.c.h.b16 %v3755
    %v4053 = vunpack.c.l.b16 %v3756
    %v4054 = vunpack.c.h.b16 %v3756
    %v4055 = vunpack.c.l.b16 %v3757
    %v4056 = vunpack.c.h.b16 %v3757
    %v4057 = vunpack.c.l.b16 %v3758
    %v4058 = vunpack.c.h.b16 %v3758
    %v4059 = vunpack.c.l.b16 %v3759
    %v4060 = vunpack.c.h.b16 %v3759
    %v4061 = vunpack.c.l.b16 %v3760
    %v4062 = vunpack.c.h.b16 %v3760
    %v4063 = vunpack.c.l.b16 %v3761
    %v4064 = vunpack.c.h.b16 %v3761
    %v4065 = vunpack.c.l.b16 %v3762
    %v4066 = vunpack.c.h.b16 %v3762
    %v4067 = vunpack.c.l.b16 %v3763
    %v4068 = vunpack.c.h.b16 %v3763
    %v4069 = vunpack.c.l.b16 %v3764
    %v4070 = vunpack.c.h.b16 %v3764
    %v4071 = vunpack.c.l.b16 %v3765
    %v4072 = vunpack.c.h.b16 %v3765
    %v4073 = vunpack.c.l.b16 %v3766
    %v4074 = vunpack.c.h.b16 %v3766
    %v4075 = vunpack.c.l.b16 %v3767
    %v4076 = vunpack.c.h.b16 %v3767
    %v4077 = vunpack.c.l.b16 %v3768
    %v4078 = vunpack.c.h.b16 %v3768
    %v4079 = vunpack.c.l.b16 %v3769
    %v4080 = vunpack.c.h.b16 %v3769
    %v4081 = vunpack.c.l.b16 %v3770
    %v4082 = vunpack.c.h.b16 %v3770
    %v4083 = vunpack.c.l.b16 %v3771
    %v4084 = vunpack.c.h.b16 %v3771
    %v4085 = vunpack.c.l.b16 %v3772
    %v4086 = vunpack.c.h.b16 %v3772
    %v4087 = vunpack.c.l.b16 %v3773
    %v4088 = vunpack.c.h.b16 %v3773
    %v4089 = vunpack.c.l.b16 %v3774
    %v4090 = vunpack.c.h.b16 %v3774
    %v4091 = vunpack.c.l.b16 %v3775
    %v4092 = vunpack.c.h.b16 %v3775
    %v4093 = vunpack.c.l.b16 %v3776
    %v4094 = vunpack.c.h.b16 %v3776
    %v4095 = vunpack.c.l.b16 %v3777
    %v4096 = vunpack.c.h.b16 %v3777
    %v4097 = vunpack.c.l.b16 %v3778
    %v4098 = vunpack.c.h.b16 %v3778
    %v4099 = vunpack.c.l.b16 %v3779
    %v4100 = vunpack.c.h.b16 %v3779
    %v4101 = vunpack.c.l.b16 %v3780
    %v4102 = vunpack.c.h.b16 %v3780
    %v4103 = vunpack.c.l.b16 %v3781
    %v4104 = vunpack.c.h.b16 %v3781
    %v4105 = vunpack.c.l.b16 %v3782
    %v4106 = vunpack.c.h.b16 %v3782
    %v4107 = vunpack.c.l.b16 %v3783
    %v4108 = vunpack.c.h.b16 %v3783
    %v4109 = vunpack.c.l.b16 %v3784
    %v4110 = vunpack.c.h.b16 %v3784
    %v4111 = vunpack.c.l.b16 %v3785
    %v4112 = vunpack.c.h.b16 %v3785
    %v4113 = vunpack.c.l.b16 %v3786
    %v4114 = vunpack.c.h.b16 %v3786
    %v4115 = vunpack.c.l.b16 %v3787
    %v4116 = vunpack.c.h.b16 %v3787
    %v4117 = vunpack.c.l.b16 %v3788
    %v4118 = vunpack.c.h.b16 %v3788
    %v4119 = vunpack.c.l.b16 %v3789
    %v4120 = vunpack.c.h.b16 %v3789
    %v4121 = vunpack.c.l.b16 %v3790
    %v4122 = vunpack.c.h.b16 %v3790
    %v4123 = vunpack.c.l.b16 %v3791
    %v4124 = vunpack.c.h.b16 %v3791
    %v4125 = vunpack.c.l.b16 %v3792
    %v4126 = vunpack.c.h.b16 %v3792
    %v4127 = vunpack.c.l.b16 %v3793
    %v4128 = vunpack.c.h.b16 %v3793
    %v4129 = vunpack.c.l.b16 %v3794
    %v4130 = vunpack.c.h.b16 %v3794
    %v4131 = vunpack.c.l.b16 %v3795
    %v4132 = vunpack.c.h.b16 %v3795
    %v4133 = vunpack.c.l.b16 %v3796
    %v4134 = vunpack.c.h.b16 %v3796
    %v4135 = vunpack.c.l.b16 %v3797
    %v4136 = vunpack.c.h.b16 %v3797
    %v4137 = vunpack.c.l.b16 %v3798
    %v4138 = vunpack.c.h.b16 %v3798
    %v4139 = vunpack.c.l.b16 %v3799
    %v4140 = vunpack.c.h.b16 %v3799
    %v4141 = vunpack.c.l.b16 %v3800
    %v4142 = vunpack.c.h.b16 %v3800
    %v4143 = vunpack.c.l.b16 %v3801
    %v4144 = vunpack.c.h.b16 %v3801
    %v4145 = vunpack.c.l.b16 %v3802
    %v4146 = vunpack.c.h.b16 %v3802
    %v4147 = vunpack.c.l.b16 %v3803
    %v4148 = vunpack.c.h.b16 %v3803
    %v4149 = vunpack.c.l.b16 %v3804
    %v4150 = vunpack.c.h.b16 %v3804
    %v4151 = vunpack.c.l.b16 %v3805
    %v4152 = vunpack.c.h.b16 %v3805
    %v4153 = vunpack.c.l.b16 %v3806
    %v4154 = vunpack.c.h.b16 %v3806
    %v4155 = vunpack.c.l.b16 %v3807
    %v4156 = vunpack.c.h.b16 %v3807
    %v4157 = vunpack.c.l.b16 %v3808
    %v4158 = vunpack.c.h.b16 %v3808
    %v4159 = vunpack.c.l.b16 %v3809
    %v4160 = vunpack.c.h.b16 %v3809
    %v4161 = vunpack.c.l.b16 %v3810
    %v4162 = vunpack.c.h.b16 %v3810
    %v4163 = vunpack.c.l.b16 %v3811
    %v4164 = vunpack.c.h.b16 %v3811
    %v4165 = vunpack.c.l.b16 %v3812
    %v4166 = vunpack.c.h.b16 %v3812
    %v4167 = vunpack.c.l.b16 %v3813
    %v4168 = vunpack.c.h.b16 %v3813
    %v4169 = vunpack.c.l.b16 %v3814
    %v4170 = vunpack.c.h.b16 %v3814
    %v4171 = vunpack.c.l.b16 %v3815
    %v4172 = vunpack.c.h.b16 %v3815
    %v4173 = vunpack.c.l.b16 %v3816
    %v4174 = vunpack.c.h.b16 %v3816
    %v4175 = vunpack.c.l.b16 %v3817
    %v4176 = vunpack.c.h.b16 %v3817
    %v4177 = vunpack.c.l.b16 %v3818
    %v4178 = vunpack.c.h.b16 %v3818
    %v4179 = vunpack.c.l.b16 %v3819
    %v4180 = vunpack.c.h.b16 %v3819
    %v4181 = vunpack.c.l.b16 %v3820
    %v4182 = vunpack.c.h.b16 %v3820
    %v4183 = vunpack.c.l.b16 %v3821
    %v4184 = vunpack.c.h.b16 %v3821
    %v4185 = vunpack.c.l.b16 %v3822
    %v4186 = vunpack.c.h.b16 %v3822
    %v4187 = vunpack.c.l.b16 %v3823
    %v4188 = vunpack.c.h.b16 %v3823
    %v4189 = vunpack.c.l.b16 %v3824
    %v4190 = vunpack.c.h.b16 %v3824
    %v4191 = vunpack.c.l.b16 %v3825
    %v4192 = vunpack.c.h.b16 %v3825
    %v4193 = vunpack.c.l.b16 %v3826
    %v4194 = vunpack.c.h.b16 %v3826
    %v4195 = vunpack.c.l.b16 %v3827
    %v4196 = vunpack.c.h.b16 %v3827
    %v4197 = vunpack.c.l.b16 %v3828
    %v4198 = vunpack.c.h.b16 %v3828
    %v4199 = vunpack.c.l.b16 %v3829
    %v4200 = vunpack.c.h.b16 %v3829
    %v4201 = vunpack.c.l.b16 %v3830
    %v4202 = vunpack.c.h.b16 %v3830
    %v4203 = vunpack.c.l.b16 %v3831
    %v4204 = vunpack.c.h.b16 %v3831
    %v4205 = vunpack.c.l.b16 %v3832
    %v4206 = vunpack.c.h.b16 %v3832
    %v4207 = vunpack.c.l.b16 %v3833
    %v4208 = vunpack.c.h.b16 %v3833
    %v4209 = vunpack.c.l.b16 %v3834
    %v4210 = vunpack.c.h.b16 %v3834
    %v4211 = vunpack.c.l.b16 %v3835
    %v4212 = vunpack.c.h.b16 %v3835
    %v4213 = vunpack.c.l.b16 %v3836
    %v4214 = vunpack.c.h.b16 %v3836
    %v4215 = vunpack.c.l.b16 %v3837
    %v4216 = vunpack.c.h.b16 %v3837
    %v4217 = vunpack.c.l.b16 %v3838
    %v4218 = vunpack.c.h.b16 %v3838
    %v4219 = vunpack.c.l.b16 %v3839
    %v4220 = vunpack.c.h.b16 %v3839
    %v4221 = vunpack.c.l.b16 %v3840
    %v4222 = vunpack.c.h.b16 %v3840
    %v4223 = vunpack.c.l.b16 %v3841
    %v4224 = vunpack.c.h.b16 %v3841
    %v4225 = vunpack.c.l.b16 %v3842
    %v4226 = vunpack.c.h.b16 %v3842
    %v4227 = vunpack.c.l.b16 %v3843
    %v4228 = vunpack.c.h.b16 %v3843
    %v4229 = vunpack.c.l.b16 %v3844
    %v4230 = vunpack.c.h.b16 %v3844
    %v4231 = vunpack.c.l.b16 %v3845
    %v4232 = vunpack.c.h.b16 %v3845
    %v4233 = vunpack.c.l.b16 %v3846
    %v4234 = vunpack.c.h.b16 %v3846
    %v4235 = vunpack.c.l.b16 %v3847
    %v4236 = vunpack.c.h.b16 %v3847
    %v4237 = vunpack.c.l.b16 %v3848
    %v4238 = vunpack.c.h.b16 %v3848
    %v4239 = vunpack.c.l.b16 %v3849
    %v4240 = vunpack.c.h.b16 %v3849
    %v4241 = vunpack.c.l.b16 %v3850
    %v4242 = vunpack.c.h.b16 %v3850
    %v4243 = vunpack.c.l.b16 %v3851
    %v4244 = vunpack.c.h.b16 %v3851
    %v4245 = vunpack.c.l.b16 %v3852
    %v4246 = vunpack.c.h.b16 %v3852
    %v4247 = vunpack.c.l.b16 %v3853
    %v4248 = vunpack.c.h.b16 %v3853
    %v4249 = vunpack.c.l.b16 %v3854
    %v4250 = vunpack.c.h.b16 %v3854
    %v4251 = vunpack.c.l.b16 %v3855
    %v4252 = vunpack.c.h.b16 %v3855
    %v4253 = vunpack.c.l.b16 %v3856
    %v4254 = vunpack.c.h.b16 %v3856
    %v4255 = vpack.c.b16 %v4001, %v3999
    %v4256 = vpack.c.b16 %v4002, %v4000
    %v4257 = vpack.c.b16 %v4005, %v4003
    %v4258 = vpack.c.b16 %v4006, %v4004
    %v4259 = vpack.c.b16 %v4009, %v4007
    %v4260 = vpack.c.b16 %v4010, %v4008
    %v4261 = vpack.c.b16 %v4013, %v4011
    %v4262 = vpack.c.b16 %v4014, %v4012
    %v4263 = vpack.c.b16 %v4017, %v4015
    %v4264 = vpack.c.b16 %v4018, %v4016
    %v4265 = vpack.c.b16 %v4021, %v4019
    %v4266 = vpack.c.b16 %v4022, %v4020
    %v4267 = vpack.c.b16 %v4025, %v4023
    %v4268 = vpack.c.b16 %v4026, %v4024
    %v4269 = vpack.c.b16 %v4029, %v4027
    %v4270 = vpack.c.b16 %v4030, %v4028
    %v4271 = vpack.c.b16 %v4033, %v4031
    %v4272 = vpack.c.b16 %v4034, %v4032
    %v4273 = vpack.c.b16 %v4037, %v4035
    %v4274 = vpack.c.b16 %v4038, %v4036
    %v4275 = vpack.c.b16 %v4041, %v4039
    %v4276 = vpack.c.b16 %v4042, %v4040
    %v4277 = vpack.c.b16 %v4045, %v4043
    %v4278 = vpack.c.b16 %v4046, %v4044
    %v4279 = vpack.c.b16 %v4049, %v4047
    %v4280 = vpack.c.b16 %v4050, %v4048
    %v4281 = vpack.c.b16 %v4053, %v4051
    %v4282 = vpack.c.b16 %v4054, %v4052
    %v4283 = vpack.c.b16 %v4057, %v4055
    %v4284 = vpack.c.b16 %v4058, %v4056
    %v4285 = vpack.c.b16 %v4061, %v4059
    %v4286 = vpack.c.b16 %v4062, %v4060
    %v4287 = vpack.c.b16 %v4065, %v4063
    %v4288 = vpack.c.b16 %v4066, %v4064
    %v4289 = vpack.c.b16 %v4069, %v4067
    %v4290 = vpack.c.b16 %v4070, %v4068
    %v4291 = vpack.c.b16 %v4073, %v4071
    %v4292 = vpack.c.b16 %v4074, %v4072
    %v4293 = vpack.c.b16 %v4077, %v4075
    %v4294 = vpack.c.b16 %v4078, %v4076
    %v4295 = vpack.c.b16 %v4081, %v4079
    %v4296 = vpack.c.b16 %v4082, %v4080
    %v4297 = vpack.c.b16 %v4085, %v4083
    %v4298 = vpack.c.b16 %v4086, %v4084
    %v4299 = vpack.c.b16 %v4089, %v4087
    %v4300 = vpack.c.b16 %v4090, %v4088
    %v4301 = vpack.c.b16 %v4093, %v4091
    %v4302 = vpack.c.b16 %v4094, %v4092
    %v4303 = vpack.c.b16 %v4097, %v4095
    %v4304 = vpack.c.b16 %v4098, %v4096
    %v4305 = vpack.c.b16 %v4101, %v4099
    %v4306 = vpack.c.b16 %v4102, %v4100
    %v4307 = vpack.c.b16 %v4105, %v4103
    %v4308 = vpack.c.b16 %v4106, %v4104
    %v4309 = vpack.c.b16 %v4109, %v4107
    %v4310 = vpack.c.b16 %v4110, %v4108
    %v4311 = vpack.c.b16 %v4113, %v4111
    %v4312 = vpack.c.b16 %v4114, %v4112
    %v4313 = vpack.c.b16 %v4117, %v4115
    %v4314 = vpack.c.b16 %v4118, %v4116
    %v4315 = vpack.c.b16 %v4121, %v4119
    %v4316 = vpack.c.b16 %v4122, %v4120
    %v4317 = vpack.c.b16 %v4125, %v4123
    %v4318 = vpack.c.b16 %v4126, %v4124
    %v4319 = vpack.c.b16 %v4129, %v4127
    %v4320 = vpack.c.b16 %v4130, %v4128
    %v4321 = vpack.c.b16 %v4133, %v4131
    %v4322 = vpack.c.b16 %v4134, %v4132
    %v4323 = vpack.c.b16 %v4137, %v4135
    %v4324 = vpack.c.b16 %v4138, %v4136
    %v4325 = vpack.c.b16 %v4141, %v4139
    %v4326 = vpack.c.b16 %v4142, %v4140
    %v4327 = vpack.c.b16 %v4145, %v4143
    %v4328 = vpack.c.b16 %v4146, %v4144
    %v4329 = vpack.c.b16 %v4149, %v4147
    %v4330 = vpack.c.b16 %v4150, %v4148
    %v4331 = vpack.c.b16 %v4153, %v4151
    %v4332 = vpack.c.b16 %v4154, %v4152
    %v4333 = vpack.c.b16 %v4157, %v4155
    %v4334 = vpack.c.b16 %v4158, %v4156
    %v4335 = vpack.c.b16 %v4161, %v4159
    %v4336 = vpack.c.b16 %v4162, %v4160
    %v4337 = vpack.c.b16 %v4165, %v4163
    %v4338 = vpack.c.b16 %v4166, %v4164
    %v4339 = vpack.c.b16 %v4169, %v4167
    %v4340 = vpack.c.b16 %v4170, %v4168
    %v4341 = vpack.c.b16 %v4173, %v4171
    %v4342 = vpack.c.b16 %v4174, %v4172
    %v4343 = vpack.c.b16 %v4177, %v4175
    %v4344 = vpack.c.b16 %v4178, %v4176
    %v4345 = vpack.c.b16 %v4181, %v4179
    %v4346 = vpack.c.b16 %v4182, %v4180
    %v4347 = vpack.c.b16 %v4185, %v4183
    %v4348 = vpack.c.b16 %v4186, %v4184
    %v4349 = vpack.c.b16 %v4189, %v4187
    %v4350 = vpack.c.b16 %v4190, %v4188
    %v4351 = vpack.c.b16 %v4193, %v4191
    %v4352 = vpack.c.b16 %v4194, %v4192
    %v4353 = vpack.c.b16 %v4197, %v4195
    %v4354 = vpack.c.b16 %v4198, %v4196
    %v4355 = vpack.c.b16 %v4201, %v4199
    %v4356 = vpack.c.b16 %v4202, %v4200
    %v4357 = vpack.c.b16 %v4205, %v4203
    %v4358 = vpack.c.b16 %v4206, %v4204
    %v4359 = vpack.c.b16 %v4209, %v4207
    %v4360 = vpack.c.b16 %v4210, %v4208
    %v4361 = vpack.c.b16 %v4213, %v4211
    %v4362 = vpack.c.b16 %v4214, %v4212
    %v4363 = vpack.c.b16 %v4217, %v4215
    %v4364 = vpack.c.b16 %v4218, %v4216
    %v4365 = vpack.c.b16 %v4221, %v4219
    %v4366 = vpack.c.b16 %v4222, %v4220
    %v4367 = vpack.c.b16 %v4225, %v4223
    %v4368 = vpack.c.b16 %v4226, %v4224
    %v4369 = vpack.c.b16 %v4229, %v4227
    %v4370 = vpack.c.b16 %v4230, %v4228
    %v4371 = vpack.c.b16 %v4233, %v4231
    %v4372 = vpack.c.b16 %v4234, %v4232
    %v4373 = vpack.c.b16 %v4237, %v4235
    %v4374 = vpack.c.b16 %v4238, %v4236
    %v4375 = vpack.c.b16 %v4241, %v4239
    %v4376 = vpack.c.b16 %v4242, %v4240
    %v4377 = vpack.c.b16 %v4245, %v4243
    %v4378 = vpack.c.b16 %v4246, %v4244
    %v4379 = vpack.c.b16 %v4249, %v4247
    %v4380 = vpack.c.b16 %v4250, %v4248
    %v4381 = vpack.c.b16 %v4253, %v4251
    %v4382 = vpack.c.b16 %v4254, %v4252
    %4511 = vmatpush.bf16.msra.mxu0 %v4269
    %4512 = vmatpush.bf16.msra.mxu0 %v4267
    %4513 = vmatpush.bf16.msra.mxu0 %v4265
    %4514 = vmatpush.bf16.msra.mxu0 %v4263
    %4515 = vmatpush.bf16.msra.mxu0 %v4261
    %4516 = vmatpush.bf16.msra.mxu0 %v4259
    %4517 = vmatpush.bf16.msra.mxu0 %v4257
    %4518 = vmatpush.bf16.msra.mxu0 %v4255
    %4519 = vmatmul.bf16.gmra.mxu0 %v3857
    %v4520 = vpop.f32.mrf.mxu0
    %v4521 = vadd.f32 %v3867, %v4520
    %v4522 = vpop.f32.mrf.mxu0
    %4523 = vdwg.mxu0
    %4524 = vmatpush.bf16.msra.mxu0 %v4285
    %4525 = vmatpush.bf16.msra.mxu0 %v4283
    %4526 = vmatpush.bf16.msra.mxu0 %v4281
    %4527 = vmatpush.bf16.msra.mxu0 %v4279
    %4528 = vmatpush.bf16.msra.mxu0 %v4277
    %4529 = vmatpush.bf16.msra.mxu0 %v4275
    %4530 = vmatpush.bf16.msra.mxu0 %v4273
    %4531 = vmatpush.bf16.msra.mxu0 %v4271
    %4532 = vmatmul.bf16.gmra.mxu0 %v3858
    %v4533 = vpop.f32.mrf.mxu0
    %v4534 = vadd.f32 %v4521, %v4533
    %v4535 = vpop.f32.mrf.mxu0
    %4536 = vdwg.mxu0
    %4537 = vmatpush.bf16.msra.mxu0 %v4301
    %4538 = vmatpush.bf16.msra.mxu0 %v4299
    %4539 = vmatpush.bf16.msra.mxu0 %v4297
    %4540 = vmatpush.bf16.msra.mxu0 %v4295
    %4541 = vmatpush.bf16.msra.mxu0 %v4293
    %4542 = vmatpush.bf16.msra.mxu0 %v4291
    %4543 = vmatpush.bf16.msra.mxu0 %v4289
    %4544 = vmatpush.bf16.msra.mxu0 %v4287
    %4545 = vmatmul.bf16.gmra.mxu0 %v3859
    %v4546 = vpop.f32.mrf.mxu0
    %v4547 = vadd.f32 %v4534, %v4546
    %v4548 = vpop.f32.mrf.mxu0
    %4549 = vdwg.mxu0
    %4550 = vmatpush.bf16.msra.mxu0 %v4317
    %4551 = vmatpush.bf16.msra.mxu0 %v4315
    %4552 = vmatpush.bf16.msra.mxu0 %v4313
    %4553 = vmatpush.bf16.msra.mxu0 %v4311
    %4554 = vmatpush.bf16.msra.mxu0 %v4309
    %4555 = vmatpush.bf16.msra.mxu0 %v4307
    %4556 = vmatpush.bf16.msra.mxu0 %v4305
    %4557 = vmatpush.bf16.msra.mxu0 %v4303
    %4558 = vmatmul.bf16.gmra.mxu0 %v3860
    %v4559 = vpop.f32.mrf.mxu0
    %v4560 = vadd.f32 %v4547, %v4559
    %v4561 = vpop.f32.mrf.mxu0
    %4562 = vdwg.mxu0
    %4563 = vmatpush.bf16.msra.mxu0 %v4333
    %4564 = vmatpush.bf16.msra.mxu0 %v4331
    %4565 = vmatpush.bf16.msra.mxu0 %v4329
    %4566 = vmatpush.bf16.msra.mxu0 %v4327
    %4567 = vmatpush.bf16.msra.mxu0 %v4325
    %4568 = vmatpush.bf16.msra.mxu0 %v4323
    %4569 = vmatpush.bf16.msra.mxu0 %v4321
    %4570 = vmatpush.bf16.msra.mxu0 %v4319
    %4571 = vmatmul.bf16.gmra.mxu0 %v3861
    %v4572 = vpop.f32.mrf.mxu0
    %v4573 = vadd.f32 %v4560, %v4572
    %v4574 = vpop.f32.mrf.mxu0
    %4575 = vdwg.mxu0
    %4576 = vmatpush.bf16.msra.mxu0 %v4349
    %4577 = vmatpush.bf16.msra.mxu0 %v4347
    %4578 = vmatpush.bf16.msra.mxu0 %v4345
    %4579 = vmatpush.bf16.msra.mxu0 %v4343
    %4580 = vmatpush.bf16.msra.mxu0 %v4341
    %4581 = vmatpush.bf16.msra.mxu0 %v4339
    %4582 = vmatpush.bf16.msra.mxu0 %v4337
    %4583 = vmatpush.bf16.msra.mxu0 %v4335
    %4584 = vmatmul.bf16.gmra.mxu0 %v3862
    %v4585 = vpop.f32.mrf.mxu0
    %v4586 = vadd.f32 %v4573, %v4585
    %v4587 = vpop.f32.mrf.mxu0
    %4588 = vdwg.mxu0
    %4589 = vmatpush.bf16.msra.mxu0 %v4365
    %4590 = vmatpush.bf16.msra.mxu0 %v4363
    %4591 = vmatpush.bf16.msra.mxu0 %v4361
    %4592 = vmatpush.bf16.msra.mxu0 %v4359
    %4593 = vmatpush.bf16.msra.mxu0 %v4357
    %4594 = vmatpush.bf16.msra.mxu0 %v4355
    %4595 = vmatpush.bf16.msra.mxu0 %v4353
    %4596 = vmatpush.bf16.msra.mxu0 %v4351
    %4597 = vmatmul.bf16.gmra.mxu0 %v3863
    %v4598 = vpop.f32.mrf.mxu0
    %v4599 = vadd.f32 %v4586, %v4598
    %v4600 = vpop.f32.mrf.mxu0
    %4601 = vdwg.mxu0
    %4602 = vmatpush.bf16.msra.mxu0 %v4381
    %4603 = vmatpush.bf16.msra.mxu0 %v4379
    %4604 = vmatpush.bf16.msra.mxu0 %v4377
    %4605 = vmatpush.bf16.msra.mxu0 %v4375
    %4606 = vmatpush.bf16.msra.mxu0 %v4373
    %4607 = vmatpush.bf16.msra.mxu0 %v4371
    %4608 = vmatpush.bf16.msra.mxu0 %v4369
    %4609 = vmatpush.bf16.msra.mxu0 %v4367
    %4610 = vmatmul.bf16.gmra.mxu0 %v3864
    %v4611 = vpop.f32.mrf.mxu0
    %v4612 = vadd.f32 %v4599, %v4611
    %v4613 = vpop.f32.mrf.mxu0
    %4614 = vdwg.mxu0
    %4615 = vmatpush.bf16.msra.mxu0 %v4270
    %4616 = vmatpush.bf16.msra.mxu0 %v4268
    %4617 = vmatpush.bf16.msra.mxu0 %v4266
    %4618 = vmatpush.bf16.msra.mxu0 %v4264
    %4619 = vmatpush.bf16.msra.mxu0 %v4262
    %4620 = vmatpush.bf16.msra.mxu0 %v4260
    %4621 = vmatpush.bf16.msra.mxu0 %v4258
    %4622 = vmatpush.bf16.msra.mxu0 %v4256
    %4623 = vmatmul.bf16.gmra.mxu0 %v3857
    %v4624 = vpop.f32.mrf.mxu0
    %v4625 = vadd.f32 %v3868, %v4624
    %v4626 = vpop.f32.mrf.mxu0
    %4627 = vdwg.mxu0
    %4628 = vmatpush.bf16.msra.mxu0 %v4286
    %4629 = vmatpush.bf16.msra.mxu0 %v4284
    %4630 = vmatpush.bf16.msra.mxu0 %v4282
    %4631 = vmatpush.bf16.msra.mxu0 %v4280
    %4632 = vmatpush.bf16.msra.mxu0 %v4278
    %4633 = vmatpush.bf16.msra.mxu0 %v4276
    %4634 = vmatpush.bf16.msra.mxu0 %v4274
    %4635 = vmatpush.bf16.msra.mxu0 %v4272
    %4636 = vmatmul.bf16.gmra.mxu0 %v3858
    %v4637 = vpop.f32.mrf.mxu0
    %v4638 = vadd.f32 %v4625, %v4637
    %v4639 = vpop.f32.mrf.mxu0
    %4640 = vdwg.mxu0
    %4641 = vmatpush.bf16.msra.mxu0 %v4302
    %4642 = vmatpush.bf16.msra.mxu0 %v4300
    %4643 = vmatpush.bf16.msra.mxu0 %v4298
    %4644 = vmatpush.bf16.msra.mxu0 %v4296
    %4645 = vmatpush.bf16.msra.mxu0 %v4294
    %4646 = vmatpush.bf16.msra.mxu0 %v4292
    %4647 = vmatpush.bf16.msra.mxu0 %v4290
    %4648 = vmatpush.bf16.msra.mxu0 %v4288
    %4649 = vmatmul.bf16.gmra.mxu0 %v3859
    %v4650 = vpop.f32.mrf.mxu0
    %v4651 = vadd.f32 %v4638, %v4650
    %v4652 = vpop.f32.mrf.mxu0
    %4653 = vdwg.mxu0
    %4654 = vmatpush.bf16.msra.mxu0 %v4318
    %4655 = vmatpush.bf16.msra.mxu0 %v4316
    %4656 = vmatpush.bf16.msra.mxu0 %v4314
    %4657 = vmatpush.bf16.msra.mxu0 %v4312
    %4658 = vmatpush.bf16.msra.mxu0 %v4310
    %4659 = vmatpush.bf16.msra.mxu0 %v4308
    %4660 = vmatpush.bf16.msra.mxu0 %v4306
    %4661 = vmatpush.bf16.msra.mxu0 %v4304
    %4662 = vmatmul.bf16.gmra.mxu0 %v3860
    %v4663 = vpop.f32.mrf.mxu0
    %v4664 = vadd.f32 %v4651, %v4663
    %v4665 = vpop.f32.mrf.mxu0
    %4666 = vdwg.mxu0
    %4667 = vmatpush.bf16.msra.mxu0 %v4334
    %4668 = vmatpush.bf16.msra.mxu0 %v4332
    %4669 = vmatpush.bf16.msra.mxu0 %v4330
    %4670 = vmatpush.bf16.msra.mxu0 %v4328
    %4671 = vmatpush.bf16.msra.mxu0 %v4326
    %4672 = vmatpush.bf16.msra.mxu0 %v4324
    %4673 = vmatpush.bf16.msra.mxu0 %v4322
    %4674 = vmatpush.bf16.msra.mxu0 %v4320
    %4675 = vmatmul.bf16.gmra.mxu0 %v3861
    %v4676 = vpop.f32.mrf.mxu0
    %v4677 = vadd.f32 %v4664, %v4676
    %v4678 = vpop.f32.mrf.mxu0
    %4679 = vdwg.mxu0
    %4680 = vmatpush.bf16.msra.mxu0 %v4350
    %4681 = vmatpush.bf16.msra.mxu0 %v4348
    %4682 = vmatpush.bf16.msra.mxu0 %v4346
    %4683 = vmatpush.bf16.msra.mxu0 %v4344
    %4684 = vmatpush.bf16.msra.mxu0 %v4342
    %4685 = vmatpush.bf16.msra.mxu0 %v4340
    %4686 = vmatpush.bf16.msra.mxu0 %v4338
    %4687 = vmatpush.bf16.msra.mxu0 %v4336
    %4688 = vmatmul.bf16.gmra.mxu0 %v3862
    %v4689 = vpop.f32.mrf.mxu0
    %v4690 = vadd.f32 %v4677, %v4689
    %v4691 = vpop.f32.mrf.mxu0
    %4692 = vdwg.mxu0
    %4693 = vmatpush.bf16.msra.mxu0 %v4366
    %4694 = vmatpush.bf16.msra.mxu0 %v4364
    %4695 = vmatpush.bf16.msra.mxu0 %v4362
    %4696 = vmatpush.bf16.msra.mxu0 %v4360
    %4697 = vmatpush.bf16.msra.mxu0 %v4358
    %4698 = vmatpush.bf16.msra.mxu0 %v4356
    %4699 = vmatpush.bf16.msra.mxu0 %v4354
    %4700 = vmatpush.bf16.msra.mxu0 %v4352
    %4701 = vmatmul.bf16.gmra.mxu0 %v3863
    %v4702 = vpop.f32.mrf.mxu0
    %v4703 = vadd.f32 %v4690, %v4702
    %v4704 = vpop.f32.mrf.mxu0
    %4705 = vdwg.mxu0
    %4706 = vmatpush.bf16.msra.mxu0 %v4382
    %4707 = vmatpush.bf16.msra.mxu0 %v4380
    %4708 = vmatpush.bf16.msra.mxu0 %v4378
    %4709 = vmatpush.bf16.msra.mxu0 %v4376
    %4710 = vmatpush.bf16.msra.mxu0 %v4374
    %4711 = vmatpush.bf16.msra.mxu0 %v4372
    %4712 = vmatpush.bf16.msra.mxu0 %v4370
    %4713 = vmatpush.bf16.msra.mxu0 %v4368
    %4714 = vmatmul.bf16.gmra.mxu0 %v3864
    %v4715 = vpop.f32.mrf.mxu0
    %v4716 = vadd.f32 %v4703, %v4715
    %v4717 = vpop.f32.mrf.mxu0
    %4718 = vdwg.mxu0
    %vm4719 = vcmp.ge.f32.partialorder %v4612, 0.0
    %vm4720 = vcmp.ge.f32.partialorder %v4716, 0.0
    %v4721 = vmul.f32 %v4612, 0.01
    %v4722 = vmul.f32 %v4716, 0.01
    %v4723 = vsel %vm4719, %v4612, %v4721
    %v4724 = vsel %vm4720, %v4716, %v4722
    %v4725 = vadd.f32 %v3715, %v4723
    %v4726 = vadd.f32 %v3716, %v4724
    %v4727 = vld [vmem:[#allocation3 + $0x400] sm:$0xff]
    %v4728 = vld [vmem:[#allocation3 + $0x408] sm:$0xff]
    %v4729 = vld [vmem:[#allocation3 + $0x410] sm:$0xff]
    %v4730 = vld [vmem:[#allocation3 + $0x418] sm:$0xff]
    %v4731 = vld [vmem:[#allocation3 + $0x420] sm:$0xff]
    %v4732 = vld [vmem:[#allocation3 + $0x428] sm:$0xff]
    %v4733 = vld [vmem:[#allocation3 + $0x430] sm:$0xff]
    %v4734 = vld [vmem:[#allocation3 + $0x438] sm:$0xff]
    %v4735 = vld [vmem:[#allocation3 + $0x440] sm:$0xff]
    %v4736 = vld [vmem:[#allocation3 + $0x448] sm:$0xff]
    %v4737 = vld [vmem:[#allocation3 + $0x450] sm:$0xff]
    %v4738 = vld [vmem:[#allocation3 + $0x458] sm:$0xff]
    %v4739 = vld [vmem:[#allocation3 + $0x460] sm:$0xff]
    %v4740 = vld [vmem:[#allocation3 + $0x468] sm:$0xff]
    %v4741 = vld [vmem:[#allocation3 + $0x470] sm:$0xff]
    %v4742 = vld [vmem:[#allocation3 + $0x478] sm:$0xff]
    %v4743 = vld [vmem:[#allocation3 + $0x480] sm:$0xff]
    %v4744 = vld [vmem:[#allocation3 + $0x488] sm:$0xff]
    %v4745 = vld [vmem:[#allocation3 + $0x490] sm:$0xff]
    %v4746 = vld [vmem:[#allocation3 + $0x498] sm:$0xff]
    %v4747 = vld [vmem:[#allocation3 + $0x4a0] sm:$0xff]
    %v4748 = vld [vmem:[#allocation3 + $0x4a8] sm:$0xff]
    %v4749 = vld [vmem:[#allocation3 + $0x4b0] sm:$0xff]
    %v4750 = vld [vmem:[#allocation3 + $0x4b8] sm:$0xff]
    %v4751 = vld [vmem:[#allocation3 + $0x4c0] sm:$0xff]
    %v4752 = vld [vmem:[#allocation3 + $0x4c8] sm:$0xff]
    %v4753 = vld [vmem:[#allocation3 + $0x4d0] sm:$0xff]
    %v4754 = vld [vmem:[#allocation3 + $0x4d8] sm:$0xff]
    %v4755 = vld [vmem:[#allocation3 + $0x4e0] sm:$0xff]
    %v4756 = vld [vmem:[#allocation3 + $0x4e8] sm:$0xff]
    %v4757 = vld [vmem:[#allocation3 + $0x4f0] sm:$0xff]
    %v4758 = vld [vmem:[#allocation3 + $0x4f8] sm:$0xff]
    %v4759 = vpack.c.bf16 %v4725, %v4725
    %v4760 = vpack.c.bf16 %v4726, %v4726
    %v4761 = vld [vmem:[#allocation7 + $0x6] sm:$0x3]
    %v4763 = vperm.slane %v4761, 0
    %v4764 = vperm.slane %v4761, 1
    %v4799 = vunpack.c.l.b16 %v4727
    %v4800 = vunpack.c.h.b16 %v4727
    %v4801 = vunpack.c.l.b16 %v4728
    %v4802 = vunpack.c.h.b16 %v4728
    %v4803 = vunpack.c.l.b16 %v4729
    %v4804 = vunpack.c.h.b16 %v4729
    %v4805 = vunpack.c.l.b16 %v4730
    %v4806 = vunpack.c.h.b16 %v4730
    %v4807 = vunpack.c.l.b16 %v4731
    %v4808 = vunpack.c.h.b16 %v4731
    %v4809 = vunpack.c.l.b16 %v4732
    %v4810 = vunpack.c.h.b16 %v4732
    %v4811 = vunpack.c.l.b16 %v4733
    %v4812 = vunpack.c.h.b16 %v4733
    %v4813 = vunpack.c.l.b16 %v4734
    %v4814 = vunpack.c.h.b16 %v4734
    %v4815 = vunpack.c.l.b16 %v4735
    %v4816 = vunpack.c.h.b16 %v4735
    %v4817 = vunpack.c.l.b16 %v4736
    %v4818 = vunpack.c.h.b16 %v4736
    %v4819 = vunpack.c.l.b16 %v4737
    %v4820 = vunpack.c.h.b16 %v4737
    %v4821 = vunpack.c.l.b16 %v4738
    %v4822 = vunpack.c.h.b16 %v4738
    %v4823 = vunpack.c.l.b16 %v4739
    %v4824 = vunpack.c.h.b16 %v4739
    %v4825 = vunpack.c.l.b16 %v4740
    %v4826 = vunpack.c.h.b16 %v4740
    %v4827 = vunpack.c.l.b16 %v4741
    %v4828 = vunpack.c.h.b16 %v4741
    %v4829 = vunpack.c.l.b16 %v4742
    %v4830 = vunpack.c.h.b16 %v4742
    %v4831 = vunpack.c.l.b16 %v4743
    %v4832 = vunpack.c.h.b16 %v4743
    %v4833 = vunpack.c.l.b16 %v4744
    %v4834 = vunpack.c.h.b16 %v4744
    %v4835 = vunpack.c.l.b16 %v4745
    %v4836 = vunpack.c.h.b16 %v4745
    %v4837 = vunpack.c.l.b16 %v4746
    %v4838 = vunpack.c.h.b16 %v4746
    %v4839 = vunpack.c.l.b16 %v4747
    %v4840 = vunpack.c.h.b16 %v4747
    %v4841 = vunpack.c.l.b16 %v4748
    %v4842 = vunpack.c.h.b16 %v4748
    %v4843 = vunpack.c.l.b16 %v4749
    %v4844 = vunpack.c.h.b16 %v4749
    %v4845 = vunpack.c.l.b16 %v4750
    %v4846 = vunpack.c.h.b16 %v4750
    %v4847 = vunpack.c.l.b16 %v4751
    %v4848 = vunpack.c.h.b16 %v4751
    %v4849 = vunpack.c.l.b16 %v4752
    %v4850 = vunpack.c.h.b16 %v4752
    %v4851 = vunpack.c.l.b16 %v4753
    %v4852 = vunpack.c.h.b16 %v4753
    %v4853 = vunpack.c.l.b16 %v4754
    %v4854 = vunpack.c.h.b16 %v4754
    %v4855 = vunpack.c.l.b16 %v4755
    %v4856 = vunpack.c.h.b16 %v4755
    %v4857 = vunpack.c.l.b16 %v4756
    %v4858 = vunpack.c.h.b16 %v4756
    %v4859 = vunpack.c.l.b16 %v4757
    %v4860 = vunpack.c.h.b16 %v4757
    %v4861 = vunpack.c.l.b16 %v4758
    %v4862 = vunpack.c.h.b16 %v4758
    %v4863 = vpack.c.b16 %v4801, %v4799
    %v4864 = vpack.c.b16 %v4802, %v4800
    %v4865 = vpack.c.b16 %v4805, %v4803
    %v4866 = vpack.c.b16 %v4806, %v4804
    %v4867 = vpack.c.b16 %v4809, %v4807
    %v4868 = vpack.c.b16 %v4810, %v4808
    %v4869 = vpack.c.b16 %v4813, %v4811
    %v4870 = vpack.c.b16 %v4814, %v4812
    %v4871 = vpack.c.b16 %v4817, %v4815
    %v4872 = vpack.c.b16 %v4818, %v4816
    %v4873 = vpack.c.b16 %v4821, %v4819
    %v4874 = vpack.c.b16 %v4822, %v4820
    %v4875 = vpack.c.b16 %v4825, %v4823
    %v4876 = vpack.c.b16 %v4826, %v4824
    %v4877 = vpack.c.b16 %v4829, %v4827
    %v4878 = vpack.c.b16 %v4830, %v4828
    %v4879 = vpack.c.b16 %v4833, %v4831
    %v4880 = vpack.c.b16 %v4834, %v4832
    %v4881 = vpack.c.b16 %v4837, %v4835
    %v4882 = vpack.c.b16 %v4838, %v4836
    %v4883 = vpack.c.b16 %v4841, %v4839
    %v4884 = vpack.c.b16 %v4842, %v4840
    %v4885 = vpack.c.b16 %v4845, %v4843
    %v4886 = vpack.c.b16 %v4846, %v4844
    %v4887 = vpack.c.b16 %v4849, %v4847
    %v4888 = vpack.c.b16 %v4850, %v4848
    %v4889 = vpack.c.b16 %v4853, %v4851
    %v4890 = vpack.c.b16 %v4854, %v4852
    %v4891 = vpack.c.b16 %v4857, %v4855
    %v4892 = vpack.c.b16 %v4858, %v4856
    %v4893 = vpack.c.b16 %v4861, %v4859
    %v4894 = vpack.c.b16 %v4862, %v4860
    %4927 = vmatpush.bf16.msra.mxu0 %v4877
    %4928 = vmatpush.bf16.msra.mxu0 %v4875
    %4929 = vmatpush.bf16.msra.mxu0 %v4873
    %4930 = vmatpush.bf16.msra.mxu0 %v4871
    %4931 = vmatpush.bf16.msra.mxu0 %v4869
    %4932 = vmatpush.bf16.msra.mxu0 %v4867
    %4933 = vmatpush.bf16.msra.mxu0 %v4865
    %4934 = vmatpush.bf16.msra.mxu0 %v4863
    %4935 = vmatmul.bf16.gmra.mxu0 %v4759
    %v4936 = vpop.f32.mrf.mxu0
    %v4937 = vadd.f32 %v4763, %v4936
    %v4938 = vpop.f32.mrf.mxu0
    %4939 = vdwg.mxu0
    %4940 = vmatpush.bf16.msra.mxu0 %v4893
    %4941 = vmatpush.bf16.msra.mxu0 %v4891
    %4942 = vmatpush.bf16.msra.mxu0 %v4889
    %4943 = vmatpush.bf16.msra.mxu0 %v4887
    %4944 = vmatpush.bf16.msra.mxu0 %v4885
    %4945 = vmatpush.bf16.msra.mxu0 %v4883
    %4946 = vmatpush.bf16.msra.mxu0 %v4881
    %4947 = vmatpush.bf16.msra.mxu0 %v4879
    %4948 = vmatmul.bf16.gmra.mxu0 %v4760
    %v4949 = vpop.f32.mrf.mxu0
    %v4950 = vadd.f32 %v4937, %v4949
    %v4951 = vpop.f32.mrf.mxu0
    %4952 = vdwg.mxu0
    %4953 = vmatpush.bf16.msra.mxu0 %v4878
    %4954 = vmatpush.bf16.msra.mxu0 %v4876
    %4955 = vmatpush.bf16.msra.mxu0 %v4874
    %4956 = vmatpush.bf16.msra.mxu0 %v4872
    %4957 = vmatpush.bf16.msra.mxu0 %v4870
    %4958 = vmatpush.bf16.msra.mxu0 %v4868
    %4959 = vmatpush.bf16.msra.mxu0 %v4866
    %4960 = vmatpush.bf16.msra.mxu0 %v4864
    %4961 = vmatmul.bf16.gmra.mxu0 %v4759
    %v4962 = vpop.f32.mrf.mxu0
    %v4963 = vadd.f32 %v4764, %v4962
    %v4964 = vpop.f32.mrf.mxu0
    %4965 = vdwg.mxu0
    %4966 = vmatpush.bf16.msra.mxu0 %v4894
    %4967 = vmatpush.bf16.msra.mxu0 %v4892
    %4968 = vmatpush.bf16.msra.mxu0 %v4890
    %4969 = vmatpush.bf16.msra.mxu0 %v4888
    %4970 = vmatpush.bf16.msra.mxu0 %v4886
    %4971 = vmatpush.bf16.msra.mxu0 %v4884
    %4972 = vmatpush.bf16.msra.mxu0 %v4882
    %4973 = vmatpush.bf16.msra.mxu0 %v4880
    %4974 = vmatmul.bf16.gmra.mxu0 %v4760
    %v4975 = vpop.f32.mrf.mxu0
    %v4976 = vadd.f32 %v4963, %v4975
    %v4977 = vpop.f32.mrf.mxu0
    %4978 = vdwg.mxu0
    %vm4979 = vcmp.ge.f32.partialorder %v4950, 0.0
    %vm4980 = vcmp.ge.f32.partialorder %v4976, 0.0
    %v4981 = vmul.f32 %v4950, 0.01
    %v4982 = vmul.f32 %v4976, 0.01
    %v4983 = vsel %vm4979, %v4950, %v4981
    %v4984 = vsel %vm4980, %v4976, %v4982
    %v4985 = vld [vmem:[#allocation12 + $0x180] sm:$0xff]
    %v4986 = vld [vmem:[#allocation12 + $0x188] sm:$0xff]
    %v4987 = vld [vmem:[#allocation12 + $0x190] sm:$0xff]
    %v4988 = vld [vmem:[#allocation12 + $0x198] sm:$0xff]
    %v4989 = vld [vmem:[#allocation12 + $0x1a0] sm:$0xff]
    %v4990 = vld [vmem:[#allocation12 + $0x1a8] sm:$0xff]
    %v4991 = vld [vmem:[#allocation12 + $0x1b0] sm:$0xff]
    %v4992 = vld [vmem:[#allocation12 + $0x1b8] sm:$0xff]
    %v4993 = vld [vmem:[#allocation12 + $0x1c0] sm:$0xff]
    %v4994 = vld [vmem:[#allocation12 + $0x1c8] sm:$0xff]
    %v4995 = vld [vmem:[#allocation12 + $0x1d0] sm:$0xff]
    %v4996 = vld [vmem:[#allocation12 + $0x1d8] sm:$0xff]
    %v4997 = vld [vmem:[#allocation12 + $0x1e0] sm:$0xff]
    %v4998 = vld [vmem:[#allocation12 + $0x1e8] sm:$0xff]
    %v4999 = vld [vmem:[#allocation12 + $0x1f0] sm:$0xff]
    %v5000 = vld [vmem:[#allocation12 + $0x1f8] sm:$0xff]
    %v5001 = vld [vmem:[#allocation12 + $0x200] sm:$0xff]
    %v5002 = vld [vmem:[#allocation12 + $0x208] sm:$0xff]
    %v5003 = vld [vmem:[#allocation12 + $0x210] sm:$0xff]
    %v5004 = vld [vmem:[#allocation12 + $0x218] sm:$0xff]
    %v5005 = vld [vmem:[#allocation12 + $0x220] sm:$0xff]
    %v5006 = vld [vmem:[#allocation12 + $0x228] sm:$0xff]
    %v5007 = vld [vmem:[#allocation12 + $0x230] sm:$0xff]
    %v5008 = vld [vmem:[#allocation12 + $0x238] sm:$0xff]
    %v5009 = vld [vmem:[#allocation12 + $0x240] sm:$0xff]
    %v5010 = vld [vmem:[#allocation12 + $0x248] sm:$0xff]
    %v5011 = vld [vmem:[#allocation12 + $0x250] sm:$0xff]
    %v5012 = vld [vmem:[#allocation12 + $0x258] sm:$0xff]
    %v5013 = vld [vmem:[#allocation12 + $0x260] sm:$0xff]
    %v5014 = vld [vmem:[#allocation12 + $0x268] sm:$0xff]
    %v5015 = vld [vmem:[#allocation12 + $0x270] sm:$0xff]
    %v5016 = vld [vmem:[#allocation12 + $0x278] sm:$0xff]
    %v5017 = vld [vmem:[#allocation12 + $0x280] sm:$0xff]
    %v5018 = vld [vmem:[#allocation12 + $0x288] sm:$0xff]
    %v5019 = vld [vmem:[#allocation12 + $0x290] sm:$0xff]
    %v5020 = vld [vmem:[#allocation12 + $0x298] sm:$0xff]
    %v5021 = vld [vmem:[#allocation12 + $0x2a0] sm:$0xff]
    %v5022 = vld [vmem:[#allocation12 + $0x2a8] sm:$0xff]
    %v5023 = vld [vmem:[#allocation12 + $0x2b0] sm:$0xff]
    %v5024 = vld [vmem:[#allocation12 + $0x2b8] sm:$0xff]
    %v5025 = vld [vmem:[#allocation12 + $0x2c0] sm:$0xff]
    %v5026 = vld [vmem:[#allocation12 + $0x2c8] sm:$0xff]
    %v5027 = vld [vmem:[#allocation12 + $0x2d0] sm:$0xff]
    %v5028 = vld [vmem:[#allocation12 + $0x2d8] sm:$0xff]
    %v5029 = vld [vmem:[#allocation12 + $0x2e0] sm:$0xff]
    %v5030 = vld [vmem:[#allocation12 + $0x2e8] sm:$0xff]
    %v5031 = vld [vmem:[#allocation12 + $0x2f0] sm:$0xff]
    %v5032 = vld [vmem:[#allocation12 + $0x2f8] sm:$0xff]
    %v5033 = vld [vmem:[#allocation12 + $0x300] sm:$0xff]
    %v5034 = vld [vmem:[#allocation12 + $0x308] sm:$0xff]
    %v5035 = vld [vmem:[#allocation12 + $0x310] sm:$0xff]
    %v5036 = vld [vmem:[#allocation12 + $0x318] sm:$0xff]
    %v5037 = vld [vmem:[#allocation12 + $0x320] sm:$0xff]
    %v5038 = vld [vmem:[#allocation12 + $0x328] sm:$0xff]
    %v5039 = vld [vmem:[#allocation12 + $0x330] sm:$0xff]
    %v5040 = vld [vmem:[#allocation12 + $0x338] sm:$0xff]
    %v5041 = vld [vmem:[#allocation12 + $0x340] sm:$0xff]
    %v5042 = vld [vmem:[#allocation12 + $0x348] sm:$0xff]
    %v5043 = vld [vmem:[#allocation12 + $0x350] sm:$0xff]
    %v5044 = vld [vmem:[#allocation12 + $0x358] sm:$0xff]
    %v5045 = vld [vmem:[#allocation12 + $0x360] sm:$0xff]
    %v5046 = vld [vmem:[#allocation12 + $0x368] sm:$0xff]
    %v5047 = vld [vmem:[#allocation12 + $0x370] sm:$0xff]
    %v5048 = vld [vmem:[#allocation12 + $0x378] sm:$0xff]
    %v5049 = vld [vmem:[#allocation12 + $0x380] sm:$0xff]
    %v5050 = vld [vmem:[#allocation12 + $0x388] sm:$0xff]
    %v5051 = vld [vmem:[#allocation12 + $0x390] sm:$0xff]
    %v5052 = vld [vmem:[#allocation12 + $0x398] sm:$0xff]
    %v5053 = vld [vmem:[#allocation12 + $0x3a0] sm:$0xff]
    %v5054 = vld [vmem:[#allocation12 + $0x3a8] sm:$0xff]
    %v5055 = vld [vmem:[#allocation12 + $0x3b0] sm:$0xff]
    %v5056 = vld [vmem:[#allocation12 + $0x3b8] sm:$0xff]
    %v5057 = vld [vmem:[#allocation12 + $0x3c0] sm:$0xff]
    %v5058 = vld [vmem:[#allocation12 + $0x3c8] sm:$0xff]
    %v5059 = vld [vmem:[#allocation12 + $0x3d0] sm:$0xff]
    %v5060 = vld [vmem:[#allocation12 + $0x3d8] sm:$0xff]
    %v5061 = vld [vmem:[#allocation12 + $0x3e0] sm:$0xff]
    %v5062 = vld [vmem:[#allocation12 + $0x3e8] sm:$0xff]
    %v5063 = vld [vmem:[#allocation12 + $0x3f0] sm:$0xff]
    %v5064 = vld [vmem:[#allocation12 + $0x3f8] sm:$0xff]
    %v5065 = vld [vmem:[#allocation12 + $0x400] sm:$0xff]
    %v5066 = vld [vmem:[#allocation12 + $0x408] sm:$0xff]
    %v5067 = vld [vmem:[#allocation12 + $0x410] sm:$0xff]
    %v5068 = vld [vmem:[#allocation12 + $0x418] sm:$0xff]
    %v5069 = vld [vmem:[#allocation12 + $0x420] sm:$0xff]
    %v5070 = vld [vmem:[#allocation12 + $0x428] sm:$0xff]
    %v5071 = vld [vmem:[#allocation12 + $0x430] sm:$0xff]
    %v5072 = vld [vmem:[#allocation12 + $0x438] sm:$0xff]
    %v5073 = vld [vmem:[#allocation12 + $0x440] sm:$0xff]
    %v5074 = vld [vmem:[#allocation12 + $0x448] sm:$0xff]
    %v5075 = vld [vmem:[#allocation12 + $0x450] sm:$0xff]
    %v5076 = vld [vmem:[#allocation12 + $0x458] sm:$0xff]
    %v5077 = vld [vmem:[#allocation12 + $0x460] sm:$0xff]
    %v5078 = vld [vmem:[#allocation12 + $0x468] sm:$0xff]
    %v5079 = vld [vmem:[#allocation12 + $0x470] sm:$0xff]
    %v5080 = vld [vmem:[#allocation12 + $0x478] sm:$0xff]
    %v5081 = vpack.c.bf16 %v4983, %v4983
    %v5082 = vpack.c.bf16 %v4984, %v4984
    %v5083 = vld [vmem:[#allocation7 + $0x17] sm:$0x3f]
    %v5085 = vperm.slane %v5083, 0
    %v5086 = vperm.slane %v5083, 1
    %v5087 = vperm.slane %v5083, 2
    %v5088 = vperm.slane %v5083, 3
    %v5089 = vperm.slane %v5083, 4
    %v5090 = vperm.slane %v5083, 5
    %v5193 = vunpack.c.l.b16 %v4985
    %v5194 = vunpack.c.h.b16 %v4985
    %v5195 = vunpack.c.l.b16 %v4986
    %v5196 = vunpack.c.h.b16 %v4986
    %v5197 = vunpack.c.l.b16 %v4987
    %v5198 = vunpack.c.h.b16 %v4987
    %v5199 = vunpack.c.l.b16 %v4988
    %v5200 = vunpack.c.h.b16 %v4988
    %v5201 = vunpack.c.l.b16 %v4989
    %v5202 = vunpack.c.h.b16 %v4989
    %v5203 = vunpack.c.l.b16 %v4990
    %v5204 = vunpack.c.h.b16 %v4990
    %v5205 = vunpack.c.l.b16 %v4991
    %v5206 = vunpack.c.h.b16 %v4991
    %v5207 = vunpack.c.l.b16 %v4992
    %v5208 = vunpack.c.h.b16 %v4992
    %v5209 = vunpack.c.l.b16 %v4993
    %v5210 = vunpack.c.h.b16 %v4993
    %v5211 = vunpack.c.l.b16 %v4994
    %v5212 = vunpack.c.h.b16 %v4994
    %v5213 = vunpack.c.l.b16 %v4995
    %v5214 = vunpack.c.h.b16 %v4995
    %v5215 = vunpack.c.l.b16 %v4996
    %v5216 = vunpack.c.h.b16 %v4996
    %v5217 = vunpack.c.l.b16 %v4997
    %v5218 = vunpack.c.h.b16 %v4997
    %v5219 = vunpack.c.l.b16 %v4998
    %v5220 = vunpack.c.h.b16 %v4998
    %v5221 = vunpack.c.l.b16 %v4999
    %v5222 = vunpack.c.h.b16 %v4999
    %v5223 = vunpack.c.l.b16 %v5000
    %v5224 = vunpack.c.h.b16 %v5000
    %v5225 = vunpack.c.l.b16 %v5001
    %v5226 = vunpack.c.h.b16 %v5001
    %v5227 = vunpack.c.l.b16 %v5002
    %v5228 = vunpack.c.h.b16 %v5002
    %v5229 = vunpack.c.l.b16 %v5003
    %v5230 = vunpack.c.h.b16 %v5003
    %v5231 = vunpack.c.l.b16 %v5004
    %v5232 = vunpack.c.h.b16 %v5004
    %v5233 = vunpack.c.l.b16 %v5005
    %v5234 = vunpack.c.h.b16 %v5005
    %v5235 = vunpack.c.l.b16 %v5006
    %v5236 = vunpack.c.h.b16 %v5006
    %v5237 = vunpack.c.l.b16 %v5007
    %v5238 = vunpack.c.h.b16 %v5007
    %v5239 = vunpack.c.l.b16 %v5008
    %v5240 = vunpack.c.h.b16 %v5008
    %v5241 = vunpack.c.l.b16 %v5009
    %v5242 = vunpack.c.h.b16 %v5009
    %v5243 = vunpack.c.l.b16 %v5010
    %v5244 = vunpack.c.h.b16 %v5010
    %v5245 = vunpack.c.l.b16 %v5011
    %v5246 = vunpack.c.h.b16 %v5011
    %v5247 = vunpack.c.l.b16 %v5012
    %v5248 = vunpack.c.h.b16 %v5012
    %v5249 = vunpack.c.l.b16 %v5013
    %v5250 = vunpack.c.h.b16 %v5013
    %v5251 = vunpack.c.l.b16 %v5014
    %v5252 = vunpack.c.h.b16 %v5014
    %v5253 = vunpack.c.l.b16 %v5015
    %v5254 = vunpack.c.h.b16 %v5015
    %v5255 = vunpack.c.l.b16 %v5016
    %v5256 = vunpack.c.h.b16 %v5016
    %v5257 = vunpack.c.l.b16 %v5017
    %v5258 = vunpack.c.h.b16 %v5017
    %v5259 = vunpack.c.l.b16 %v5018
    %v5260 = vunpack.c.h.b16 %v5018
    %v5261 = vunpack.c.l.b16 %v5019
    %v5262 = vunpack.c.h.b16 %v5019
    %v5263 = vunpack.c.l.b16 %v5020
    %v5264 = vunpack.c.h.b16 %v5020
    %v5265 = vunpack.c.l.b16 %v5021
    %v5266 = vunpack.c.h.b16 %v5021
    %v5267 = vunpack.c.l.b16 %v5022
    %v5268 = vunpack.c.h.b16 %v5022
    %v5269 = vunpack.c.l.b16 %v5023
    %v5270 = vunpack.c.h.b16 %v5023
    %v5271 = vunpack.c.l.b16 %v5024
    %v5272 = vunpack.c.h.b16 %v5024
    %v5273 = vunpack.c.l.b16 %v5025
    %v5274 = vunpack.c.h.b16 %v5025
    %v5275 = vunpack.c.l.b16 %v5026
    %v5276 = vunpack.c.h.b16 %v5026
    %v5277 = vunpack.c.l.b16 %v5027
    %v5278 = vunpack.c.h.b16 %v5027
    %v5279 = vunpack.c.l.b16 %v5028
    %v5280 = vunpack.c.h.b16 %v5028
    %v5281 = vunpack.c.l.b16 %v5029
    %v5282 = vunpack.c.h.b16 %v5029
    %v5283 = vunpack.c.l.b16 %v5030
    %v5284 = vunpack.c.h.b16 %v5030
    %v5285 = vunpack.c.l.b16 %v5031
    %v5286 = vunpack.c.h.b16 %v5031
    %v5287 = vunpack.c.l.b16 %v5032
    %v5288 = vunpack.c.h.b16 %v5032
    %v5289 = vunpack.c.l.b16 %v5033
    %v5290 = vunpack.c.h.b16 %v5033
    %v5291 = vunpack.c.l.b16 %v5034
    %v5292 = vunpack.c.h.b16 %v5034
    %v5293 = vunpack.c.l.b16 %v5035
    %v5294 = vunpack.c.h.b16 %v5035
    %v5295 = vunpack.c.l.b16 %v5036
    %v5296 = vunpack.c.h.b16 %v5036
    %v5297 = vunpack.c.l.b16 %v5037
    %v5298 = vunpack.c.h.b16 %v5037
    %v5299 = vunpack.c.l.b16 %v5038
    %v5300 = vunpack.c.h.b16 %v5038
    %v5301 = vunpack.c.l.b16 %v5039
    %v5302 = vunpack.c.h.b16 %v5039
    %v5303 = vunpack.c.l.b16 %v5040
    %v5304 = vunpack.c.h.b16 %v5040
    %v5305 = vunpack.c.l.b16 %v5041
    %v5306 = vunpack.c.h.b16 %v5041
    %v5307 = vunpack.c.l.b16 %v5042
    %v5308 = vunpack.c.h.b16 %v5042
    %v5309 = vunpack.c.l.b16 %v5043
    %v5310 = vunpack.c.h.b16 %v5043
    %v5311 = vunpack.c.l.b16 %v5044
    %v5312 = vunpack.c.h.b16 %v5044
    %v5313 = vunpack.c.l.b16 %v5045
    %v5314 = vunpack.c.h.b16 %v5045
    %v5315 = vunpack.c.l.b16 %v5046
    %v5316 = vunpack.c.h.b16 %v5046
    %v5317 = vunpack.c.l.b16 %v5047
    %v5318 = vunpack.c.h.b16 %v5047
    %v5319 = vunpack.c.l.b16 %v5048
    %v5320 = vunpack.c.h.b16 %v5048
    %v5321 = vunpack.c.l.b16 %v5049
    %v5322 = vunpack.c.h.b16 %v5049
    %v5323 = vunpack.c.l.b16 %v5050
    %v5324 = vunpack.c.h.b16 %v5050
    %v5325 = vunpack.c.l.b16 %v5051
    %v5326 = vunpack.c.h.b16 %v5051
    %v5327 = vunpack.c.l.b16 %v5052
    %v5328 = vunpack.c.h.b16 %v5052
    %v5329 = vunpack.c.l.b16 %v5053
    %v5330 = vunpack.c.h.b16 %v5053
    %v5331 = vunpack.c.l.b16 %v5054
    %v5332 = vunpack.c.h.b16 %v5054
    %v5333 = vunpack.c.l.b16 %v5055
    %v5334 = vunpack.c.h.b16 %v5055
    %v5335 = vunpack.c.l.b16 %v5056
    %v5336 = vunpack.c.h.b16 %v5056
    %v5337 = vunpack.c.l.b16 %v5057
    %v5338 = vunpack.c.h.b16 %v5057
    %v5339 = vunpack.c.l.b16 %v5058
    %v5340 = vunpack.c.h.b16 %v5058
    %v5341 = vunpack.c.l.b16 %v5059
    %v5342 = vunpack.c.h.b16 %v5059
    %v5343 = vunpack.c.l.b16 %v5060
    %v5344 = vunpack.c.h.b16 %v5060
    %v5345 = vunpack.c.l.b16 %v5061
    %v5346 = vunpack.c.h.b16 %v5061
    %v5347 = vunpack.c.l.b16 %v5062
    %v5348 = vunpack.c.h.b16 %v5062
    %v5349 = vunpack.c.l.b16 %v5063
    %v5350 = vunpack.c.h.b16 %v5063
    %v5351 = vunpack.c.l.b16 %v5064
    %v5352 = vunpack.c.h.b16 %v5064
    %v5353 = vunpack.c.l.b16 %v5065
    %v5354 = vunpack.c.h.b16 %v5065
    %v5355 = vunpack.c.l.b16 %v5066
    %v5356 = vunpack.c.h.b16 %v5066
    %v5357 = vunpack.c.l.b16 %v5067
    %v5358 = vunpack.c.h.b16 %v5067
    %v5359 = vunpack.c.l.b16 %v5068
    %v5360 = vunpack.c.h.b16 %v5068
    %v5361 = vunpack.c.l.b16 %v5069
    %v5362 = vunpack.c.h.b16 %v5069
    %v5363 = vunpack.c.l.b16 %v5070
    %v5364 = vunpack.c.h.b16 %v5070
    %v5365 = vunpack.c.l.b16 %v5071
    %v5366 = vunpack.c.h.b16 %v5071
    %v5367 = vunpack.c.l.b16 %v5072
    %v5368 = vunpack.c.h.b16 %v5072
    %v5369 = vunpack.c.l.b16 %v5073
    %v5370 = vunpack.c.h.b16 %v5073
    %v5371 = vunpack.c.l.b16 %v5074
    %v5372 = vunpack.c.h.b16 %v5074
    %v5373 = vunpack.c.l.b16 %v5075
    %v5374 = vunpack.c.h.b16 %v5075
    %v5375 = vunpack.c.l.b16 %v5076
    %v5376 = vunpack.c.h.b16 %v5076
    %v5377 = vunpack.c.l.b16 %v5077
    %v5378 = vunpack.c.h.b16 %v5077
    %v5379 = vunpack.c.l.b16 %v5078
    %v5380 = vunpack.c.h.b16 %v5078
    %v5381 = vunpack.c.l.b16 %v5079
    %v5382 = vunpack.c.h.b16 %v5079
    %v5383 = vunpack.c.l.b16 %v5080
    %v5384 = vunpack.c.h.b16 %v5080
    %v5385 = vpack.c.b16 %v5199, %v5193
    %v5386 = vpack.c.b16 %v5200, %v5194
    %v5387 = vpack.c.b16 %v5201, %v5195
    %v5388 = vpack.c.b16 %v5202, %v5196
    %v5389 = vpack.c.b16 %v5203, %v5197
    %v5390 = vpack.c.b16 %v5204, %v5198
    %v5391 = vpack.c.b16 %v5211, %v5205
    %v5392 = vpack.c.b16 %v5212, %v5206
    %v5393 = vpack.c.b16 %v5213, %v5207
    %v5394 = vpack.c.b16 %v5214, %v5208
    %v5395 = vpack.c.b16 %v5215, %v5209
    %v5396 = vpack.c.b16 %v5216, %v5210
    %v5397 = vpack.c.b16 %v5223, %v5217
    %v5398 = vpack.c.b16 %v5224, %v5218
    %v5399 = vpack.c.b16 %v5225, %v5219
    %v5400 = vpack.c.b16 %v5226, %v5220
    %v5401 = vpack.c.b16 %v5227, %v5221
    %v5402 = vpack.c.b16 %v5228, %v5222
    %v5403 = vpack.c.b16 %v5235, %v5229
    %v5404 = vpack.c.b16 %v5236, %v5230
    %v5405 = vpack.c.b16 %v5237, %v5231
    %v5406 = vpack.c.b16 %v5238, %v5232
    %v5407 = vpack.c.b16 %v5239, %v5233
    %v5408 = vpack.c.b16 %v5240, %v5234
    %v5409 = vpack.c.b16 %v5247, %v5241
    %v5410 = vpack.c.b16 %v5248, %v5242
    %v5411 = vpack.c.b16 %v5249, %v5243
    %v5412 = vpack.c.b16 %v5250, %v5244
    %v5413 = vpack.c.b16 %v5251, %v5245
    %v5414 = vpack.c.b16 %v5252, %v5246
    %v5415 = vpack.c.b16 %v5259, %v5253
    %v5416 = vpack.c.b16 %v5260, %v5254
    %v5417 = vpack.c.b16 %v5261, %v5255
    %v5418 = vpack.c.b16 %v5262, %v5256
    %v5419 = vpack.c.b16 %v5263, %v5257
    %v5420 = vpack.c.b16 %v5264, %v5258
    %v5421 = vpack.c.b16 %v5271, %v5265
    %v5422 = vpack.c.b16 %v5272, %v5266
    %v5423 = vpack.c.b16 %v5273, %v5267
    %v5424 = vpack.c.b16 %v5274, %v5268
    %v5425 = vpack.c.b16 %v5275, %v5269
    %v5426 = vpack.c.b16 %v5276, %v5270
    %v5427 = vpack.c.b16 %v5283, %v5277
    %v5428 = vpack.c.b16 %v5284, %v5278
    %v5429 = vpack.c.b16 %v5285, %v5279
    %v5430 = vpack.c.b16 %v5286, %v5280
    %v5431 = vpack.c.b16 %v5287, %v5281
    %v5432 = vpack.c.b16 %v5288, %v5282
    %v5433 = vpack.c.b16 %v5295, %v5289
    %v5434 = vpack.c.b16 %v5296, %v5290
    %v5435 = vpack.c.b16 %v5297, %v5291
    %v5436 = vpack.c.b16 %v5298, %v5292
    %v5437 = vpack.c.b16 %v5299, %v5293
    %v5438 = vpack.c.b16 %v5300, %v5294
    %v5439 = vpack.c.b16 %v5307, %v5301
    %v5440 = vpack.c.b16 %v5308, %v5302
    %v5441 = vpack.c.b16 %v5309, %v5303
    %v5442 = vpack.c.b16 %v5310, %v5304
    %v5443 = vpack.c.b16 %v5311, %v5305
    %v5444 = vpack.c.b16 %v5312, %v5306
    %v5445 = vpack.c.b16 %v5319, %v5313
    %v5446 = vpack.c.b16 %v5320, %v5314
    %v5447 = vpack.c.b16 %v5321, %v5315
    %v5448 = vpack.c.b16 %v5322, %v5316
    %v5449 = vpack.c.b16 %v5323, %v5317
    %v5450 = vpack.c.b16 %v5324, %v5318
    %v5451 = vpack.c.b16 %v5331, %v5325
    %v5452 = vpack.c.b16 %v5332, %v5326
    %v5453 = vpack.c.b16 %v5333, %v5327
    %v5454 = vpack.c.b16 %v5334, %v5328
    %v5455 = vpack.c.b16 %v5335, %v5329
    %v5456 = vpack.c.b16 %v5336, %v5330
    %v5457 = vpack.c.b16 %v5343, %v5337
    %v5458 = vpack.c.b16 %v5344, %v5338
    %v5459 = vpack.c.b16 %v5345, %v5339
    %v5460 = vpack.c.b16 %v5346, %v5340
    %v5461 = vpack.c.b16 %v5347, %v5341
    %v5462 = vpack.c.b16 %v5348, %v5342
    %v5463 = vpack.c.b16 %v5355, %v5349
    %v5464 = vpack.c.b16 %v5356, %v5350
    %v5465 = vpack.c.b16 %v5357, %v5351
    %v5466 = vpack.c.b16 %v5358, %v5352
    %v5467 = vpack.c.b16 %v5359, %v5353
    %v5468 = vpack.c.b16 %v5360, %v5354
    %v5469 = vpack.c.b16 %v5367, %v5361
    %v5470 = vpack.c.b16 %v5368, %v5362
    %v5471 = vpack.c.b16 %v5369, %v5363
    %v5472 = vpack.c.b16 %v5370, %v5364
    %v5473 = vpack.c.b16 %v5371, %v5365
    %v5474 = vpack.c.b16 %v5372, %v5366
    %v5475 = vpack.c.b16 %v5379, %v5373
    %v5476 = vpack.c.b16 %v5380, %v5374
    %v5477 = vpack.c.b16 %v5381, %v5375
    %v5478 = vpack.c.b16 %v5382, %v5376
    %v5479 = vpack.c.b16 %v5383, %v5377
    %v5480 = vpack.c.b16 %v5384, %v5378
    %5577 = vmatpush.bf16.msra.mxu0 %v5427
    %5578 = vmatpush.bf16.msra.mxu0 %v5421
    %5579 = vmatpush.bf16.msra.mxu0 %v5415
    %5580 = vmatpush.bf16.msra.mxu0 %v5409
    %5581 = vmatpush.bf16.msra.mxu0 %v5403
    %5582 = vmatpush.bf16.msra.mxu0 %v5397
    %5583 = vmatpush.bf16.msra.mxu0 %v5391
    %5584 = vmatpush.bf16.msra.mxu0 %v5385
    %5585 = vmatmul.bf16.gmra.mxu0 %v5081
    %v5586 = vpop.f32.mrf.mxu0
    %v5587 = vadd.f32 %v5085, %v5586
    %v5588 = vpop.f32.mrf.mxu0
    %5589 = vdwg.mxu0
    %5590 = vmatpush.bf16.msra.mxu0 %v5475
    %5591 = vmatpush.bf16.msra.mxu0 %v5469
    %5592 = vmatpush.bf16.msra.mxu0 %v5463
    %5593 = vmatpush.bf16.msra.mxu0 %v5457
    %5594 = vmatpush.bf16.msra.mxu0 %v5451
    %5595 = vmatpush.bf16.msra.mxu0 %v5445
    %5596 = vmatpush.bf16.msra.mxu0 %v5439
    %5597 = vmatpush.bf16.msra.mxu0 %v5433
    %5598 = vmatmul.bf16.gmra.mxu0 %v5082
    %v5599 = vpop.f32.mrf.mxu0
    %v5600 = vadd.f32 %v5587, %v5599
    %v5601 = vpop.f32.mrf.mxu0
    %5602 = vdwg.mxu0
    %5603 = vmatpush.bf16.msra.mxu0 %v5428
    %5604 = vmatpush.bf16.msra.mxu0 %v5422
    %5605 = vmatpush.bf16.msra.mxu0 %v5416
    %5606 = vmatpush.bf16.msra.mxu0 %v5410
    %5607 = vmatpush.bf16.msra.mxu0 %v5404
    %5608 = vmatpush.bf16.msra.mxu0 %v5398
    %5609 = vmatpush.bf16.msra.mxu0 %v5392
    %5610 = vmatpush.bf16.msra.mxu0 %v5386
    %5611 = vmatmul.bf16.gmra.mxu0 %v5081
    %v5612 = vpop.f32.mrf.mxu0
    %v5613 = vadd.f32 %v5086, %v5612
    %v5614 = vpop.f32.mrf.mxu0
    %5615 = vdwg.mxu0
    %5616 = vmatpush.bf16.msra.mxu0 %v5476
    %5617 = vmatpush.bf16.msra.mxu0 %v5470
    %5618 = vmatpush.bf16.msra.mxu0 %v5464
    %5619 = vmatpush.bf16.msra.mxu0 %v5458
    %5620 = vmatpush.bf16.msra.mxu0 %v5452
    %5621 = vmatpush.bf16.msra.mxu0 %v5446
    %5622 = vmatpush.bf16.msra.mxu0 %v5440
    %5623 = vmatpush.bf16.msra.mxu0 %v5434
    %5624 = vmatmul.bf16.gmra.mxu0 %v5082
    %v5625 = vpop.f32.mrf.mxu0
    %v5626 = vadd.f32 %v5613, %v5625
    %v5627 = vpop.f32.mrf.mxu0
    %5628 = vdwg.mxu0
    %5629 = vmatpush.bf16.msra.mxu0 %v5429
    %5630 = vmatpush.bf16.msra.mxu0 %v5423
    %5631 = vmatpush.bf16.msra.mxu0 %v5417
    %5632 = vmatpush.bf16.msra.mxu0 %v5411
    %5633 = vmatpush.bf16.msra.mxu0 %v5405
    %5634 = vmatpush.bf16.msra.mxu0 %v5399
    %5635 = vmatpush.bf16.msra.mxu0 %v5393
    %5636 = vmatpush.bf16.msra.mxu0 %v5387
    %5637 = vmatmul.bf16.gmra.mxu0 %v5081
    %v5638 = vpop.f32.mrf.mxu0
    %v5639 = vadd.f32 %v5087, %v5638
    %v5640 = vpop.f32.mrf.mxu0
    %5641 = vdwg.mxu0
    %5642 = vmatpush.bf16.msra.mxu0 %v5477
    %5643 = vmatpush.bf16.msra.mxu0 %v5471
    %5644 = vmatpush.bf16.msra.mxu0 %v5465
    %5645 = vmatpush.bf16.msra.mxu0 %v5459
    %5646 = vmatpush.bf16.msra.mxu0 %v5453
    %5647 = vmatpush.bf16.msra.mxu0 %v5447
    %5648 = vmatpush.bf16.msra.mxu0 %v5441
    %5649 = vmatpush.bf16.msra.mxu0 %v5435
    %5650 = vmatmul.bf16.gmra.mxu0 %v5082
    %v5651 = vpop.f32.mrf.mxu0
    %v5652 = vadd.f32 %v5639, %v5651
    %v5653 = vpop.f32.mrf.mxu0
    %5654 = vdwg.mxu0
    %5655 = vmatpush.bf16.msra.mxu0 %v5430
    %5656 = vmatpush.bf16.msra.mxu0 %v5424
    %5657 = vmatpush.bf16.msra.mxu0 %v5418
    %5658 = vmatpush.bf16.msra.mxu0 %v5412
    %5659 = vmatpush.bf16.msra.mxu0 %v5406
    %5660 = vmatpush.bf16.msra.mxu0 %v5400
    %5661 = vmatpush.bf16.msra.mxu0 %v5394
    %5662 = vmatpush.bf16.msra.mxu0 %v5388
    %5663 = vmatmul.bf16.gmra.mxu0 %v5081
    %v5664 = vpop.f32.mrf.mxu0
    %v5665 = vadd.f32 %v5088, %v5664
    %v5666 = vpop.f32.mrf.mxu0
    %5667 = vdwg.mxu0
    %5668 = vmatpush.bf16.msra.mxu0 %v5478
    %5669 = vmatpush.bf16.msra.mxu0 %v5472
    %5670 = vmatpush.bf16.msra.mxu0 %v5466
    %5671 = vmatpush.bf16.msra.mxu0 %v5460
    %5672 = vmatpush.bf16.msra.mxu0 %v5454
    %5673 = vmatpush.bf16.msra.mxu0 %v5448
    %5674 = vmatpush.bf16.msra.mxu0 %v5442
    %5675 = vmatpush.bf16.msra.mxu0 %v5436
    %5676 = vmatmul.bf16.gmra.mxu0 %v5082
    %v5677 = vpop.f32.mrf.mxu0
    %v5678 = vadd.f32 %v5665, %v5677
    %v5679 = vpop.f32.mrf.mxu0
    %5680 = vdwg.mxu0
    %5681 = vmatpush.bf16.msra.mxu0 %v5431
    %5682 = vmatpush.bf16.msra.mxu0 %v5425
    %5683 = vmatpush.bf16.msra.mxu0 %v5419
    %5684 = vmatpush.bf16.msra.mxu0 %v5413
    %5685 = vmatpush.bf16.msra.mxu0 %v5407
    %5686 = vmatpush.bf16.msra.mxu0 %v5401
    %5687 = vmatpush.bf16.msra.mxu0 %v5395
    %5688 = vmatpush.bf16.msra.mxu0 %v5389
    %5689 = vmatmul.bf16.gmra.mxu0 %v5081
    %v5690 = vpop.f32.mrf.mxu0
    %v5691 = vadd.f32 %v5089, %v5690
    %v5692 = vpop.f32.mrf.mxu0
    %5693 = vdwg.mxu0
    %5694 = vmatpush.bf16.msra.mxu0 %v5479
    %5695 = vmatpush.bf16.msra.mxu0 %v5473
    %5696 = vmatpush.bf16.msra.mxu0 %v5467
    %5697 = vmatpush.bf16.msra.mxu0 %v5461
    %5698 = vmatpush.bf16.msra.mxu0 %v5455
    %5699 = vmatpush.bf16.msra.mxu0 %v5449
    %5700 = vmatpush.bf16.msra.mxu0 %v5443
    %5701 = vmatpush.bf16.msra.mxu0 %v5437
    %5702 = vmatmul.bf16.gmra.mxu0 %v5082
    %v5703 = vpop.f32.mrf.mxu0
    %v5704 = vadd.f32 %v5691, %v5703
    %v5705 = vpop.f32.mrf.mxu0
    %5706 = vdwg.mxu0
    %5707 = vmatpush.bf16.msra.mxu0 %v5432
    %5708 = vmatpush.bf16.msra.mxu0 %v5426
    %5709 = vmatpush.bf16.msra.mxu0 %v5420
    %5710 = vmatpush.bf16.msra.mxu0 %v5414
    %5711 = vmatpush.bf16.msra.mxu0 %v5408
    %5712 = vmatpush.bf16.msra.mxu0 %v5402
    %5713 = vmatpush.bf16.msra.mxu0 %v5396
    %5714 = vmatpush.bf16.msra.mxu0 %v5390
    %5715 = vmatmul.bf16.gmra.mxu0 %v5081
    %v5716 = vpop.f32.mrf.mxu0
    %v5717 = vadd.f32 %v5090, %v5716
    %v5718 = vpop.f32.mrf.mxu0
    %5719 = vdwg.mxu0
    %5720 = vmatpush.bf16.msra.mxu0 %v5480
    %5721 = vmatpush.bf16.msra.mxu0 %v5474
    %5722 = vmatpush.bf16.msra.mxu0 %v5468
    %5723 = vmatpush.bf16.msra.mxu0 %v5462
    %5724 = vmatpush.bf16.msra.mxu0 %v5456
    %5725 = vmatpush.bf16.msra.mxu0 %v5450
    %5726 = vmatpush.bf16.msra.mxu0 %v5444
    %5727 = vmatpush.bf16.msra.mxu0 %v5438
    %5728 = vmatmul.bf16.gmra.mxu0 %v5082
    %v5729 = vpop.f32.mrf.mxu0
    %v5730 = vadd.f32 %v5717, %v5729
    %v5731 = vpop.f32.mrf.mxu0
    %5732 = vdwg.mxu0
    %vm5733 = vcmp.ge.f32.partialorder %v5600, 0.0
    %vm5734 = vcmp.ge.f32.partialorder %v5626, 0.0
    %vm5735 = vcmp.ge.f32.partialorder %v5652, 0.0
    %vm5736 = vcmp.ge.f32.partialorder %v5678, 0.0
    %vm5737 = vcmp.ge.f32.partialorder %v5704, 0.0
    %vm5738 = vcmp.ge.f32.partialorder %v5730, 0.0
    %v5739 = vmul.f32 %v5600, 0.01
    %v5740 = vmul.f32 %v5626, 0.01
    %v5741 = vmul.f32 %v5652, 0.01
    %v5742 = vmul.f32 %v5678, 0.01
    %v5743 = vmul.f32 %v5704, 0.01
    %v5744 = vmul.f32 %v5730, 0.01
    %v5745 = vsel %vm5733, %v5600, %v5739
    %v5746 = vsel %vm5734, %v5626, %v5740
    %v5747 = vsel %vm5735, %v5652, %v5741
    %v5748 = vsel %vm5736, %v5678, %v5742
    %v5749 = vsel %vm5737, %v5704, %v5743
    %v5750 = vsel %vm5738, %v5730, %v5744
    %s5751 = smul.u32 4, 48
    %s5752 = smul.u32 %s5751, 3
    %s5753 = sshll.u32 %s5752, 4
    %5754 = dma.done %s112, %s5753
    %v5755 = vld [vmem:[#allocation4] sm:$0xff]
    %v5756 = vld [vmem:[#allocation4 + $0x8] sm:$0xf]
    %v5757 = vld [vmem:[#allocation4 + $0xc] sm:$0xff]
    %v5758 = vld [vmem:[#allocation4 + $0x14] sm:$0xf]
    %v5759 = vld [vmem:[#allocation4 + $0x18] sm:$0xff]
    %v5760 = vld [vmem:[#allocation4 + $0x20] sm:$0xf]
    %v5761 = vld [vmem:[#allocation4 + $0x24] sm:$0xff]
    %v5762 = vld [vmem:[#allocation4 + $0x2c] sm:$0xf]
    %v5763 = vld [vmem:[#allocation4 + $0x30] sm:$0xff]
    %v5764 = vld [vmem:[#allocation4 + $0x38] sm:$0xf]
    %v5765 = vld [vmem:[#allocation4 + $0x3c] sm:$0xff]
    %v5766 = vld [vmem:[#allocation4 + $0x44] sm:$0xf]
    %v5767 = vld [vmem:[#allocation4 + $0x48] sm:$0xff]
    %v5768 = vld [vmem:[#allocation4 + $0x50] sm:$0xf]
    %v5769 = vld [vmem:[#allocation4 + $0x54] sm:$0xff]
    %v5770 = vld [vmem:[#allocation4 + $0x5c] sm:$0xf]
    %v5771 = vld [vmem:[#allocation4 + $0x60] sm:$0xff]
    %v5772 = vld [vmem:[#allocation4 + $0x68] sm:$0xf]
    %v5773 = vld [vmem:[#allocation4 + $0x6c] sm:$0xff]
    %v5774 = vld [vmem:[#allocation4 + $0x74] sm:$0xf]
    %v5775 = vld [vmem:[#allocation4 + $0x78] sm:$0xff]
    %v5776 = vld [vmem:[#allocation4 + $0x80] sm:$0xf]
    %v5777 = vld [vmem:[#allocation4 + $0x84] sm:$0xff]
    %v5778 = vld [vmem:[#allocation4 + $0x8c] sm:$0xf]
    %v5779 = vld [vmem:[#allocation4 + $0x90] sm:$0xff]
    %v5780 = vld [vmem:[#allocation4 + $0x98] sm:$0xf]
    %v5781 = vld [vmem:[#allocation4 + $0x9c] sm:$0xff]
    %v5782 = vld [vmem:[#allocation4 + $0xa4] sm:$0xf]
    %v5783 = vld [vmem:[#allocation4 + $0xa8] sm:$0xff]
    %v5784 = vld [vmem:[#allocation4 + $0xb0] sm:$0xf]
    %v5785 = vld [vmem:[#allocation4 + $0xb4] sm:$0xff]
    %v5786 = vld [vmem:[#allocation4 + $0xbc] sm:$0xf]
    %v5787 = vld [vmem:[#allocation4 + $0xc0] sm:$0xff]
    %v5788 = vld [vmem:[#allocation4 + $0xc8] sm:$0xf]
    %v5789 = vld [vmem:[#allocation4 + $0xcc] sm:$0xff]
    %v5790 = vld [vmem:[#allocation4 + $0xd4] sm:$0xf]
    %v5791 = vld [vmem:[#allocation4 + $0xd8] sm:$0xff]
    %v5792 = vld [vmem:[#allocation4 + $0xe0] sm:$0xf]
    %v5793 = vld [vmem:[#allocation4 + $0xe4] sm:$0xff]
    %v5794 = vld [vmem:[#allocation4 + $0xec] sm:$0xf]
    %v5795 = vld [vmem:[#allocation4 + $0xf0] sm:$0xff]
    %v5796 = vld [vmem:[#allocation4 + $0xf8] sm:$0xf]
    %v5797 = vld [vmem:[#allocation4 + $0xfc] sm:$0xff]
    %v5798 = vld [vmem:[#allocation4 + $0x104] sm:$0xf]
    %v5799 = vld [vmem:[#allocation4 + $0x108] sm:$0xff]
    %v5800 = vld [vmem:[#allocation4 + $0x110] sm:$0xf]
    %v5801 = vld [vmem:[#allocation4 + $0x114] sm:$0xff]
    %v5802 = vld [vmem:[#allocation4 + $0x11c] sm:$0xf]
    %v5803 = vld [vmem:[#allocation4 + $0x120] sm:$0xff]
    %v5804 = vld [vmem:[#allocation4 + $0x128] sm:$0xf]
    %v5805 = vld [vmem:[#allocation4 + $0x12c] sm:$0xff]
    %v5806 = vld [vmem:[#allocation4 + $0x134] sm:$0xf]
    %v5807 = vld [vmem:[#allocation4 + $0x138] sm:$0xff]
    %v5808 = vld [vmem:[#allocation4 + $0x140] sm:$0xf]
    %v5809 = vld [vmem:[#allocation4 + $0x144] sm:$0xff]
    %v5810 = vld [vmem:[#allocation4 + $0x14c] sm:$0xf]
    %v5811 = vld [vmem:[#allocation4 + $0x150] sm:$0xff]
    %v5812 = vld [vmem:[#allocation4 + $0x158] sm:$0xf]
    %v5813 = vld [vmem:[#allocation4 + $0x15c] sm:$0xff]
    %v5814 = vld [vmem:[#allocation4 + $0x164] sm:$0xf]
    %v5815 = vld [vmem:[#allocation4 + $0x168] sm:$0xff]
    %v5816 = vld [vmem:[#allocation4 + $0x170] sm:$0xf]
    %v5817 = vld [vmem:[#allocation4 + $0x174] sm:$0xff]
    %v5818 = vld [vmem:[#allocation4 + $0x17c] sm:$0xf]
    %v5819 = vld [vmem:[#allocation4 + $0x180] sm:$0xff]
    %v5820 = vld [vmem:[#allocation4 + $0x188] sm:$0xf]
    %v5821 = vld [vmem:[#allocation4 + $0x18c] sm:$0xff]
    %v5822 = vld [vmem:[#allocation4 + $0x194] sm:$0xf]
    %v5823 = vld [vmem:[#allocation4 + $0x198] sm:$0xff]
    %v5824 = vld [vmem:[#allocation4 + $0x1a0] sm:$0xf]
    %v5825 = vld [vmem:[#allocation4 + $0x1a4] sm:$0xff]
    %v5826 = vld [vmem:[#allocation4 + $0x1ac] sm:$0xf]
    %v5827 = vld [vmem:[#allocation4 + $0x1b0] sm:$0xff]
    %v5828 = vld [vmem:[#allocation4 + $0x1b8] sm:$0xf]
    %v5829 = vld [vmem:[#allocation4 + $0x1bc] sm:$0xff]
    %v5830 = vld [vmem:[#allocation4 + $0x1c4] sm:$0xf]
    %v5831 = vld [vmem:[#allocation4 + $0x1c8] sm:$0xff]
    %v5832 = vld [vmem:[#allocation4 + $0x1d0] sm:$0xf]
    %v5833 = vld [vmem:[#allocation4 + $0x1d4] sm:$0xff]
    %v5834 = vld [vmem:[#allocation4 + $0x1dc] sm:$0xf]
    %v5835 = vld [vmem:[#allocation4 + $0x1e0] sm:$0xff]
    %v5836 = vld [vmem:[#allocation4 + $0x1e8] sm:$0xf]
    %v5837 = vld [vmem:[#allocation4 + $0x1ec] sm:$0xff]
    %v5838 = vld [vmem:[#allocation4 + $0x1f4] sm:$0xf]
    %v5839 = vld [vmem:[#allocation4 + $0x1f8] sm:$0xff]
    %v5840 = vld [vmem:[#allocation4 + $0x200] sm:$0xf]
    %v5841 = vld [vmem:[#allocation4 + $0x204] sm:$0xff]
    %v5842 = vld [vmem:[#allocation4 + $0x20c] sm:$0xf]
    %v5843 = vld [vmem:[#allocation4 + $0x210] sm:$0xff]
    %v5844 = vld [vmem:[#allocation4 + $0x218] sm:$0xf]
    %v5845 = vld [vmem:[#allocation4 + $0x21c] sm:$0xff]
    %v5846 = vld [vmem:[#allocation4 + $0x224] sm:$0xf]
    %v5847 = vld [vmem:[#allocation4 + $0x228] sm:$0xff]
    %v5848 = vld [vmem:[#allocation4 + $0x230] sm:$0xf]
    %v5849 = vld [vmem:[#allocation4 + $0x234] sm:$0xff]
    %v5850 = vld [vmem:[#allocation4 + $0x23c] sm:$0xf]
    %v5851 = vpack.c.bf16 %v5748, %v5748
    %v5852 = vpack.c.bf16 %v5749, %v5749
    %v5853 = vpack.c.bf16 %v5750, %v5750
    %v5854 = vld [vmem:[#allocation7 + $0xa] sm:$0x7]
    %v5856 = vperm.slane %v5854, 0
    %v5857 = vperm.slane %v5854, 1
    %v5858 = vperm.slane %v5854, 2
    %v5958 = vunpack.c.l.b16 %v5755
    %v5959 = vunpack.c.h.b16 %v5755
    %v5960 = vunpack.c.l.b16 %v5756
    %v5961 = vunpack.c.l.b16 %v5757
    %v5962 = vunpack.c.h.b16 %v5757
    %v5963 = vunpack.c.l.b16 %v5758
    %v5964 = vunpack.c.l.b16 %v5759
    %v5965 = vunpack.c.h.b16 %v5759
    %v5966 = vunpack.c.l.b16 %v5760
    %v5967 = vunpack.c.l.b16 %v5761
    %v5968 = vunpack.c.h.b16 %v5761
    %v5969 = vunpack.c.l.b16 %v5762
    %v5970 = vunpack.c.l.b16 %v5763
    %v5971 = vunpack.c.h.b16 %v5763
    %v5972 = vunpack.c.l.b16 %v5764
    %v5973 = vunpack.c.l.b16 %v5765
    %v5974 = vunpack.c.h.b16 %v5765
    %v5975 = vunpack.c.l.b16 %v5766
    %v5976 = vunpack.c.l.b16 %v5767
    %v5977 = vunpack.c.h.b16 %v5767
    %v5978 = vunpack.c.l.b16 %v5768
    %v5979 = vunpack.c.l.b16 %v5769
    %v5980 = vunpack.c.h.b16 %v5769
    %v5981 = vunpack.c.l.b16 %v5770
    %v5982 = vunpack.c.l.b16 %v5771
    %v5983 = vunpack.c.h.b16 %v5771
    %v5984 = vunpack.c.l.b16 %v5772
    %v5985 = vunpack.c.l.b16 %v5773
    %v5986 = vunpack.c.h.b16 %v5773
    %v5987 = vunpack.c.l.b16 %v5774
    %v5988 = vunpack.c.l.b16 %v5775
    %v5989 = vunpack.c.h.b16 %v5775
    %v5990 = vunpack.c.l.b16 %v5776
    %v5991 = vunpack.c.l.b16 %v5777
    %v5992 = vunpack.c.h.b16 %v5777
    %v5993 = vunpack.c.l.b16 %v5778
    %v5994 = vunpack.c.l.b16 %v5779
    %v5995 = vunpack.c.h.b16 %v5779
    %v5996 = vunpack.c.l.b16 %v5780
    %v5997 = vunpack.c.l.b16 %v5781
    %v5998 = vunpack.c.h.b16 %v5781
    %v5999 = vunpack.c.l.b16 %v5782
    %v6000 = vunpack.c.l.b16 %v5783
    %v6001 = vunpack.c.h.b16 %v5783
    %v6002 = vunpack.c.l.b16 %v5784
    %v6003 = vunpack.c.l.b16 %v5785
    %v6004 = vunpack.c.h.b16 %v5785
    %v6005 = vunpack.c.l.b16 %v5786
    %v6006 = vunpack.c.l.b16 %v5787
    %v6007 = vunpack.c.h.b16 %v5787
    %v6008 = vunpack.c.l.b16 %v5788
    %v6009 = vunpack.c.l.b16 %v5789
    %v6010 = vunpack.c.h.b16 %v5789
    %v6011 = vunpack.c.l.b16 %v5790
    %v6012 = vunpack.c.l.b16 %v5791
    %v6013 = vunpack.c.h.b16 %v5791
    %v6014 = vunpack.c.l.b16 %v5792
    %v6015 = vunpack.c.l.b16 %v5793
    %v6016 = vunpack.c.h.b16 %v5793
    %v6017 = vunpack.c.l.b16 %v5794
    %v6018 = vunpack.c.l.b16 %v5795
    %v6019 = vunpack.c.h.b16 %v5795
    %v6020 = vunpack.c.l.b16 %v5796
    %v6021 = vunpack.c.l.b16 %v5797
    %v6022 = vunpack.c.h.b16 %v5797
    %v6023 = vunpack.c.l.b16 %v5798
    %v6024 = vunpack.c.l.b16 %v5799
    %v6025 = vunpack.c.h.b16 %v5799
    %v6026 = vunpack.c.l.b16 %v5800
    %v6027 = vunpack.c.l.b16 %v5801
    %v6028 = vunpack.c.h.b16 %v5801
    %v6029 = vunpack.c.l.b16 %v5802
    %v6030 = vunpack.c.l.b16 %v5803
    %v6031 = vunpack.c.h.b16 %v5803
    %v6032 = vunpack.c.l.b16 %v5804
    %v6033 = vunpack.c.l.b16 %v5805
    %v6034 = vunpack.c.h.b16 %v5805
    %v6035 = vunpack.c.l.b16 %v5806
    %v6036 = vunpack.c.l.b16 %v5807
    %v6037 = vunpack.c.h.b16 %v5807
    %v6038 = vunpack.c.l.b16 %v5808
    %v6039 = vunpack.c.l.b16 %v5809
    %v6040 = vunpack.c.h.b16 %v5809
    %v6041 = vunpack.c.l.b16 %v5810
    %v6042 = vunpack.c.l.b16 %v5811
    %v6043 = vunpack.c.h.b16 %v5811
    %v6044 = vunpack.c.l.b16 %v5812
    %v6045 = vunpack.c.l.b16 %v5813
    %v6046 = vunpack.c.h.b16 %v5813
    %v6047 = vunpack.c.l.b16 %v5814
    %v6048 = vunpack.c.l.b16 %v5815
    %v6049 = vunpack.c.h.b16 %v5815
    %v6050 = vunpack.c.l.b16 %v5816
    %v6051 = vunpack.c.l.b16 %v5817
    %v6052 = vunpack.c.h.b16 %v5817
    %v6053 = vunpack.c.l.b16 %v5818
    %v6054 = vunpack.c.l.b16 %v5819
    %v6055 = vunpack.c.h.b16 %v5819
    %v6056 = vunpack.c.l.b16 %v5820
    %v6057 = vunpack.c.l.b16 %v5821
    %v6058 = vunpack.c.h.b16 %v5821
    %v6059 = vunpack.c.l.b16 %v5822
    %v6060 = vunpack.c.l.b16 %v5823
    %v6061 = vunpack.c.h.b16 %v5823
    %v6062 = vunpack.c.l.b16 %v5824
    %v6063 = vunpack.c.l.b16 %v5825
    %v6064 = vunpack.c.h.b16 %v5825
    %v6065 = vunpack.c.l.b16 %v5826
    %v6066 = vunpack.c.l.b16 %v5827
    %v6067 = vunpack.c.h.b16 %v5827
    %v6068 = vunpack.c.l.b16 %v5828
    %v6069 = vunpack.c.l.b16 %v5829
    %v6070 = vunpack.c.h.b16 %v5829
    %v6071 = vunpack.c.l.b16 %v5830
    %v6072 = vunpack.c.l.b16 %v5831
    %v6073 = vunpack.c.h.b16 %v5831
    %v6074 = vunpack.c.l.b16 %v5832
    %v6075 = vunpack.c.l.b16 %v5833
    %v6076 = vunpack.c.h.b16 %v5833
    %v6077 = vunpack.c.l.b16 %v5834
    %v6078 = vunpack.c.l.b16 %v5835
    %v6079 = vunpack.c.h.b16 %v5835
    %v6080 = vunpack.c.l.b16 %v5836
    %v6081 = vunpack.c.l.b16 %v5837
    %v6082 = vunpack.c.h.b16 %v5837
    %v6083 = vunpack.c.l.b16 %v5838
    %v6084 = vunpack.c.l.b16 %v5839
    %v6085 = vunpack.c.h.b16 %v5839
    %v6086 = vunpack.c.l.b16 %v5840
    %v6087 = vunpack.c.l.b16 %v5841
    %v6088 = vunpack.c.h.b16 %v5841
    %v6089 = vunpack.c.l.b16 %v5842
    %v6090 = vunpack.c.l.b16 %v5843
    %v6091 = vunpack.c.h.b16 %v5843
    %v6092 = vunpack.c.l.b16 %v5844
    %v6093 = vunpack.c.l.b16 %v5845
    %v6094 = vunpack.c.h.b16 %v5845
    %v6095 = vunpack.c.l.b16 %v5846
    %v6096 = vunpack.c.l.b16 %v5847
    %v6097 = vunpack.c.h.b16 %v5847
    %v6098 = vunpack.c.l.b16 %v5848
    %v6099 = vunpack.c.l.b16 %v5849
    %v6100 = vunpack.c.h.b16 %v5849
    %v6101 = vunpack.c.l.b16 %v5850
    %v6102 = vpack.c.b16 %v5961, %v5958
    %v6103 = vpack.c.b16 %v5962, %v5959
    %v6104 = vpack.c.b16 %v5963, %v5960
    %v6105 = vpack.c.b16 %v5967, %v5964
    %v6106 = vpack.c.b16 %v5968, %v5965
    %v6107 = vpack.c.b16 %v5969, %v5966
    %v6108 = vpack.c.b16 %v5973, %v5970
    %v6109 = vpack.c.b16 %v5974, %v5971
    %v6110 = vpack.c.b16 %v5975, %v5972
    %v6111 = vpack.c.b16 %v5979, %v5976
    %v6112 = vpack.c.b16 %v5980, %v5977
    %v6113 = vpack.c.b16 %v5981, %v5978
    %v6114 = vpack.c.b16 %v5985, %v5982
    %v6115 = vpack.c.b16 %v5986, %v5983
    %v6116 = vpack.c.b16 %v5987, %v5984
    %v6117 = vpack.c.b16 %v5991, %v5988
    %v6118 = vpack.c.b16 %v5992, %v5989
    %v6119 = vpack.c.b16 %v5993, %v5990
    %v6120 = vpack.c.b16 %v5997, %v5994
    %v6121 = vpack.c.b16 %v5998, %v5995
    %v6122 = vpack.c.b16 %v5999, %v5996
    %v6123 = vpack.c.b16 %v6003, %v6000
    %v6124 = vpack.c.b16 %v6004, %v6001
    %v6125 = vpack.c.b16 %v6005, %v6002
    %v6126 = vpack.c.b16 %v6009, %v6006
    %v6127 = vpack.c.b16 %v6010, %v6007
    %v6128 = vpack.c.b16 %v6011, %v6008
    %v6129 = vpack.c.b16 %v6015, %v6012
    %v6130 = vpack.c.b16 %v6016, %v6013
    %v6131 = vpack.c.b16 %v6017, %v6014
    %v6132 = vpack.c.b16 %v6021, %v6018
    %v6133 = vpack.c.b16 %v6022, %v6019
    %v6134 = vpack.c.b16 %v6023, %v6020
    %v6135 = vpack.c.b16 %v6027, %v6024
    %v6136 = vpack.c.b16 %v6028, %v6025
    %v6137 = vpack.c.b16 %v6029, %v6026
    %v6138 = vpack.c.b16 %v6033, %v6030
    %v6139 = vpack.c.b16 %v6034, %v6031
    %v6140 = vpack.c.b16 %v6035, %v6032
    %v6141 = vpack.c.b16 %v6039, %v6036
    %v6142 = vpack.c.b16 %v6040, %v6037
    %v6143 = vpack.c.b16 %v6041, %v6038
    %v6144 = vpack.c.b16 %v6045, %v6042
    %v6145 = vpack.c.b16 %v6046, %v6043
    %v6146 = vpack.c.b16 %v6047, %v6044
    %v6147 = vpack.c.b16 %v6051, %v6048
    %v6148 = vpack.c.b16 %v6052, %v6049
    %v6149 = vpack.c.b16 %v6053, %v6050
    %v6150 = vpack.c.b16 %v6057, %v6054
    %v6151 = vpack.c.b16 %v6058, %v6055
    %v6152 = vpack.c.b16 %v6059, %v6056
    %v6153 = vpack.c.b16 %v6063, %v6060
    %v6154 = vpack.c.b16 %v6064, %v6061
    %v6155 = vpack.c.b16 %v6065, %v6062
    %v6156 = vpack.c.b16 %v6069, %v6066
    %v6157 = vpack.c.b16 %v6070, %v6067
    %v6158 = vpack.c.b16 %v6071, %v6068
    %v6159 = vpack.c.b16 %v6075, %v6072
    %v6160 = vpack.c.b16 %v6076, %v6073
    %v6161 = vpack.c.b16 %v6077, %v6074
    %v6162 = vpack.c.b16 %v6081, %v6078
    %v6163 = vpack.c.b16 %v6082, %v6079
    %v6164 = vpack.c.b16 %v6083, %v6080
    %v6165 = vpack.c.b16 %v6087, %v6084
    %v6166 = vpack.c.b16 %v6088, %v6085
    %v6167 = vpack.c.b16 %v6089, %v6086
    %v6168 = vpack.c.b16 %v6093, %v6090
    %v6169 = vpack.c.b16 %v6094, %v6091
    %v6170 = vpack.c.b16 %v6095, %v6092
    %v6171 = vpack.c.b16 %v6099, %v6096
    %v6172 = vpack.c.b16 %v6100, %v6097
    %v6173 = vpack.c.b16 %v6101, %v6098
    %6246 = vmatpush.bf16.msra.mxu0 %v6123
    %6247 = vmatpush.bf16.msra.mxu0 %v6120
    %6248 = vmatpush.bf16.msra.mxu0 %v6117
    %6249 = vmatpush.bf16.msra.mxu0 %v6114
    %6250 = vmatpush.bf16.msra.mxu0 %v6111
    %6251 = vmatpush.bf16.msra.mxu0 %v6108
    %6252 = vmatpush.bf16.msra.mxu0 %v6105
    %6253 = vmatpush.bf16.msra.mxu0 %v6102
    %6254 = vmatmul.bf16.gmra.mxu0 %v5851
    %v6255 = vpop.f32.mrf.mxu0
    %v6256 = vadd.f32 %v5856, %v6255
    %v6257 = vpop.f32.mrf.mxu0
    %6258 = vdwg.mxu0
    %6259 = vmatpush.bf16.msra.mxu0 %v6147
    %6260 = vmatpush.bf16.msra.mxu0 %v6144
    %6261 = vmatpush.bf16.msra.mxu0 %v6141
    %6262 = vmatpush.bf16.msra.mxu0 %v6138
    %6263 = vmatpush.bf16.msra.mxu0 %v6135
    %6264 = vmatpush.bf16.msra.mxu0 %v6132
    %6265 = vmatpush.bf16.msra.mxu0 %v6129
    %6266 = vmatpush.bf16.msra.mxu0 %v6126
    %6267 = vmatmul.bf16.gmra.mxu0 %v5852
    %v6268 = vpop.f32.mrf.mxu0
    %v6269 = vadd.f32 %v6256, %v6268
    %v6270 = vpop.f32.mrf.mxu0
    %6271 = vdwg.mxu0
    %6272 = vmatpush.bf16.msra.mxu0 %v6171
    %6273 = vmatpush.bf16.msra.mxu0 %v6168
    %6274 = vmatpush.bf16.msra.mxu0 %v6165
    %6275 = vmatpush.bf16.msra.mxu0 %v6162
    %6276 = vmatpush.bf16.msra.mxu0 %v6159
    %6277 = vmatpush.bf16.msra.mxu0 %v6156
    %6278 = vmatpush.bf16.msra.mxu0 %v6153
    %6279 = vmatpush.bf16.msra.mxu0 %v6150
    %6280 = vmatmul.bf16.gmra.mxu0 %v5853
    %v6281 = vpop.f32.mrf.mxu0
    %v6282 = vadd.f32 %v6269, %v6281
    %v6283 = vpop.f32.mrf.mxu0
    %6284 = vdwg.mxu0
    %6285 = vmatpush.bf16.msra.mxu0 %v6124
    %6286 = vmatpush.bf16.msra.mxu0 %v6121
    %6287 = vmatpush.bf16.msra.mxu0 %v6118
    %6288 = vmatpush.bf16.msra.mxu0 %v6115
    %6289 = vmatpush.bf16.msra.mxu0 %v6112
    %6290 = vmatpush.bf16.msra.mxu0 %v6109
    %6291 = vmatpush.bf16.msra.mxu0 %v6106
    %6292 = vmatpush.bf16.msra.mxu0 %v6103
    %6293 = vmatmul.bf16.gmra.mxu0 %v5851
    %v6294 = vpop.f32.mrf.mxu0
    %v6295 = vadd.f32 %v5857, %v6294
    %v6296 = vpop.f32.mrf.mxu0
    %6297 = vdwg.mxu0
    %6298 = vmatpush.bf16.msra.mxu0 %v6148
    %6299 = vmatpush.bf16.msra.mxu0 %v6145
    %6300 = vmatpush.bf16.msra.mxu0 %v6142
    %6301 = vmatpush.bf16.msra.mxu0 %v6139
    %6302 = vmatpush.bf16.msra.mxu0 %v6136
    %6303 = vmatpush.bf16.msra.mxu0 %v6133
    %6304 = vmatpush.bf16.msra.mxu0 %v6130
    %6305 = vmatpush.bf16.msra.mxu0 %v6127
    %6306 = vmatmul.bf16.gmra.mxu0 %v5852
    %v6307 = vpop.f32.mrf.mxu0
    %v6308 = vadd.f32 %v6295, %v6307
    %v6309 = vpop.f32.mrf.mxu0
    %6310 = vdwg.mxu0
    %6311 = vmatpush.bf16.msra.mxu0 %v6172
    %6312 = vmatpush.bf16.msra.mxu0 %v6169
    %6313 = vmatpush.bf16.msra.mxu0 %v6166
    %6314 = vmatpush.bf16.msra.mxu0 %v6163
    %6315 = vmatpush.bf16.msra.mxu0 %v6160
    %6316 = vmatpush.bf16.msra.mxu0 %v6157
    %6317 = vmatpush.bf16.msra.mxu0 %v6154
    %6318 = vmatpush.bf16.msra.mxu0 %v6151
    %6319 = vmatmul.bf16.gmra.mxu0 %v5853
    %v6320 = vpop.f32.mrf.mxu0
    %v6321 = vadd.f32 %v6308, %v6320
    %v6322 = vpop.f32.mrf.mxu0
    %6323 = vdwg.mxu0
    %6324 = vmatpush.bf16.msra.mxu0 %v6125
    %6325 = vmatpush.bf16.msra.mxu0 %v6122
    %6326 = vmatpush.bf16.msra.mxu0 %v6119
    %6327 = vmatpush.bf16.msra.mxu0 %v6116
    %6328 = vmatpush.bf16.msra.mxu0 %v6113
    %6329 = vmatpush.bf16.msra.mxu0 %v6110
    %6330 = vmatpush.bf16.msra.mxu0 %v6107
    %6331 = vmatpush.bf16.msra.mxu0 %v6104
    %6332 = vmatmul.bf16.gmra.mxu0 %v5851
    %v6333 = vpop.f32.mrf.mxu0
    %v6334 = vadd.f32 %v5858, %v6333
    %v6335 = vpop.f32.mrf.mxu0
    %6336 = vdwg.mxu0
    %6337 = vmatpush.bf16.msra.mxu0 %v6149
    %6338 = vmatpush.bf16.msra.mxu0 %v6146
    %6339 = vmatpush.bf16.msra.mxu0 %v6143
    %6340 = vmatpush.bf16.msra.mxu0 %v6140
    %6341 = vmatpush.bf16.msra.mxu0 %v6137
    %6342 = vmatpush.bf16.msra.mxu0 %v6134
    %6343 = vmatpush.bf16.msra.mxu0 %v6131
    %6344 = vmatpush.bf16.msra.mxu0 %v6128
    %6345 = vmatmul.bf16.gmra.mxu0 %v5852
    %v6346 = vpop.f32.mrf.mxu0
    %v6347 = vadd.f32 %v6334, %v6346
    %v6348 = vpop.f32.mrf.mxu0
    %6349 = vdwg.mxu0
    %6350 = vmatpush.bf16.msra.mxu0 %v6173
    %6351 = vmatpush.bf16.msra.mxu0 %v6170
    %6352 = vmatpush.bf16.msra.mxu0 %v6167
    %6353 = vmatpush.bf16.msra.mxu0 %v6164
    %6354 = vmatpush.bf16.msra.mxu0 %v6161
    %6355 = vmatpush.bf16.msra.mxu0 %v6158
    %6356 = vmatpush.bf16.msra.mxu0 %v6155
    %6357 = vmatpush.bf16.msra.mxu0 %v6152
    %6358 = vmatmul.bf16.gmra.mxu0 %v5853
    %v6359 = vpop.f32.mrf.mxu0
    %v6360 = vadd.f32 %v6347, %v6359
    %v6361 = vpop.f32.mrf.mxu0
    %6362 = vdwg.mxu0
    %vm6363 = vcmp.ge.f32.partialorder %v6282, 0.0
    %vm6364 = vcmp.ge.f32.partialorder %v6321, 0.0
    %vm6365 = vcmp.ge.f32.partialorder %v6360, 0.0
    %v6366 = vmul.f32 %v6282, 0.01
    %v6367 = vmul.f32 %v6321, 0.01
    %v6368 = vmul.f32 %v6360, 0.01
    %v6369 = vsel %vm6363, %v6282, %v6366
    %v6370 = vsel %vm6364, %v6321, %v6367
    %v6371 = vsel %vm6365, %v6360, %v6368
    %v6372 = vadd.f32 %v5745, %v6369
    %v6373 = vadd.f32 %v5746, %v6370
    %v6374 = vadd.f32 %v5747, %v6371
    %s6375 = smul.u32 %s5751, 7
    %s6376 = sshll.u32 %s6375, 4
    %6377 = dma.done %s126, %s6376
    %v6378 = vld [vmem:[#allocation5] sm:$0xff]
    %v6379 = vld [vmem:[#allocation5 + $0x8] sm:$0xff]
    %v6380 = vld [vmem:[#allocation5 + $0x10] sm:$0xff]
    %v6381 = vld [vmem:[#allocation5 + $0x18] sm:$0xf]
    %v6382 = vld [vmem:[#allocation5 + $0x1c] sm:$0xff]
    %v6383 = vld [vmem:[#allocation5 + $0x24] sm:$0xff]
    %v6384 = vld [vmem:[#allocation5 + $0x2c] sm:$0xff]
    %v6385 = vld [vmem:[#allocation5 + $0x34] sm:$0xf]
    %v6386 = vld [vmem:[#allocation5 + $0x38] sm:$0xff]
    %v6387 = vld [vmem:[#allocation5 + $0x40] sm:$0xff]
    %v6388 = vld [vmem:[#allocation5 + $0x48] sm:$0xff]
    %v6389 = vld [vmem:[#allocation5 + $0x50] sm:$0xf]
    %v6390 = vld [vmem:[#allocation5 + $0x54] sm:$0xff]
    %v6391 = vld [vmem:[#allocation5 + $0x5c] sm:$0xff]
    %v6392 = vld [vmem:[#allocation5 + $0x64] sm:$0xff]
    %v6393 = vld [vmem:[#allocation5 + $0x6c] sm:$0xf]
    %v6394 = vld [vmem:[#allocation5 + $0x70] sm:$0xff]
    %v6395 = vld [vmem:[#allocation5 + $0x78] sm:$0xff]
    %v6396 = vld [vmem:[#allocation5 + $0x80] sm:$0xff]
    %v6397 = vld [vmem:[#allocation5 + $0x88] sm:$0xf]
    %v6398 = vld [vmem:[#allocation5 + $0x8c] sm:$0xff]
    %v6399 = vld [vmem:[#allocation5 + $0x94] sm:$0xff]
    %v6400 = vld [vmem:[#allocation5 + $0x9c] sm:$0xff]
    %v6401 = vld [vmem:[#allocation5 + $0xa4] sm:$0xf]
    %v6402 = vld [vmem:[#allocation5 + $0xa8] sm:$0xff]
    %v6403 = vld [vmem:[#allocation5 + $0xb0] sm:$0xff]
    %v6404 = vld [vmem:[#allocation5 + $0xb8] sm:$0xff]
    %v6405 = vld [vmem:[#allocation5 + $0xc0] sm:$0xf]
    %v6406 = vld [vmem:[#allocation5 + $0xc4] sm:$0xff]
    %v6407 = vld [vmem:[#allocation5 + $0xcc] sm:$0xff]
    %v6408 = vld [vmem:[#allocation5 + $0xd4] sm:$0xff]
    %v6409 = vld [vmem:[#allocation5 + $0xdc] sm:$0xf]
    %v6410 = vld [vmem:[#allocation5 + $0xe0] sm:$0xff]
    %v6411 = vld [vmem:[#allocation5 + $0xe8] sm:$0xff]
    %v6412 = vld [vmem:[#allocation5 + $0xf0] sm:$0xff]
    %v6413 = vld [vmem:[#allocation5 + $0xf8] sm:$0xf]
    %v6414 = vld [vmem:[#allocation5 + $0xfc] sm:$0xff]
    %v6415 = vld [vmem:[#allocation5 + $0x104] sm:$0xff]
    %v6416 = vld [vmem:[#allocation5 + $0x10c] sm:$0xff]
    %v6417 = vld [vmem:[#allocation5 + $0x114] sm:$0xf]
    %v6418 = vld [vmem:[#allocation5 + $0x118] sm:$0xff]
    %v6419 = vld [vmem:[#allocation5 + $0x120] sm:$0xff]
    %v6420 = vld [vmem:[#allocation5 + $0x128] sm:$0xff]
    %v6421 = vld [vmem:[#allocation5 + $0x130] sm:$0xf]
    %v6422 = vld [vmem:[#allocation5 + $0x134] sm:$0xff]
    %v6423 = vld [vmem:[#allocation5 + $0x13c] sm:$0xff]
    %v6424 = vld [vmem:[#allocation5 + $0x144] sm:$0xff]
    %v6425 = vld [vmem:[#allocation5 + $0x14c] sm:$0xf]
    %v6426 = vld [vmem:[#allocation5 + $0x150] sm:$0xff]
    %v6427 = vld [vmem:[#allocation5 + $0x158] sm:$0xff]
    %v6428 = vld [vmem:[#allocation5 + $0x160] sm:$0xff]
    %v6429 = vld [vmem:[#allocation5 + $0x168] sm:$0xf]
    %v6430 = vld [vmem:[#allocation5 + $0x16c] sm:$0xff]
    %v6431 = vld [vmem:[#allocation5 + $0x174] sm:$0xff]
    %v6432 = vld [vmem:[#allocation5 + $0x17c] sm:$0xff]
    %v6433 = vld [vmem:[#allocation5 + $0x184] sm:$0xf]
    %v6434 = vld [vmem:[#allocation5 + $0x188] sm:$0xff]
    %v6435 = vld [vmem:[#allocation5 + $0x190] sm:$0xff]
    %v6436 = vld [vmem:[#allocation5 + $0x198] sm:$0xff]
    %v6437 = vld [vmem:[#allocation5 + $0x1a0] sm:$0xf]
    %v6438 = vld [vmem:[#allocation5 + $0x1a4] sm:$0xff]
    %v6439 = vld [vmem:[#allocation5 + $0x1ac] sm:$0xff]
    %v6440 = vld [vmem:[#allocation5 + $0x1b4] sm:$0xff]
    %v6441 = vld [vmem:[#allocation5 + $0x1bc] sm:$0xf]
    %v6442 = vld [vmem:[#allocation5 + $0x1c0] sm:$0xff]
    %v6443 = vld [vmem:[#allocation5 + $0x1c8] sm:$0xff]
    %v6444 = vld [vmem:[#allocation5 + $0x1d0] sm:$0xff]
    %v6445 = vld [vmem:[#allocation5 + $0x1d8] sm:$0xf]
    %v6446 = vld [vmem:[#allocation5 + $0x1dc] sm:$0xff]
    %v6447 = vld [vmem:[#allocation5 + $0x1e4] sm:$0xff]
    %v6448 = vld [vmem:[#allocation5 + $0x1ec] sm:$0xff]
    %v6449 = vld [vmem:[#allocation5 + $0x1f4] sm:$0xf]
    %v6450 = vld [vmem:[#allocation5 + $0x1f8] sm:$0xff]
    %v6451 = vld [vmem:[#allocation5 + $0x200] sm:$0xff]
    %v6452 = vld [vmem:[#allocation5 + $0x208] sm:$0xff]
    %v6453 = vld [vmem:[#allocation5 + $0x210] sm:$0xf]
    %v6454 = vld [vmem:[#allocation5 + $0x214] sm:$0xff]
    %v6455 = vld [vmem:[#allocation5 + $0x21c] sm:$0xff]
    %v6456 = vld [vmem:[#allocation5 + $0x224] sm:$0xff]
    %v6457 = vld [vmem:[#allocation5 + $0x22c] sm:$0xf]
    %v6458 = vld [vmem:[#allocation5 + $0x230] sm:$0xff]
    %v6459 = vld [vmem:[#allocation5 + $0x238] sm:$0xff]
    %v6460 = vld [vmem:[#allocation5 + $0x240] sm:$0xff]
    %v6461 = vld [vmem:[#allocation5 + $0x248] sm:$0xf]
    %v6462 = vld [vmem:[#allocation5 + $0x24c] sm:$0xff]
    %v6463 = vld [vmem:[#allocation5 + $0x254] sm:$0xff]
    %v6464 = vld [vmem:[#allocation5 + $0x25c] sm:$0xff]
    %v6465 = vld [vmem:[#allocation5 + $0x264] sm:$0xf]
    %v6466 = vld [vmem:[#allocation5 + $0x268] sm:$0xff]
    %v6467 = vld [vmem:[#allocation5 + $0x270] sm:$0xff]
    %v6468 = vld [vmem:[#allocation5 + $0x278] sm:$0xff]
    %v6469 = vld [vmem:[#allocation5 + $0x280] sm:$0xf]
    %v6470 = vld [vmem:[#allocation5 + $0x284] sm:$0xff]
    %v6471 = vld [vmem:[#allocation5 + $0x28c] sm:$0xff]
    %v6472 = vld [vmem:[#allocation5 + $0x294] sm:$0xff]
    %v6473 = vld [vmem:[#allocation5 + $0x29c] sm:$0xf]
    %v6474 = vld [vmem:[#allocation5 + $0x2a0] sm:$0xff]
    %v6475 = vld [vmem:[#allocation5 + $0x2a8] sm:$0xff]
    %v6476 = vld [vmem:[#allocation5 + $0x2b0] sm:$0xff]
    %v6477 = vld [vmem:[#allocation5 + $0x2b8] sm:$0xf]
    %v6478 = vld [vmem:[#allocation5 + $0x2bc] sm:$0xff]
    %v6479 = vld [vmem:[#allocation5 + $0x2c4] sm:$0xff]
    %v6480 = vld [vmem:[#allocation5 + $0x2cc] sm:$0xff]
    %v6481 = vld [vmem:[#allocation5 + $0x2d4] sm:$0xf]
    %v6482 = vld [vmem:[#allocation5 + $0x2d8] sm:$0xff]
    %v6483 = vld [vmem:[#allocation5 + $0x2e0] sm:$0xff]
    %v6484 = vld [vmem:[#allocation5 + $0x2e8] sm:$0xff]
    %v6485 = vld [vmem:[#allocation5 + $0x2f0] sm:$0xf]
    %v6486 = vld [vmem:[#allocation5 + $0x2f4] sm:$0xff]
    %v6487 = vld [vmem:[#allocation5 + $0x2fc] sm:$0xff]
    %v6488 = vld [vmem:[#allocation5 + $0x304] sm:$0xff]
    %v6489 = vld [vmem:[#allocation5 + $0x30c] sm:$0xf]
    %v6490 = vld [vmem:[#allocation5 + $0x310] sm:$0xff]
    %v6491 = vld [vmem:[#allocation5 + $0x318] sm:$0xff]
    %v6492 = vld [vmem:[#allocation5 + $0x320] sm:$0xff]
    %v6493 = vld [vmem:[#allocation5 + $0x328] sm:$0xf]
    %v6494 = vld [vmem:[#allocation5 + $0x32c] sm:$0xff]
    %v6495 = vld [vmem:[#allocation5 + $0x334] sm:$0xff]
    %v6496 = vld [vmem:[#allocation5 + $0x33c] sm:$0xff]
    %v6497 = vld [vmem:[#allocation5 + $0x344] sm:$0xf]
    %v6498 = vld [vmem:[#allocation5 + $0x348] sm:$0xff]
    %v6499 = vld [vmem:[#allocation5 + $0x350] sm:$0xff]
    %v6500 = vld [vmem:[#allocation5 + $0x358] sm:$0xff]
    %v6501 = vld [vmem:[#allocation5 + $0x360] sm:$0xf]
    %v6502 = vld [vmem:[#allocation5 + $0x364] sm:$0xff]
    %v6503 = vld [vmem:[#allocation5 + $0x36c] sm:$0xff]
    %v6504 = vld [vmem:[#allocation5 + $0x374] sm:$0xff]
    %v6505 = vld [vmem:[#allocation5 + $0x37c] sm:$0xf]
    %v6506 = vld [vmem:[#allocation5 + $0x380] sm:$0xff]
    %v6507 = vld [vmem:[#allocation5 + $0x388] sm:$0xff]
    %v6508 = vld [vmem:[#allocation5 + $0x390] sm:$0xff]
    %v6509 = vld [vmem:[#allocation5 + $0x398] sm:$0xf]
    %v6510 = vld [vmem:[#allocation5 + $0x39c] sm:$0xff]
    %v6511 = vld [vmem:[#allocation5 + $0x3a4] sm:$0xff]
    %v6512 = vld [vmem:[#allocation5 + $0x3ac] sm:$0xff]
    %v6513 = vld [vmem:[#allocation5 + $0x3b4] sm:$0xf]
    %v6514 = vld [vmem:[#allocation5 + $0x3b8] sm:$0xff]
    %v6515 = vld [vmem:[#allocation5 + $0x3c0] sm:$0xff]
    %v6516 = vld [vmem:[#allocation5 + $0x3c8] sm:$0xff]
    %v6517 = vld [vmem:[#allocation5 + $0x3d0] sm:$0xf]
    %v6518 = vld [vmem:[#allocation5 + $0x3d4] sm:$0xff]
    %v6519 = vld [vmem:[#allocation5 + $0x3dc] sm:$0xff]
    %v6520 = vld [vmem:[#allocation5 + $0x3e4] sm:$0xff]
    %v6521 = vld [vmem:[#allocation5 + $0x3ec] sm:$0xf]
    %v6522 = vld [vmem:[#allocation5 + $0x3f0] sm:$0xff]
    %v6523 = vld [vmem:[#allocation5 + $0x3f8] sm:$0xff]
    %v6524 = vld [vmem:[#allocation5 + $0x400] sm:$0xff]
    %v6525 = vld [vmem:[#allocation5 + $0x408] sm:$0xf]
    %v6526 = vld [vmem:[#allocation5 + $0x40c] sm:$0xff]
    %v6527 = vld [vmem:[#allocation5 + $0x414] sm:$0xff]
    %v6528 = vld [vmem:[#allocation5 + $0x41c] sm:$0xff]
    %v6529 = vld [vmem:[#allocation5 + $0x424] sm:$0xf]
    %v6530 = vld [vmem:[#allocation5 + $0x428] sm:$0xff]
    %v6531 = vld [vmem:[#allocation5 + $0x430] sm:$0xff]
    %v6532 = vld [vmem:[#allocation5 + $0x438] sm:$0xff]
    %v6533 = vld [vmem:[#allocation5 + $0x440] sm:$0xf]
    %v6534 = vld [vmem:[#allocation5 + $0x444] sm:$0xff]
    %v6535 = vld [vmem:[#allocation5 + $0x44c] sm:$0xff]
    %v6536 = vld [vmem:[#allocation5 + $0x454] sm:$0xff]
    %v6537 = vld [vmem:[#allocation5 + $0x45c] sm:$0xf]
    %v6538 = vld [vmem:[#allocation5 + $0x460] sm:$0xff]
    %v6539 = vld [vmem:[#allocation5 + $0x468] sm:$0xff]
    %v6540 = vld [vmem:[#allocation5 + $0x470] sm:$0xff]
    %v6541 = vld [vmem:[#allocation5 + $0x478] sm:$0xf]
    %v6542 = vld [vmem:[#allocation5 + $0x47c] sm:$0xff]
    %v6543 = vld [vmem:[#allocation5 + $0x484] sm:$0xff]
    %v6544 = vld [vmem:[#allocation5 + $0x48c] sm:$0xff]
    %v6545 = vld [vmem:[#allocation5 + $0x494] sm:$0xf]
    %v6546 = vld [vmem:[#allocation5 + $0x498] sm:$0xff]
    %v6547 = vld [vmem:[#allocation5 + $0x4a0] sm:$0xff]
    %v6548 = vld [vmem:[#allocation5 + $0x4a8] sm:$0xff]
    %v6549 = vld [vmem:[#allocation5 + $0x4b0] sm:$0xf]
    %v6550 = vld [vmem:[#allocation5 + $0x4b4] sm:$0xff]
    %v6551 = vld [vmem:[#allocation5 + $0x4bc] sm:$0xff]
    %v6552 = vld [vmem:[#allocation5 + $0x4c4] sm:$0xff]
    %v6553 = vld [vmem:[#allocation5 + $0x4cc] sm:$0xf]
    %v6554 = vld [vmem:[#allocation5 + $0x4d0] sm:$0xff]
    %v6555 = vld [vmem:[#allocation5 + $0x4d8] sm:$0xff]
    %v6556 = vld [vmem:[#allocation5 + $0x4e0] sm:$0xff]
    %v6557 = vld [vmem:[#allocation5 + $0x4e8] sm:$0xf]
    %v6558 = vld [vmem:[#allocation5 + $0x4ec] sm:$0xff]
    %v6559 = vld [vmem:[#allocation5 + $0x4f4] sm:$0xff]
    %v6560 = vld [vmem:[#allocation5 + $0x4fc] sm:$0xff]
    %v6561 = vld [vmem:[#allocation5 + $0x504] sm:$0xf]
    %v6562 = vld [vmem:[#allocation5 + $0x508] sm:$0xff]
    %v6563 = vld [vmem:[#allocation5 + $0x510] sm:$0xff]
    %v6564 = vld [vmem:[#allocation5 + $0x518] sm:$0xff]
    %v6565 = vld [vmem:[#allocation5 + $0x520] sm:$0xf]
    %v6566 = vld [vmem:[#allocation5 + $0x524] sm:$0xff]
    %v6567 = vld [vmem:[#allocation5 + $0x52c] sm:$0xff]
    %v6568 = vld [vmem:[#allocation5 + $0x534] sm:$0xff]
    %v6569 = vld [vmem:[#allocation5 + $0x53c] sm:$0xf]
    %v6570 = vpack.c.bf16 %v6372, %v6372
    %v6571 = vpack.c.bf16 %v6373, %v6373
    %v6572 = vpack.c.bf16 %v6374, %v6374
    %v6573 = vld [vmem:[#allocation7 + $0x1d] sm:$0xff]
    %v6575 = vperm.slane %v6573, 0
    %v6576 = vperm.slane %v6573, 1
    %v6577 = vperm.slane %v6573, 2
    %v6578 = vperm.slane %v6573, 3
    %v6579 = vperm.slane %v6573, 4
    %v6580 = vperm.slane %v6573, 5
    %v6581 = vperm.slane %v6573, 6
    %v6781 = vunpack.c.l.b16 %v6378
    %v6782 = vunpack.c.h.b16 %v6378
    %v6783 = vunpack.c.l.b16 %v6379
    %v6784 = vunpack.c.h.b16 %v6379
    %v6785 = vunpack.c.l.b16 %v6380
    %v6786 = vunpack.c.h.b16 %v6380
    %v6787 = vunpack.c.l.b16 %v6381
    %v6788 = vunpack.c.l.b16 %v6382
    %v6789 = vunpack.c.h.b16 %v6382
    %v6790 = vunpack.c.l.b16 %v6383
    %v6791 = vunpack.c.h.b16 %v6383
    %v6792 = vunpack.c.l.b16 %v6384
    %v6793 = vunpack.c.h.b16 %v6384
    %v6794 = vunpack.c.l.b16 %v6385
    %v6795 = vunpack.c.l.b16 %v6386
    %v6796 = vunpack.c.h.b16 %v6386
    %v6797 = vunpack.c.l.b16 %v6387
    %v6798 = vunpack.c.h.b16 %v6387
    %v6799 = vunpack.c.l.b16 %v6388
    %v6800 = vunpack.c.h.b16 %v6388
    %v6801 = vunpack.c.l.b16 %v6389
    %v6802 = vunpack.c.l.b16 %v6390
    %v6803 = vunpack.c.h.b16 %v6390
    %v6804 = vunpack.c.l.b16 %v6391
    %v6805 = vunpack.c.h.b16 %v6391
    %v6806 = vunpack.c.l.b16 %v6392
    %v6807 = vunpack.c.h.b16 %v6392
    %v6808 = vunpack.c.l.b16 %v6393
    %v6809 = vunpack.c.l.b16 %v6394
    %v6810 = vunpack.c.h.b16 %v6394
    %v6811 = vunpack.c.l.b16 %v6395
    %v6812 = vunpack.c.h.b16 %v6395
    %v6813 = vunpack.c.l.b16 %v6396
    %v6814 = vunpack.c.h.b16 %v6396
    %v6815 = vunpack.c.l.b16 %v6397
    %v6816 = vunpack.c.l.b16 %v6398
    %v6817 = vunpack.c.h.b16 %v6398
    %v6818 = vunpack.c.l.b16 %v6399
    %v6819 = vunpack.c.h.b16 %v6399
    %v6820 = vunpack.c.l.b16 %v6400
    %v6821 = vunpack.c.h.b16 %v6400
    %v6822 = vunpack.c.l.b16 %v6401
    %v6823 = vunpack.c.l.b16 %v6402
    %v6824 = vunpack.c.h.b16 %v6402
    %v6825 = vunpack.c.l.b16 %v6403
    %v6826 = vunpack.c.h.b16 %v6403
    %v6827 = vunpack.c.l.b16 %v6404
    %v6828 = vunpack.c.h.b16 %v6404
    %v6829 = vunpack.c.l.b16 %v6405
    %v6830 = vunpack.c.l.b16 %v6406
    %v6831 = vunpack.c.h.b16 %v6406
    %v6832 = vunpack.c.l.b16 %v6407
    %v6833 = vunpack.c.h.b16 %v6407
    %v6834 = vunpack.c.l.b16 %v6408
    %v6835 = vunpack.c.h.b16 %v6408
    %v6836 = vunpack.c.l.b16 %v6409
    %v6837 = vunpack.c.l.b16 %v6410
    %v6838 = vunpack.c.h.b16 %v6410
    %v6839 = vunpack.c.l.b16 %v6411
    %v6840 = vunpack.c.h.b16 %v6411
    %v6841 = vunpack.c.l.b16 %v6412
    %v6842 = vunpack.c.h.b16 %v6412
    %v6843 = vunpack.c.l.b16 %v6413
    %v6844 = vunpack.c.l.b16 %v6414
    %v6845 = vunpack.c.h.b16 %v6414
    %v6846 = vunpack.c.l.b16 %v6415
    %v6847 = vunpack.c.h.b16 %v6415
    %v6848 = vunpack.c.l.b16 %v6416
    %v6849 = vunpack.c.h.b16 %v6416
    %v6850 = vunpack.c.l.b16 %v6417
    %v6851 = vunpack.c.l.b16 %v6418
    %v6852 = vunpack.c.h.b16 %v6418
    %v6853 = vunpack.c.l.b16 %v6419
    %v6854 = vunpack.c.h.b16 %v6419
    %v6855 = vunpack.c.l.b16 %v6420
    %v6856 = vunpack.c.h.b16 %v6420
    %v6857 = vunpack.c.l.b16 %v6421
    %v6858 = vunpack.c.l.b16 %v6422
    %v6859 = vunpack.c.h.b16 %v6422
    %v6860 = vunpack.c.l.b16 %v6423
    %v6861 = vunpack.c.h.b16 %v6423
    %v6862 = vunpack.c.l.b16 %v6424
    %v6863 = vunpack.c.h.b16 %v6424
    %v6864 = vunpack.c.l.b16 %v6425
    %v6865 = vunpack.c.l.b16 %v6426
    %v6866 = vunpack.c.h.b16 %v6426
    %v6867 = vunpack.c.l.b16 %v6427
    %v6868 = vunpack.c.h.b16 %v6427
    %v6869 = vunpack.c.l.b16 %v6428
    %v6870 = vunpack.c.h.b16 %v6428
    %v6871 = vunpack.c.l.b16 %v6429
    %v6872 = vunpack.c.l.b16 %v6430
    %v6873 = vunpack.c.h.b16 %v6430
    %v6874 = vunpack.c.l.b16 %v6431
    %v6875 = vunpack.c.h.b16 %v6431
    %v6876 = vunpack.c.l.b16 %v6432
    %v6877 = vunpack.c.h.b16 %v6432
    %v6878 = vunpack.c.l.b16 %v6433
    %v6879 = vunpack.c.l.b16 %v6434
    %v6880 = vunpack.c.h.b16 %v6434
    %v6881 = vunpack.c.l.b16 %v6435
    %v6882 = vunpack.c.h.b16 %v6435
    %v6883 = vunpack.c.l.b16 %v6436
    %v6884 = vunpack.c.h.b16 %v6436
    %v6885 = vunpack.c.l.b16 %v6437
    %v6886 = vunpack.c.l.b16 %v6438
    %v6887 = vunpack.c.h.b16 %v6438
    %v6888 = vunpack.c.l.b16 %v6439
    %v6889 = vunpack.c.h.b16 %v6439
    %v6890 = vunpack.c.l.b16 %v6440
    %v6891 = vunpack.c.h.b16 %v6440
    %v6892 = vunpack.c.l.b16 %v6441
    %v6893 = vunpack.c.l.b16 %v6442
    %v6894 = vunpack.c.h.b16 %v6442
    %v6895 = vunpack.c.l.b16 %v6443
    %v6896 = vunpack.c.h.b16 %v6443
    %v6897 = vunpack.c.l.b16 %v6444
    %v6898 = vunpack.c.h.b16 %v6444
    %v6899 = vunpack.c.l.b16 %v6445
    %v6900 = vunpack.c.l.b16 %v6446
    %v6901 = vunpack.c.h.b16 %v6446
    %v6902 = vunpack.c.l.b16 %v6447
    %v6903 = vunpack.c.h.b16 %v6447
    %v6904 = vunpack.c.l.b16 %v6448
    %v6905 = vunpack.c.h.b16 %v6448
    %v6906 = vunpack.c.l.b16 %v6449
    %v6907 = vunpack.c.l.b16 %v6450
    %v6908 = vunpack.c.h.b16 %v6450
    %v6909 = vunpack.c.l.b16 %v6451
    %v6910 = vunpack.c.h.b16 %v6451
    %v6911 = vunpack.c.l.b16 %v6452
    %v6912 = vunpack.c.h.b16 %v6452
    %v6913 = vunpack.c.l.b16 %v6453
    %v6914 = vunpack.c.l.b16 %v6454
    %v6915 = vunpack.c.h.b16 %v6454
    %v6916 = vunpack.c.l.b16 %v6455
    %v6917 = vunpack.c.h.b16 %v6455
    %v6918 = vunpack.c.l.b16 %v6456
    %v6919 = vunpack.c.h.b16 %v6456
    %v6920 = vunpack.c.l.b16 %v6457
    %v6921 = vunpack.c.l.b16 %v6458
    %v6922 = vunpack.c.h.b16 %v6458
    %v6923 = vunpack.c.l.b16 %v6459
    %v6924 = vunpack.c.h.b16 %v6459
    %v6925 = vunpack.c.l.b16 %v6460
    %v6926 = vunpack.c.h.b16 %v6460
    %v6927 = vunpack.c.l.b16 %v6461
    %v6928 = vunpack.c.l.b16 %v6462
    %v6929 = vunpack.c.h.b16 %v6462
    %v6930 = vunpack.c.l.b16 %v6463
    %v6931 = vunpack.c.h.b16 %v6463
    %v6932 = vunpack.c.l.b16 %v6464
    %v6933 = vunpack.c.h.b16 %v6464
    %v6934 = vunpack.c.l.b16 %v6465
    %v6935 = vunpack.c.l.b16 %v6466
    %v6936 = vunpack.c.h.b16 %v6466
    %v6937 = vunpack.c.l.b16 %v6467
    %v6938 = vunpack.c.h.b16 %v6467
    %v6939 = vunpack.c.l.b16 %v6468
    %v6940 = vunpack.c.h.b16 %v6468
    %v6941 = vunpack.c.l.b16 %v6469
    %v6942 = vunpack.c.l.b16 %v6470
    %v6943 = vunpack.c.h.b16 %v6470
    %v6944 = vunpack.c.l.b16 %v6471
    %v6945 = vunpack.c.h.b16 %v6471
    %v6946 = vunpack.c.l.b16 %v6472
    %v6947 = vunpack.c.h.b16 %v6472
    %v6948 = vunpack.c.l.b16 %v6473
    %v6949 = vunpack.c.l.b16 %v6474
    %v6950 = vunpack.c.h.b16 %v6474
    %v6951 = vunpack.c.l.b16 %v6475
    %v6952 = vunpack.c.h.b16 %v6475
    %v6953 = vunpack.c.l.b16 %v6476
    %v6954 = vunpack.c.h.b16 %v6476
    %v6955 = vunpack.c.l.b16 %v6477
    %v6956 = vunpack.c.l.b16 %v6478
    %v6957 = vunpack.c.h.b16 %v6478
    %v6958 = vunpack.c.l.b16 %v6479
    %v6959 = vunpack.c.h.b16 %v6479
    %v6960 = vunpack.c.l.b16 %v6480
    %v6961 = vunpack.c.h.b16 %v6480
    %v6962 = vunpack.c.l.b16 %v6481
    %v6963 = vunpack.c.l.b16 %v6482
    %v6964 = vunpack.c.h.b16 %v6482
    %v6965 = vunpack.c.l.b16 %v6483
    %v6966 = vunpack.c.h.b16 %v6483
    %v6967 = vunpack.c.l.b16 %v6484
    %v6968 = vunpack.c.h.b16 %v6484
    %v6969 = vunpack.c.l.b16 %v6485
    %v6970 = vunpack.c.l.b16 %v6486
    %v6971 = vunpack.c.h.b16 %v6486
    %v6972 = vunpack.c.l.b16 %v6487
    %v6973 = vunpack.c.h.b16 %v6487
    %v6974 = vunpack.c.l.b16 %v6488
    %v6975 = vunpack.c.h.b16 %v6488
    %v6976 = vunpack.c.l.b16 %v6489
    %v6977 = vunpack.c.l.b16 %v6490
    %v6978 = vunpack.c.h.b16 %v6490
    %v6979 = vunpack.c.l.b16 %v6491
    %v6980 = vunpack.c.h.b16 %v6491
    %v6981 = vunpack.c.l.b16 %v6492
    %v6982 = vunpack.c.h.b16 %v6492
    %v6983 = vunpack.c.l.b16 %v6493
    %v6984 = vunpack.c.l.b16 %v6494
    %v6985 = vunpack.c.h.b16 %v6494
    %v6986 = vunpack.c.l.b16 %v6495
    %v6987 = vunpack.c.h.b16 %v6495
    %v6988 = vunpack.c.l.b16 %v6496
    %v6989 = vunpack.c.h.b16 %v6496
    %v6990 = vunpack.c.l.b16 %v6497
    %v6991 = vunpack.c.l.b16 %v6498
    %v6992 = vunpack.c.h.b16 %v6498
    %v6993 = vunpack.c.l.b16 %v6499
    %v6994 = vunpack.c.h.b16 %v6499
    %v6995 = vunpack.c.l.b16 %v6500
    %v6996 = vunpack.c.h.b16 %v6500
    %v6997 = vunpack.c.l.b16 %v6501
    %v6998 = vunpack.c.l.b16 %v6502
    %v6999 = vunpack.c.h.b16 %v6502
    %v7000 = vunpack.c.l.b16 %v6503
    %v7001 = vunpack.c.h.b16 %v6503
    %v7002 = vunpack.c.l.b16 %v6504
    %v7003 = vunpack.c.h.b16 %v6504
    %v7004 = vunpack.c.l.b16 %v6505
    %v7005 = vunpack.c.l.b16 %v6506
    %v7006 = vunpack.c.h.b16 %v6506
    %v7007 = vunpack.c.l.b16 %v6507
    %v7008 = vunpack.c.h.b16 %v6507
    %v7009 = vunpack.c.l.b16 %v6508
    %v7010 = vunpack.c.h.b16 %v6508
    %v7011 = vunpack.c.l.b16 %v6509
    %v7012 = vunpack.c.l.b16 %v6510
    %v7013 = vunpack.c.h.b16 %v6510
    %v7014 = vunpack.c.l.b16 %v6511
    %v7015 = vunpack.c.h.b16 %v6511
    %v7016 = vunpack.c.l.b16 %v6512
    %v7017 = vunpack.c.h.b16 %v6512
    %v7018 = vunpack.c.l.b16 %v6513
    %v7019 = vunpack.c.l.b16 %v6514
    %v7020 = vunpack.c.h.b16 %v6514
    %v7021 = vunpack.c.l.b16 %v6515
    %v7022 = vunpack.c.h.b16 %v6515
    %v7023 = vunpack.c.l.b16 %v6516
    %v7024 = vunpack.c.h.b16 %v6516
    %v7025 = vunpack.c.l.b16 %v6517
    %v7026 = vunpack.c.l.b16 %v6518
    %v7027 = vunpack.c.h.b16 %v6518
    %v7028 = vunpack.c.l.b16 %v6519
    %v7029 = vunpack.c.h.b16 %v6519
    %v7030 = vunpack.c.l.b16 %v6520
    %v7031 = vunpack.c.h.b16 %v6520
    %v7032 = vunpack.c.l.b16 %v6521
    %v7033 = vunpack.c.l.b16 %v6522
    %v7034 = vunpack.c.h.b16 %v6522
    %v7035 = vunpack.c.l.b16 %v6523
    %v7036 = vunpack.c.h.b16 %v6523
    %v7037 = vunpack.c.l.b16 %v6524
    %v7038 = vunpack.c.h.b16 %v6524
    %v7039 = vunpack.c.l.b16 %v6525
    %v7040 = vunpack.c.l.b16 %v6526
    %v7041 = vunpack.c.h.b16 %v6526
    %v7042 = vunpack.c.l.b16 %v6527
    %v7043 = vunpack.c.h.b16 %v6527
    %v7044 = vunpack.c.l.b16 %v6528
    %v7045 = vunpack.c.h.b16 %v6528
    %v7046 = vunpack.c.l.b16 %v6529
    %v7047 = vunpack.c.l.b16 %v6530
    %v7048 = vunpack.c.h.b16 %v6530
    %v7049 = vunpack.c.l.b16 %v6531
    %v7050 = vunpack.c.h.b16 %v6531
    %v7051 = vunpack.c.l.b16 %v6532
    %v7052 = vunpack.c.h.b16 %v6532
    %v7053 = vunpack.c.l.b16 %v6533
    %v7054 = vunpack.c.l.b16 %v6534
    %v7055 = vunpack.c.h.b16 %v6534
    %v7056 = vunpack.c.l.b16 %v6535
    %v7057 = vunpack.c.h.b16 %v6535
    %v7058 = vunpack.c.l.b16 %v6536
    %v7059 = vunpack.c.h.b16 %v6536
    %v7060 = vunpack.c.l.b16 %v6537
    %v7061 = vunpack.c.l.b16 %v6538
    %v7062 = vunpack.c.h.b16 %v6538
    %v7063 = vunpack.c.l.b16 %v6539
    %v7064 = vunpack.c.h.b16 %v6539
    %v7065 = vunpack.c.l.b16 %v6540
    %v7066 = vunpack.c.h.b16 %v6540
    %v7067 = vunpack.c.l.b16 %v6541
    %v7068 = vunpack.c.l.b16 %v6542
    %v7069 = vunpack.c.h.b16 %v6542
    %v7070 = vunpack.c.l.b16 %v6543
    %v7071 = vunpack.c.h.b16 %v6543
    %v7072 = vunpack.c.l.b16 %v6544
    %v7073 = vunpack.c.h.b16 %v6544
    %v7074 = vunpack.c.l.b16 %v6545
    %v7075 = vunpack.c.l.b16 %v6546
    %v7076 = vunpack.c.h.b16 %v6546
    %v7077 = vunpack.c.l.b16 %v6547
    %v7078 = vunpack.c.h.b16 %v6547
    %v7079 = vunpack.c.l.b16 %v6548
    %v7080 = vunpack.c.h.b16 %v6548
    %v7081 = vunpack.c.l.b16 %v6549
    %v7082 = vunpack.c.l.b16 %v6550
    %v7083 = vunpack.c.h.b16 %v6550
    %v7084 = vunpack.c.l.b16 %v6551
    %v7085 = vunpack.c.h.b16 %v6551
    %v7086 = vunpack.c.l.b16 %v6552
    %v7087 = vunpack.c.h.b16 %v6552
    %v7088 = vunpack.c.l.b16 %v6553
    %v7089 = vunpack.c.l.b16 %v6554
    %v7090 = vunpack.c.h.b16 %v6554
    %v7091 = vunpack.c.l.b16 %v6555
    %v7092 = vunpack.c.h.b16 %v6555
    %v7093 = vunpack.c.l.b16 %v6556
    %v7094 = vunpack.c.h.b16 %v6556
    %v7095 = vunpack.c.l.b16 %v6557
    %v7096 = vunpack.c.l.b16 %v6558
    %v7097 = vunpack.c.h.b16 %v6558
    %v7098 = vunpack.c.l.b16 %v6559
    %v7099 = vunpack.c.h.b16 %v6559
    %v7100 = vunpack.c.l.b16 %v6560
    %v7101 = vunpack.c.h.b16 %v6560
    %v7102 = vunpack.c.l.b16 %v6561
    %v7103 = vunpack.c.l.b16 %v6562
    %v7104 = vunpack.c.h.b16 %v6562
    %v7105 = vunpack.c.l.b16 %v6563
    %v7106 = vunpack.c.h.b16 %v6563
    %v7107 = vunpack.c.l.b16 %v6564
    %v7108 = vunpack.c.h.b16 %v6564
    %v7109 = vunpack.c.l.b16 %v6565
    %v7110 = vunpack.c.l.b16 %v6566
    %v7111 = vunpack.c.h.b16 %v6566
    %v7112 = vunpack.c.l.b16 %v6567
    %v7113 = vunpack.c.h.b16 %v6567
    %v7114 = vunpack.c.l.b16 %v6568
    %v7115 = vunpack.c.h.b16 %v6568
    %v7116 = vunpack.c.l.b16 %v6569
    %v7117 = vpack.c.b16 %v6788, %v6781
    %v7118 = vpack.c.b16 %v6789, %v6782
    %v7119 = vpack.c.b16 %v6790, %v6783
    %v7120 = vpack.c.b16 %v6791, %v6784
    %v7121 = vpack.c.b16 %v6792, %v6785
    %v7122 = vpack.c.b16 %v6793, %v6786
    %v7123 = vpack.c.b16 %v6794, %v6787
    %v7124 = vpack.c.b16 %v6802, %v6795
    %v7125 = vpack.c.b16 %v6803, %v6796
    %v7126 = vpack.c.b16 %v6804, %v6797
    %v7127 = vpack.c.b16 %v6805, %v6798
    %v7128 = vpack.c.b16 %v6806, %v6799
    %v7129 = vpack.c.b16 %v6807, %v6800
    %v7130 = vpack.c.b16 %v6808, %v6801
    %v7131 = vpack.c.b16 %v6816, %v6809
    %v7132 = vpack.c.b16 %v6817, %v6810
    %v7133 = vpack.c.b16 %v6818, %v6811
    %v7134 = vpack.c.b16 %v6819, %v6812
    %v7135 = vpack.c.b16 %v6820, %v6813
    %v7136 = vpack.c.b16 %v6821, %v6814
    %v7137 = vpack.c.b16 %v6822, %v6815
    %v7138 = vpack.c.b16 %v6830, %v6823
    %v7139 = vpack.c.b16 %v6831, %v6824
    %v7140 = vpack.c.b16 %v6832, %v6825
    %v7141 = vpack.c.b16 %v6833, %v6826
    %v7142 = vpack.c.b16 %v6834, %v6827
    %v7143 = vpack.c.b16 %v6835, %v6828
    %v7144 = vpack.c.b16 %v6836, %v6829
    %v7145 = vpack.c.b16 %v6844, %v6837
    %v7146 = vpack.c.b16 %v6845, %v6838
    %v7147 = vpack.c.b16 %v6846, %v6839
    %v7148 = vpack.c.b16 %v6847, %v6840
    %v7149 = vpack.c.b16 %v6848, %v6841
    %v7150 = vpack.c.b16 %v6849, %v6842
    %v7151 = vpack.c.b16 %v6850, %v6843
    %v7152 = vpack.c.b16 %v6858, %v6851
    %v7153 = vpack.c.b16 %v6859, %v6852
    %v7154 = vpack.c.b16 %v6860, %v6853
    %v7155 = vpack.c.b16 %v6861, %v6854
    %v7156 = vpack.c.b16 %v6862, %v6855
    %v7157 = vpack.c.b16 %v6863, %v6856
    %v7158 = vpack.c.b16 %v6864, %v6857
    %v7159 = vpack.c.b16 %v6872, %v6865
    %v7160 = vpack.c.b16 %v6873, %v6866
    %v7161 = vpack.c.b16 %v6874, %v6867
    %v7162 = vpack.c.b16 %v6875, %v6868
    %v7163 = vpack.c.b16 %v6876, %v6869
    %v7164 = vpack.c.b16 %v6877, %v6870
    %v7165 = vpack.c.b16 %v6878, %v6871
    %v7166 = vpack.c.b16 %v6886, %v6879
    %v7167 = vpack.c.b16 %v6887, %v6880
    %v7168 = vpack.c.b16 %v6888, %v6881
    %v7169 = vpack.c.b16 %v6889, %v6882
    %v7170 = vpack.c.b16 %v6890, %v6883
    %v7171 = vpack.c.b16 %v6891, %v6884
    %v7172 = vpack.c.b16 %v6892, %v6885
    %v7173 = vpack.c.b16 %v6900, %v6893
    %v7174 = vpack.c.b16 %v6901, %v6894
    %v7175 = vpack.c.b16 %v6902, %v6895
    %v7176 = vpack.c.b16 %v6903, %v6896
    %v7177 = vpack.c.b16 %v6904, %v6897
    %v7178 = vpack.c.b16 %v6905, %v6898
    %v7179 = vpack.c.b16 %v6906, %v6899
    %v7180 = vpack.c.b16 %v6914, %v6907
    %v7181 = vpack.c.b16 %v6915, %v6908
    %v7182 = vpack.c.b16 %v6916, %v6909
    %v7183 = vpack.c.b16 %v6917, %v6910
    %v7184 = vpack.c.b16 %v6918, %v6911
    %v7185 = vpack.c.b16 %v6919, %v6912
    %v7186 = vpack.c.b16 %v6920, %v6913
    %v7187 = vpack.c.b16 %v6928, %v6921
    %v7188 = vpack.c.b16 %v6929, %v6922
    %v7189 = vpack.c.b16 %v6930, %v6923
    %v7190 = vpack.c.b16 %v6931, %v6924
    %v7191 = vpack.c.b16 %v6932, %v6925
    %v7192 = vpack.c.b16 %v6933, %v6926
    %v7193 = vpack.c.b16 %v6934, %v6927
    %v7194 = vpack.c.b16 %v6942, %v6935
    %v7195 = vpack.c.b16 %v6943, %v6936
    %v7196 = vpack.c.b16 %v6944, %v6937
    %v7197 = vpack.c.b16 %v6945, %v6938
    %v7198 = vpack.c.b16 %v6946, %v6939
    %v7199 = vpack.c.b16 %v6947, %v6940
    %v7200 = vpack.c.b16 %v6948, %v6941
    %v7201 = vpack.c.b16 %v6956, %v6949
    %v7202 = vpack.c.b16 %v6957, %v6950
    %v7203 = vpack.c.b16 %v6958, %v6951
    %v7204 = vpack.c.b16 %v6959, %v6952
    %v7205 = vpack.c.b16 %v6960, %v6953
    %v7206 = vpack.c.b16 %v6961, %v6954
    %v7207 = vpack.c.b16 %v6962, %v6955
    %v7208 = vpack.c.b16 %v6970, %v6963
    %v7209 = vpack.c.b16 %v6971, %v6964
    %v7210 = vpack.c.b16 %v6972, %v6965
    %v7211 = vpack.c.b16 %v6973, %v6966
    %v7212 = vpack.c.b16 %v6974, %v6967
    %v7213 = vpack.c.b16 %v6975, %v6968
    %v7214 = vpack.c.b16 %v6976, %v6969
    %v7215 = vpack.c.b16 %v6984, %v6977
    %v7216 = vpack.c.b16 %v6985, %v6978
    %v7217 = vpack.c.b16 %v6986, %v6979
    %v7218 = vpack.c.b16 %v6987, %v6980
    %v7219 = vpack.c.b16 %v6988, %v6981
    %v7220 = vpack.c.b16 %v6989, %v6982
    %v7221 = vpack.c.b16 %v6990, %v6983
    %v7222 = vpack.c.b16 %v6998, %v6991
    %v7223 = vpack.c.b16 %v6999, %v6992
    %v7224 = vpack.c.b16 %v7000, %v6993
    %v7225 = vpack.c.b16 %v7001, %v6994
    %v7226 = vpack.c.b16 %v7002, %v6995
    %v7227 = vpack.c.b16 %v7003, %v6996
    %v7228 = vpack.c.b16 %v7004, %v6997
    %v7229 = vpack.c.b16 %v7012, %v7005
    %v7230 = vpack.c.b16 %v7013, %v7006
    %v7231 = vpack.c.b16 %v7014, %v7007
    %v7232 = vpack.c.b16 %v7015, %v7008
    %v7233 = vpack.c.b16 %v7016, %v7009
    %v7234 = vpack.c.b16 %v7017, %v7010
    %v7235 = vpack.c.b16 %v7018, %v7011
    %v7236 = vpack.c.b16 %v7026, %v7019
    %v7237 = vpack.c.b16 %v7027, %v7020
    %v7238 = vpack.c.b16 %v7028, %v7021
    %v7239 = vpack.c.b16 %v7029, %v7022
    %v7240 = vpack.c.b16 %v7030, %v7023
    %v7241 = vpack.c.b16 %v7031, %v7024
    %v7242 = vpack.c.b16 %v7032, %v7025
    %v7243 = vpack.c.b16 %v7040, %v7033
    %v7244 = vpack.c.b16 %v7041, %v7034
    %v7245 = vpack.c.b16 %v7042, %v7035
    %v7246 = vpack.c.b16 %v7043, %v7036
    %v7247 = vpack.c.b16 %v7044, %v7037
    %v7248 = vpack.c.b16 %v7045, %v7038
    %v7249 = vpack.c.b16 %v7046, %v7039
    %v7250 = vpack.c.b16 %v7054, %v7047
    %v7251 = vpack.c.b16 %v7055, %v7048
    %v7252 = vpack.c.b16 %v7056, %v7049
    %v7253 = vpack.c.b16 %v7057, %v7050
    %v7254 = vpack.c.b16 %v7058, %v7051
    %v7255 = vpack.c.b16 %v7059, %v7052
    %v7256 = vpack.c.b16 %v7060, %v7053
    %v7257 = vpack.c.b16 %v7068, %v7061
    %v7258 = vpack.c.b16 %v7069, %v7062
    %v7259 = vpack.c.b16 %v7070, %v7063
    %v7260 = vpack.c.b16 %v7071, %v7064
    %v7261 = vpack.c.b16 %v7072, %v7065
    %v7262 = vpack.c.b16 %v7073, %v7066
    %v7263 = vpack.c.b16 %v7074, %v7067
    %v7264 = vpack.c.b16 %v7082, %v7075
    %v7265 = vpack.c.b16 %v7083, %v7076
    %v7266 = vpack.c.b16 %v7084, %v7077
    %v7267 = vpack.c.b16 %v7085, %v7078
    %v7268 = vpack.c.b16 %v7086, %v7079
    %v7269 = vpack.c.b16 %v7087, %v7080
    %v7270 = vpack.c.b16 %v7088, %v7081
    %v7271 = vpack.c.b16 %v7096, %v7089
    %v7272 = vpack.c.b16 %v7097, %v7090
    %v7273 = vpack.c.b16 %v7098, %v7091
    %v7274 = vpack.c.b16 %v7099, %v7092
    %v7275 = vpack.c.b16 %v7100, %v7093
    %v7276 = vpack.c.b16 %v7101, %v7094
    %v7277 = vpack.c.b16 %v7102, %v7095
    %v7278 = vpack.c.b16 %v7110, %v7103
    %v7279 = vpack.c.b16 %v7111, %v7104
    %v7280 = vpack.c.b16 %v7112, %v7105
    %v7281 = vpack.c.b16 %v7113, %v7106
    %v7282 = vpack.c.b16 %v7114, %v7107
    %v7283 = vpack.c.b16 %v7115, %v7108
    %v7284 = vpack.c.b16 %v7116, %v7109
    %7453 = vmatpush.bf16.msra.mxu0 %v7166
    %7454 = vmatpush.bf16.msra.mxu0 %v7159
    %7455 = vmatpush.bf16.msra.mxu0 %v7152
    %7456 = vmatpush.bf16.msra.mxu0 %v7145
    %7457 = vmatpush.bf16.msra.mxu0 %v7138
    %7458 = vmatpush.bf16.msra.mxu0 %v7131
    %7459 = vmatpush.bf16.msra.mxu0 %v7124
    %7460 = vmatpush.bf16.msra.mxu0 %v7117
    %7461 = vmatmul.bf16.gmra.mxu0 %v6570
    %v7462 = vpop.f32.mrf.mxu0
    %v7463 = vadd.f32 %v6575, %v7462
    %v7464 = vpop.f32.mrf.mxu0
    %7465 = vdwg.mxu0
    %7466 = vmatpush.bf16.msra.mxu0 %v7222
    %7467 = vmatpush.bf16.msra.mxu0 %v7215
    %7468 = vmatpush.bf16.msra.mxu0 %v7208
    %7469 = vmatpush.bf16.msra.mxu0 %v7201
    %7470 = vmatpush.bf16.msra.mxu0 %v7194
    %7471 = vmatpush.bf16.msra.mxu0 %v7187
    %7472 = vmatpush.bf16.msra.mxu0 %v7180
    %7473 = vmatpush.bf16.msra.mxu0 %v7173
    %7474 = vmatmul.bf16.gmra.mxu0 %v6571
    %v7475 = vpop.f32.mrf.mxu0
    %v7476 = vadd.f32 %v7463, %v7475
    %v7477 = vpop.f32.mrf.mxu0
    %7478 = vdwg.mxu0
    %7479 = vmatpush.bf16.msra.mxu0 %v7278
    %7480 = vmatpush.bf16.msra.mxu0 %v7271
    %7481 = vmatpush.bf16.msra.mxu0 %v7264
    %7482 = vmatpush.bf16.msra.mxu0 %v7257
    %7483 = vmatpush.bf16.msra.mxu0 %v7250
    %7484 = vmatpush.bf16.msra.mxu0 %v7243
    %7485 = vmatpush.bf16.msra.mxu0 %v7236
    %7486 = vmatpush.bf16.msra.mxu0 %v7229
    %7487 = vmatmul.bf16.gmra.mxu0 %v6572
    %v7488 = vpop.f32.mrf.mxu0
    %v7489 = vadd.f32 %v7476, %v7488
    %v7490 = vpop.f32.mrf.mxu0
    %7491 = vdwg.mxu0
    %7492 = vmatpush.bf16.msra.mxu0 %v7167
    %7493 = vmatpush.bf16.msra.mxu0 %v7160
    %7494 = vmatpush.bf16.msra.mxu0 %v7153
    %7495 = vmatpush.bf16.msra.mxu0 %v7146
    %7496 = vmatpush.bf16.msra.mxu0 %v7139
    %7497 = vmatpush.bf16.msra.mxu0 %v7132
    %7498 = vmatpush.bf16.msra.mxu0 %v7125
    %7499 = vmatpush.bf16.msra.mxu0 %v7118
    %7500 = vmatmul.bf16.gmra.mxu0 %v6570
    %v7501 = vpop.f32.mrf.mxu0
    %v7502 = vadd.f32 %v6576, %v7501
    %v7503 = vpop.f32.mrf.mxu0
    %7504 = vdwg.mxu0
    %7505 = vmatpush.bf16.msra.mxu0 %v7223
    %7506 = vmatpush.bf16.msra.mxu0 %v7216
    %7507 = vmatpush.bf16.msra.mxu0 %v7209
    %7508 = vmatpush.bf16.msra.mxu0 %v7202
    %7509 = vmatpush.bf16.msra.mxu0 %v7195
    %7510 = vmatpush.bf16.msra.mxu0 %v7188
    %7511 = vmatpush.bf16.msra.mxu0 %v7181
    %7512 = vmatpush.bf16.msra.mxu0 %v7174
    %7513 = vmatmul.bf16.gmra.mxu0 %v6571
    %v7514 = vpop.f32.mrf.mxu0
    %v7515 = vadd.f32 %v7502, %v7514
    %v7516 = vpop.f32.mrf.mxu0
    %7517 = vdwg.mxu0
    %7518 = vmatpush.bf16.msra.mxu0 %v7279
    %7519 = vmatpush.bf16.msra.mxu0 %v7272
    %7520 = vmatpush.bf16.msra.mxu0 %v7265
    %7521 = vmatpush.bf16.msra.mxu0 %v7258
    %7522 = vmatpush.bf16.msra.mxu0 %v7251
    %7523 = vmatpush.bf16.msra.mxu0 %v7244
    %7524 = vmatpush.bf16.msra.mxu0 %v7237
    %7525 = vmatpush.bf16.msra.mxu0 %v7230
    %7526 = vmatmul.bf16.gmra.mxu0 %v6572
    %v7527 = vpop.f32.mrf.mxu0
    %v7528 = vadd.f32 %v7515, %v7527
    %v7529 = vpop.f32.mrf.mxu0
    %7530 = vdwg.mxu0
    %7531 = vmatpush.bf16.msra.mxu0 %v7168
    %7532 = vmatpush.bf16.msra.mxu0 %v7161
    %7533 = vmatpush.bf16.msra.mxu0 %v7154
    %7534 = vmatpush.bf16.msra.mxu0 %v7147
    %7535 = vmatpush.bf16.msra.mxu0 %v7140
    %7536 = vmatpush.bf16.msra.mxu0 %v7133
    %7537 = vmatpush.bf16.msra.mxu0 %v7126
    %7538 = vmatpush.bf16.msra.mxu0 %v7119
    %7539 = vmatmul.bf16.gmra.mxu0 %v6570
    %v7540 = vpop.f32.mrf.mxu0
    %v7541 = vadd.f32 %v6577, %v7540
    %v7542 = vpop.f32.mrf.mxu0
    %7543 = vdwg.mxu0
    %7544 = vmatpush.bf16.msra.mxu0 %v7224
    %7545 = vmatpush.bf16.msra.mxu0 %v7217
    %7546 = vmatpush.bf16.msra.mxu0 %v7210
    %7547 = vmatpush.bf16.msra.mxu0 %v7203
    %7548 = vmatpush.bf16.msra.mxu0 %v7196
    %7549 = vmatpush.bf16.msra.mxu0 %v7189
    %7550 = vmatpush.bf16.msra.mxu0 %v7182
    %7551 = vmatpush.bf16.msra.mxu0 %v7175
    %7552 = vmatmul.bf16.gmra.mxu0 %v6571
    %v7553 = vpop.f32.mrf.mxu0
    %v7554 = vadd.f32 %v7541, %v7553
    %v7555 = vpop.f32.mrf.mxu0
    %7556 = vdwg.mxu0
    %7557 = vmatpush.bf16.msra.mxu0 %v7280
    %7558 = vmatpush.bf16.msra.mxu0 %v7273
    %7559 = vmatpush.bf16.msra.mxu0 %v7266
    %7560 = vmatpush.bf16.msra.mxu0 %v7259
    %7561 = vmatpush.bf16.msra.mxu0 %v7252
    %7562 = vmatpush.bf16.msra.mxu0 %v7245
    %7563 = vmatpush.bf16.msra.mxu0 %v7238
    %7564 = vmatpush.bf16.msra.mxu0 %v7231
    %7565 = vmatmul.bf16.gmra.mxu0 %v6572
    %v7566 = vpop.f32.mrf.mxu0
    %v7567 = vadd.f32 %v7554, %v7566
    %v7568 = vpop.f32.mrf.mxu0
    %7569 = vdwg.mxu0
    %7570 = vmatpush.bf16.msra.mxu0 %v7169
    %7571 = vmatpush.bf16.msra.mxu0 %v7162
    %7572 = vmatpush.bf16.msra.mxu0 %v7155
    %7573 = vmatpush.bf16.msra.mxu0 %v7148
    %7574 = vmatpush.bf16.msra.mxu0 %v7141
    %7575 = vmatpush.bf16.msra.mxu0 %v7134
    %7576 = vmatpush.bf16.msra.mxu0 %v7127
    %7577 = vmatpush.bf16.msra.mxu0 %v7120
    %7578 = vmatmul.bf16.gmra.mxu0 %v6570
    %v7579 = vpop.f32.mrf.mxu0
    %v7580 = vadd.f32 %v6578, %v7579
    %v7581 = vpop.f32.mrf.mxu0
    %7582 = vdwg.mxu0
    %7583 = vmatpush.bf16.msra.mxu0 %v7225
    %7584 = vmatpush.bf16.msra.mxu0 %v7218
    %7585 = vmatpush.bf16.msra.mxu0 %v7211
    %7586 = vmatpush.bf16.msra.mxu0 %v7204
    %7587 = vmatpush.bf16.msra.mxu0 %v7197
    %7588 = vmatpush.bf16.msra.mxu0 %v7190
    %7589 = vmatpush.bf16.msra.mxu0 %v7183
    %7590 = vmatpush.bf16.msra.mxu0 %v7176
    %7591 = vmatmul.bf16.gmra.mxu0 %v6571
    %v7592 = vpop.f32.mrf.mxu0
    %v7593 = vadd.f32 %v7580, %v7592
    %v7594 = vpop.f32.mrf.mxu0
    %7595 = vdwg.mxu0
    %7596 = vmatpush.bf16.msra.mxu0 %v7281
    %7597 = vmatpush.bf16.msra.mxu0 %v7274
    %7598 = vmatpush.bf16.msra.mxu0 %v7267
    %7599 = vmatpush.bf16.msra.mxu0 %v7260
    %7600 = vmatpush.bf16.msra.mxu0 %v7253
    %7601 = vmatpush.bf16.msra.mxu0 %v7246
    %7602 = vmatpush.bf16.msra.mxu0 %v7239
    %7603 = vmatpush.bf16.msra.mxu0 %v7232
    %7604 = vmatmul.bf16.gmra.mxu0 %v6572
    %v7605 = vpop.f32.mrf.mxu0
    %v7606 = vadd.f32 %v7593, %v7605
    %v7607 = vpop.f32.mrf.mxu0
    %7608 = vdwg.mxu0
    %7609 = vmatpush.bf16.msra.mxu0 %v7170
    %7610 = vmatpush.bf16.msra.mxu0 %v7163
    %7611 = vmatpush.bf16.msra.mxu0 %v7156
    %7612 = vmatpush.bf16.msra.mxu0 %v7149
    %7613 = vmatpush.bf16.msra.mxu0 %v7142
    %7614 = vmatpush.bf16.msra.mxu0 %v7135
    %7615 = vmatpush.bf16.msra.mxu0 %v7128
    %7616 = vmatpush.bf16.msra.mxu0 %v7121
    %7617 = vmatmul.bf16.gmra.mxu0 %v6570
    %v7618 = vpop.f32.mrf.mxu0
    %v7619 = vadd.f32 %v6579, %v7618
    %v7620 = vpop.f32.mrf.mxu0
    %7621 = vdwg.mxu0
    %7622 = vmatpush.bf16.msra.mxu0 %v7226
    %7623 = vmatpush.bf16.msra.mxu0 %v7219
    %7624 = vmatpush.bf16.msra.mxu0 %v7212
    %7625 = vmatpush.bf16.msra.mxu0 %v7205
    %7626 = vmatpush.bf16.msra.mxu0 %v7198
    %7627 = vmatpush.bf16.msra.mxu0 %v7191
    %7628 = vmatpush.bf16.msra.mxu0 %v7184
    %7629 = vmatpush.bf16.msra.mxu0 %v7177
    %7630 = vmatmul.bf16.gmra.mxu0 %v6571
    %v7631 = vpop.f32.mrf.mxu0
    %v7632 = vadd.f32 %v7619, %v7631
    %v7633 = vpop.f32.mrf.mxu0
    %7634 = vdwg.mxu0
    %7635 = vmatpush.bf16.msra.mxu0 %v7282
    %7636 = vmatpush.bf16.msra.mxu0 %v7275
    %7637 = vmatpush.bf16.msra.mxu0 %v7268
    %7638 = vmatpush.bf16.msra.mxu0 %v7261
    %7639 = vmatpush.bf16.msra.mxu0 %v7254
    %7640 = vmatpush.bf16.msra.mxu0 %v7247
    %7641 = vmatpush.bf16.msra.mxu0 %v7240
    %7642 = vmatpush.bf16.msra.mxu0 %v7233
    %7643 = vmatmul.bf16.gmra.mxu0 %v6572
    %v7644 = vpop.f32.mrf.mxu0
    %v7645 = vadd.f32 %v7632, %v7644
    %v7646 = vpop.f32.mrf.mxu0
    %7647 = vdwg.mxu0
    %7648 = vmatpush.bf16.msra.mxu0 %v7171
    %7649 = vmatpush.bf16.msra.mxu0 %v7164
    %7650 = vmatpush.bf16.msra.mxu0 %v7157
    %7651 = vmatpush.bf16.msra.mxu0 %v7150
    %7652 = vmatpush.bf16.msra.mxu0 %v7143
    %7653 = vmatpush.bf16.msra.mxu0 %v7136
    %7654 = vmatpush.bf16.msra.mxu0 %v7129
    %7655 = vmatpush.bf16.msra.mxu0 %v7122
    %7656 = vmatmul.bf16.gmra.mxu0 %v6570
    %v7657 = vpop.f32.mrf.mxu0
    %v7658 = vadd.f32 %v6580, %v7657
    %v7659 = vpop.f32.mrf.mxu0
    %7660 = vdwg.mxu0
    %7661 = vmatpush.bf16.msra.mxu0 %v7227
    %7662 = vmatpush.bf16.msra.mxu0 %v7220
    %7663 = vmatpush.bf16.msra.mxu0 %v7213
    %7664 = vmatpush.bf16.msra.mxu0 %v7206
    %7665 = vmatpush.bf16.msra.mxu0 %v7199
    %7666 = vmatpush.bf16.msra.mxu0 %v7192
    %7667 = vmatpush.bf16.msra.mxu0 %v7185
    %7668 = vmatpush.bf16.msra.mxu0 %v7178
    %7669 = vmatmul.bf16.gmra.mxu0 %v6571
    %v7670 = vpop.f32.mrf.mxu0
    %v7671 = vadd.f32 %v7658, %v7670
    %v7672 = vpop.f32.mrf.mxu0
    %7673 = vdwg.mxu0
    %7674 = vmatpush.bf16.msra.mxu0 %v7283
    %7675 = vmatpush.bf16.msra.mxu0 %v7276
    %7676 = vmatpush.bf16.msra.mxu0 %v7269
    %7677 = vmatpush.bf16.msra.mxu0 %v7262
    %7678 = vmatpush.bf16.msra.mxu0 %v7255
    %7679 = vmatpush.bf16.msra.mxu0 %v7248
    %7680 = vmatpush.bf16.msra.mxu0 %v7241
    %7681 = vmatpush.bf16.msra.mxu0 %v7234
    %7682 = vmatmul.bf16.gmra.mxu0 %v6572
    %v7683 = vpop.f32.mrf.mxu0
    %v7684 = vadd.f32 %v7671, %v7683
    %v7685 = vpop.f32.mrf.mxu0
    %7686 = vdwg.mxu0
    %7687 = vmatpush.bf16.msra.mxu0 %v7172
    %7688 = vmatpush.bf16.msra.mxu0 %v7165
    %7689 = vmatpush.bf16.msra.mxu0 %v7158
    %7690 = vmatpush.bf16.msra.mxu0 %v7151
    %7691 = vmatpush.bf16.msra.mxu0 %v7144
    %7692 = vmatpush.bf16.msra.mxu0 %v7137
    %7693 = vmatpush.bf16.msra.mxu0 %v7130
    %7694 = vmatpush.bf16.msra.mxu0 %v7123
    %7695 = vmatmul.bf16.gmra.mxu0 %v6570
    %v7696 = vpop.f32.mrf.mxu0
    %v7697 = vadd.f32 %v6581, %v7696
    %v7698 = vpop.f32.mrf.mxu0
    %7699 = vdwg.mxu0
    %7700 = vmatpush.bf16.msra.mxu0 %v7228
    %7701 = vmatpush.bf16.msra.mxu0 %v7221
    %7702 = vmatpush.bf16.msra.mxu0 %v7214
    %7703 = vmatpush.bf16.msra.mxu0 %v7207
    %7704 = vmatpush.bf16.msra.mxu0 %v7200
    %7705 = vmatpush.bf16.msra.mxu0 %v7193
    %7706 = vmatpush.bf16.msra.mxu0 %v7186
    %7707 = vmatpush.bf16.msra.mxu0 %v7179
    %7708 = vmatmul.bf16.gmra.mxu0 %v6571
    %v7709 = vpop.f32.mrf.mxu0
    %v7710 = vadd.f32 %v7697, %v7709
    %v7711 = vpop.f32.mrf.mxu0
    %7712 = vdwg.mxu0
    %7713 = vmatpush.bf16.msra.mxu0 %v7284
    %7714 = vmatpush.bf16.msra.mxu0 %v7277
    %7715 = vmatpush.bf16.msra.mxu0 %v7270
    %7716 = vmatpush.bf16.msra.mxu0 %v7263
    %7717 = vmatpush.bf16.msra.mxu0 %v7256
    %7718 = vmatpush.bf16.msra.mxu0 %v7249
    %7719 = vmatpush.bf16.msra.mxu0 %v7242
    %7720 = vmatpush.bf16.msra.mxu0 %v7235
    %7721 = vmatmul.bf16.gmra.mxu0 %v6572
    %v7722 = vpop.f32.mrf.mxu0
    %v7723 = vadd.f32 %v7710, %v7722
    %v7724 = vpop.f32.mrf.mxu0
    %7725 = vdwg.mxu0
    %vm7726 = vcmp.ge.f32.partialorder %v7489, 0.0
    %vm7727 = vcmp.ge.f32.partialorder %v7528, 0.0
    %vm7728 = vcmp.ge.f32.partialorder %v7567, 0.0
    %vm7729 = vcmp.ge.f32.partialorder %v7606, 0.0
    %vm7730 = vcmp.ge.f32.partialorder %v7645, 0.0
    %vm7731 = vcmp.ge.f32.partialorder %v7684, 0.0
    %vm7732 = vcmp.ge.f32.partialorder %v7723, 0.0
    %v7733 = vmul.f32 %v7489, 0.01
    %v7734 = vmul.f32 %v7528, 0.01
    %v7735 = vmul.f32 %v7567, 0.01
    %v7736 = vmul.f32 %v7606, 0.01
    %v7737 = vmul.f32 %v7645, 0.01
    %v7738 = vmul.f32 %v7684, 0.01
    %v7739 = vmul.f32 %v7723, 0.01
    %v7740 = vsel %vm7726, %v7489, %v7733
    %v7741 = vsel %vm7727, %v7528, %v7734
    %v7742 = vsel %vm7728, %v7567, %v7735
    %v7743 = vsel %vm7729, %v7606, %v7736
    %v7744 = vsel %vm7730, %v7645, %v7737
    %v7745 = vsel %vm7731, %v7684, %v7738
    %v7746 = vsel %vm7732, %v7723, %v7739
    %v7747 = vld [vmem:[#allocation3 + $0x500] sm:$0xff]
    %v7748 = vld [vmem:[#allocation3 + $0x508] sm:$0xff]
    %v7749 = vld [vmem:[#allocation3 + $0x510] sm:$0xff]
    %v7750 = vld [vmem:[#allocation3 + $0x518] sm:$0xff]
    %v7751 = vld [vmem:[#allocation3 + $0x520] sm:$0xff]
    %v7752 = vld [vmem:[#allocation3 + $0x528] sm:$0xff]
    %v7753 = vld [vmem:[#allocation3 + $0x530] sm:$0xff]
    %v7754 = vld [vmem:[#allocation3 + $0x538] sm:$0xff]
    %v7755 = vld [vmem:[#allocation3 + $0x540] sm:$0xff]
    %v7756 = vld [vmem:[#allocation3 + $0x548] sm:$0xff]
    %v7757 = vld [vmem:[#allocation3 + $0x550] sm:$0xff]
    %v7758 = vld [vmem:[#allocation3 + $0x558] sm:$0xff]
    %v7759 = vld [vmem:[#allocation3 + $0x560] sm:$0xff]
    %v7760 = vld [vmem:[#allocation3 + $0x568] sm:$0xff]
    %v7761 = vld [vmem:[#allocation3 + $0x570] sm:$0xff]
    %v7762 = vld [vmem:[#allocation3 + $0x578] sm:$0xff]
    %v7763 = vld [vmem:[#allocation3 + $0x580] sm:$0xff]
    %v7764 = vld [vmem:[#allocation3 + $0x588] sm:$0xff]
    %v7765 = vld [vmem:[#allocation3 + $0x590] sm:$0xff]
    %v7766 = vld [vmem:[#allocation3 + $0x598] sm:$0xff]
    %v7767 = vld [vmem:[#allocation3 + $0x5a0] sm:$0xff]
    %v7768 = vld [vmem:[#allocation3 + $0x5a8] sm:$0xff]
    %v7769 = vld [vmem:[#allocation3 + $0x5b0] sm:$0xff]
    %v7770 = vld [vmem:[#allocation3 + $0x5b8] sm:$0xff]
    %v7771 = vld [vmem:[#allocation3 + $0x5c0] sm:$0xff]
    %v7772 = vld [vmem:[#allocation3 + $0x5c8] sm:$0xff]
    %v7773 = vld [vmem:[#allocation3 + $0x5d0] sm:$0xff]
    %v7774 = vld [vmem:[#allocation3 + $0x5d8] sm:$0xff]
    %v7775 = vld [vmem:[#allocation3 + $0x5e0] sm:$0xff]
    %v7776 = vld [vmem:[#allocation3 + $0x5e8] sm:$0xff]
    %v7777 = vld [vmem:[#allocation3 + $0x5f0] sm:$0xff]
    %v7778 = vld [vmem:[#allocation3 + $0x5f8] sm:$0xff]
    %v7779 = vld [vmem:[#allocation3 + $0x600] sm:$0xff]
    %v7780 = vld [vmem:[#allocation3 + $0x608] sm:$0xff]
    %v7781 = vld [vmem:[#allocation3 + $0x610] sm:$0xff]
    %v7782 = vld [vmem:[#allocation3 + $0x618] sm:$0xff]
    %v7783 = vld [vmem:[#allocation3 + $0x620] sm:$0xff]
    %v7784 = vld [vmem:[#allocation3 + $0x628] sm:$0xff]
    %v7785 = vld [vmem:[#allocation3 + $0x630] sm:$0xff]
    %v7786 = vld [vmem:[#allocation3 + $0x638] sm:$0xff]
    %v7787 = vld [vmem:[#allocation3 + $0x640] sm:$0xff]
    %v7788 = vld [vmem:[#allocation3 + $0x648] sm:$0xff]
    %v7789 = vld [vmem:[#allocation3 + $0x650] sm:$0xff]
    %v7790 = vld [vmem:[#allocation3 + $0x658] sm:$0xff]
    %v7791 = vld [vmem:[#allocation3 + $0x660] sm:$0xff]
    %v7792 = vld [vmem:[#allocation3 + $0x668] sm:$0xff]
    %v7793 = vld [vmem:[#allocation3 + $0x670] sm:$0xff]
    %v7794 = vld [vmem:[#allocation3 + $0x678] sm:$0xff]
    %v7795 = vld [vmem:[#allocation3 + $0x680] sm:$0xff]
    %v7796 = vld [vmem:[#allocation3 + $0x688] sm:$0xff]
    %v7797 = vld [vmem:[#allocation3 + $0x690] sm:$0xff]
    %v7798 = vld [vmem:[#allocation3 + $0x698] sm:$0xff]
    %v7799 = vld [vmem:[#allocation3 + $0x6a0] sm:$0xff]
    %v7800 = vld [vmem:[#allocation3 + $0x6a8] sm:$0xff]
    %v7801 = vld [vmem:[#allocation3 + $0x6b0] sm:$0xff]
    %v7802 = vld [vmem:[#allocation3 + $0x6b8] sm:$0xff]
    %v7803 = vld [vmem:[#allocation3 + $0x6c0] sm:$0xff]
    %v7804 = vld [vmem:[#allocation3 + $0x6c8] sm:$0xff]
    %v7805 = vld [vmem:[#allocation3 + $0x6d0] sm:$0xff]
    %v7806 = vld [vmem:[#allocation3 + $0x6d8] sm:$0xff]
    %v7807 = vld [vmem:[#allocation3 + $0x6e0] sm:$0xff]
    %v7808 = vld [vmem:[#allocation3 + $0x6e8] sm:$0xff]
    %v7809 = vld [vmem:[#allocation3 + $0x6f0] sm:$0xff]
    %v7810 = vld [vmem:[#allocation3 + $0x6f8] sm:$0xff]
    %v7811 = vld [vmem:[#allocation3 + $0x700] sm:$0xff]
    %v7812 = vld [vmem:[#allocation3 + $0x708] sm:$0xff]
    %v7813 = vld [vmem:[#allocation3 + $0x710] sm:$0xff]
    %v7814 = vld [vmem:[#allocation3 + $0x718] sm:$0xff]
    %v7815 = vld [vmem:[#allocation3 + $0x720] sm:$0xff]
    %v7816 = vld [vmem:[#allocation3 + $0x728] sm:$0xff]
    %v7817 = vld [vmem:[#allocation3 + $0x730] sm:$0xff]
    %v7818 = vld [vmem:[#allocation3 + $0x738] sm:$0xff]
    %v7819 = vld [vmem:[#allocation3 + $0x740] sm:$0xff]
    %v7820 = vld [vmem:[#allocation3 + $0x748] sm:$0xff]
    %v7821 = vld [vmem:[#allocation3 + $0x750] sm:$0xff]
    %v7822 = vld [vmem:[#allocation3 + $0x758] sm:$0xff]
    %v7823 = vld [vmem:[#allocation3 + $0x760] sm:$0xff]
    %v7824 = vld [vmem:[#allocation3 + $0x768] sm:$0xff]
    %v7825 = vld [vmem:[#allocation3 + $0x770] sm:$0xff]
    %v7826 = vld [vmem:[#allocation3 + $0x778] sm:$0xff]
    %v7827 = vpack.c.bf16 %v7742, %v7742
    %v7828 = vpack.c.bf16 %v7743, %v7743
    %v7829 = vpack.c.bf16 %v7744, %v7744
    %v7830 = vpack.c.bf16 %v7745, %v7745
    %v7831 = vpack.c.bf16 %v7746, %v7746
    %v7832 = vld [vmem:[#allocation7 + $0x8] sm:$0x3]
    %v7834 = vperm.slane %v7832, 0
    %v7835 = vperm.slane %v7832, 1
    %v7918 = vunpack.c.l.b16 %v7747
    %v7919 = vunpack.c.h.b16 %v7747
    %v7920 = vunpack.c.l.b16 %v7748
    %v7921 = vunpack.c.h.b16 %v7748
    %v7922 = vunpack.c.l.b16 %v7749
    %v7923 = vunpack.c.h.b16 %v7749
    %v7924 = vunpack.c.l.b16 %v7750
    %v7925 = vunpack.c.h.b16 %v7750
    %v7926 = vunpack.c.l.b16 %v7751
    %v7927 = vunpack.c.h.b16 %v7751
    %v7928 = vunpack.c.l.b16 %v7752
    %v7929 = vunpack.c.h.b16 %v7752
    %v7930 = vunpack.c.l.b16 %v7753
    %v7931 = vunpack.c.h.b16 %v7753
    %v7932 = vunpack.c.l.b16 %v7754
    %v7933 = vunpack.c.h.b16 %v7754
    %v7934 = vunpack.c.l.b16 %v7755
    %v7935 = vunpack.c.h.b16 %v7755
    %v7936 = vunpack.c.l.b16 %v7756
    %v7937 = vunpack.c.h.b16 %v7756
    %v7938 = vunpack.c.l.b16 %v7757
    %v7939 = vunpack.c.h.b16 %v7757
    %v7940 = vunpack.c.l.b16 %v7758
    %v7941 = vunpack.c.h.b16 %v7758
    %v7942 = vunpack.c.l.b16 %v7759
    %v7943 = vunpack.c.h.b16 %v7759
    %v7944 = vunpack.c.l.b16 %v7760
    %v7945 = vunpack.c.h.b16 %v7760
    %v7946 = vunpack.c.l.b16 %v7761
    %v7947 = vunpack.c.h.b16 %v7761
    %v7948 = vunpack.c.l.b16 %v7762
    %v7949 = vunpack.c.h.b16 %v7762
    %v7950 = vunpack.c.l.b16 %v7763
    %v7951 = vunpack.c.h.b16 %v7763
    %v7952 = vunpack.c.l.b16 %v7764
    %v7953 = vunpack.c.h.b16 %v7764
    %v7954 = vunpack.c.l.b16 %v7765
    %v7955 = vunpack.c.h.b16 %v7765
    %v7956 = vunpack.c.l.b16 %v7766
    %v7957 = vunpack.c.h.b16 %v7766
    %v7958 = vunpack.c.l.b16 %v7767
    %v7959 = vunpack.c.h.b16 %v7767
    %v7960 = vunpack.c.l.b16 %v7768
    %v7961 = vunpack.c.h.b16 %v7768
    %v7962 = vunpack.c.l.b16 %v7769
    %v7963 = vunpack.c.h.b16 %v7769
    %v7964 = vunpack.c.l.b16 %v7770
    %v7965 = vunpack.c.h.b16 %v7770
    %v7966 = vunpack.c.l.b16 %v7771
    %v7967 = vunpack.c.h.b16 %v7771
    %v7968 = vunpack.c.l.b16 %v7772
    %v7969 = vunpack.c.h.b16 %v7772
    %v7970 = vunpack.c.l.b16 %v7773
    %v7971 = vunpack.c.h.b16 %v7773
    %v7972 = vunpack.c.l.b16 %v7774
    %v7973 = vunpack.c.h.b16 %v7774
    %v7974 = vunpack.c.l.b16 %v7775
    %v7975 = vunpack.c.h.b16 %v7775
    %v7976 = vunpack.c.l.b16 %v7776
    %v7977 = vunpack.c.h.b16 %v7776
    %v7978 = vunpack.c.l.b16 %v7777
    %v7979 = vunpack.c.h.b16 %v7777
    %v7980 = vunpack.c.l.b16 %v7778
    %v7981 = vunpack.c.h.b16 %v7778
    %v7982 = vunpack.c.l.b16 %v7779
    %v7983 = vunpack.c.h.b16 %v7779
    %v7984 = vunpack.c.l.b16 %v7780
    %v7985 = vunpack.c.h.b16 %v7780
    %v7986 = vunpack.c.l.b16 %v7781
    %v7987 = vunpack.c.h.b16 %v7781
    %v7988 = vunpack.c.l.b16 %v7782
    %v7989 = vunpack.c.h.b16 %v7782
    %v7990 = vunpack.c.l.b16 %v7783
    %v7991 = vunpack.c.h.b16 %v7783
    %v7992 = vunpack.c.l.b16 %v7784
    %v7993 = vunpack.c.h.b16 %v7784
    %v7994 = vunpack.c.l.b16 %v7785
    %v7995 = vunpack.c.h.b16 %v7785
    %v7996 = vunpack.c.l.b16 %v7786
    %v7997 = vunpack.c.h.b16 %v7786
    %v7998 = vunpack.c.l.b16 %v7787
    %v7999 = vunpack.c.h.b16 %v7787
    %v8000 = vunpack.c.l.b16 %v7788
    %v8001 = vunpack.c.h.b16 %v7788
    %v8002 = vunpack.c.l.b16 %v7789
    %v8003 = vunpack.c.h.b16 %v7789
    %v8004 = vunpack.c.l.b16 %v7790
    %v8005 = vunpack.c.h.b16 %v7790
    %v8006 = vunpack.c.l.b16 %v7791
    %v8007 = vunpack.c.h.b16 %v7791
    %v8008 = vunpack.c.l.b16 %v7792
    %v8009 = vunpack.c.h.b16 %v7792
    %v8010 = vunpack.c.l.b16 %v7793
    %v8011 = vunpack.c.h.b16 %v7793
    %v8012 = vunpack.c.l.b16 %v7794
    %v8013 = vunpack.c.h.b16 %v7794
    %v8014 = vunpack.c.l.b16 %v7795
    %v8015 = vunpack.c.h.b16 %v7795
    %v8016 = vunpack.c.l.b16 %v7796
    %v8017 = vunpack.c.h.b16 %v7796
    %v8018 = vunpack.c.l.b16 %v7797
    %v8019 = vunpack.c.h.b16 %v7797
    %v8020 = vunpack.c.l.b16 %v7798
    %v8021 = vunpack.c.h.b16 %v7798
    %v8022 = vunpack.c.l.b16 %v7799
    %v8023 = vunpack.c.h.b16 %v7799
    %v8024 = vunpack.c.l.b16 %v7800
    %v8025 = vunpack.c.h.b16 %v7800
    %v8026 = vunpack.c.l.b16 %v7801
    %v8027 = vunpack.c.h.b16 %v7801
    %v8028 = vunpack.c.l.b16 %v7802
    %v8029 = vunpack.c.h.b16 %v7802
    %v8030 = vunpack.c.l.b16 %v7803
    %v8031 = vunpack.c.h.b16 %v7803
    %v8032 = vunpack.c.l.b16 %v7804
    %v8033 = vunpack.c.h.b16 %v7804
    %v8034 = vunpack.c.l.b16 %v7805
    %v8035 = vunpack.c.h.b16 %v7805
    %v8036 = vunpack.c.l.b16 %v7806
    %v8037 = vunpack.c.h.b16 %v7806
    %v8038 = vunpack.c.l.b16 %v7807
    %v8039 = vunpack.c.h.b16 %v7807
    %v8040 = vunpack.c.l.b16 %v7808
    %v8041 = vunpack.c.h.b16 %v7808
    %v8042 = vunpack.c.l.b16 %v7809
    %v8043 = vunpack.c.h.b16 %v7809
    %v8044 = vunpack.c.l.b16 %v7810
    %v8045 = vunpack.c.h.b16 %v7810
    %v8046 = vunpack.c.l.b16 %v7811
    %v8047 = vunpack.c.h.b16 %v7811
    %v8048 = vunpack.c.l.b16 %v7812
    %v8049 = vunpack.c.h.b16 %v7812
    %v8050 = vunpack.c.l.b16 %v7813
    %v8051 = vunpack.c.h.b16 %v7813
    %v8052 = vunpack.c.l.b16 %v7814
    %v8053 = vunpack.c.h.b16 %v7814
    %v8054 = vunpack.c.l.b16 %v7815
    %v8055 = vunpack.c.h.b16 %v7815
    %v8056 = vunpack.c.l.b16 %v7816
    %v8057 = vunpack.c.h.b16 %v7816
    %v8058 = vunpack.c.l.b16 %v7817
    %v8059 = vunpack.c.h.b16 %v7817
    %v8060 = vunpack.c.l.b16 %v7818
    %v8061 = vunpack.c.h.b16 %v7818
    %v8062 = vunpack.c.l.b16 %v7819
    %v8063 = vunpack.c.h.b16 %v7819
    %v8064 = vunpack.c.l.b16 %v7820
    %v8065 = vunpack.c.h.b16 %v7820
    %v8066 = vunpack.c.l.b16 %v7821
    %v8067 = vunpack.c.h.b16 %v7821
    %v8068 = vunpack.c.l.b16 %v7822
    %v8069 = vunpack.c.h.b16 %v7822
    %v8070 = vunpack.c.l.b16 %v7823
    %v8071 = vunpack.c.h.b16 %v7823
    %v8072 = vunpack.c.l.b16 %v7824
    %v8073 = vunpack.c.h.b16 %v7824
    %v8074 = vunpack.c.l.b16 %v7825
    %v8075 = vunpack.c.h.b16 %v7825
    %v8076 = vunpack.c.l.b16 %v7826
    %v8077 = vunpack.c.h.b16 %v7826
    %v8078 = vpack.c.b16 %v7920, %v7918
    %v8079 = vpack.c.b16 %v7921, %v7919
    %v8080 = vpack.c.b16 %v7924, %v7922
    %v8081 = vpack.c.b16 %v7925, %v7923
    %v8082 = vpack.c.b16 %v7928, %v7926
    %v8083 = vpack.c.b16 %v7929, %v7927
    %v8084 = vpack.c.b16 %v7932, %v7930
    %v8085 = vpack.c.b16 %v7933, %v7931
    %v8086 = vpack.c.b16 %v7936, %v7934
    %v8087 = vpack.c.b16 %v7937, %v7935
    %v8088 = vpack.c.b16 %v7940, %v7938
    %v8089 = vpack.c.b16 %v7941, %v7939
    %v8090 = vpack.c.b16 %v7944, %v7942
    %v8091 = vpack.c.b16 %v7945, %v7943
    %v8092 = vpack.c.b16 %v7948, %v7946
    %v8093 = vpack.c.b16 %v7949, %v7947
    %v8094 = vpack.c.b16 %v7952, %v7950
    %v8095 = vpack.c.b16 %v7953, %v7951
    %v8096 = vpack.c.b16 %v7956, %v7954
    %v8097 = vpack.c.b16 %v7957, %v7955
    %v8098 = vpack.c.b16 %v7960, %v7958
    %v8099 = vpack.c.b16 %v7961, %v7959
    %v8100 = vpack.c.b16 %v7964, %v7962
    %v8101 = vpack.c.b16 %v7965, %v7963
    %v8102 = vpack.c.b16 %v7968, %v7966
    %v8103 = vpack.c.b16 %v7969, %v7967
    %v8104 = vpack.c.b16 %v7972, %v7970
    %v8105 = vpack.c.b16 %v7973, %v7971
    %v8106 = vpack.c.b16 %v7976, %v7974
    %v8107 = vpack.c.b16 %v7977, %v7975
    %v8108 = vpack.c.b16 %v7980, %v7978
    %v8109 = vpack.c.b16 %v7981, %v7979
    %v8110 = vpack.c.b16 %v7984, %v7982
    %v8111 = vpack.c.b16 %v7985, %v7983
    %v8112 = vpack.c.b16 %v7988, %v7986
    %v8113 = vpack.c.b16 %v7989, %v7987
    %v8114 = vpack.c.b16 %v7992, %v7990
    %v8115 = vpack.c.b16 %v7993, %v7991
    %v8116 = vpack.c.b16 %v7996, %v7994
    %v8117 = vpack.c.b16 %v7997, %v7995
    %v8118 = vpack.c.b16 %v8000, %v7998
    %v8119 = vpack.c.b16 %v8001, %v7999
    %v8120 = vpack.c.b16 %v8004, %v8002
    %v8121 = vpack.c.b16 %v8005, %v8003
    %v8122 = vpack.c.b16 %v8008, %v8006
    %v8123 = vpack.c.b16 %v8009, %v8007
    %v8124 = vpack.c.b16 %v8012, %v8010
    %v8125 = vpack.c.b16 %v8013, %v8011
    %v8126 = vpack.c.b16 %v8016, %v8014
    %v8127 = vpack.c.b16 %v8017, %v8015
    %v8128 = vpack.c.b16 %v8020, %v8018
    %v8129 = vpack.c.b16 %v8021, %v8019
    %v8130 = vpack.c.b16 %v8024, %v8022
    %v8131 = vpack.c.b16 %v8025, %v8023
    %v8132 = vpack.c.b16 %v8028, %v8026
    %v8133 = vpack.c.b16 %v8029, %v8027
    %v8134 = vpack.c.b16 %v8032, %v8030
    %v8135 = vpack.c.b16 %v8033, %v8031
    %v8136 = vpack.c.b16 %v8036, %v8034
    %v8137 = vpack.c.b16 %v8037, %v8035
    %v8138 = vpack.c.b16 %v8040, %v8038
    %v8139 = vpack.c.b16 %v8041, %v8039
    %v8140 = vpack.c.b16 %v8044, %v8042
    %v8141 = vpack.c.b16 %v8045, %v8043
    %v8142 = vpack.c.b16 %v8048, %v8046
    %v8143 = vpack.c.b16 %v8049, %v8047
    %v8144 = vpack.c.b16 %v8052, %v8050
    %v8145 = vpack.c.b16 %v8053, %v8051
    %v8146 = vpack.c.b16 %v8056, %v8054
    %v8147 = vpack.c.b16 %v8057, %v8055
    %v8148 = vpack.c.b16 %v8060, %v8058
    %v8149 = vpack.c.b16 %v8061, %v8059
    %v8150 = vpack.c.b16 %v8064, %v8062
    %v8151 = vpack.c.b16 %v8065, %v8063
    %v8152 = vpack.c.b16 %v8068, %v8066
    %v8153 = vpack.c.b16 %v8069, %v8067
    %v8154 = vpack.c.b16 %v8072, %v8070
    %v8155 = vpack.c.b16 %v8073, %v8071
    %v8156 = vpack.c.b16 %v8076, %v8074
    %v8157 = vpack.c.b16 %v8077, %v8075
    %8238 = vmatpush.bf16.msra.mxu0 %v8092
    %8239 = vmatpush.bf16.msra.mxu0 %v8090
    %8240 = vmatpush.bf16.msra.mxu0 %v8088
    %8241 = vmatpush.bf16.msra.mxu0 %v8086
    %8242 = vmatpush.bf16.msra.mxu0 %v8084
    %8243 = vmatpush.bf16.msra.mxu0 %v8082
    %8244 = vmatpush.bf16.msra.mxu0 %v8080
    %8245 = vmatpush.bf16.msra.mxu0 %v8078
    %8246 = vmatmul.bf16.gmra.mxu0 %v7827
    %v8247 = vpop.f32.mrf.mxu0
    %v8248 = vadd.f32 %v7834, %v8247
    %v8249 = vpop.f32.mrf.mxu0
    %8250 = vdwg.mxu0
    %8251 = vmatpush.bf16.msra.mxu0 %v8108
    %8252 = vmatpush.bf16.msra.mxu0 %v8106
    %8253 = vmatpush.bf16.msra.mxu0 %v8104
    %8254 = vmatpush.bf16.msra.mxu0 %v8102
    %8255 = vmatpush.bf16.msra.mxu0 %v8100
    %8256 = vmatpush.bf16.msra.mxu0 %v8098
    %8257 = vmatpush.bf16.msra.mxu0 %v8096
    %8258 = vmatpush.bf16.msra.mxu0 %v8094
    %8259 = vmatmul.bf16.gmra.mxu0 %v7828
    %v8260 = vpop.f32.mrf.mxu0
    %v8261 = vadd.f32 %v8248, %v8260
    %v8262 = vpop.f32.mrf.mxu0
    %8263 = vdwg.mxu0
    %8264 = vmatpush.bf16.msra.mxu0 %v8124
    %8265 = vmatpush.bf16.msra.mxu0 %v8122
    %8266 = vmatpush.bf16.msra.mxu0 %v8120
    %8267 = vmatpush.bf16.msra.mxu0 %v8118
    %8268 = vmatpush.bf16.msra.mxu0 %v8116
    %8269 = vmatpush.bf16.msra.mxu0 %v8114
    %8270 = vmatpush.bf16.msra.mxu0 %v8112
    %8271 = vmatpush.bf16.msra.mxu0 %v8110
    %8272 = vmatmul.bf16.gmra.mxu0 %v7829
    %v8273 = vpop.f32.mrf.mxu0
    %v8274 = vadd.f32 %v8261, %v8273
    %v8275 = vpop.f32.mrf.mxu0
    %8276 = vdwg.mxu0
    %8277 = vmatpush.bf16.msra.mxu0 %v8140
    %8278 = vmatpush.bf16.msra.mxu0 %v8138
    %8279 = vmatpush.bf16.msra.mxu0 %v8136
    %8280 = vmatpush.bf16.msra.mxu0 %v8134
    %8281 = vmatpush.bf16.msra.mxu0 %v8132
    %8282 = vmatpush.bf16.msra.mxu0 %v8130
    %8283 = vmatpush.bf16.msra.mxu0 %v8128
    %8284 = vmatpush.bf16.msra.mxu0 %v8126
    %8285 = vmatmul.bf16.gmra.mxu0 %v7830
    %v8286 = vpop.f32.mrf.mxu0
    %v8287 = vadd.f32 %v8274, %v8286
    %v8288 = vpop.f32.mrf.mxu0
    %8289 = vdwg.mxu0
    %8290 = vmatpush.bf16.msra.mxu0 %v8156
    %8291 = vmatpush.bf16.msra.mxu0 %v8154
    %8292 = vmatpush.bf16.msra.mxu0 %v8152
    %8293 = vmatpush.bf16.msra.mxu0 %v8150
    %8294 = vmatpush.bf16.msra.mxu0 %v8148
    %8295 = vmatpush.bf16.msra.mxu0 %v8146
    %8296 = vmatpush.bf16.msra.mxu0 %v8144
    %8297 = vmatpush.bf16.msra.mxu0 %v8142
    %8298 = vmatmul.bf16.gmra.mxu0 %v7831
    %v8299 = vpop.f32.mrf.mxu0
    %v8300 = vadd.f32 %v8287, %v8299
    %v8301 = vpop.f32.mrf.mxu0
    %8302 = vdwg.mxu0
    %8303 = vmatpush.bf16.msra.mxu0 %v8093
    %8304 = vmatpush.bf16.msra.mxu0 %v8091
    %8305 = vmatpush.bf16.msra.mxu0 %v8089
    %8306 = vmatpush.bf16.msra.mxu0 %v8087
    %8307 = vmatpush.bf16.msra.mxu0 %v8085
    %8308 = vmatpush.bf16.msra.mxu0 %v8083
    %8309 = vmatpush.bf16.msra.mxu0 %v8081
    %8310 = vmatpush.bf16.msra.mxu0 %v8079
    %8311 = vmatmul.bf16.gmra.mxu0 %v7827
    %v8312 = vpop.f32.mrf.mxu0
    %v8313 = vadd.f32 %v7835, %v8312
    %v8314 = vpop.f32.mrf.mxu0
    %8315 = vdwg.mxu0
    %8316 = vmatpush.bf16.msra.mxu0 %v8109
    %8317 = vmatpush.bf16.msra.mxu0 %v8107
    %8318 = vmatpush.bf16.msra.mxu0 %v8105
    %8319 = vmatpush.bf16.msra.mxu0 %v8103
    %8320 = vmatpush.bf16.msra.mxu0 %v8101
    %8321 = vmatpush.bf16.msra.mxu0 %v8099
    %8322 = vmatpush.bf16.msra.mxu0 %v8097
    %8323 = vmatpush.bf16.msra.mxu0 %v8095
    %8324 = vmatmul.bf16.gmra.mxu0 %v7828
    %v8325 = vpop.f32.mrf.mxu0
    %v8326 = vadd.f32 %v8313, %v8325
    %v8327 = vpop.f32.mrf.mxu0
    %8328 = vdwg.mxu0
    %8329 = vmatpush.bf16.msra.mxu0 %v8125
    %8330 = vmatpush.bf16.msra.mxu0 %v8123
    %8331 = vmatpush.bf16.msra.mxu0 %v8121
    %8332 = vmatpush.bf16.msra.mxu0 %v8119
    %8333 = vmatpush.bf16.msra.mxu0 %v8117
    %8334 = vmatpush.bf16.msra.mxu0 %v8115
    %8335 = vmatpush.bf16.msra.mxu0 %v8113
    %8336 = vmatpush.bf16.msra.mxu0 %v8111
    %8337 = vmatmul.bf16.gmra.mxu0 %v7829
    %v8338 = vpop.f32.mrf.mxu0
    %v8339 = vadd.f32 %v8326, %v8338
    %v8340 = vpop.f32.mrf.mxu0
    %8341 = vdwg.mxu0
    %8342 = vmatpush.bf16.msra.mxu0 %v8141
    %8343 = vmatpush.bf16.msra.mxu0 %v8139
    %8344 = vmatpush.bf16.msra.mxu0 %v8137
    %8345 = vmatpush.bf16.msra.mxu0 %v8135
    %8346 = vmatpush.bf16.msra.mxu0 %v8133
    %8347 = vmatpush.bf16.msra.mxu0 %v8131
    %8348 = vmatpush.bf16.msra.mxu0 %v8129
    %8349 = vmatpush.bf16.msra.mxu0 %v8127
    %8350 = vmatmul.bf16.gmra.mxu0 %v7830
    %v8351 = vpop.f32.mrf.mxu0
    %v8352 = vadd.f32 %v8339, %v8351
    %v8353 = vpop.f32.mrf.mxu0
    %8354 = vdwg.mxu0
    %8355 = vmatpush.bf16.msra.mxu0 %v8157
    %8356 = vmatpush.bf16.msra.mxu0 %v8155
    %8357 = vmatpush.bf16.msra.mxu0 %v8153
    %8358 = vmatpush.bf16.msra.mxu0 %v8151
    %8359 = vmatpush.bf16.msra.mxu0 %v8149
    %8360 = vmatpush.bf16.msra.mxu0 %v8147
    %8361 = vmatpush.bf16.msra.mxu0 %v8145
    %8362 = vmatpush.bf16.msra.mxu0 %v8143
    %8363 = vmatmul.bf16.gmra.mxu0 %v7831
    %v8364 = vpop.f32.mrf.mxu0
    %v8365 = vadd.f32 %v8352, %v8364
    %v8366 = vpop.f32.mrf.mxu0
    %8367 = vdwg.mxu0
    %vm8368 = vcmp.ge.f32.partialorder %v8300, 0.0
    %vm8369 = vcmp.ge.f32.partialorder %v8365, 0.0
    %v8370 = vmul.f32 %v8300, 0.01
    %v8371 = vmul.f32 %v8365, 0.01
    %v8372 = vsel %vm8368, %v8300, %v8370
    %v8373 = vsel %vm8369, %v8365, %v8371
    %v8374 = vadd.f32 %v7740, %v8372
    %v8375 = vadd.f32 %v7741, %v8373
    %v8376 = vld [vmem:[#allocation9 + $0x80] sm:$0xf]
    %v8377 = vld [vmem:[#allocation9 + $0x84] sm:$0xf]
    %v8378 = vld [vmem:[#allocation9 + $0x88] sm:$0xf]
    %v8379 = vld [vmem:[#allocation9 + $0x8c] sm:$0xf]
    %v8380 = vld [vmem:[#allocation9 + $0x90] sm:$0xf]
    %v8381 = vld [vmem:[#allocation9 + $0x94] sm:$0xf]
    %v8382 = vld [vmem:[#allocation9 + $0x98] sm:$0xf]
    %v8383 = vld [vmem:[#allocation9 + $0x9c] sm:$0xf]
    %v8384 = vld [vmem:[#allocation9 + $0xa0] sm:$0xf]
    %v8385 = vld [vmem:[#allocation9 + $0xa4] sm:$0xf]
    %v8386 = vld [vmem:[#allocation9 + $0xa8] sm:$0xf]
    %v8387 = vld [vmem:[#allocation9 + $0xac] sm:$0xf]
    %v8388 = vld [vmem:[#allocation9 + $0xb0] sm:$0xf]
    %v8389 = vld [vmem:[#allocation9 + $0xb4] sm:$0xf]
    %v8390 = vld [vmem:[#allocation9 + $0xb8] sm:$0xf]
    %v8391 = vld [vmem:[#allocation9 + $0xbc] sm:$0xf]
    %v8392 = vld [vmem:[#allocation9 + $0xc0] sm:$0xf]
    %v8393 = vld [vmem:[#allocation9 + $0xc4] sm:$0xf]
    %v8394 = vld [vmem:[#allocation9 + $0xc8] sm:$0xf]
    %v8395 = vld [vmem:[#allocation9 + $0xcc] sm:$0xf]
    %v8396 = vld [vmem:[#allocation9 + $0xd0] sm:$0xf]
    %v8397 = vld [vmem:[#allocation9 + $0xd4] sm:$0xf]
    %v8398 = vld [vmem:[#allocation9 + $0xd8] sm:$0xf]
    %v8399 = vld [vmem:[#allocation9 + $0xdc] sm:$0xf]
    %v8400 = vld [vmem:[#allocation9 + $0xe0] sm:$0xf]
    %v8401 = vld [vmem:[#allocation9 + $0xe4] sm:$0xf]
    %v8402 = vld [vmem:[#allocation9 + $0xe8] sm:$0xf]
    %v8403 = vld [vmem:[#allocation9 + $0xec] sm:$0xf]
    %v8404 = vld [vmem:[#allocation9 + $0xf0] sm:$0xf]
    %v8405 = vld [vmem:[#allocation9 + $0xf4] sm:$0xf]
    %v8406 = vld [vmem:[#allocation9 + $0xf8] sm:$0xf]
    %v8407 = vld [vmem:[#allocation9 + $0xfc] sm:$0xf]
    %v8408 = vpack.c.bf16 %v8374, %v8374
    %v8409 = vpack.c.bf16 %v8375, %v8375
    %v8410 = vld [vmem:[#allocation7 + $0x2] sm:$0x1]
    %v8412 = vperm.slane %v8410, 0
    %v8446 = vunpack.c.l.b16 %v8376
    %v8447 = vunpack.c.l.b16 %v8377
    %v8448 = vunpack.c.l.b16 %v8378
    %v8449 = vunpack.c.l.b16 %v8379
    %v8450 = vunpack.c.l.b16 %v8380
    %v8451 = vunpack.c.l.b16 %v8381
    %v8452 = vunpack.c.l.b16 %v8382
    %v8453 = vunpack.c.l.b16 %v8383
    %v8454 = vunpack.c.l.b16 %v8384
    %v8455 = vunpack.c.l.b16 %v8385
    %v8456 = vunpack.c.l.b16 %v8386
    %v8457 = vunpack.c.l.b16 %v8387
    %v8458 = vunpack.c.l.b16 %v8388
    %v8459 = vunpack.c.l.b16 %v8389
    %v8460 = vunpack.c.l.b16 %v8390
    %v8461 = vunpack.c.l.b16 %v8391
    %v8462 = vunpack.c.l.b16 %v8392
    %v8463 = vunpack.c.l.b16 %v8393
    %v8464 = vunpack.c.l.b16 %v8394
    %v8465 = vunpack.c.l.b16 %v8395
    %v8466 = vunpack.c.l.b16 %v8396
    %v8467 = vunpack.c.l.b16 %v8397
    %v8468 = vunpack.c.l.b16 %v8398
    %v8469 = vunpack.c.l.b16 %v8399
    %v8470 = vunpack.c.l.b16 %v8400
    %v8471 = vunpack.c.l.b16 %v8401
    %v8472 = vunpack.c.l.b16 %v8402
    %v8473 = vunpack.c.l.b16 %v8403
    %v8474 = vunpack.c.l.b16 %v8404
    %v8475 = vunpack.c.l.b16 %v8405
    %v8476 = vunpack.c.l.b16 %v8406
    %v8477 = vunpack.c.l.b16 %v8407
    %v8478 = vpack.c.b16 %v8447, %v8446
    %v8479 = vpack.c.b16 %v8449, %v8448
    %v8480 = vpack.c.b16 %v8451, %v8450
    %v8481 = vpack.c.b16 %v8453, %v8452
    %v8482 = vpack.c.b16 %v8455, %v8454
    %v8483 = vpack.c.b16 %v8457, %v8456
    %v8484 = vpack.c.b16 %v8459, %v8458
    %v8485 = vpack.c.b16 %v8461, %v8460
    %v8486 = vpack.c.b16 %v8463, %v8462
    %v8487 = vpack.c.b16 %v8465, %v8464
    %v8488 = vpack.c.b16 %v8467, %v8466
    %v8489 = vpack.c.b16 %v8469, %v8468
    %v8490 = vpack.c.b16 %v8471, %v8470
    %v8491 = vpack.c.b16 %v8473, %v8472
    %v8492 = vpack.c.b16 %v8475, %v8474
    %v8493 = vpack.c.b16 %v8477, %v8476
    %8510 = vmatpush.bf16.msra.mxu0 %v8485
    %8511 = vmatpush.bf16.msra.mxu0 %v8484
    %8512 = vmatpush.bf16.msra.mxu0 %v8483
    %8513 = vmatpush.bf16.msra.mxu0 %v8482
    %8514 = vmatpush.bf16.msra.mxu0 %v8481
    %8515 = vmatpush.bf16.msra.mxu0 %v8480
    %8516 = vmatpush.bf16.msra.mxu0 %v8479
    %8517 = vmatpush.bf16.msra.mxu0 %v8478
    %8518 = vmatmul.bf16.gmra.mxu0 %v8408
    %v8519 = vpop.f32.mrf.mxu0
    %v8520 = vadd.f32 %v8412, %v8519
    %v8521 = vpop.f32.mrf.mxu0
    %8522 = vdwg.mxu0
    %8523 = vmatpush.bf16.msra.mxu0 %v8493
    %8524 = vmatpush.bf16.msra.mxu0 %v8492
    %8525 = vmatpush.bf16.msra.mxu0 %v8491
    %8526 = vmatpush.bf16.msra.mxu0 %v8490
    %8527 = vmatpush.bf16.msra.mxu0 %v8489
    %8528 = vmatpush.bf16.msra.mxu0 %v8488
    %8529 = vmatpush.bf16.msra.mxu0 %v8487
    %8530 = vmatpush.bf16.msra.mxu0 %v8486
    %8531 = vmatmul.bf16.gmra.mxu0 %v8409
    %v8532 = vpop.f32.mrf.mxu0
    %v8533 = vadd.f32 %v8520, %v8532
    %v8534 = vpop.f32.mrf.mxu0
    %8535 = vdwg.mxu0
    %vm8536 = vcmp.ge.f32.partialorder %v8533, 0.0
    %v8537 = vmul.f32 %v8533, 0.01
    %v8538 = vsel %vm8536, %v8533, %v8537
    %v8539 = vld [vmem:[#allocation9 + $0x100] sm:$0xf]
    %v8540 = vld [vmem:[#allocation9 + $0x104] sm:$0xf]
    %v8541 = vld [vmem:[#allocation9 + $0x108] sm:$0xf]
    %v8542 = vld [vmem:[#allocation9 + $0x10c] sm:$0xf]
    %v8543 = vld [vmem:[#allocation9 + $0x110] sm:$0xf]
    %v8544 = vld [vmem:[#allocation9 + $0x114] sm:$0xf]
    %v8545 = vld [vmem:[#allocation9 + $0x118] sm:$0xf]
    %v8546 = vld [vmem:[#allocation9 + $0x11c] sm:$0xf]
    %v8547 = vld [vmem:[#allocation9 + $0x120] sm:$0xf]
    %v8548 = vld [vmem:[#allocation9 + $0x124] sm:$0xf]
    %v8549 = vld [vmem:[#allocation9 + $0x128] sm:$0xf]
    %v8550 = vld [vmem:[#allocation9 + $0x12c] sm:$0xf]
    %v8551 = vld [vmem:[#allocation9 + $0x130] sm:$0xf]
    %v8552 = vld [vmem:[#allocation9 + $0x134] sm:$0xf]
    %v8553 = vld [vmem:[#allocation9 + $0x138] sm:$0xf]
    %v8554 = vld [vmem:[#allocation9 + $0x13c] sm:$0xf]
    %v8555 = vpack.c.bf16 %v8538, %v8538
    %v8556 = vld [vmem:[#allocation7 + $0x3] sm:$0x1]
    %v8558 = vperm.slane %v8556, 0
    %v8576 = vunpack.c.l.b16 %v8539
    %v8577 = vunpack.c.l.b16 %v8540
    %v8578 = vunpack.c.l.b16 %v8541
    %v8579 = vunpack.c.l.b16 %v8542
    %v8580 = vunpack.c.l.b16 %v8543
    %v8581 = vunpack.c.l.b16 %v8544
    %v8582 = vunpack.c.l.b16 %v8545
    %v8583 = vunpack.c.l.b16 %v8546
    %v8584 = vunpack.c.l.b16 %v8547
    %v8585 = vunpack.c.l.b16 %v8548
    %v8586 = vunpack.c.l.b16 %v8549
    %v8587 = vunpack.c.l.b16 %v8550
    %v8588 = vunpack.c.l.b16 %v8551
    %v8589 = vunpack.c.l.b16 %v8552
    %v8590 = vunpack.c.l.b16 %v8553
    %v8591 = vunpack.c.l.b16 %v8554
    %v8592 = vpack.c.b16 %v8577, %v8576
    %v8593 = vpack.c.b16 %v8579, %v8578
    %v8594 = vpack.c.b16 %v8581, %v8580
    %v8595 = vpack.c.b16 %v8583, %v8582
    %v8596 = vpack.c.b16 %v8585, %v8584
    %v8597 = vpack.c.b16 %v8587, %v8586
    %v8598 = vpack.c.b16 %v8589, %v8588
    %v8599 = vpack.c.b16 %v8591, %v8590
    %8608 = vmatpush.bf16.msra.mxu0 %v8599
    %8609 = vmatpush.bf16.msra.mxu0 %v8598
    %8610 = vmatpush.bf16.msra.mxu0 %v8597
    %8611 = vmatpush.bf16.msra.mxu0 %v8596
    %8612 = vmatpush.bf16.msra.mxu0 %v8595
    %8613 = vmatpush.bf16.msra.mxu0 %v8594
    %8614 = vmatpush.bf16.msra.mxu0 %v8593
    %8615 = vmatpush.bf16.msra.mxu0 %v8592
    %8616 = vmatmul.bf16.gmra.mxu0 %v8555
    %v8617 = vpop.f32.mrf.mxu0
    %v8618 = vadd.f32 %v8558, %v8617
    %v8619 = vpop.f32.mrf.mxu0
    %8620 = vdwg.mxu0
    %vm8621 = vcmp.ge.f32.partialorder %v8618, 0.0
    %v8622 = vmul.f32 %v8618, 0.01
    %v8623 = vsel %vm8621, %v8618, %v8622
    %v8624 = vadd.f32 %v8623, 2048.0
    %8625 = vst [vmem:[%s9] sm:$0xff] %v8624
    // Predicated region
    $region54: #{forward.1} parent=1 // pred_check
      _
    $region55: #{forward.1} parent=1 // pred_check_branch
      %8627 = sbr.rel (0) target = $region57
    $region56: #{forward.1} parent=1 // pred_region
      _
    $region57: #{forward.1} parent=1 // pred_fallthru
      _
    // Predicated region
    $region58: #{forward.1} parent=1 // pred_check
      _
    $region59: #{forward.1} parent=1 // pred_check_branch
      %8629 = sbr.rel (0) target = $region61
    $region60: #{forward.1} parent=1 // pred_region
      _
    $region61: #{forward.1} parent=1 // pred_fallthru
      _
    %8630 = vsyncpa [#allocation8], 1
    %8631 = vsyncpa [#allocation10], 1
    %8632 = vsyncpa [#allocation13], 1
  %8633 = vsyncmov [#allocation6]
  %s8634 = vpop.sfrf %8633
  %p8635 = scmp.eq.s32.totalorder %s8634, 0
  %p8636 = pneg %p8635
  %8638 = shalt.err (%p8636)
  %s8639 = scalar_lea.sflag [#allocation6], 1
  %8640 = vsyncmov %s8639
  %s8641 = vpop.sfrf %8640
  %p8642 = scmp.eq.s32.totalorder %s8641, 0
  %p8643 = pneg %p8642
  %8645 = shalt.err (%p8643)
  %s8646 = scalar_lea.sflag [#allocation6], 2
  %8647 = vsyncmov %s8646
  %s8648 = vpop.sfrf %8647
  %p8649 = scmp.eq.s32.totalorder %s8648, 0
  %p8650 = pneg %p8649
  %8652 = shalt.err (%p8650)
  %s8653 = scalar_lea.sflag [#allocation6], 3
  %8654 = vsyncmov %s8653
  %s8655 = vpop.sfrf %8654
  %p8656 = scmp.eq.s32.totalorder %s8655, 0
  %p8657 = pneg %p8656
  %8659 = shalt.err (%p8657)

</llo_original>
